<compile_context>
chip_gen: v7x
topology: tpu7x:2x2x1
jax: 0.10.0
libtpu: 0.0.40
codegen_flags: <defaults>
</compile_context>

<pallas_src>
import math

import jax
import jax.numpy as jnp
from jax import lax
from jax.experimental import pallas as pl
from jax.experimental.pallas import tpu as pltpu


# ----------------------------- fused Pallas kernel ---------------------------
def _fused_forward_kernel(x_ref, c1w_ref, c1b_ref, c2w_ref, c2b_ref,
                          w1_ref, b1_ref, w2_ref, b2_ref, w3_ref, b3_ref,
                          out_ref, p1buf_ref, fbuf_ref):
    f32 = jnp.float32
    bt = x_ref.shape[0]
    x = x_ref[...]                                          # (bt, 28, 28)

    def wmax(a, n):
        # 2x2 window max at every position of the n x n top-left corner.
        return jnp.maximum(
            jnp.maximum(a[:, :n, :n], a[:, :n, 1:n + 1]),
            jnp.maximum(a[:, 1:n + 1, :n], a[:, 1:n + 1, 1:n + 1]))

    # ---------------- conv1 (1 -> 3, k=4) + ReLU, tap-major -------------------
    acc1 = [None, None, None]
    for kh in range(4):
        for kw in range(4):
            sl = x[:, kh:kh + 25, kw:kw + 25]               # (bt, 25, 25)
            for oc in range(3):
                t = c1w_ref[oc * 16 + kh * 4 + kw] * sl
                acc1[oc] = t if acc1[oc] is None else acc1[oc] + t
    act1 = [jnp.maximum(acc1[oc] + c1b_ref[oc], 0.0) for oc in range(3)]

    # ---------------- pool1: 2x2/2 max-pool, 25x25 -> 12x12 -------------------
    # even-column picker (24, 12): ec1[2j, j] = 1, built in-kernel from iota
    rr = lax.broadcasted_iota(jnp.int32, (24, 12), 0)
    cc = lax.broadcasted_iota(jnp.int32, (24, 12), 1)
    ec1 = (rr == 2 * cc).astype(f32)

    for c in range(3):
        wm = wmax(act1[c], 24)                              # (bt, 24, 24)
        cols = jnp.dot(wm.reshape(bt * 24, 24), ec1,
                       preferred_element_type=f32)          # (bt*24, 12)
        cols = cols.reshape(bt, 24, 12)
        for i in range(12):                                 # even-row selection
            p1buf_ref[c, :, i:i + 1, :] = cols[:, 2 * i:2 * i + 1, :]
    p1 = [p1buf_ref[c, :, :, :] for c in range(3)]          # 3 x (bt, 12, 12)

    # ---------------- conv2 (3 -> 5, k=3) + ReLU, tap-major -------------------
    acc2 = [None] * 5
    for ic in range(3):
        for kh in range(3):
            for kw in range(3):
                sl = p1[ic][:, kh:kh + 10, kw:kw + 10]      # (bt, 10, 10)
                for oc in range(5):
                    t = c2w_ref[oc * 27 + ic * 9 + kh * 3 + kw] * sl
                    acc2[oc] = t if acc2[oc] is None else acc2[oc] + t
    act2 = [jnp.maximum(acc2[oc] + c2b_ref[oc], 0.0) for oc in range(5)]

    # ------- pool2 + flatten: assemble one lane-dense (bt, 256) activation ----
    # flat[:, (c*5+h)*9 + W] = wmax(act2[c])[:, 2h, W]; the even-column (W=2w)
    # selection of the max-pool is absorbed into zeroed fc1 weight rows.
    fbuf_ref[...] = jnp.zeros(fbuf_ref.shape, f32)
    for c in range(5):
        wm2 = wmax(act2[c], 9)                              # (bt, 9, 9)
        for h in range(5):
            base = (c * 5 + h) * 9
            fbuf_ref[:, :, base:base + 9] = wm2[:, 2 * h:2 * h + 1, :]
    flat = fbuf_ref[:, 0, :]                                # (bt, 256)

    # ---------------- fc1 / fc2 / fc3: three plain 2D MXU matmuls -------------
    h1 = jnp.maximum(
        jnp.dot(flat, w1_ref[...], preferred_element_type=f32) + b1_ref[...],
        0.0)                                                # (bt, 256)
    h2 = jnp.maximum(
        jnp.dot(h1, w2_ref[...], preferred_element_type=f32) + b2_ref[...],
        0.0)                                                # (bt, 128)
    logits = (jnp.dot(h2, w3_ref[...], preferred_element_type=f32)
              + b3_ref[...])                                # (bt, 128)

    out_ref[:, 0, :] = h2                                   # intermediate (padded)
    out_ref[:, 1, :] = logits                               # logits (padded)


# ------------------------------ wrapper ---------------------------------------
def _pick_bt(B):
    """Largest batch tile (<= 8) dividing B that still gives >= 2 grid programs
    when B >= 2 (v7x has two TensorCores to shard the 'parallel' axis over)."""
    best = 1
    for cand in range(1, min(8, B) + 1):
        if B % cand == 0 and (B == 1 or B // cand >= 2):
            best = cand
    return best


def fmnist_cnn_forward(params, x):
    """x: (B, 1, 28, 28) f32 -> (intermediate (B, 100), logits (B, n_classes))."""
    B = x.shape[0]
    x3 = x.reshape(B, 28, 28)

    c1w, c1b = params["conv1"]
    c2w, c2b = params["conv2"]
    w1, b1, w2, b2, w3, b3 = params["fc"]
    n_hidden1 = w1.shape[0]          # 200
    n_hidden2 = w2.shape[0]          # 100
    n_classes = w3.shape[0]          # assumed <= 128

    c1w_f = c1w.reshape(-1)          # (48,)  order [oc, kh, kw]
    c2w_f = c2w.reshape(-1)          # (135,) order [oc, ic, kh, kw]

    # fc1 weights: absorb pool2's even-column selection and the NCHW flatten.
    # Kernel lane layout: flat[:, (c*5+h)*9 + W] = wm2_c[:, 2h, W], W = 0..8;
    # only even W carries a pooled value -> odd-W rows get zero weight.
    w1t = w1.T.reshape(25, 5, n_hidden1)                      # [(c*5+h), w, n]
    w1_rows = jnp.zeros((25, 9, n_hidden1), jnp.float32).at[:, 0::2, :].set(w1t)
    w1p = jnp.pad(w1_rows.reshape(225, n_hidden1),
                  ((0, 256 - 225), (0, 256 - n_hidden1)))      # (256, 256)
    w2p = jnp.pad(w2.T, ((0, 256 - n_hidden1), (0, 128 - n_hidden2)))  # (256,128)
    w3p = jnp.pad(w3.T, ((0, 128 - n_hidden2), (0, 128 - n_classes)))  # (128,128)
    b1p = jnp.pad(b1, (0, 256 - n_hidden1)).reshape(1, 256)
    b2p = jnp.pad(b2, (0, 128 - n_hidden2)).reshape(1, 128)
    b3p = jnp.pad(b3, (0, 128 - n_classes)).reshape(1, 128)

    bt = _pick_bt(B)
    grid = (B // bt,)

    def smem1(n):
        return pl.BlockSpec((n,), lambda i: (0,),
                            memory_space=pltpu.MemorySpace.SMEM)

    def full2(shape):
        return pl.BlockSpec(shape, lambda i: (0, 0))

    in_specs = [
        pl.BlockSpec((bt, 28, 28), lambda i: (i, 0, 0)),
        smem1(48), smem1(3), smem1(135), smem1(5),
        full2((256, 256)), full2((1, 256)),
        full2((256, 128)), full2((1, 128)),
        full2((128, 128)), full2((1, 128)),
    ]
    out_specs = pl.BlockSpec((bt, 2, 128), lambda i: (i, 0, 0))

    out = pl.pallas_call(
        _fused_forward_kernel,
        out_shape=jax.ShapeDtypeStruct((B, 2, 128), jnp.float32),
        grid=grid,
        in_specs=in_specs,
        out_specs=out_specs,
        scratch_shapes=[
            pltpu.VMEM((3, bt, 12, 12), jnp.float32),   # pool1 output per channel
            pltpu.VMEM((bt, 1, 256), jnp.float32),      # fc1 input assembly
        ],
        compiler_params=pltpu.CompilerParams(
            dimension_semantics=("parallel",)),
    )(x3, c1w_f, c1b, c2w_f, c2b, w1p, b1p, w2p, b2p, w3p, b3p)

    intermediate = out[:, 0, :n_hidden2]
    logits = out[:, 1, :n_classes]
    return intermediate, logits


# ------------------------------ params ----------------------------------------
def init_params(key, n_classes):
    """Deterministic init mirroring torch defaults (uniform +-1/sqrt(fan_in))."""
    def uniform(k, shape, fan_in):
        bound = 1.0 / math.sqrt(fan_in)
        return jax.random.uniform(k, shape, jnp.float32, -bound, bound)

    ks = jax.random.split(key, 10)
    conv1_w = uniform(ks[0], (3, 1, 4, 4), 1 * 4 * 4)
    conv1_b = uniform(ks[1], (3,), 1 * 4 * 4)
    conv2_w = uniform(ks[2], (5, 3, 3, 3), 3 * 3 * 3)
    conv2_b = uniform(ks[3], (5,), 3 * 3 * 3)
    fc1_w = uniform(ks[4], (200, 125), 125)
    fc1_b = uniform(ks[5], (200,), 125)
    fc2_w = uniform(ks[6], (100, 200), 200)
    fc2_b = uniform(ks[7], (100,), 200)
    fc3_w = uniform(ks[8], (n_classes, 100), 100)
    fc3_b = uniform(ks[9], (n_classes,), 100)
    return dict(conv1=(conv1_w, conv1_b), conv2=(conv2_w, conv2_b),
                fc=(fc1_w, fc1_b, fc2_w, fc2_b, fc3_w, fc3_b))


# ------------------------------ reference (pure JAX) ---------------------------
def _reference_forward(params, x):
    def conv(x, w, b):
        y = lax.conv_general_dilated(x, w, (1, 1), "VALID",
                                     dimension_numbers=("NCHW", "OIHW", "NCHW"))
        return jnp.maximum(y + b.reshape(1, -1, 1, 1), 0.0)

    def pool(x):
        return lax.reduce_window(x, -jnp.inf, lax.max,
                                 (1, 1, 2, 2), (1, 1, 2, 2), "VALID")

    x = pool(conv(x, *params["conv1"]))
    x = pool(conv(x, *params["conv2"]))
    x = x.reshape(x.shape[0], -1)
    w1, b1, w2, b2, w3, b3 = params["fc"]
    h1 = jnp.maximum(x @ w1.T + b1, 0.0)
    h2 = jnp.maximum(h1 @ w2.T + b2, 0.0)
    return h2, h2 @ w3.T + b3


# ------------------------------ main -------------------------------------------
if __name__ == "__main__":
    n_classes = 10
    batch = 2
    key = jax.random.PRNGKey(0)
    k_params, k_x = jax.random.split(key)

    params = init_params(k_params, n_classes)
    x = jax.random.normal(k_x, (batch, 1, 28, 28), dtype=jnp.float32)

    intermediate, logits = jax.jit(fmnist_cnn_forward)(params, x)
    jax.block_until_ready((intermediate, logits))

    ref_inter, ref_logits = _reference_forward(params, x)
    assert intermediate.shape == (batch, 100)
    assert logits.shape == (batch, n_classes)
    assert jnp.allclose(intermediate, ref_inter, atol=5e-4, rtol=5e-4)
    assert jnp.allclose(logits, ref_logits, atol=5e-4, rtol=5e-4)

    print("KERNEL_OK")
</pallas_src>

<mosaic_0001>
module attributes {stable_mosaic.version = 11 : i64} {
  func.func @_fused_forward_kernel(%arg0: i32, %arg1: memref<1x28x28xf32, #tpu.memory_space<vmem>>, %arg2: memref<48xf32, #tpu.memory_space<smem>>, %arg3: memref<3xf32, #tpu.memory_space<smem>>, %arg4: memref<135xf32, #tpu.memory_space<smem>>, %arg5: memref<5xf32, #tpu.memory_space<smem>>, %arg6: memref<256x256xf32, #tpu.memory_space<vmem>>, %arg7: memref<1x256xf32, #tpu.memory_space<vmem>>, %arg8: memref<256x128xf32, #tpu.memory_space<vmem>>, %arg9: memref<1x128xf32, #tpu.memory_space<vmem>>, %arg10: memref<128x128xf32, #tpu.memory_space<vmem>>, %arg11: memref<1x128xf32, #tpu.memory_space<vmem>>, %arg12: memref<1x2x128xf32, #tpu.memory_space<vmem>>, %arg13: memref<3x1x12x12xf32, #tpu.memory_space<vmem>>, %arg14: memref<1x1x256xf32, #tpu.memory_space<vmem>>) attributes {dimension_semantics = [#tpu.dimension_semantics<parallel>], iteration_bounds = array<i64: 2>, scalar_prefetch = 0 : i64, scratch_operands = 2 : i64, tpu.core_type = #tpu.core_type<tc>, window_params = [{transform_indices = @transform_0, window_bounds = array<i64: 1, 28, 28>}, {transform_indices = @transform_1, window_bounds = array<i64: 48>}, {transform_indices = @transform_2, window_bounds = array<i64: 3>}, {transform_indices = @transform_3, window_bounds = array<i64: 135>}, {transform_indices = @transform_4, window_bounds = array<i64: 5>}, {pipeline_mode = #tpu.pipeline_mode<synchronous>, transform_indices = @transform_5, window_bounds = array<i64: 256, 256>}, {pipeline_mode = #tpu.pipeline_mode<synchronous>, transform_indices = @transform_6, window_bounds = array<i64: 1, 256>}, {pipeline_mode = #tpu.pipeline_mode<synchronous>, transform_indices = @transform_7, window_bounds = array<i64: 256, 128>}, {pipeline_mode = #tpu.pipeline_mode<synchronous>, transform_indices = @transform_8, window_bounds = array<i64: 1, 128>}, {pipeline_mode = #tpu.pipeline_mode<synchronous>, transform_indices = @transform_9, window_bounds = array<i64: 128, 128>}, {pipeline_mode = #tpu.pipeline_mode<synchronous>, transform_indices = @transform_10, window_bounds = array<i64: 1, 128>}, {transform_indices = @transform_11, window_bounds = array<i64: 1, 2, 128>}]} {
    %c0 = arith.constant 0 : index
    %c0_0 = arith.constant 0 : index
    %c0_1 = arith.constant 0 : index
    %0 = vector.load %arg1[%c0, %c0_0, %c0_1] : memref<1x28x28xf32, #tpu.memory_space<vmem>>, vector<1x28x28xf32>
    %1 = vector.extract_strided_slice %0 {offsets = [0, 0, 0], sizes = [1, 25, 25], strides = [1, 1, 1]} : vector<1x28x28xf32> to vector<1x25x25xf32>
    %c0_2 = arith.constant 0 : index
    %2 = memref.load %arg2[%c0_2] : memref<48xf32, #tpu.memory_space<smem>>
    %3 = vector.broadcast %2 : f32 to vector<1x25x25xf32>
    %4 = arith.mulf %3, %1 : vector<1x25x25xf32>
    %c16 = arith.constant 16 : index
    %5 = memref.load %arg2[%c16] : memref<48xf32, #tpu.memory_space<smem>>
    %6 = vector.broadcast %5 : f32 to vector<1x25x25xf32>
    %7 = arith.mulf %6, %1 : vector<1x25x25xf32>
    %c32 = arith.constant 32 : index
    %8 = memref.load %arg2[%c32] : memref<48xf32, #tpu.memory_space<smem>>
    %9 = vector.broadcast %8 : f32 to vector<1x25x25xf32>
    %10 = arith.mulf %9, %1 : vector<1x25x25xf32>
    %11 = vector.extract_strided_slice %0 {offsets = [0, 0, 1], sizes = [1, 25, 25], strides = [1, 1, 1]} : vector<1x28x28xf32> to vector<1x25x25xf32>
    %c1 = arith.constant 1 : index
    %12 = memref.load %arg2[%c1] : memref<48xf32, #tpu.memory_space<smem>>
    %13 = vector.broadcast %12 : f32 to vector<1x25x25xf32>
    %14 = arith.mulf %13, %11 : vector<1x25x25xf32>
    %15 = arith.addf %4, %14 : vector<1x25x25xf32>
    %c17 = arith.constant 17 : index
    %16 = memref.load %arg2[%c17] : memref<48xf32, #tpu.memory_space<smem>>
    %17 = vector.broadcast %16 : f32 to vector<1x25x25xf32>
    %18 = arith.mulf %17, %11 : vector<1x25x25xf32>
    %19 = arith.addf %7, %18 : vector<1x25x25xf32>
    %c33 = arith.constant 33 : index
    %20 = memref.load %arg2[%c33] : memref<48xf32, #tpu.memory_space<smem>>
    %21 = vector.broadcast %20 : f32 to vector<1x25x25xf32>
    %22 = arith.mulf %21, %11 : vector<1x25x25xf32>
    %23 = arith.addf %10, %22 : vector<1x25x25xf32>
    %24 = vector.extract_strided_slice %0 {offsets = [0, 0, 2], sizes = [1, 25, 25], strides = [1, 1, 1]} : vector<1x28x28xf32> to vector<1x25x25xf32>
    %c2 = arith.constant 2 : index
    %25 = memref.load %arg2[%c2] : memref<48xf32, #tpu.memory_space<smem>>
    %26 = vector.broadcast %25 : f32 to vector<1x25x25xf32>
    %27 = arith.mulf %26, %24 : vector<1x25x25xf32>
    %28 = arith.addf %15, %27 : vector<1x25x25xf32>
    %c18 = arith.constant 18 : index
    %29 = memref.load %arg2[%c18] : memref<48xf32, #tpu.memory_space<smem>>
    %30 = vector.broadcast %29 : f32 to vector<1x25x25xf32>
    %31 = arith.mulf %30, %24 : vector<1x25x25xf32>
    %32 = arith.addf %19, %31 : vector<1x25x25xf32>
    %c34 = arith.constant 34 : index
    %33 = memref.load %arg2[%c34] : memref<48xf32, #tpu.memory_space<smem>>
    %34 = vector.broadcast %33 : f32 to vector<1x25x25xf32>
    %35 = arith.mulf %34, %24 : vector<1x25x25xf32>
    %36 = arith.addf %23, %35 : vector<1x25x25xf32>
    %37 = vector.extract_strided_slice %0 {offsets = [0, 0, 3], sizes = [1, 25, 25], strides = [1, 1, 1]} : vector<1x28x28xf32> to vector<1x25x25xf32>
    %c3 = arith.constant 3 : index
    %38 = memref.load %arg2[%c3] : memref<48xf32, #tpu.memory_space<smem>>
    %39 = vector.broadcast %38 : f32 to vector<1x25x25xf32>
    %40 = arith.mulf %39, %37 : vector<1x25x25xf32>
    %41 = arith.addf %28, %40 : vector<1x25x25xf32>
    %c19 = arith.constant 19 : index
    %42 = memref.load %arg2[%c19] : memref<48xf32, #tpu.memory_space<smem>>
    %43 = vector.broadcast %42 : f32 to vector<1x25x25xf32>
    %44 = arith.mulf %43, %37 : vector<1x25x25xf32>
    %45 = arith.addf %32, %44 : vector<1x25x25xf32>
    %c35 = arith.constant 35 : index
    %46 = memref.load %arg2[%c35] : memref<48xf32, #tpu.memory_space<smem>>
    %47 = vector.broadcast %46 : f32 to vector<1x25x25xf32>
    %48 = arith.mulf %47, %37 : vector<1x25x25xf32>
    %49 = arith.addf %36, %48 : vector<1x25x25xf32>
    %50 = vector.extract_strided_slice %0 {offsets = [0, 1, 0], sizes = [1, 25, 25], strides = [1, 1, 1]} : vector<1x28x28xf32> to vector<1x25x25xf32>
    %c4 = arith.constant 4 : index
    %51 = memref.load %arg2[%c4] : memref<48xf32, #tpu.memory_space<smem>>
    %52 = vector.broadcast %51 : f32 to vector<1x25x25xf32>
    %53 = arith.mulf %52, %50 : vector<1x25x25xf32>
    %54 = arith.addf %41, %53 : vector<1x25x25xf32>
    %c20 = arith.constant 20 : index
    %55 = memref.load %arg2[%c20] : memref<48xf32, #tpu.memory_space<smem>>
    %56 = vector.broadcast %55 : f32 to vector<1x25x25xf32>
    %57 = arith.mulf %56, %50 : vector<1x25x25xf32>
    %58 = arith.addf %45, %57 : vector<1x25x25xf32>
    %c36 = arith.constant 36 : index
    %59 = memref.load %arg2[%c36] : memref<48xf32, #tpu.memory_space<smem>>
    %60 = vector.broadcast %59 : f32 to vector<1x25x25xf32>
    %61 = arith.mulf %60, %50 : vector<1x25x25xf32>
    %62 = arith.addf %49, %61 : vector<1x25x25xf32>
    %63 = vector.extract_strided_slice %0 {offsets = [0, 1, 1], sizes = [1, 25, 25], strides = [1, 1, 1]} : vector<1x28x28xf32> to vector<1x25x25xf32>
    %c5 = arith.constant 5 : index
    %64 = memref.load %arg2[%c5] : memref<48xf32, #tpu.memory_space<smem>>
    %65 = vector.broadcast %64 : f32 to vector<1x25x25xf32>
    %66 = arith.mulf %65, %63 : vector<1x25x25xf32>
    %67 = arith.addf %54, %66 : vector<1x25x25xf32>
    %c21 = arith.constant 21 : index
    %68 = memref.load %arg2[%c21] : memref<48xf32, #tpu.memory_space<smem>>
    %69 = vector.broadcast %68 : f32 to vector<1x25x25xf32>
    %70 = arith.mulf %69, %63 : vector<1x25x25xf32>
    %71 = arith.addf %58, %70 : vector<1x25x25xf32>
    %c37 = arith.constant 37 : index
    %72 = memref.load %arg2[%c37] : memref<48xf32, #tpu.memory_space<smem>>
    %73 = vector.broadcast %72 : f32 to vector<1x25x25xf32>
    %74 = arith.mulf %73, %63 : vector<1x25x25xf32>
    %75 = arith.addf %62, %74 : vector<1x25x25xf32>
    %76 = vector.extract_strided_slice %0 {offsets = [0, 1, 2], sizes = [1, 25, 25], strides = [1, 1, 1]} : vector<1x28x28xf32> to vector<1x25x25xf32>
    %c6 = arith.constant 6 : index
    %77 = memref.load %arg2[%c6] : memref<48xf32, #tpu.memory_space<smem>>
    %78 = vector.broadcast %77 : f32 to vector<1x25x25xf32>
    %79 = arith.mulf %78, %76 : vector<1x25x25xf32>
    %80 = arith.addf %67, %79 : vector<1x25x25xf32>
    %c22 = arith.constant 22 : index
    %81 = memref.load %arg2[%c22] : memref<48xf32, #tpu.memory_space<smem>>
    %82 = vector.broadcast %81 : f32 to vector<1x25x25xf32>
    %83 = arith.mulf %82, %76 : vector<1x25x25xf32>
    %84 = arith.addf %71, %83 : vector<1x25x25xf32>
    %c38 = arith.constant 38 : index
    %85 = memref.load %arg2[%c38] : memref<48xf32, #tpu.memory_space<smem>>
    %86 = vector.broadcast %85 : f32 to vector<1x25x25xf32>
    %87 = arith.mulf %86, %76 : vector<1x25x25xf32>
    %88 = arith.addf %75, %87 : vector<1x25x25xf32>
    %89 = vector.extract_strided_slice %0 {offsets = [0, 1, 3], sizes = [1, 25, 25], strides = [1, 1, 1]} : vector<1x28x28xf32> to vector<1x25x25xf32>
    %c7 = arith.constant 7 : index
    %90 = memref.load %arg2[%c7] : memref<48xf32, #tpu.memory_space<smem>>
    %91 = vector.broadcast %90 : f32 to vector<1x25x25xf32>
    %92 = arith.mulf %91, %89 : vector<1x25x25xf32>
    %93 = arith.addf %80, %92 : vector<1x25x25xf32>
    %c23 = arith.constant 23 : index
    %94 = memref.load %arg2[%c23] : memref<48xf32, #tpu.memory_space<smem>>
    %95 = vector.broadcast %94 : f32 to vector<1x25x25xf32>
    %96 = arith.mulf %95, %89 : vector<1x25x25xf32>
    %97 = arith.addf %84, %96 : vector<1x25x25xf32>
    %c39 = arith.constant 39 : index
    %98 = memref.load %arg2[%c39] : memref<48xf32, #tpu.memory_space<smem>>
    %99 = vector.broadcast %98 : f32 to vector<1x25x25xf32>
    %100 = arith.mulf %99, %89 : vector<1x25x25xf32>
    %101 = arith.addf %88, %100 : vector<1x25x25xf32>
    %102 = vector.extract_strided_slice %0 {offsets = [0, 2, 0], sizes = [1, 25, 25], strides = [1, 1, 1]} : vector<1x28x28xf32> to vector<1x25x25xf32>
    %c8 = arith.constant 8 : index
    %103 = memref.load %arg2[%c8] : memref<48xf32, #tpu.memory_space<smem>>
    %104 = vector.broadcast %103 : f32 to vector<1x25x25xf32>
    %105 = arith.mulf %104, %102 : vector<1x25x25xf32>
    %106 = arith.addf %93, %105 : vector<1x25x25xf32>
    %c24 = arith.constant 24 : index
    %107 = memref.load %arg2[%c24] : memref<48xf32, #tpu.memory_space<smem>>
    %108 = vector.broadcast %107 : f32 to vector<1x25x25xf32>
    %109 = arith.mulf %108, %102 : vector<1x25x25xf32>
    %110 = arith.addf %97, %109 : vector<1x25x25xf32>
    %c40 = arith.constant 40 : index
    %111 = memref.load %arg2[%c40] : memref<48xf32, #tpu.memory_space<smem>>
    %112 = vector.broadcast %111 : f32 to vector<1x25x25xf32>
    %113 = arith.mulf %112, %102 : vector<1x25x25xf32>
    %114 = arith.addf %101, %113 : vector<1x25x25xf32>
    %115 = vector.extract_strided_slice %0 {offsets = [0, 2, 1], sizes = [1, 25, 25], strides = [1, 1, 1]} : vector<1x28x28xf32> to vector<1x25x25xf32>
    %c9 = arith.constant 9 : index
    %116 = memref.load %arg2[%c9] : memref<48xf32, #tpu.memory_space<smem>>
    %117 = vector.broadcast %116 : f32 to vector<1x25x25xf32>
    %118 = arith.mulf %117, %115 : vector<1x25x25xf32>
    %119 = arith.addf %106, %118 : vector<1x25x25xf32>
    %c25 = arith.constant 25 : index
    %120 = memref.load %arg2[%c25] : memref<48xf32, #tpu.memory_space<smem>>
    %121 = vector.broadcast %120 : f32 to vector<1x25x25xf32>
    %122 = arith.mulf %121, %115 : vector<1x25x25xf32>
    %123 = arith.addf %110, %122 : vector<1x25x25xf32>
    %c41 = arith.constant 41 : index
    %124 = memref.load %arg2[%c41] : memref<48xf32, #tpu.memory_space<smem>>
    %125 = vector.broadcast %124 : f32 to vector<1x25x25xf32>
    %126 = arith.mulf %125, %115 : vector<1x25x25xf32>
    %127 = arith.addf %114, %126 : vector<1x25x25xf32>
    %128 = vector.extract_strided_slice %0 {offsets = [0, 2, 2], sizes = [1, 25, 25], strides = [1, 1, 1]} : vector<1x28x28xf32> to vector<1x25x25xf32>
    %c10 = arith.constant 10 : index
    %129 = memref.load %arg2[%c10] : memref<48xf32, #tpu.memory_space<smem>>
    %130 = vector.broadcast %129 : f32 to vector<1x25x25xf32>
    %131 = arith.mulf %130, %128 : vector<1x25x25xf32>
    %132 = arith.addf %119, %131 : vector<1x25x25xf32>
    %c26 = arith.constant 26 : index
    %133 = memref.load %arg2[%c26] : memref<48xf32, #tpu.memory_space<smem>>
    %134 = vector.broadcast %133 : f32 to vector<1x25x25xf32>
    %135 = arith.mulf %134, %128 : vector<1x25x25xf32>
    %136 = arith.addf %123, %135 : vector<1x25x25xf32>
    %c42 = arith.constant 42 : index
    %137 = memref.load %arg2[%c42] : memref<48xf32, #tpu.memory_space<smem>>
    %138 = vector.broadcast %137 : f32 to vector<1x25x25xf32>
    %139 = arith.mulf %138, %128 : vector<1x25x25xf32>
    %140 = arith.addf %127, %139 : vector<1x25x25xf32>
    %141 = vector.extract_strided_slice %0 {offsets = [0, 2, 3], sizes = [1, 25, 25], strides = [1, 1, 1]} : vector<1x28x28xf32> to vector<1x25x25xf32>
    %c11 = arith.constant 11 : index
    %142 = memref.load %arg2[%c11] : memref<48xf32, #tpu.memory_space<smem>>
    %143 = vector.broadcast %142 : f32 to vector<1x25x25xf32>
    %144 = arith.mulf %143, %141 : vector<1x25x25xf32>
    %145 = arith.addf %132, %144 : vector<1x25x25xf32>
    %c27 = arith.constant 27 : index
    %146 = memref.load %arg2[%c27] : memref<48xf32, #tpu.memory_space<smem>>
    %147 = vector.broadcast %146 : f32 to vector<1x25x25xf32>
    %148 = arith.mulf %147, %141 : vector<1x25x25xf32>
    %149 = arith.addf %136, %148 : vector<1x25x25xf32>
    %c43 = arith.constant 43 : index
    %150 = memref.load %arg2[%c43] : memref<48xf32, #tpu.memory_space<smem>>
    %151 = vector.broadcast %150 : f32 to vector<1x25x25xf32>
    %152 = arith.mulf %151, %141 : vector<1x25x25xf32>
    %153 = arith.addf %140, %152 : vector<1x25x25xf32>
    %154 = vector.extract_strided_slice %0 {offsets = [0, 3, 0], sizes = [1, 25, 25], strides = [1, 1, 1]} : vector<1x28x28xf32> to vector<1x25x25xf32>
    %c12 = arith.constant 12 : index
    %155 = memref.load %arg2[%c12] : memref<48xf32, #tpu.memory_space<smem>>
    %156 = vector.broadcast %155 : f32 to vector<1x25x25xf32>
    %157 = arith.mulf %156, %154 : vector<1x25x25xf32>
    %158 = arith.addf %145, %157 : vector<1x25x25xf32>
    %c28 = arith.constant 28 : index
    %159 = memref.load %arg2[%c28] : memref<48xf32, #tpu.memory_space<smem>>
    %160 = vector.broadcast %159 : f32 to vector<1x25x25xf32>
    %161 = arith.mulf %160, %154 : vector<1x25x25xf32>
    %162 = arith.addf %149, %161 : vector<1x25x25xf32>
    %c44 = arith.constant 44 : index
    %163 = memref.load %arg2[%c44] : memref<48xf32, #tpu.memory_space<smem>>
    %164 = vector.broadcast %163 : f32 to vector<1x25x25xf32>
    %165 = arith.mulf %164, %154 : vector<1x25x25xf32>
    %166 = arith.addf %153, %165 : vector<1x25x25xf32>
    %167 = vector.extract_strided_slice %0 {offsets = [0, 3, 1], sizes = [1, 25, 25], strides = [1, 1, 1]} : vector<1x28x28xf32> to vector<1x25x25xf32>
    %c13 = arith.constant 13 : index
    %168 = memref.load %arg2[%c13] : memref<48xf32, #tpu.memory_space<smem>>
    %169 = vector.broadcast %168 : f32 to vector<1x25x25xf32>
    %170 = arith.mulf %169, %167 : vector<1x25x25xf32>
    %171 = arith.addf %158, %170 : vector<1x25x25xf32>
    %c29 = arith.constant 29 : index
    %172 = memref.load %arg2[%c29] : memref<48xf32, #tpu.memory_space<smem>>
    %173 = vector.broadcast %172 : f32 to vector<1x25x25xf32>
    %174 = arith.mulf %173, %167 : vector<1x25x25xf32>
    %175 = arith.addf %162, %174 : vector<1x25x25xf32>
    %c45 = arith.constant 45 : index
    %176 = memref.load %arg2[%c45] : memref<48xf32, #tpu.memory_space<smem>>
    %177 = vector.broadcast %176 : f32 to vector<1x25x25xf32>
    %178 = arith.mulf %177, %167 : vector<1x25x25xf32>
    %179 = arith.addf %166, %178 : vector<1x25x25xf32>
    %180 = vector.extract_strided_slice %0 {offsets = [0, 3, 2], sizes = [1, 25, 25], strides = [1, 1, 1]} : vector<1x28x28xf32> to vector<1x25x25xf32>
    %c14 = arith.constant 14 : index
    %181 = memref.load %arg2[%c14] : memref<48xf32, #tpu.memory_space<smem>>
    %182 = vector.broadcast %181 : f32 to vector<1x25x25xf32>
    %183 = arith.mulf %182, %180 : vector<1x25x25xf32>
    %184 = arith.addf %171, %183 : vector<1x25x25xf32>
    %c30 = arith.constant 30 : index
    %185 = memref.load %arg2[%c30] : memref<48xf32, #tpu.memory_space<smem>>
    %186 = vector.broadcast %185 : f32 to vector<1x25x25xf32>
    %187 = arith.mulf %186, %180 : vector<1x25x25xf32>
    %188 = arith.addf %175, %187 : vector<1x25x25xf32>
    %c46 = arith.constant 46 : index
    %189 = memref.load %arg2[%c46] : memref<48xf32, #tpu.memory_space<smem>>
    %190 = vector.broadcast %189 : f32 to vector<1x25x25xf32>
    %191 = arith.mulf %190, %180 : vector<1x25x25xf32>
    %192 = arith.addf %179, %191 : vector<1x25x25xf32>
    %193 = vector.extract_strided_slice %0 {offsets = [0, 3, 3], sizes = [1, 25, 25], strides = [1, 1, 1]} : vector<1x28x28xf32> to vector<1x25x25xf32>
    %c15 = arith.constant 15 : index
    %194 = memref.load %arg2[%c15] : memref<48xf32, #tpu.memory_space<smem>>
    %195 = vector.broadcast %194 : f32 to vector<1x25x25xf32>
    %196 = arith.mulf %195, %193 : vector<1x25x25xf32>
    %197 = arith.addf %184, %196 : vector<1x25x25xf32>
    %c31 = arith.constant 31 : index
    %198 = memref.load %arg2[%c31] : memref<48xf32, #tpu.memory_space<smem>>
    %199 = vector.broadcast %198 : f32 to vector<1x25x25xf32>
    %200 = arith.mulf %199, %193 : vector<1x25x25xf32>
    %201 = arith.addf %188, %200 : vector<1x25x25xf32>
    %c47 = arith.constant 47 : index
    %202 = memref.load %arg2[%c47] : memref<48xf32, #tpu.memory_space<smem>>
    %203 = vector.broadcast %202 : f32 to vector<1x25x25xf32>
    %204 = arith.mulf %203, %193 : vector<1x25x25xf32>
    %205 = arith.addf %192, %204 : vector<1x25x25xf32>
    %c0_3 = arith.constant 0 : index
    %206 = memref.load %arg3[%c0_3] : memref<3xf32, #tpu.memory_space<smem>>
    %207 = vector.broadcast %206 : f32 to vector<1x25x25xf32>
    %208 = arith.addf %197, %207 : vector<1x25x25xf32>
    %cst = arith.constant 0.000000e+00 : f32
    %209 = vector.broadcast %cst : f32 to vector<1x25x25xf32>
    %210 = arith.maximumf %208, %209 : vector<1x25x25xf32>
    %c1_4 = arith.constant 1 : index
    %211 = memref.load %arg3[%c1_4] : memref<3xf32, #tpu.memory_space<smem>>
    %212 = vector.broadcast %211 : f32 to vector<1x25x25xf32>
    %213 = arith.addf %201, %212 : vector<1x25x25xf32>
    %cst_5 = arith.constant 0.000000e+00 : f32
    %214 = vector.broadcast %cst_5 : f32 to vector<1x25x25xf32>
    %215 = arith.maximumf %213, %214 : vector<1x25x25xf32>
    %c2_6 = arith.constant 2 : index
    %216 = memref.load %arg3[%c2_6] : memref<3xf32, #tpu.memory_space<smem>>
    %217 = vector.broadcast %216 : f32 to vector<1x25x25xf32>
    %218 = arith.addf %205, %217 : vector<1x25x25xf32>
    %cst_7 = arith.constant 0.000000e+00 : f32
    %219 = vector.broadcast %cst_7 : f32 to vector<1x25x25xf32>
    %220 = arith.maximumf %218, %219 : vector<1x25x25xf32>
    %221 = tpu.iota {dimensions = array<i32: 0>} : vector<24x12xi32>
    %222 = tpu.iota {dimensions = array<i32: 1>} : vector<24x12xi32>
    %c2_i32 = arith.constant 2 : i32
    %223 = vector.broadcast %c2_i32 : i32 to vector<24x12xi32>
    %224 = arith.muli %223, %222 : vector<24x12xi32>
    %225 = arith.cmpi eq, %221, %224 : vector<24x12xi32>
    %226 = arith.extui %225 : vector<24x12xi1> to vector<24x12xi32>
    %227 = arith.sitofp %226 : vector<24x12xi32> to vector<24x12xf32>
    %228 = vector.extract_strided_slice %210 {offsets = [0, 0, 0], sizes = [1, 24, 24], strides = [1, 1, 1]} : vector<1x25x25xf32> to vector<1x24x24xf32>
    %229 = vector.extract_strided_slice %210 {offsets = [0, 0, 1], sizes = [1, 24, 24], strides = [1, 1, 1]} : vector<1x25x25xf32> to vector<1x24x24xf32>
    %230 = arith.maximumf %228, %229 : vector<1x24x24xf32>
    %231 = vector.extract_strided_slice %210 {offsets = [0, 1, 0], sizes = [1, 24, 24], strides = [1, 1, 1]} : vector<1x25x25xf32> to vector<1x24x24xf32>
    %232 = vector.extract_strided_slice %210 {offsets = [0, 1, 1], sizes = [1, 24, 24], strides = [1, 1, 1]} : vector<1x25x25xf32> to vector<1x24x24xf32>
    %233 = arith.maximumf %231, %232 : vector<1x24x24xf32>
    %234 = arith.maximumf %230, %233 : vector<1x24x24xf32>
    %235 = vector.shape_cast %234 : vector<1x24x24xf32> to vector<24x24xf32>
    %cst_8 = arith.constant dense<0.000000e+00> : vector<24x12xf32>
    %236 = tpu.matmul %235, %227, %cst_8 {dimension_numbers = #tpu.dot_dimension_numbers<[1], [0], [0], [1], [0, 0, 1, 1], [], []>} : vector<24x24xf32>, vector<24x12xf32>, vector<24x12xf32> -> vector<24x12xf32>
    %237 = vector.shape_cast %236 : vector<24x12xf32> to vector<1x24x12xf32>
    %238 = vector.extract_strided_slice %237 {offsets = [0, 0, 0], sizes = [1, 1, 12], strides = [1, 1, 1]} : vector<1x24x12xf32> to vector<1x1x12xf32>
    %c0_9 = arith.constant 0 : index
    %c0_10 = arith.constant 0 : index
    %c0_11 = arith.constant 0 : index
    %c0_12 = arith.constant 0 : index
    %239 = vector.load %arg13[%c0_9, %c0_10, %c0_11, %c0_12] : memref<3x1x12x12xf32, #tpu.memory_space<vmem>>, vector<1x1x1x12xf32>
    %240 = vector.shape_cast %239 : vector<1x1x1x12xf32> to vector<1x1x12xf32>
    %241 = vector.shape_cast %238 : vector<1x1x12xf32> to vector<1x1x1x12xf32>
    tpu.vector_store %arg13[%c0_9, %c0_10, %c0_11, %c0_12], %241 {strides = array<i32>} : memref<3x1x12x12xf32, #tpu.memory_space<vmem>>, vector<1x1x1x12xf32>,
    %242 = vector.extract_strided_slice %237 {offsets = [0, 2, 0], sizes = [1, 1, 12], strides = [1, 1, 1]} : vector<1x24x12xf32> to vector<1x1x12xf32>
    %c0_13 = arith.constant 0 : index
    %c0_14 = arith.constant 0 : index
    %c1_15 = arith.constant 1 : index
    %c0_16 = arith.constant 0 : index
    %243 = vector.load %arg13[%c0_13, %c0_14, %c1_15, %c0_16] : memref<3x1x12x12xf32, #tpu.memory_space<vmem>>, vector<1x1x1x12xf32>
    %244 = vector.shape_cast %243 : vector<1x1x1x12xf32> to vector<1x1x12xf32>
    %245 = vector.shape_cast %242 : vector<1x1x12xf32> to vector<1x1x1x12xf32>
    tpu.vector_store %arg13[%c0_13, %c0_14, %c1_15, %c0_16], %245 {strides = array<i32>} : memref<3x1x12x12xf32, #tpu.memory_space<vmem>>, vector<1x1x1x12xf32>,
    %246 = vector.extract_strided_slice %237 {offsets = [0, 4, 0], sizes = [1, 1, 12], strides = [1, 1, 1]} : vector<1x24x12xf32> to vector<1x1x12xf32>
    %c0_17 = arith.constant 0 : index
    %c0_18 = arith.constant 0 : index
    %c2_19 = arith.constant 2 : index
    %c0_20 = arith.constant 0 : index
    %247 = vector.load %arg13[%c0_17, %c0_18, %c2_19, %c0_20] : memref<3x1x12x12xf32, #tpu.memory_space<vmem>>, vector<1x1x1x12xf32>
    %248 = vector.shape_cast %247 : vector<1x1x1x12xf32> to vector<1x1x12xf32>
    %249 = vector.shape_cast %246 : vector<1x1x12xf32> to vector<1x1x1x12xf32>
    tpu.vector_store %arg13[%c0_17, %c0_18, %c2_19, %c0_20], %249 {strides = array<i32>} : memref<3x1x12x12xf32, #tpu.memory_space<vmem>>, vector<1x1x1x12xf32>,
    %250 = vector.extract_strided_slice %237 {offsets = [0, 6, 0], sizes = [1, 1, 12], strides = [1, 1, 1]} : vector<1x24x12xf32> to vector<1x1x12xf32>
    %c0_21 = arith.constant 0 : index
    %c0_22 = arith.constant 0 : index
    %c3_23 = arith.constant 3 : index
    %c0_24 = arith.constant 0 : index
    %251 = vector.load %arg13[%c0_21, %c0_22, %c3_23, %c0_24] : memref<3x1x12x12xf32, #tpu.memory_space<vmem>>, vector<1x1x1x12xf32>
    %252 = vector.shape_cast %251 : vector<1x1x1x12xf32> to vector<1x1x12xf32>
    %253 = vector.shape_cast %250 : vector<1x1x12xf32> to vector<1x1x1x12xf32>
    tpu.vector_store %arg13[%c0_21, %c0_22, %c3_23, %c0_24], %253 {strides = array<i32>} : memref<3x1x12x12xf32, #tpu.memory_space<vmem>>, vector<1x1x1x12xf32>,
    %254 = vector.extract_strided_slice %237 {offsets = [0, 8, 0], sizes = [1, 1, 12], strides = [1, 1, 1]} : vector<1x24x12xf32> to vector<1x1x12xf32>
    %c0_25 = arith.constant 0 : index
    %c0_26 = arith.constant 0 : index
    %c4_27 = arith.constant 4 : index
    %c0_28 = arith.constant 0 : index
    %255 = vector.load %arg13[%c0_25, %c0_26, %c4_27, %c0_28] : memref<3x1x12x12xf32, #tpu.memory_space<vmem>>, vector<1x1x1x12xf32>
    %256 = vector.shape_cast %255 : vector<1x1x1x12xf32> to vector<1x1x12xf32>
    %257 = vector.shape_cast %254 : vector<1x1x12xf32> to vector<1x1x1x12xf32>
    tpu.vector_store %arg13[%c0_25, %c0_26, %c4_27, %c0_28], %257 {strides = array<i32>} : memref<3x1x12x12xf32, #tpu.memory_space<vmem>>, vector<1x1x1x12xf32>,
    %258 = vector.extract_strided_slice %237 {offsets = [0, 10, 0], sizes = [1, 1, 12], strides = [1, 1, 1]} : vector<1x24x12xf32> to vector<1x1x12xf32>
    %c0_29 = arith.constant 0 : index
    %c0_30 = arith.constant 0 : index
    %c5_31 = arith.constant 5 : index
    %c0_32 = arith.constant 0 : index
    %259 = vector.load %arg13[%c0_29, %c0_30, %c5_31, %c0_32] : memref<3x1x12x12xf32, #tpu.memory_space<vmem>>, vector<1x1x1x12xf32>
    %260 = vector.shape_cast %259 : vector<1x1x1x12xf32> to vector<1x1x12xf32>
    %261 = vector.shape_cast %258 : vector<1x1x12xf32> to vector<1x1x1x12xf32>
    tpu.vector_store %arg13[%c0_29, %c0_30, %c5_31, %c0_32], %261 {strides = array<i32>} : memref<3x1x12x12xf32, #tpu.memory_space<vmem>>, vector<1x1x1x12xf32>,
    %262 = vector.extract_strided_slice %237 {offsets = [0, 12, 0], sizes = [1, 1, 12], strides = [1, 1, 1]} : vector<1x24x12xf32> to vector<1x1x12xf32>
    %c0_33 = arith.constant 0 : index
    %c0_34 = arith.constant 0 : index
    %c6_35 = arith.constant 6 : index
    %c0_36 = arith.constant 0 : index
    %263 = vector.load %arg13[%c0_33, %c0_34, %c6_35, %c0_36] : memref<3x1x12x12xf32, #tpu.memory_space<vmem>>, vector<1x1x1x12xf32>
    %264 = vector.shape_cast %263 : vector<1x1x1x12xf32> to vector<1x1x12xf32>
    %265 = vector.shape_cast %262 : vector<1x1x12xf32> to vector<1x1x1x12xf32>
    tpu.vector_store %arg13[%c0_33, %c0_34, %c6_35, %c0_36], %265 {strides = array<i32>} : memref<3x1x12x12xf32, #tpu.memory_space<vmem>>, vector<1x1x1x12xf32>,
    %266 = vector.extract_strided_slice %237 {offsets = [0, 14, 0], sizes = [1, 1, 12], strides = [1, 1, 1]} : vector<1x24x12xf32> to vector<1x1x12xf32>
    %c0_37 = arith.constant 0 : index
    %c0_38 = arith.constant 0 : index
    %c7_39 = arith.constant 7 : index
    %c0_40 = arith.constant 0 : index
    %267 = vector.load %arg13[%c0_37, %c0_38, %c7_39, %c0_40] : memref<3x1x12x12xf32, #tpu.memory_space<vmem>>, vector<1x1x1x12xf32>
    %268 = vector.shape_cast %267 : vector<1x1x1x12xf32> to vector<1x1x12xf32>
    %269 = vector.shape_cast %266 : vector<1x1x12xf32> to vector<1x1x1x12xf32>
    tpu.vector_store %arg13[%c0_37, %c0_38, %c7_39, %c0_40], %269 {strides = array<i32>} : memref<3x1x12x12xf32, #tpu.memory_space<vmem>>, vector<1x1x1x12xf32>,
    %270 = vector.extract_strided_slice %237 {offsets = [0, 16, 0], sizes = [1, 1, 12], strides = [1, 1, 1]} : vector<1x24x12xf32> to vector<1x1x12xf32>
    %c0_41 = arith.constant 0 : index
    %c0_42 = arith.constant 0 : index
    %c8_43 = arith.constant 8 : index
    %c0_44 = arith.constant 0 : index
    %271 = vector.load %arg13[%c0_41, %c0_42, %c8_43, %c0_44] : memref<3x1x12x12xf32, #tpu.memory_space<vmem>>, vector<1x1x1x12xf32>
    %272 = vector.shape_cast %271 : vector<1x1x1x12xf32> to vector<1x1x12xf32>
    %273 = vector.shape_cast %270 : vector<1x1x12xf32> to vector<1x1x1x12xf32>
    tpu.vector_store %arg13[%c0_41, %c0_42, %c8_43, %c0_44], %273 {strides = array<i32>} : memref<3x1x12x12xf32, #tpu.memory_space<vmem>>, vector<1x1x1x12xf32>,
    %274 = vector.extract_strided_slice %237 {offsets = [0, 18, 0], sizes = [1, 1, 12], strides = [1, 1, 1]} : vector<1x24x12xf32> to vector<1x1x12xf32>
    %c0_45 = arith.constant 0 : index
    %c0_46 = arith.constant 0 : index
    %c9_47 = arith.constant 9 : index
    %c0_48 = arith.constant 0 : index
    %275 = vector.load %arg13[%c0_45, %c0_46, %c9_47, %c0_48] : memref<3x1x12x12xf32, #tpu.memory_space<vmem>>, vector<1x1x1x12xf32>
    %276 = vector.shape_cast %275 : vector<1x1x1x12xf32> to vector<1x1x12xf32>
    %277 = vector.shape_cast %274 : vector<1x1x12xf32> to vector<1x1x1x12xf32>
    tpu.vector_store %arg13[%c0_45, %c0_46, %c9_47, %c0_48], %277 {strides = array<i32>} : memref<3x1x12x12xf32, #tpu.memory_space<vmem>>, vector<1x1x1x12xf32>,
    %278 = vector.extract_strided_slice %237 {offsets = [0, 20, 0], sizes = [1, 1, 12], strides = [1, 1, 1]} : vector<1x24x12xf32> to vector<1x1x12xf32>
    %c0_49 = arith.constant 0 : index
    %c0_50 = arith.constant 0 : index
    %c10_51 = arith.constant 10 : index
    %c0_52 = arith.constant 0 : index
    %279 = vector.load %arg13[%c0_49, %c0_50, %c10_51, %c0_52] : memref<3x1x12x12xf32, #tpu.memory_space<vmem>>, vector<1x1x1x12xf32>
    %280 = vector.shape_cast %279 : vector<1x1x1x12xf32> to vector<1x1x12xf32>
    %281 = vector.shape_cast %278 : vector<1x1x12xf32> to vector<1x1x1x12xf32>
    tpu.vector_store %arg13[%c0_49, %c0_50, %c10_51, %c0_52], %281 {strides = array<i32>} : memref<3x1x12x12xf32, #tpu.memory_space<vmem>>, vector<1x1x1x12xf32>,
    %282 = vector.extract_strided_slice %237 {offsets = [0, 22, 0], sizes = [1, 1, 12], strides = [1, 1, 1]} : vector<1x24x12xf32> to vector<1x1x12xf32>
    %c0_53 = arith.constant 0 : index
    %c0_54 = arith.constant 0 : index
    %c11_55 = arith.constant 11 : index
    %c0_56 = arith.constant 0 : index
    %283 = vector.load %arg13[%c0_53, %c0_54, %c11_55, %c0_56] : memref<3x1x12x12xf32, #tpu.memory_space<vmem>>, vector<1x1x1x12xf32>
    %284 = vector.shape_cast %283 : vector<1x1x1x12xf32> to vector<1x1x12xf32>
    %285 = vector.shape_cast %282 : vector<1x1x12xf32> to vector<1x1x1x12xf32>
    tpu.vector_store %arg13[%c0_53, %c0_54, %c11_55, %c0_56], %285 {strides = array<i32>} : memref<3x1x12x12xf32, #tpu.memory_space<vmem>>, vector<1x1x1x12xf32>,
    %286 = vector.extract_strided_slice %215 {offsets = [0, 0, 0], sizes = [1, 24, 24], strides = [1, 1, 1]} : vector<1x25x25xf32> to vector<1x24x24xf32>
    %287 = vector.extract_strided_slice %215 {offsets = [0, 0, 1], sizes = [1, 24, 24], strides = [1, 1, 1]} : vector<1x25x25xf32> to vector<1x24x24xf32>
    %288 = arith.maximumf %286, %287 : vector<1x24x24xf32>
    %289 = vector.extract_strided_slice %215 {offsets = [0, 1, 0], sizes = [1, 24, 24], strides = [1, 1, 1]} : vector<1x25x25xf32> to vector<1x24x24xf32>
    %290 = vector.extract_strided_slice %215 {offsets = [0, 1, 1], sizes = [1, 24, 24], strides = [1, 1, 1]} : vector<1x25x25xf32> to vector<1x24x24xf32>
    %291 = arith.maximumf %289, %290 : vector<1x24x24xf32>
    %292 = arith.maximumf %288, %291 : vector<1x24x24xf32>
    %293 = vector.shape_cast %292 : vector<1x24x24xf32> to vector<24x24xf32>
    %cst_57 = arith.constant dense<0.000000e+00> : vector<24x12xf32>
    %294 = tpu.matmul %293, %227, %cst_57 {dimension_numbers = #tpu.dot_dimension_numbers<[1], [0], [0], [1], [0, 0, 1, 1], [], []>} : vector<24x24xf32>, vector<24x12xf32>, vector<24x12xf32> -> vector<24x12xf32>
    %295 = vector.shape_cast %294 : vector<24x12xf32> to vector<1x24x12xf32>
    %296 = vector.extract_strided_slice %295 {offsets = [0, 0, 0], sizes = [1, 1, 12], strides = [1, 1, 1]} : vector<1x24x12xf32> to vector<1x1x12xf32>
    %c1_58 = arith.constant 1 : index
    %c0_59 = arith.constant 0 : index
    %c0_60 = arith.constant 0 : index
    %c0_61 = arith.constant 0 : index
    %297 = vector.load %arg13[%c1_58, %c0_59, %c0_60, %c0_61] : memref<3x1x12x12xf32, #tpu.memory_space<vmem>>, vector<1x1x1x12xf32>
    %298 = vector.shape_cast %297 : vector<1x1x1x12xf32> to vector<1x1x12xf32>
    %299 = vector.shape_cast %296 : vector<1x1x12xf32> to vector<1x1x1x12xf32>
    tpu.vector_store %arg13[%c1_58, %c0_59, %c0_60, %c0_61], %299 {strides = array<i32>} : memref<3x1x12x12xf32, #tpu.memory_space<vmem>>, vector<1x1x1x12xf32>,
    %300 = vector.extract_strided_slice %295 {offsets = [0, 2, 0], sizes = [1, 1, 12], strides = [1, 1, 1]} : vector<1x24x12xf32> to vector<1x1x12xf32>
    %c1_62 = arith.constant 1 : index
    %c0_63 = arith.constant 0 : index
    %c1_64 = arith.constant 1 : index
    %c0_65 = arith.constant 0 : index
    %301 = vector.load %arg13[%c1_62, %c0_63, %c1_64, %c0_65] : memref<3x1x12x12xf32, #tpu.memory_space<vmem>>, vector<1x1x1x12xf32>
    %302 = vector.shape_cast %301 : vector<1x1x1x12xf32> to vector<1x1x12xf32>
    %303 = vector.shape_cast %300 : vector<1x1x12xf32> to vector<1x1x1x12xf32>
    tpu.vector_store %arg13[%c1_62, %c0_63, %c1_64, %c0_65], %303 {strides = array<i32>} : memref<3x1x12x12xf32, #tpu.memory_space<vmem>>, vector<1x1x1x12xf32>,
    %304 = vector.extract_strided_slice %295 {offsets = [0, 4, 0], sizes = [1, 1, 12], strides = [1, 1, 1]} : vector<1x24x12xf32> to vector<1x1x12xf32>
    %c1_66 = arith.constant 1 : index
    %c0_67 = arith.constant 0 : index
    %c2_68 = arith.constant 2 : index
    %c0_69 = arith.constant 0 : index
    %305 = vector.load %arg13[%c1_66, %c0_67, %c2_68, %c0_69] : memref<3x1x12x12xf32, #tpu.memory_space<vmem>>, vector<1x1x1x12xf32>
    %306 = vector.shape_cast %305 : vector<1x1x1x12xf32> to vector<1x1x12xf32>
    %307 = vector.shape_cast %304 : vector<1x1x12xf32> to vector<1x1x1x12xf32>
    tpu.vector_store %arg13[%c1_66, %c0_67, %c2_68, %c0_69], %307 {strides = array<i32>} : memref<3x1x12x12xf32, #tpu.memory_space<vmem>>, vector<1x1x1x12xf32>,
    %308 = vector.extract_strided_slice %295 {offsets = [0, 6, 0], sizes = [1, 1, 12], strides = [1, 1, 1]} : vector<1x24x12xf32> to vector<1x1x12xf32>
    %c1_70 = arith.constant 1 : index
    %c0_71 = arith.constant 0 : index
    %c3_72 = arith.constant 3 : index
    %c0_73 = arith.constant 0 : index
    %309 = vector.load %arg13[%c1_70, %c0_71, %c3_72, %c0_73] : memref<3x1x12x12xf32, #tpu.memory_space<vmem>>, vector<1x1x1x12xf32>
    %310 = vector.shape_cast %309 : vector<1x1x1x12xf32> to vector<1x1x12xf32>
    %311 = vector.shape_cast %308 : vector<1x1x12xf32> to vector<1x1x1x12xf32>
    tpu.vector_store %arg13[%c1_70, %c0_71, %c3_72, %c0_73], %311 {strides = array<i32>} : memref<3x1x12x12xf32, #tpu.memory_space<vmem>>, vector<1x1x1x12xf32>,
    %312 = vector.extract_strided_slice %295 {offsets = [0, 8, 0], sizes = [1, 1, 12], strides = [1, 1, 1]} : vector<1x24x12xf32> to vector<1x1x12xf32>
    %c1_74 = arith.constant 1 : index
    %c0_75 = arith.constant 0 : index
    %c4_76 = arith.constant 4 : index
    %c0_77 = arith.constant 0 : index
    %313 = vector.load %arg13[%c1_74, %c0_75, %c4_76, %c0_77] : memref<3x1x12x12xf32, #tpu.memory_space<vmem>>, vector<1x1x1x12xf32>
    %314 = vector.shape_cast %313 : vector<1x1x1x12xf32> to vector<1x1x12xf32>
    %315 = vector.shape_cast %312 : vector<1x1x12xf32> to vector<1x1x1x12xf32>
    tpu.vector_store %arg13[%c1_74, %c0_75, %c4_76, %c0_77], %315 {strides = array<i32>} : memref<3x1x12x12xf32, #tpu.memory_space<vmem>>, vector<1x1x1x12xf32>,
    %316 = vector.extract_strided_slice %295 {offsets = [0, 10, 0], sizes = [1, 1, 12], strides = [1, 1, 1]} : vector<1x24x12xf32> to vector<1x1x12xf32>
    %c1_78 = arith.constant 1 : index
    %c0_79 = arith.constant 0 : index
    %c5_80 = arith.constant 5 : index
    %c0_81 = arith.constant 0 : index
    %317 = vector.load %arg13[%c1_78, %c0_79, %c5_80, %c0_81] : memref<3x1x12x12xf32, #tpu.memory_space<vmem>>, vector<1x1x1x12xf32>
    %318 = vector.shape_cast %317 : vector<1x1x1x12xf32> to vector<1x1x12xf32>
    %319 = vector.shape_cast %316 : vector<1x1x12xf32> to vector<1x1x1x12xf32>
    tpu.vector_store %arg13[%c1_78, %c0_79, %c5_80, %c0_81], %319 {strides = array<i32>} : memref<3x1x12x12xf32, #tpu.memory_space<vmem>>, vector<1x1x1x12xf32>,
    %320 = vector.extract_strided_slice %295 {offsets = [0, 12, 0], sizes = [1, 1, 12], strides = [1, 1, 1]} : vector<1x24x12xf32> to vector<1x1x12xf32>
    %c1_82 = arith.constant 1 : index
    %c0_83 = arith.constant 0 : index
    %c6_84 = arith.constant 6 : index
    %c0_85 = arith.constant 0 : index
    %321 = vector.load %arg13[%c1_82, %c0_83, %c6_84, %c0_85] : memref<3x1x12x12xf32, #tpu.memory_space<vmem>>, vector<1x1x1x12xf32>
    %322 = vector.shape_cast %321 : vector<1x1x1x12xf32> to vector<1x1x12xf32>
    %323 = vector.shape_cast %320 : vector<1x1x12xf32> to vector<1x1x1x12xf32>
    tpu.vector_store %arg13[%c1_82, %c0_83, %c6_84, %c0_85], %323 {strides = array<i32>} : memref<3x1x12x12xf32, #tpu.memory_space<vmem>>, vector<1x1x1x12xf32>,
    %324 = vector.extract_strided_slice %295 {offsets = [0, 14, 0], sizes = [1, 1, 12], strides = [1, 1, 1]} : vector<1x24x12xf32> to vector<1x1x12xf32>
    %c1_86 = arith.constant 1 : index
    %c0_87 = arith.constant 0 : index
    %c7_88 = arith.constant 7 : index
    %c0_89 = arith.constant 0 : index
    %325 = vector.load %arg13[%c1_86, %c0_87, %c7_88, %c0_89] : memref<3x1x12x12xf32, #tpu.memory_space<vmem>>, vector<1x1x1x12xf32>
    %326 = vector.shape_cast %325 : vector<1x1x1x12xf32> to vector<1x1x12xf32>
    %327 = vector.shape_cast %324 : vector<1x1x12xf32> to vector<1x1x1x12xf32>
    tpu.vector_store %arg13[%c1_86, %c0_87, %c7_88, %c0_89], %327 {strides = array<i32>} : memref<3x1x12x12xf32, #tpu.memory_space<vmem>>, vector<1x1x1x12xf32>,
    %328 = vector.extract_strided_slice %295 {offsets = [0, 16, 0], sizes = [1, 1, 12], strides = [1, 1, 1]} : vector<1x24x12xf32> to vector<1x1x12xf32>
    %c1_90 = arith.constant 1 : index
    %c0_91 = arith.constant 0 : index
    %c8_92 = arith.constant 8 : index
    %c0_93 = arith.constant 0 : index
    %329 = vector.load %arg13[%c1_90, %c0_91, %c8_92, %c0_93] : memref<3x1x12x12xf32, #tpu.memory_space<vmem>>, vector<1x1x1x12xf32>
    %330 = vector.shape_cast %329 : vector<1x1x1x12xf32> to vector<1x1x12xf32>
    %331 = vector.shape_cast %328 : vector<1x1x12xf32> to vector<1x1x1x12xf32>
    tpu.vector_store %arg13[%c1_90, %c0_91, %c8_92, %c0_93], %331 {strides = array<i32>} : memref<3x1x12x12xf32, #tpu.memory_space<vmem>>, vector<1x1x1x12xf32>,
    %332 = vector.extract_strided_slice %295 {offsets = [0, 18, 0], sizes = [1, 1, 12], strides = [1, 1, 1]} : vector<1x24x12xf32> to vector<1x1x12xf32>
    %c1_94 = arith.constant 1 : index
    %c0_95 = arith.constant 0 : index
    %c9_96 = arith.constant 9 : index
    %c0_97 = arith.constant 0 : index
    %333 = vector.load %arg13[%c1_94, %c0_95, %c9_96, %c0_97] : memref<3x1x12x12xf32, #tpu.memory_space<vmem>>, vector<1x1x1x12xf32>
    %334 = vector.shape_cast %333 : vector<1x1x1x12xf32> to vector<1x1x12xf32>
    %335 = vector.shape_cast %332 : vector<1x1x12xf32> to vector<1x1x1x12xf32>
    tpu.vector_store %arg13[%c1_94, %c0_95, %c9_96, %c0_97], %335 {strides = array<i32>} : memref<3x1x12x12xf32, #tpu.memory_space<vmem>>, vector<1x1x1x12xf32>,
    %336 = vector.extract_strided_slice %295 {offsets = [0, 20, 0], sizes = [1, 1, 12], strides = [1, 1, 1]} : vector<1x24x12xf32> to vector<1x1x12xf32>
    %c1_98 = arith.constant 1 : index
    %c0_99 = arith.constant 0 : index
    %c10_100 = arith.constant 10 : index
    %c0_101 = arith.constant 0 : index
    %337 = vector.load %arg13[%c1_98, %c0_99, %c10_100, %c0_101] : memref<3x1x12x12xf32, #tpu.memory_space<vmem>>, vector<1x1x1x12xf32>
    %338 = vector.shape_cast %337 : vector<1x1x1x12xf32> to vector<1x1x12xf32>
    %339 = vector.shape_cast %336 : vector<1x1x12xf32> to vector<1x1x1x12xf32>
    tpu.vector_store %arg13[%c1_98, %c0_99, %c10_100, %c0_101], %339 {strides = array<i32>} : memref<3x1x12x12xf32, #tpu.memory_space<vmem>>, vector<1x1x1x12xf32>,
    %340 = vector.extract_strided_slice %295 {offsets = [0, 22, 0], sizes = [1, 1, 12], strides = [1, 1, 1]} : vector<1x24x12xf32> to vector<1x1x12xf32>
    %c1_102 = arith.constant 1 : index
    %c0_103 = arith.constant 0 : index
    %c11_104 = arith.constant 11 : index
    %c0_105 = arith.constant 0 : index
    %341 = vector.load %arg13[%c1_102, %c0_103, %c11_104, %c0_105] : memref<3x1x12x12xf32, #tpu.memory_space<vmem>>, vector<1x1x1x12xf32>
    %342 = vector.shape_cast %341 : vector<1x1x1x12xf32> to vector<1x1x12xf32>
    %343 = vector.shape_cast %340 : vector<1x1x12xf32> to vector<1x1x1x12xf32>
    tpu.vector_store %arg13[%c1_102, %c0_103, %c11_104, %c0_105], %343 {strides = array<i32>} : memref<3x1x12x12xf32, #tpu.memory_space<vmem>>, vector<1x1x1x12xf32>,
    %344 = vector.extract_strided_slice %220 {offsets = [0, 0, 0], sizes = [1, 24, 24], strides = [1, 1, 1]} : vector<1x25x25xf32> to vector<1x24x24xf32>
    %345 = vector.extract_strided_slice %220 {offsets = [0, 0, 1], sizes = [1, 24, 24], strides = [1, 1, 1]} : vector<1x25x25xf32> to vector<1x24x24xf32>
    %346 = arith.maximumf %344, %345 : vector<1x24x24xf32>
    %347 = vector.extract_strided_slice %220 {offsets = [0, 1, 0], sizes = [1, 24, 24], strides = [1, 1, 1]} : vector<1x25x25xf32> to vector<1x24x24xf32>
    %348 = vector.extract_strided_slice %220 {offsets = [0, 1, 1], sizes = [1, 24, 24], strides = [1, 1, 1]} : vector<1x25x25xf32> to vector<1x24x24xf32>
    %349 = arith.maximumf %347, %348 : vector<1x24x24xf32>
    %350 = arith.maximumf %346, %349 : vector<1x24x24xf32>
    %351 = vector.shape_cast %350 : vector<1x24x24xf32> to vector<24x24xf32>
    %cst_106 = arith.constant dense<0.000000e+00> : vector<24x12xf32>
    %352 = tpu.matmul %351, %227, %cst_106 {dimension_numbers = #tpu.dot_dimension_numbers<[1], [0], [0], [1], [0, 0, 1, 1], [], []>} : vector<24x24xf32>, vector<24x12xf32>, vector<24x12xf32> -> vector<24x12xf32>
    %353 = vector.shape_cast %352 : vector<24x12xf32> to vector<1x24x12xf32>
    %354 = vector.extract_strided_slice %353 {offsets = [0, 0, 0], sizes = [1, 1, 12], strides = [1, 1, 1]} : vector<1x24x12xf32> to vector<1x1x12xf32>
    %c2_107 = arith.constant 2 : index
    %c0_108 = arith.constant 0 : index
    %c0_109 = arith.constant 0 : index
    %c0_110 = arith.constant 0 : index
    %355 = vector.load %arg13[%c2_107, %c0_108, %c0_109, %c0_110] : memref<3x1x12x12xf32, #tpu.memory_space<vmem>>, vector<1x1x1x12xf32>
    %356 = vector.shape_cast %355 : vector<1x1x1x12xf32> to vector<1x1x12xf32>
    %357 = vector.shape_cast %354 : vector<1x1x12xf32> to vector<1x1x1x12xf32>
    tpu.vector_store %arg13[%c2_107, %c0_108, %c0_109, %c0_110], %357 {strides = array<i32>} : memref<3x1x12x12xf32, #tpu.memory_space<vmem>>, vector<1x1x1x12xf32>,
    %358 = vector.extract_strided_slice %353 {offsets = [0, 2, 0], sizes = [1, 1, 12], strides = [1, 1, 1]} : vector<1x24x12xf32> to vector<1x1x12xf32>
    %c2_111 = arith.constant 2 : index
    %c0_112 = arith.constant 0 : index
    %c1_113 = arith.constant 1 : index
    %c0_114 = arith.constant 0 : index
    %359 = vector.load %arg13[%c2_111, %c0_112, %c1_113, %c0_114] : memref<3x1x12x12xf32, #tpu.memory_space<vmem>>, vector<1x1x1x12xf32>
    %360 = vector.shape_cast %359 : vector<1x1x1x12xf32> to vector<1x1x12xf32>
    %361 = vector.shape_cast %358 : vector<1x1x12xf32> to vector<1x1x1x12xf32>
    tpu.vector_store %arg13[%c2_111, %c0_112, %c1_113, %c0_114], %361 {strides = array<i32>} : memref<3x1x12x12xf32, #tpu.memory_space<vmem>>, vector<1x1x1x12xf32>,
    %362 = vector.extract_strided_slice %353 {offsets = [0, 4, 0], sizes = [1, 1, 12], strides = [1, 1, 1]} : vector<1x24x12xf32> to vector<1x1x12xf32>
    %c2_115 = arith.constant 2 : index
    %c0_116 = arith.constant 0 : index
    %c2_117 = arith.constant 2 : index
    %c0_118 = arith.constant 0 : index
    %363 = vector.load %arg13[%c2_115, %c0_116, %c2_117, %c0_118] : memref<3x1x12x12xf32, #tpu.memory_space<vmem>>, vector<1x1x1x12xf32>
    %364 = vector.shape_cast %363 : vector<1x1x1x12xf32> to vector<1x1x12xf32>
    %365 = vector.shape_cast %362 : vector<1x1x12xf32> to vector<1x1x1x12xf32>
    tpu.vector_store %arg13[%c2_115, %c0_116, %c2_117, %c0_118], %365 {strides = array<i32>} : memref<3x1x12x12xf32, #tpu.memory_space<vmem>>, vector<1x1x1x12xf32>,
    %366 = vector.extract_strided_slice %353 {offsets = [0, 6, 0], sizes = [1, 1, 12], strides = [1, 1, 1]} : vector<1x24x12xf32> to vector<1x1x12xf32>
    %c2_119 = arith.constant 2 : index
    %c0_120 = arith.constant 0 : index
    %c3_121 = arith.constant 3 : index
    %c0_122 = arith.constant 0 : index
    %367 = vector.load %arg13[%c2_119, %c0_120, %c3_121, %c0_122] : memref<3x1x12x12xf32, #tpu.memory_space<vmem>>, vector<1x1x1x12xf32>
    %368 = vector.shape_cast %367 : vector<1x1x1x12xf32> to vector<1x1x12xf32>
    %369 = vector.shape_cast %366 : vector<1x1x12xf32> to vector<1x1x1x12xf32>
    tpu.vector_store %arg13[%c2_119, %c0_120, %c3_121, %c0_122], %369 {strides = array<i32>} : memref<3x1x12x12xf32, #tpu.memory_space<vmem>>, vector<1x1x1x12xf32>,
    %370 = vector.extract_strided_slice %353 {offsets = [0, 8, 0], sizes = [1, 1, 12], strides = [1, 1, 1]} : vector<1x24x12xf32> to vector<1x1x12xf32>
    %c2_123 = arith.constant 2 : index
    %c0_124 = arith.constant 0 : index
    %c4_125 = arith.constant 4 : index
    %c0_126 = arith.constant 0 : index
    %371 = vector.load %arg13[%c2_123, %c0_124, %c4_125, %c0_126] : memref<3x1x12x12xf32, #tpu.memory_space<vmem>>, vector<1x1x1x12xf32>
    %372 = vector.shape_cast %371 : vector<1x1x1x12xf32> to vector<1x1x12xf32>
    %373 = vector.shape_cast %370 : vector<1x1x12xf32> to vector<1x1x1x12xf32>
    tpu.vector_store %arg13[%c2_123, %c0_124, %c4_125, %c0_126], %373 {strides = array<i32>} : memref<3x1x12x12xf32, #tpu.memory_space<vmem>>, vector<1x1x1x12xf32>,
    %374 = vector.extract_strided_slice %353 {offsets = [0, 10, 0], sizes = [1, 1, 12], strides = [1, 1, 1]} : vector<1x24x12xf32> to vector<1x1x12xf32>
    %c2_127 = arith.constant 2 : index
    %c0_128 = arith.constant 0 : index
    %c5_129 = arith.constant 5 : index
    %c0_130 = arith.constant 0 : index
    %375 = vector.load %arg13[%c2_127, %c0_128, %c5_129, %c0_130] : memref<3x1x12x12xf32, #tpu.memory_space<vmem>>, vector<1x1x1x12xf32>
    %376 = vector.shape_cast %375 : vector<1x1x1x12xf32> to vector<1x1x12xf32>
    %377 = vector.shape_cast %374 : vector<1x1x12xf32> to vector<1x1x1x12xf32>
    tpu.vector_store %arg13[%c2_127, %c0_128, %c5_129, %c0_130], %377 {strides = array<i32>} : memref<3x1x12x12xf32, #tpu.memory_space<vmem>>, vector<1x1x1x12xf32>,
    %378 = vector.extract_strided_slice %353 {offsets = [0, 12, 0], sizes = [1, 1, 12], strides = [1, 1, 1]} : vector<1x24x12xf32> to vector<1x1x12xf32>
    %c2_131 = arith.constant 2 : index
    %c0_132 = arith.constant 0 : index
    %c6_133 = arith.constant 6 : index
    %c0_134 = arith.constant 0 : index
    %379 = vector.load %arg13[%c2_131, %c0_132, %c6_133, %c0_134] : memref<3x1x12x12xf32, #tpu.memory_space<vmem>>, vector<1x1x1x12xf32>
    %380 = vector.shape_cast %379 : vector<1x1x1x12xf32> to vector<1x1x12xf32>
    %381 = vector.shape_cast %378 : vector<1x1x12xf32> to vector<1x1x1x12xf32>
    tpu.vector_store %arg13[%c2_131, %c0_132, %c6_133, %c0_134], %381 {strides = array<i32>} : memref<3x1x12x12xf32, #tpu.memory_space<vmem>>, vector<1x1x1x12xf32>,
    %382 = vector.extract_strided_slice %353 {offsets = [0, 14, 0], sizes = [1, 1, 12], strides = [1, 1, 1]} : vector<1x24x12xf32> to vector<1x1x12xf32>
    %c2_135 = arith.constant 2 : index
    %c0_136 = arith.constant 0 : index
    %c7_137 = arith.constant 7 : index
    %c0_138 = arith.constant 0 : index
    %383 = vector.load %arg13[%c2_135, %c0_136, %c7_137, %c0_138] : memref<3x1x12x12xf32, #tpu.memory_space<vmem>>, vector<1x1x1x12xf32>
    %384 = vector.shape_cast %383 : vector<1x1x1x12xf32> to vector<1x1x12xf32>
    %385 = vector.shape_cast %382 : vector<1x1x12xf32> to vector<1x1x1x12xf32>
    tpu.vector_store %arg13[%c2_135, %c0_136, %c7_137, %c0_138], %385 {strides = array<i32>} : memref<3x1x12x12xf32, #tpu.memory_space<vmem>>, vector<1x1x1x12xf32>,
    %386 = vector.extract_strided_slice %353 {offsets = [0, 16, 0], sizes = [1, 1, 12], strides = [1, 1, 1]} : vector<1x24x12xf32> to vector<1x1x12xf32>
    %c2_139 = arith.constant 2 : index
    %c0_140 = arith.constant 0 : index
    %c8_141 = arith.constant 8 : index
    %c0_142 = arith.constant 0 : index
    %387 = vector.load %arg13[%c2_139, %c0_140, %c8_141, %c0_142] : memref<3x1x12x12xf32, #tpu.memory_space<vmem>>, vector<1x1x1x12xf32>
    %388 = vector.shape_cast %387 : vector<1x1x1x12xf32> to vector<1x1x12xf32>
    %389 = vector.shape_cast %386 : vector<1x1x12xf32> to vector<1x1x1x12xf32>
    tpu.vector_store %arg13[%c2_139, %c0_140, %c8_141, %c0_142], %389 {strides = array<i32>} : memref<3x1x12x12xf32, #tpu.memory_space<vmem>>, vector<1x1x1x12xf32>,
    %390 = vector.extract_strided_slice %353 {offsets = [0, 18, 0], sizes = [1, 1, 12], strides = [1, 1, 1]} : vector<1x24x12xf32> to vector<1x1x12xf32>
    %c2_143 = arith.constant 2 : index
    %c0_144 = arith.constant 0 : index
    %c9_145 = arith.constant 9 : index
    %c0_146 = arith.constant 0 : index
    %391 = vector.load %arg13[%c2_143, %c0_144, %c9_145, %c0_146] : memref<3x1x12x12xf32, #tpu.memory_space<vmem>>, vector<1x1x1x12xf32>
    %392 = vector.shape_cast %391 : vector<1x1x1x12xf32> to vector<1x1x12xf32>
    %393 = vector.shape_cast %390 : vector<1x1x12xf32> to vector<1x1x1x12xf32>
    tpu.vector_store %arg13[%c2_143, %c0_144, %c9_145, %c0_146], %393 {strides = array<i32>} : memref<3x1x12x12xf32, #tpu.memory_space<vmem>>, vector<1x1x1x12xf32>,
    %394 = vector.extract_strided_slice %353 {offsets = [0, 20, 0], sizes = [1, 1, 12], strides = [1, 1, 1]} : vector<1x24x12xf32> to vector<1x1x12xf32>
    %c2_147 = arith.constant 2 : index
    %c0_148 = arith.constant 0 : index
    %c10_149 = arith.constant 10 : index
    %c0_150 = arith.constant 0 : index
    %395 = vector.load %arg13[%c2_147, %c0_148, %c10_149, %c0_150] : memref<3x1x12x12xf32, #tpu.memory_space<vmem>>, vector<1x1x1x12xf32>
    %396 = vector.shape_cast %395 : vector<1x1x1x12xf32> to vector<1x1x12xf32>
    %397 = vector.shape_cast %394 : vector<1x1x12xf32> to vector<1x1x1x12xf32>
    tpu.vector_store %arg13[%c2_147, %c0_148, %c10_149, %c0_150], %397 {strides = array<i32>} : memref<3x1x12x12xf32, #tpu.memory_space<vmem>>, vector<1x1x1x12xf32>,
    %398 = vector.extract_strided_slice %353 {offsets = [0, 22, 0], sizes = [1, 1, 12], strides = [1, 1, 1]} : vector<1x24x12xf32> to vector<1x1x12xf32>
    %c2_151 = arith.constant 2 : index
    %c0_152 = arith.constant 0 : index
    %c11_153 = arith.constant 11 : index
    %c0_154 = arith.constant 0 : index
    %399 = vector.load %arg13[%c2_151, %c0_152, %c11_153, %c0_154] : memref<3x1x12x12xf32, #tpu.memory_space<vmem>>, vector<1x1x1x12xf32>
    %400 = vector.shape_cast %399 : vector<1x1x1x12xf32> to vector<1x1x12xf32>
    %401 = vector.shape_cast %398 : vector<1x1x12xf32> to vector<1x1x1x12xf32>
    tpu.vector_store %arg13[%c2_151, %c0_152, %c11_153, %c0_154], %401 {strides = array<i32>} : memref<3x1x12x12xf32, #tpu.memory_space<vmem>>, vector<1x1x1x12xf32>,
    %c0_155 = arith.constant 0 : index
    %c0_156 = arith.constant 0 : index
    %c0_157 = arith.constant 0 : index
    %c0_158 = arith.constant 0 : index
    %402 = vector.load %arg13[%c0_155, %c0_156, %c0_157, %c0_158] : memref<3x1x12x12xf32, #tpu.memory_space<vmem>>, vector<1x1x12x12xf32>
    %403 = vector.shape_cast %402 : vector<1x1x12x12xf32> to vector<1x12x12xf32>
    %c1_159 = arith.constant 1 : index
    %c0_160 = arith.constant 0 : index
    %c0_161 = arith.constant 0 : index
    %c0_162 = arith.constant 0 : index
    %404 = vector.load %arg13[%c1_159, %c0_160, %c0_161, %c0_162] : memref<3x1x12x12xf32, #tpu.memory_space<vmem>>, vector<1x1x12x12xf32>
    %405 = vector.shape_cast %404 : vector<1x1x12x12xf32> to vector<1x12x12xf32>
    %c2_163 = arith.constant 2 : index
    %c0_164 = arith.constant 0 : index
    %c0_165 = arith.constant 0 : index
    %c0_166 = arith.constant 0 : index
    %406 = vector.load %arg13[%c2_163, %c0_164, %c0_165, %c0_166] : memref<3x1x12x12xf32, #tpu.memory_space<vmem>>, vector<1x1x12x12xf32>
    %407 = vector.shape_cast %406 : vector<1x1x12x12xf32> to vector<1x12x12xf32>
    %408 = vector.extract_strided_slice %403 {offsets = [0, 0, 0], sizes = [1, 10, 10], strides = [1, 1, 1]} : vector<1x12x12xf32> to vector<1x10x10xf32>
    %c0_167 = arith.constant 0 : index
    %409 = memref.load %arg4[%c0_167] : memref<135xf32, #tpu.memory_space<smem>>
    %410 = vector.broadcast %409 : f32 to vector<1x10x10xf32>
    %411 = arith.mulf %410, %408 : vector<1x10x10xf32>
    %c27_168 = arith.constant 27 : index
    %412 = memref.load %arg4[%c27_168] : memref<135xf32, #tpu.memory_space<smem>>
    %413 = vector.broadcast %412 : f32 to vector<1x10x10xf32>
    %414 = arith.mulf %413, %408 : vector<1x10x10xf32>
    %c54 = arith.constant 54 : index
    %415 = memref.load %arg4[%c54] : memref<135xf32, #tpu.memory_space<smem>>
    %416 = vector.broadcast %415 : f32 to vector<1x10x10xf32>
    %417 = arith.mulf %416, %408 : vector<1x10x10xf32>
    %c81 = arith.constant 81 : index
    %418 = memref.load %arg4[%c81] : memref<135xf32, #tpu.memory_space<smem>>
    %419 = vector.broadcast %418 : f32 to vector<1x10x10xf32>
    %420 = arith.mulf %419, %408 : vector<1x10x10xf32>
    %c108 = arith.constant 108 : index
    %421 = memref.load %arg4[%c108] : memref<135xf32, #tpu.memory_space<smem>>
    %422 = vector.broadcast %421 : f32 to vector<1x10x10xf32>
    %423 = arith.mulf %422, %408 : vector<1x10x10xf32>
    %424 = vector.extract_strided_slice %403 {offsets = [0, 0, 1], sizes = [1, 10, 10], strides = [1, 1, 1]} : vector<1x12x12xf32> to vector<1x10x10xf32>
    %c1_169 = arith.constant 1 : index
    %425 = memref.load %arg4[%c1_169] : memref<135xf32, #tpu.memory_space<smem>>
    %426 = vector.broadcast %425 : f32 to vector<1x10x10xf32>
    %427 = arith.mulf %426, %424 : vector<1x10x10xf32>
    %428 = arith.addf %411, %427 : vector<1x10x10xf32>
    %c28_170 = arith.constant 28 : index
    %429 = memref.load %arg4[%c28_170] : memref<135xf32, #tpu.memory_space<smem>>
    %430 = vector.broadcast %429 : f32 to vector<1x10x10xf32>
    %431 = arith.mulf %430, %424 : vector<1x10x10xf32>
    %432 = arith.addf %414, %431 : vector<1x10x10xf32>
    %c55 = arith.constant 55 : index
    %433 = memref.load %arg4[%c55] : memref<135xf32, #tpu.memory_space<smem>>
    %434 = vector.broadcast %433 : f32 to vector<1x10x10xf32>
    %435 = arith.mulf %434, %424 : vector<1x10x10xf32>
    %436 = arith.addf %417, %435 : vector<1x10x10xf32>
    %c82 = arith.constant 82 : index
    %437 = memref.load %arg4[%c82] : memref<135xf32, #tpu.memory_space<smem>>
    %438 = vector.broadcast %437 : f32 to vector<1x10x10xf32>
    %439 = arith.mulf %438, %424 : vector<1x10x10xf32>
    %440 = arith.addf %420, %439 : vector<1x10x10xf32>
    %c109 = arith.constant 109 : index
    %441 = memref.load %arg4[%c109] : memref<135xf32, #tpu.memory_space<smem>>
    %442 = vector.broadcast %441 : f32 to vector<1x10x10xf32>
    %443 = arith.mulf %442, %424 : vector<1x10x10xf32>
    %444 = arith.addf %423, %443 : vector<1x10x10xf32>
    %445 = vector.extract_strided_slice %403 {offsets = [0, 0, 2], sizes = [1, 10, 10], strides = [1, 1, 1]} : vector<1x12x12xf32> to vector<1x10x10xf32>
    %c2_171 = arith.constant 2 : index
    %446 = memref.load %arg4[%c2_171] : memref<135xf32, #tpu.memory_space<smem>>
    %447 = vector.broadcast %446 : f32 to vector<1x10x10xf32>
    %448 = arith.mulf %447, %445 : vector<1x10x10xf32>
    %449 = arith.addf %428, %448 : vector<1x10x10xf32>
    %c29_172 = arith.constant 29 : index
    %450 = memref.load %arg4[%c29_172] : memref<135xf32, #tpu.memory_space<smem>>
    %451 = vector.broadcast %450 : f32 to vector<1x10x10xf32>
    %452 = arith.mulf %451, %445 : vector<1x10x10xf32>
    %453 = arith.addf %432, %452 : vector<1x10x10xf32>
    %c56 = arith.constant 56 : index
    %454 = memref.load %arg4[%c56] : memref<135xf32, #tpu.memory_space<smem>>
    %455 = vector.broadcast %454 : f32 to vector<1x10x10xf32>
    %456 = arith.mulf %455, %445 : vector<1x10x10xf32>
    %457 = arith.addf %436, %456 : vector<1x10x10xf32>
    %c83 = arith.constant 83 : index
    %458 = memref.load %arg4[%c83] : memref<135xf32, #tpu.memory_space<smem>>
    %459 = vector.broadcast %458 : f32 to vector<1x10x10xf32>
    %460 = arith.mulf %459, %445 : vector<1x10x10xf32>
    %461 = arith.addf %440, %460 : vector<1x10x10xf32>
    %c110 = arith.constant 110 : index
    %462 = memref.load %arg4[%c110] : memref<135xf32, #tpu.memory_space<smem>>
    %463 = vector.broadcast %462 : f32 to vector<1x10x10xf32>
    %464 = arith.mulf %463, %445 : vector<1x10x10xf32>
    %465 = arith.addf %444, %464 : vector<1x10x10xf32>
    %466 = vector.extract_strided_slice %403 {offsets = [0, 1, 0], sizes = [1, 10, 10], strides = [1, 1, 1]} : vector<1x12x12xf32> to vector<1x10x10xf32>
    %c3_173 = arith.constant 3 : index
    %467 = memref.load %arg4[%c3_173] : memref<135xf32, #tpu.memory_space<smem>>
    %468 = vector.broadcast %467 : f32 to vector<1x10x10xf32>
    %469 = arith.mulf %468, %466 : vector<1x10x10xf32>
    %470 = arith.addf %449, %469 : vector<1x10x10xf32>
    %c30_174 = arith.constant 30 : index
    %471 = memref.load %arg4[%c30_174] : memref<135xf32, #tpu.memory_space<smem>>
    %472 = vector.broadcast %471 : f32 to vector<1x10x10xf32>
    %473 = arith.mulf %472, %466 : vector<1x10x10xf32>
    %474 = arith.addf %453, %473 : vector<1x10x10xf32>
    %c57 = arith.constant 57 : index
    %475 = memref.load %arg4[%c57] : memref<135xf32, #tpu.memory_space<smem>>
    %476 = vector.broadcast %475 : f32 to vector<1x10x10xf32>
    %477 = arith.mulf %476, %466 : vector<1x10x10xf32>
    %478 = arith.addf %457, %477 : vector<1x10x10xf32>
    %c84 = arith.constant 84 : index
    %479 = memref.load %arg4[%c84] : memref<135xf32, #tpu.memory_space<smem>>
    %480 = vector.broadcast %479 : f32 to vector<1x10x10xf32>
    %481 = arith.mulf %480, %466 : vector<1x10x10xf32>
    %482 = arith.addf %461, %481 : vector<1x10x10xf32>
    %c111 = arith.constant 111 : index
    %483 = memref.load %arg4[%c111] : memref<135xf32, #tpu.memory_space<smem>>
    %484 = vector.broadcast %483 : f32 to vector<1x10x10xf32>
    %485 = arith.mulf %484, %466 : vector<1x10x10xf32>
    %486 = arith.addf %465, %485 : vector<1x10x10xf32>
    %487 = vector.extract_strided_slice %403 {offsets = [0, 1, 1], sizes = [1, 10, 10], strides = [1, 1, 1]} : vector<1x12x12xf32> to vector<1x10x10xf32>
    %c4_175 = arith.constant 4 : index
    %488 = memref.load %arg4[%c4_175] : memref<135xf32, #tpu.memory_space<smem>>
    %489 = vector.broadcast %488 : f32 to vector<1x10x10xf32>
    %490 = arith.mulf %489, %487 : vector<1x10x10xf32>
    %491 = arith.addf %470, %490 : vector<1x10x10xf32>
    %c31_176 = arith.constant 31 : index
    %492 = memref.load %arg4[%c31_176] : memref<135xf32, #tpu.memory_space<smem>>
    %493 = vector.broadcast %492 : f32 to vector<1x10x10xf32>
    %494 = arith.mulf %493, %487 : vector<1x10x10xf32>
    %495 = arith.addf %474, %494 : vector<1x10x10xf32>
    %c58 = arith.constant 58 : index
    %496 = memref.load %arg4[%c58] : memref<135xf32, #tpu.memory_space<smem>>
    %497 = vector.broadcast %496 : f32 to vector<1x10x10xf32>
    %498 = arith.mulf %497, %487 : vector<1x10x10xf32>
    %499 = arith.addf %478, %498 : vector<1x10x10xf32>
    %c85 = arith.constant 85 : index
    %500 = memref.load %arg4[%c85] : memref<135xf32, #tpu.memory_space<smem>>
    %501 = vector.broadcast %500 : f32 to vector<1x10x10xf32>
    %502 = arith.mulf %501, %487 : vector<1x10x10xf32>
    %503 = arith.addf %482, %502 : vector<1x10x10xf32>
    %c112 = arith.constant 112 : index
    %504 = memref.load %arg4[%c112] : memref<135xf32, #tpu.memory_space<smem>>
    %505 = vector.broadcast %504 : f32 to vector<1x10x10xf32>
    %506 = arith.mulf %505, %487 : vector<1x10x10xf32>
    %507 = arith.addf %486, %506 : vector<1x10x10xf32>
    %508 = vector.extract_strided_slice %403 {offsets = [0, 1, 2], sizes = [1, 10, 10], strides = [1, 1, 1]} : vector<1x12x12xf32> to vector<1x10x10xf32>
    %c5_177 = arith.constant 5 : index
    %509 = memref.load %arg4[%c5_177] : memref<135xf32, #tpu.memory_space<smem>>
    %510 = vector.broadcast %509 : f32 to vector<1x10x10xf32>
    %511 = arith.mulf %510, %508 : vector<1x10x10xf32>
    %512 = arith.addf %491, %511 : vector<1x10x10xf32>
    %c32_178 = arith.constant 32 : index
    %513 = memref.load %arg4[%c32_178] : memref<135xf32, #tpu.memory_space<smem>>
    %514 = vector.broadcast %513 : f32 to vector<1x10x10xf32>
    %515 = arith.mulf %514, %508 : vector<1x10x10xf32>
    %516 = arith.addf %495, %515 : vector<1x10x10xf32>
    %c59 = arith.constant 59 : index
    %517 = memref.load %arg4[%c59] : memref<135xf32, #tpu.memory_space<smem>>
    %518 = vector.broadcast %517 : f32 to vector<1x10x10xf32>
    %519 = arith.mulf %518, %508 : vector<1x10x10xf32>
    %520 = arith.addf %499, %519 : vector<1x10x10xf32>
    %c86 = arith.constant 86 : index
    %521 = memref.load %arg4[%c86] : memref<135xf32, #tpu.memory_space<smem>>
    %522 = vector.broadcast %521 : f32 to vector<1x10x10xf32>
    %523 = arith.mulf %522, %508 : vector<1x10x10xf32>
    %524 = arith.addf %503, %523 : vector<1x10x10xf32>
    %c113 = arith.constant 113 : index
    %525 = memref.load %arg4[%c113] : memref<135xf32, #tpu.memory_space<smem>>
    %526 = vector.broadcast %525 : f32 to vector<1x10x10xf32>
    %527 = arith.mulf %526, %508 : vector<1x10x10xf32>
    %528 = arith.addf %507, %527 : vector<1x10x10xf32>
    %529 = vector.extract_strided_slice %403 {offsets = [0, 2, 0], sizes = [1, 10, 10], strides = [1, 1, 1]} : vector<1x12x12xf32> to vector<1x10x10xf32>
    %c6_179 = arith.constant 6 : index
    %530 = memref.load %arg4[%c6_179] : memref<135xf32, #tpu.memory_space<smem>>
    %531 = vector.broadcast %530 : f32 to vector<1x10x10xf32>
    %532 = arith.mulf %531, %529 : vector<1x10x10xf32>
    %533 = arith.addf %512, %532 : vector<1x10x10xf32>
    %c33_180 = arith.constant 33 : index
    %534 = memref.load %arg4[%c33_180] : memref<135xf32, #tpu.memory_space<smem>>
    %535 = vector.broadcast %534 : f32 to vector<1x10x10xf32>
    %536 = arith.mulf %535, %529 : vector<1x10x10xf32>
    %537 = arith.addf %516, %536 : vector<1x10x10xf32>
    %c60 = arith.constant 60 : index
    %538 = memref.load %arg4[%c60] : memref<135xf32, #tpu.memory_space<smem>>
    %539 = vector.broadcast %538 : f32 to vector<1x10x10xf32>
    %540 = arith.mulf %539, %529 : vector<1x10x10xf32>
    %541 = arith.addf %520, %540 : vector<1x10x10xf32>
    %c87 = arith.constant 87 : index
    %542 = memref.load %arg4[%c87] : memref<135xf32, #tpu.memory_space<smem>>
    %543 = vector.broadcast %542 : f32 to vector<1x10x10xf32>
    %544 = arith.mulf %543, %529 : vector<1x10x10xf32>
    %545 = arith.addf %524, %544 : vector<1x10x10xf32>
    %c114 = arith.constant 114 : index
    %546 = memref.load %arg4[%c114] : memref<135xf32, #tpu.memory_space<smem>>
    %547 = vector.broadcast %546 : f32 to vector<1x10x10xf32>
    %548 = arith.mulf %547, %529 : vector<1x10x10xf32>
    %549 = arith.addf %528, %548 : vector<1x10x10xf32>
    %550 = vector.extract_strided_slice %403 {offsets = [0, 2, 1], sizes = [1, 10, 10], strides = [1, 1, 1]} : vector<1x12x12xf32> to vector<1x10x10xf32>
    %c7_181 = arith.constant 7 : index
    %551 = memref.load %arg4[%c7_181] : memref<135xf32, #tpu.memory_space<smem>>
    %552 = vector.broadcast %551 : f32 to vector<1x10x10xf32>
    %553 = arith.mulf %552, %550 : vector<1x10x10xf32>
    %554 = arith.addf %533, %553 : vector<1x10x10xf32>
    %c34_182 = arith.constant 34 : index
    %555 = memref.load %arg4[%c34_182] : memref<135xf32, #tpu.memory_space<smem>>
    %556 = vector.broadcast %555 : f32 to vector<1x10x10xf32>
    %557 = arith.mulf %556, %550 : vector<1x10x10xf32>
    %558 = arith.addf %537, %557 : vector<1x10x10xf32>
    %c61 = arith.constant 61 : index
    %559 = memref.load %arg4[%c61] : memref<135xf32, #tpu.memory_space<smem>>
    %560 = vector.broadcast %559 : f32 to vector<1x10x10xf32>
    %561 = arith.mulf %560, %550 : vector<1x10x10xf32>
    %562 = arith.addf %541, %561 : vector<1x10x10xf32>
    %c88 = arith.constant 88 : index
    %563 = memref.load %arg4[%c88] : memref<135xf32, #tpu.memory_space<smem>>
    %564 = vector.broadcast %563 : f32 to vector<1x10x10xf32>
    %565 = arith.mulf %564, %550 : vector<1x10x10xf32>
    %566 = arith.addf %545, %565 : vector<1x10x10xf32>
    %c115 = arith.constant 115 : index
    %567 = memref.load %arg4[%c115] : memref<135xf32, #tpu.memory_space<smem>>
    %568 = vector.broadcast %567 : f32 to vector<1x10x10xf32>
    %569 = arith.mulf %568, %550 : vector<1x10x10xf32>
    %570 = arith.addf %549, %569 : vector<1x10x10xf32>
    %571 = vector.extract_strided_slice %403 {offsets = [0, 2, 2], sizes = [1, 10, 10], strides = [1, 1, 1]} : vector<1x12x12xf32> to vector<1x10x10xf32>
    %c8_183 = arith.constant 8 : index
    %572 = memref.load %arg4[%c8_183] : memref<135xf32, #tpu.memory_space<smem>>
    %573 = vector.broadcast %572 : f32 to vector<1x10x10xf32>
    %574 = arith.mulf %573, %571 : vector<1x10x10xf32>
    %575 = arith.addf %554, %574 : vector<1x10x10xf32>
    %c35_184 = arith.constant 35 : index
    %576 = memref.load %arg4[%c35_184] : memref<135xf32, #tpu.memory_space<smem>>
    %577 = vector.broadcast %576 : f32 to vector<1x10x10xf32>
    %578 = arith.mulf %577, %571 : vector<1x10x10xf32>
    %579 = arith.addf %558, %578 : vector<1x10x10xf32>
    %c62 = arith.constant 62 : index
    %580 = memref.load %arg4[%c62] : memref<135xf32, #tpu.memory_space<smem>>
    %581 = vector.broadcast %580 : f32 to vector<1x10x10xf32>
    %582 = arith.mulf %581, %571 : vector<1x10x10xf32>
    %583 = arith.addf %562, %582 : vector<1x10x10xf32>
    %c89 = arith.constant 89 : index
    %584 = memref.load %arg4[%c89] : memref<135xf32, #tpu.memory_space<smem>>
    %585 = vector.broadcast %584 : f32 to vector<1x10x10xf32>
    %586 = arith.mulf %585, %571 : vector<1x10x10xf32>
    %587 = arith.addf %566, %586 : vector<1x10x10xf32>
    %c116 = arith.constant 116 : index
    %588 = memref.load %arg4[%c116] : memref<135xf32, #tpu.memory_space<smem>>
    %589 = vector.broadcast %588 : f32 to vector<1x10x10xf32>
    %590 = arith.mulf %589, %571 : vector<1x10x10xf32>
    %591 = arith.addf %570, %590 : vector<1x10x10xf32>
    %592 = vector.extract_strided_slice %405 {offsets = [0, 0, 0], sizes = [1, 10, 10], strides = [1, 1, 1]} : vector<1x12x12xf32> to vector<1x10x10xf32>
    %c9_185 = arith.constant 9 : index
    %593 = memref.load %arg4[%c9_185] : memref<135xf32, #tpu.memory_space<smem>>
    %594 = vector.broadcast %593 : f32 to vector<1x10x10xf32>
    %595 = arith.mulf %594, %592 : vector<1x10x10xf32>
    %596 = arith.addf %575, %595 : vector<1x10x10xf32>
    %c36_186 = arith.constant 36 : index
    %597 = memref.load %arg4[%c36_186] : memref<135xf32, #tpu.memory_space<smem>>
    %598 = vector.broadcast %597 : f32 to vector<1x10x10xf32>
    %599 = arith.mulf %598, %592 : vector<1x10x10xf32>
    %600 = arith.addf %579, %599 : vector<1x10x10xf32>
    %c63 = arith.constant 63 : index
    %601 = memref.load %arg4[%c63] : memref<135xf32, #tpu.memory_space<smem>>
    %602 = vector.broadcast %601 : f32 to vector<1x10x10xf32>
    %603 = arith.mulf %602, %592 : vector<1x10x10xf32>
    %604 = arith.addf %583, %603 : vector<1x10x10xf32>
    %c90 = arith.constant 90 : index
    %605 = memref.load %arg4[%c90] : memref<135xf32, #tpu.memory_space<smem>>
    %606 = vector.broadcast %605 : f32 to vector<1x10x10xf32>
    %607 = arith.mulf %606, %592 : vector<1x10x10xf32>
    %608 = arith.addf %587, %607 : vector<1x10x10xf32>
    %c117 = arith.constant 117 : index
    %609 = memref.load %arg4[%c117] : memref<135xf32, #tpu.memory_space<smem>>
    %610 = vector.broadcast %609 : f32 to vector<1x10x10xf32>
    %611 = arith.mulf %610, %592 : vector<1x10x10xf32>
    %612 = arith.addf %591, %611 : vector<1x10x10xf32>
    %613 = vector.extract_strided_slice %405 {offsets = [0, 0, 1], sizes = [1, 10, 10], strides = [1, 1, 1]} : vector<1x12x12xf32> to vector<1x10x10xf32>
    %c10_187 = arith.constant 10 : index
    %614 = memref.load %arg4[%c10_187] : memref<135xf32, #tpu.memory_space<smem>>
    %615 = vector.broadcast %614 : f32 to vector<1x10x10xf32>
    %616 = arith.mulf %615, %613 : vector<1x10x10xf32>
    %617 = arith.addf %596, %616 : vector<1x10x10xf32>
    %c37_188 = arith.constant 37 : index
    %618 = memref.load %arg4[%c37_188] : memref<135xf32, #tpu.memory_space<smem>>
    %619 = vector.broadcast %618 : f32 to vector<1x10x10xf32>
    %620 = arith.mulf %619, %613 : vector<1x10x10xf32>
    %621 = arith.addf %600, %620 : vector<1x10x10xf32>
    %c64 = arith.constant 64 : index
    %622 = memref.load %arg4[%c64] : memref<135xf32, #tpu.memory_space<smem>>
    %623 = vector.broadcast %622 : f32 to vector<1x10x10xf32>
    %624 = arith.mulf %623, %613 : vector<1x10x10xf32>
    %625 = arith.addf %604, %624 : vector<1x10x10xf32>
    %c91 = arith.constant 91 : index
    %626 = memref.load %arg4[%c91] : memref<135xf32, #tpu.memory_space<smem>>
    %627 = vector.broadcast %626 : f32 to vector<1x10x10xf32>
    %628 = arith.mulf %627, %613 : vector<1x10x10xf32>
    %629 = arith.addf %608, %628 : vector<1x10x10xf32>
    %c118 = arith.constant 118 : index
    %630 = memref.load %arg4[%c118] : memref<135xf32, #tpu.memory_space<smem>>
    %631 = vector.broadcast %630 : f32 to vector<1x10x10xf32>
    %632 = arith.mulf %631, %613 : vector<1x10x10xf32>
    %633 = arith.addf %612, %632 : vector<1x10x10xf32>
    %634 = vector.extract_strided_slice %405 {offsets = [0, 0, 2], sizes = [1, 10, 10], strides = [1, 1, 1]} : vector<1x12x12xf32> to vector<1x10x10xf32>
    %c11_189 = arith.constant 11 : index
    %635 = memref.load %arg4[%c11_189] : memref<135xf32, #tpu.memory_space<smem>>
    %636 = vector.broadcast %635 : f32 to vector<1x10x10xf32>
    %637 = arith.mulf %636, %634 : vector<1x10x10xf32>
    %638 = arith.addf %617, %637 : vector<1x10x10xf32>
    %c38_190 = arith.constant 38 : index
    %639 = memref.load %arg4[%c38_190] : memref<135xf32, #tpu.memory_space<smem>>
    %640 = vector.broadcast %639 : f32 to vector<1x10x10xf32>
    %641 = arith.mulf %640, %634 : vector<1x10x10xf32>
    %642 = arith.addf %621, %641 : vector<1x10x10xf32>
    %c65 = arith.constant 65 : index
    %643 = memref.load %arg4[%c65] : memref<135xf32, #tpu.memory_space<smem>>
    %644 = vector.broadcast %643 : f32 to vector<1x10x10xf32>
    %645 = arith.mulf %644, %634 : vector<1x10x10xf32>
    %646 = arith.addf %625, %645 : vector<1x10x10xf32>
    %c92 = arith.constant 92 : index
    %647 = memref.load %arg4[%c92] : memref<135xf32, #tpu.memory_space<smem>>
    %648 = vector.broadcast %647 : f32 to vector<1x10x10xf32>
    %649 = arith.mulf %648, %634 : vector<1x10x10xf32>
    %650 = arith.addf %629, %649 : vector<1x10x10xf32>
    %c119 = arith.constant 119 : index
    %651 = memref.load %arg4[%c119] : memref<135xf32, #tpu.memory_space<smem>>
    %652 = vector.broadcast %651 : f32 to vector<1x10x10xf32>
    %653 = arith.mulf %652, %634 : vector<1x10x10xf32>
    %654 = arith.addf %633, %653 : vector<1x10x10xf32>
    %655 = vector.extract_strided_slice %405 {offsets = [0, 1, 0], sizes = [1, 10, 10], strides = [1, 1, 1]} : vector<1x12x12xf32> to vector<1x10x10xf32>
    %c12_191 = arith.constant 12 : index
    %656 = memref.load %arg4[%c12_191] : memref<135xf32, #tpu.memory_space<smem>>
    %657 = vector.broadcast %656 : f32 to vector<1x10x10xf32>
    %658 = arith.mulf %657, %655 : vector<1x10x10xf32>
    %659 = arith.addf %638, %658 : vector<1x10x10xf32>
    %c39_192 = arith.constant 39 : index
    %660 = memref.load %arg4[%c39_192] : memref<135xf32, #tpu.memory_space<smem>>
    %661 = vector.broadcast %660 : f32 to vector<1x10x10xf32>
    %662 = arith.mulf %661, %655 : vector<1x10x10xf32>
    %663 = arith.addf %642, %662 : vector<1x10x10xf32>
    %c66 = arith.constant 66 : index
    %664 = memref.load %arg4[%c66] : memref<135xf32, #tpu.memory_space<smem>>
    %665 = vector.broadcast %664 : f32 to vector<1x10x10xf32>
    %666 = arith.mulf %665, %655 : vector<1x10x10xf32>
    %667 = arith.addf %646, %666 : vector<1x10x10xf32>
    %c93 = arith.constant 93 : index
    %668 = memref.load %arg4[%c93] : memref<135xf32, #tpu.memory_space<smem>>
    %669 = vector.broadcast %668 : f32 to vector<1x10x10xf32>
    %670 = arith.mulf %669, %655 : vector<1x10x10xf32>
    %671 = arith.addf %650, %670 : vector<1x10x10xf32>
    %c120 = arith.constant 120 : index
    %672 = memref.load %arg4[%c120] : memref<135xf32, #tpu.memory_space<smem>>
    %673 = vector.broadcast %672 : f32 to vector<1x10x10xf32>
    %674 = arith.mulf %673, %655 : vector<1x10x10xf32>
    %675 = arith.addf %654, %674 : vector<1x10x10xf32>
    %676 = vector.extract_strided_slice %405 {offsets = [0, 1, 1], sizes = [1, 10, 10], strides = [1, 1, 1]} : vector<1x12x12xf32> to vector<1x10x10xf32>
    %c13_193 = arith.constant 13 : index
    %677 = memref.load %arg4[%c13_193] : memref<135xf32, #tpu.memory_space<smem>>
    %678 = vector.broadcast %677 : f32 to vector<1x10x10xf32>
    %679 = arith.mulf %678, %676 : vector<1x10x10xf32>
    %680 = arith.addf %659, %679 : vector<1x10x10xf32>
    %c40_194 = arith.constant 40 : index
    %681 = memref.load %arg4[%c40_194] : memref<135xf32, #tpu.memory_space<smem>>
    %682 = vector.broadcast %681 : f32 to vector<1x10x10xf32>
    %683 = arith.mulf %682, %676 : vector<1x10x10xf32>
    %684 = arith.addf %663, %683 : vector<1x10x10xf32>
    %c67 = arith.constant 67 : index
    %685 = memref.load %arg4[%c67] : memref<135xf32, #tpu.memory_space<smem>>
    %686 = vector.broadcast %685 : f32 to vector<1x10x10xf32>
    %687 = arith.mulf %686, %676 : vector<1x10x10xf32>
    %688 = arith.addf %667, %687 : vector<1x10x10xf32>
    %c94 = arith.constant 94 : index
    %689 = memref.load %arg4[%c94] : memref<135xf32, #tpu.memory_space<smem>>
    %690 = vector.broadcast %689 : f32 to vector<1x10x10xf32>
    %691 = arith.mulf %690, %676 : vector<1x10x10xf32>
    %692 = arith.addf %671, %691 : vector<1x10x10xf32>
    %c121 = arith.constant 121 : index
    %693 = memref.load %arg4[%c121] : memref<135xf32, #tpu.memory_space<smem>>
    %694 = vector.broadcast %693 : f32 to vector<1x10x10xf32>
    %695 = arith.mulf %694, %676 : vector<1x10x10xf32>
    %696 = arith.addf %675, %695 : vector<1x10x10xf32>
    %697 = vector.extract_strided_slice %405 {offsets = [0, 1, 2], sizes = [1, 10, 10], strides = [1, 1, 1]} : vector<1x12x12xf32> to vector<1x10x10xf32>
    %c14_195 = arith.constant 14 : index
    %698 = memref.load %arg4[%c14_195] : memref<135xf32, #tpu.memory_space<smem>>
    %699 = vector.broadcast %698 : f32 to vector<1x10x10xf32>
    %700 = arith.mulf %699, %697 : vector<1x10x10xf32>
    %701 = arith.addf %680, %700 : vector<1x10x10xf32>
    %c41_196 = arith.constant 41 : index
    %702 = memref.load %arg4[%c41_196] : memref<135xf32, #tpu.memory_space<smem>>
    %703 = vector.broadcast %702 : f32 to vector<1x10x10xf32>
    %704 = arith.mulf %703, %697 : vector<1x10x10xf32>
    %705 = arith.addf %684, %704 : vector<1x10x10xf32>
    %c68 = arith.constant 68 : index
    %706 = memref.load %arg4[%c68] : memref<135xf32, #tpu.memory_space<smem>>
    %707 = vector.broadcast %706 : f32 to vector<1x10x10xf32>
    %708 = arith.mulf %707, %697 : vector<1x10x10xf32>
    %709 = arith.addf %688, %708 : vector<1x10x10xf32>
    %c95 = arith.constant 95 : index
    %710 = memref.load %arg4[%c95] : memref<135xf32, #tpu.memory_space<smem>>
    %711 = vector.broadcast %710 : f32 to vector<1x10x10xf32>
    %712 = arith.mulf %711, %697 : vector<1x10x10xf32>
    %713 = arith.addf %692, %712 : vector<1x10x10xf32>
    %c122 = arith.constant 122 : index
    %714 = memref.load %arg4[%c122] : memref<135xf32, #tpu.memory_space<smem>>
    %715 = vector.broadcast %714 : f32 to vector<1x10x10xf32>
    %716 = arith.mulf %715, %697 : vector<1x10x10xf32>
    %717 = arith.addf %696, %716 : vector<1x10x10xf32>
    %718 = vector.extract_strided_slice %405 {offsets = [0, 2, 0], sizes = [1, 10, 10], strides = [1, 1, 1]} : vector<1x12x12xf32> to vector<1x10x10xf32>
    %c15_197 = arith.constant 15 : index
    %719 = memref.load %arg4[%c15_197] : memref<135xf32, #tpu.memory_space<smem>>
    %720 = vector.broadcast %719 : f32 to vector<1x10x10xf32>
    %721 = arith.mulf %720, %718 : vector<1x10x10xf32>
    %722 = arith.addf %701, %721 : vector<1x10x10xf32>
    %c42_198 = arith.constant 42 : index
    %723 = memref.load %arg4[%c42_198] : memref<135xf32, #tpu.memory_space<smem>>
    %724 = vector.broadcast %723 : f32 to vector<1x10x10xf32>
    %725 = arith.mulf %724, %718 : vector<1x10x10xf32>
    %726 = arith.addf %705, %725 : vector<1x10x10xf32>
    %c69 = arith.constant 69 : index
    %727 = memref.load %arg4[%c69] : memref<135xf32, #tpu.memory_space<smem>>
    %728 = vector.broadcast %727 : f32 to vector<1x10x10xf32>
    %729 = arith.mulf %728, %718 : vector<1x10x10xf32>
    %730 = arith.addf %709, %729 : vector<1x10x10xf32>
    %c96 = arith.constant 96 : index
    %731 = memref.load %arg4[%c96] : memref<135xf32, #tpu.memory_space<smem>>
    %732 = vector.broadcast %731 : f32 to vector<1x10x10xf32>
    %733 = arith.mulf %732, %718 : vector<1x10x10xf32>
    %734 = arith.addf %713, %733 : vector<1x10x10xf32>
    %c123 = arith.constant 123 : index
    %735 = memref.load %arg4[%c123] : memref<135xf32, #tpu.memory_space<smem>>
    %736 = vector.broadcast %735 : f32 to vector<1x10x10xf32>
    %737 = arith.mulf %736, %718 : vector<1x10x10xf32>
    %738 = arith.addf %717, %737 : vector<1x10x10xf32>
    %739 = vector.extract_strided_slice %405 {offsets = [0, 2, 1], sizes = [1, 10, 10], strides = [1, 1, 1]} : vector<1x12x12xf32> to vector<1x10x10xf32>
    %c16_199 = arith.constant 16 : index
    %740 = memref.load %arg4[%c16_199] : memref<135xf32, #tpu.memory_space<smem>>
    %741 = vector.broadcast %740 : f32 to vector<1x10x10xf32>
    %742 = arith.mulf %741, %739 : vector<1x10x10xf32>
    %743 = arith.addf %722, %742 : vector<1x10x10xf32>
    %c43_200 = arith.constant 43 : index
    %744 = memref.load %arg4[%c43_200] : memref<135xf32, #tpu.memory_space<smem>>
    %745 = vector.broadcast %744 : f32 to vector<1x10x10xf32>
    %746 = arith.mulf %745, %739 : vector<1x10x10xf32>
    %747 = arith.addf %726, %746 : vector<1x10x10xf32>
    %c70 = arith.constant 70 : index
    %748 = memref.load %arg4[%c70] : memref<135xf32, #tpu.memory_space<smem>>
    %749 = vector.broadcast %748 : f32 to vector<1x10x10xf32>
    %750 = arith.mulf %749, %739 : vector<1x10x10xf32>
    %751 = arith.addf %730, %750 : vector<1x10x10xf32>
    %c97 = arith.constant 97 : index
    %752 = memref.load %arg4[%c97] : memref<135xf32, #tpu.memory_space<smem>>
    %753 = vector.broadcast %752 : f32 to vector<1x10x10xf32>
    %754 = arith.mulf %753, %739 : vector<1x10x10xf32>
    %755 = arith.addf %734, %754 : vector<1x10x10xf32>
    %c124 = arith.constant 124 : index
    %756 = memref.load %arg4[%c124] : memref<135xf32, #tpu.memory_space<smem>>
    %757 = vector.broadcast %756 : f32 to vector<1x10x10xf32>
    %758 = arith.mulf %757, %739 : vector<1x10x10xf32>
    %759 = arith.addf %738, %758 : vector<1x10x10xf32>
    %760 = vector.extract_strided_slice %405 {offsets = [0, 2, 2], sizes = [1, 10, 10], strides = [1, 1, 1]} : vector<1x12x12xf32> to vector<1x10x10xf32>
    %c17_201 = arith.constant 17 : index
    %761 = memref.load %arg4[%c17_201] : memref<135xf32, #tpu.memory_space<smem>>
    %762 = vector.broadcast %761 : f32 to vector<1x10x10xf32>
    %763 = arith.mulf %762, %760 : vector<1x10x10xf32>
    %764 = arith.addf %743, %763 : vector<1x10x10xf32>
    %c44_202 = arith.constant 44 : index
    %765 = memref.load %arg4[%c44_202] : memref<135xf32, #tpu.memory_space<smem>>
    %766 = vector.broadcast %765 : f32 to vector<1x10x10xf32>
    %767 = arith.mulf %766, %760 : vector<1x10x10xf32>
    %768 = arith.addf %747, %767 : vector<1x10x10xf32>
    %c71 = arith.constant 71 : index
    %769 = memref.load %arg4[%c71] : memref<135xf32, #tpu.memory_space<smem>>
    %770 = vector.broadcast %769 : f32 to vector<1x10x10xf32>
    %771 = arith.mulf %770, %760 : vector<1x10x10xf32>
    %772 = arith.addf %751, %771 : vector<1x10x10xf32>
    %c98 = arith.constant 98 : index
    %773 = memref.load %arg4[%c98] : memref<135xf32, #tpu.memory_space<smem>>
    %774 = vector.broadcast %773 : f32 to vector<1x10x10xf32>
    %775 = arith.mulf %774, %760 : vector<1x10x10xf32>
    %776 = arith.addf %755, %775 : vector<1x10x10xf32>
    %c125 = arith.constant 125 : index
    %777 = memref.load %arg4[%c125] : memref<135xf32, #tpu.memory_space<smem>>
    %778 = vector.broadcast %777 : f32 to vector<1x10x10xf32>
    %779 = arith.mulf %778, %760 : vector<1x10x10xf32>
    %780 = arith.addf %759, %779 : vector<1x10x10xf32>
    %781 = vector.extract_strided_slice %407 {offsets = [0, 0, 0], sizes = [1, 10, 10], strides = [1, 1, 1]} : vector<1x12x12xf32> to vector<1x10x10xf32>
    %c18_203 = arith.constant 18 : index
    %782 = memref.load %arg4[%c18_203] : memref<135xf32, #tpu.memory_space<smem>>
    %783 = vector.broadcast %782 : f32 to vector<1x10x10xf32>
    %784 = arith.mulf %783, %781 : vector<1x10x10xf32>
    %785 = arith.addf %764, %784 : vector<1x10x10xf32>
    %c45_204 = arith.constant 45 : index
    %786 = memref.load %arg4[%c45_204] : memref<135xf32, #tpu.memory_space<smem>>
    %787 = vector.broadcast %786 : f32 to vector<1x10x10xf32>
    %788 = arith.mulf %787, %781 : vector<1x10x10xf32>
    %789 = arith.addf %768, %788 : vector<1x10x10xf32>
    %c72 = arith.constant 72 : index
    %790 = memref.load %arg4[%c72] : memref<135xf32, #tpu.memory_space<smem>>
    %791 = vector.broadcast %790 : f32 to vector<1x10x10xf32>
    %792 = arith.mulf %791, %781 : vector<1x10x10xf32>
    %793 = arith.addf %772, %792 : vector<1x10x10xf32>
    %c99 = arith.constant 99 : index
    %794 = memref.load %arg4[%c99] : memref<135xf32, #tpu.memory_space<smem>>
    %795 = vector.broadcast %794 : f32 to vector<1x10x10xf32>
    %796 = arith.mulf %795, %781 : vector<1x10x10xf32>
    %797 = arith.addf %776, %796 : vector<1x10x10xf32>
    %c126 = arith.constant 126 : index
    %798 = memref.load %arg4[%c126] : memref<135xf32, #tpu.memory_space<smem>>
    %799 = vector.broadcast %798 : f32 to vector<1x10x10xf32>
    %800 = arith.mulf %799, %781 : vector<1x10x10xf32>
    %801 = arith.addf %780, %800 : vector<1x10x10xf32>
    %802 = vector.extract_strided_slice %407 {offsets = [0, 0, 1], sizes = [1, 10, 10], strides = [1, 1, 1]} : vector<1x12x12xf32> to vector<1x10x10xf32>
    %c19_205 = arith.constant 19 : index
    %803 = memref.load %arg4[%c19_205] : memref<135xf32, #tpu.memory_space<smem>>
    %804 = vector.broadcast %803 : f32 to vector<1x10x10xf32>
    %805 = arith.mulf %804, %802 : vector<1x10x10xf32>
    %806 = arith.addf %785, %805 : vector<1x10x10xf32>
    %c46_206 = arith.constant 46 : index
    %807 = memref.load %arg4[%c46_206] : memref<135xf32, #tpu.memory_space<smem>>
    %808 = vector.broadcast %807 : f32 to vector<1x10x10xf32>
    %809 = arith.mulf %808, %802 : vector<1x10x10xf32>
    %810 = arith.addf %789, %809 : vector<1x10x10xf32>
    %c73 = arith.constant 73 : index
    %811 = memref.load %arg4[%c73] : memref<135xf32, #tpu.memory_space<smem>>
    %812 = vector.broadcast %811 : f32 to vector<1x10x10xf32>
    %813 = arith.mulf %812, %802 : vector<1x10x10xf32>
    %814 = arith.addf %793, %813 : vector<1x10x10xf32>
    %c100 = arith.constant 100 : index
    %815 = memref.load %arg4[%c100] : memref<135xf32, #tpu.memory_space<smem>>
    %816 = vector.broadcast %815 : f32 to vector<1x10x10xf32>
    %817 = arith.mulf %816, %802 : vector<1x10x10xf32>
    %818 = arith.addf %797, %817 : vector<1x10x10xf32>
    %c127 = arith.constant 127 : index
    %819 = memref.load %arg4[%c127] : memref<135xf32, #tpu.memory_space<smem>>
    %820 = vector.broadcast %819 : f32 to vector<1x10x10xf32>
    %821 = arith.mulf %820, %802 : vector<1x10x10xf32>
    %822 = arith.addf %801, %821 : vector<1x10x10xf32>
    %823 = vector.extract_strided_slice %407 {offsets = [0, 0, 2], sizes = [1, 10, 10], strides = [1, 1, 1]} : vector<1x12x12xf32> to vector<1x10x10xf32>
    %c20_207 = arith.constant 20 : index
    %824 = memref.load %arg4[%c20_207] : memref<135xf32, #tpu.memory_space<smem>>
    %825 = vector.broadcast %824 : f32 to vector<1x10x10xf32>
    %826 = arith.mulf %825, %823 : vector<1x10x10xf32>
    %827 = arith.addf %806, %826 : vector<1x10x10xf32>
    %c47_208 = arith.constant 47 : index
    %828 = memref.load %arg4[%c47_208] : memref<135xf32, #tpu.memory_space<smem>>
    %829 = vector.broadcast %828 : f32 to vector<1x10x10xf32>
    %830 = arith.mulf %829, %823 : vector<1x10x10xf32>
    %831 = arith.addf %810, %830 : vector<1x10x10xf32>
    %c74 = arith.constant 74 : index
    %832 = memref.load %arg4[%c74] : memref<135xf32, #tpu.memory_space<smem>>
    %833 = vector.broadcast %832 : f32 to vector<1x10x10xf32>
    %834 = arith.mulf %833, %823 : vector<1x10x10xf32>
    %835 = arith.addf %814, %834 : vector<1x10x10xf32>
    %c101 = arith.constant 101 : index
    %836 = memref.load %arg4[%c101] : memref<135xf32, #tpu.memory_space<smem>>
    %837 = vector.broadcast %836 : f32 to vector<1x10x10xf32>
    %838 = arith.mulf %837, %823 : vector<1x10x10xf32>
    %839 = arith.addf %818, %838 : vector<1x10x10xf32>
    %c128 = arith.constant 128 : index
    %840 = memref.load %arg4[%c128] : memref<135xf32, #tpu.memory_space<smem>>
    %841 = vector.broadcast %840 : f32 to vector<1x10x10xf32>
    %842 = arith.mulf %841, %823 : vector<1x10x10xf32>
    %843 = arith.addf %822, %842 : vector<1x10x10xf32>
    %844 = vector.extract_strided_slice %407 {offsets = [0, 1, 0], sizes = [1, 10, 10], strides = [1, 1, 1]} : vector<1x12x12xf32> to vector<1x10x10xf32>
    %c21_209 = arith.constant 21 : index
    %845 = memref.load %arg4[%c21_209] : memref<135xf32, #tpu.memory_space<smem>>
    %846 = vector.broadcast %845 : f32 to vector<1x10x10xf32>
    %847 = arith.mulf %846, %844 : vector<1x10x10xf32>
    %848 = arith.addf %827, %847 : vector<1x10x10xf32>
    %c48 = arith.constant 48 : index
    %849 = memref.load %arg4[%c48] : memref<135xf32, #tpu.memory_space<smem>>
    %850 = vector.broadcast %849 : f32 to vector<1x10x10xf32>
    %851 = arith.mulf %850, %844 : vector<1x10x10xf32>
    %852 = arith.addf %831, %851 : vector<1x10x10xf32>
    %c75 = arith.constant 75 : index
    %853 = memref.load %arg4[%c75] : memref<135xf32, #tpu.memory_space<smem>>
    %854 = vector.broadcast %853 : f32 to vector<1x10x10xf32>
    %855 = arith.mulf %854, %844 : vector<1x10x10xf32>
    %856 = arith.addf %835, %855 : vector<1x10x10xf32>
    %c102 = arith.constant 102 : index
    %857 = memref.load %arg4[%c102] : memref<135xf32, #tpu.memory_space<smem>>
    %858 = vector.broadcast %857 : f32 to vector<1x10x10xf32>
    %859 = arith.mulf %858, %844 : vector<1x10x10xf32>
    %860 = arith.addf %839, %859 : vector<1x10x10xf32>
    %c129 = arith.constant 129 : index
    %861 = memref.load %arg4[%c129] : memref<135xf32, #tpu.memory_space<smem>>
    %862 = vector.broadcast %861 : f32 to vector<1x10x10xf32>
    %863 = arith.mulf %862, %844 : vector<1x10x10xf32>
    %864 = arith.addf %843, %863 : vector<1x10x10xf32>
    %865 = vector.extract_strided_slice %407 {offsets = [0, 1, 1], sizes = [1, 10, 10], strides = [1, 1, 1]} : vector<1x12x12xf32> to vector<1x10x10xf32>
    %c22_210 = arith.constant 22 : index
    %866 = memref.load %arg4[%c22_210] : memref<135xf32, #tpu.memory_space<smem>>
    %867 = vector.broadcast %866 : f32 to vector<1x10x10xf32>
    %868 = arith.mulf %867, %865 : vector<1x10x10xf32>
    %869 = arith.addf %848, %868 : vector<1x10x10xf32>
    %c49 = arith.constant 49 : index
    %870 = memref.load %arg4[%c49] : memref<135xf32, #tpu.memory_space<smem>>
    %871 = vector.broadcast %870 : f32 to vector<1x10x10xf32>
    %872 = arith.mulf %871, %865 : vector<1x10x10xf32>
    %873 = arith.addf %852, %872 : vector<1x10x10xf32>
    %c76 = arith.constant 76 : index
    %874 = memref.load %arg4[%c76] : memref<135xf32, #tpu.memory_space<smem>>
    %875 = vector.broadcast %874 : f32 to vector<1x10x10xf32>
    %876 = arith.mulf %875, %865 : vector<1x10x10xf32>
    %877 = arith.addf %856, %876 : vector<1x10x10xf32>
    %c103 = arith.constant 103 : index
    %878 = memref.load %arg4[%c103] : memref<135xf32, #tpu.memory_space<smem>>
    %879 = vector.broadcast %878 : f32 to vector<1x10x10xf32>
    %880 = arith.mulf %879, %865 : vector<1x10x10xf32>
    %881 = arith.addf %860, %880 : vector<1x10x10xf32>
    %c130 = arith.constant 130 : index
    %882 = memref.load %arg4[%c130] : memref<135xf32, #tpu.memory_space<smem>>
    %883 = vector.broadcast %882 : f32 to vector<1x10x10xf32>
    %884 = arith.mulf %883, %865 : vector<1x10x10xf32>
    %885 = arith.addf %864, %884 : vector<1x10x10xf32>
    %886 = vector.extract_strided_slice %407 {offsets = [0, 1, 2], sizes = [1, 10, 10], strides = [1, 1, 1]} : vector<1x12x12xf32> to vector<1x10x10xf32>
    %c23_211 = arith.constant 23 : index
    %887 = memref.load %arg4[%c23_211] : memref<135xf32, #tpu.memory_space<smem>>
    %888 = vector.broadcast %887 : f32 to vector<1x10x10xf32>
    %889 = arith.mulf %888, %886 : vector<1x10x10xf32>
    %890 = arith.addf %869, %889 : vector<1x10x10xf32>
    %c50 = arith.constant 50 : index
    %891 = memref.load %arg4[%c50] : memref<135xf32, #tpu.memory_space<smem>>
    %892 = vector.broadcast %891 : f32 to vector<1x10x10xf32>
    %893 = arith.mulf %892, %886 : vector<1x10x10xf32>
    %894 = arith.addf %873, %893 : vector<1x10x10xf32>
    %c77 = arith.constant 77 : index
    %895 = memref.load %arg4[%c77] : memref<135xf32, #tpu.memory_space<smem>>
    %896 = vector.broadcast %895 : f32 to vector<1x10x10xf32>
    %897 = arith.mulf %896, %886 : vector<1x10x10xf32>
    %898 = arith.addf %877, %897 : vector<1x10x10xf32>
    %c104 = arith.constant 104 : index
    %899 = memref.load %arg4[%c104] : memref<135xf32, #tpu.memory_space<smem>>
    %900 = vector.broadcast %899 : f32 to vector<1x10x10xf32>
    %901 = arith.mulf %900, %886 : vector<1x10x10xf32>
    %902 = arith.addf %881, %901 : vector<1x10x10xf32>
    %c131 = arith.constant 131 : index
    %903 = memref.load %arg4[%c131] : memref<135xf32, #tpu.memory_space<smem>>
    %904 = vector.broadcast %903 : f32 to vector<1x10x10xf32>
    %905 = arith.mulf %904, %886 : vector<1x10x10xf32>
    %906 = arith.addf %885, %905 : vector<1x10x10xf32>
    %907 = vector.extract_strided_slice %407 {offsets = [0, 2, 0], sizes = [1, 10, 10], strides = [1, 1, 1]} : vector<1x12x12xf32> to vector<1x10x10xf32>
    %c24_212 = arith.constant 24 : index
    %908 = memref.load %arg4[%c24_212] : memref<135xf32, #tpu.memory_space<smem>>
    %909 = vector.broadcast %908 : f32 to vector<1x10x10xf32>
    %910 = arith.mulf %909, %907 : vector<1x10x10xf32>
    %911 = arith.addf %890, %910 : vector<1x10x10xf32>
    %c51 = arith.constant 51 : index
    %912 = memref.load %arg4[%c51] : memref<135xf32, #tpu.memory_space<smem>>
    %913 = vector.broadcast %912 : f32 to vector<1x10x10xf32>
    %914 = arith.mulf %913, %907 : vector<1x10x10xf32>
    %915 = arith.addf %894, %914 : vector<1x10x10xf32>
    %c78 = arith.constant 78 : index
    %916 = memref.load %arg4[%c78] : memref<135xf32, #tpu.memory_space<smem>>
    %917 = vector.broadcast %916 : f32 to vector<1x10x10xf32>
    %918 = arith.mulf %917, %907 : vector<1x10x10xf32>
    %919 = arith.addf %898, %918 : vector<1x10x10xf32>
    %c105 = arith.constant 105 : index
    %920 = memref.load %arg4[%c105] : memref<135xf32, #tpu.memory_space<smem>>
    %921 = vector.broadcast %920 : f32 to vector<1x10x10xf32>
    %922 = arith.mulf %921, %907 : vector<1x10x10xf32>
    %923 = arith.addf %902, %922 : vector<1x10x10xf32>
    %c132 = arith.constant 132 : index
    %924 = memref.load %arg4[%c132] : memref<135xf32, #tpu.memory_space<smem>>
    %925 = vector.broadcast %924 : f32 to vector<1x10x10xf32>
    %926 = arith.mulf %925, %907 : vector<1x10x10xf32>
    %927 = arith.addf %906, %926 : vector<1x10x10xf32>
    %928 = vector.extract_strided_slice %407 {offsets = [0, 2, 1], sizes = [1, 10, 10], strides = [1, 1, 1]} : vector<1x12x12xf32> to vector<1x10x10xf32>
    %c25_213 = arith.constant 25 : index
    %929 = memref.load %arg4[%c25_213] : memref<135xf32, #tpu.memory_space<smem>>
    %930 = vector.broadcast %929 : f32 to vector<1x10x10xf32>
    %931 = arith.mulf %930, %928 : vector<1x10x10xf32>
    %932 = arith.addf %911, %931 : vector<1x10x10xf32>
    %c52 = arith.constant 52 : index
    %933 = memref.load %arg4[%c52] : memref<135xf32, #tpu.memory_space<smem>>
    %934 = vector.broadcast %933 : f32 to vector<1x10x10xf32>
    %935 = arith.mulf %934, %928 : vector<1x10x10xf32>
    %936 = arith.addf %915, %935 : vector<1x10x10xf32>
    %c79 = arith.constant 79 : index
    %937 = memref.load %arg4[%c79] : memref<135xf32, #tpu.memory_space<smem>>
    %938 = vector.broadcast %937 : f32 to vector<1x10x10xf32>
    %939 = arith.mulf %938, %928 : vector<1x10x10xf32>
    %940 = arith.addf %919, %939 : vector<1x10x10xf32>
    %c106 = arith.constant 106 : index
    %941 = memref.load %arg4[%c106] : memref<135xf32, #tpu.memory_space<smem>>
    %942 = vector.broadcast %941 : f32 to vector<1x10x10xf32>
    %943 = arith.mulf %942, %928 : vector<1x10x10xf32>
    %944 = arith.addf %923, %943 : vector<1x10x10xf32>
    %c133 = arith.constant 133 : index
    %945 = memref.load %arg4[%c133] : memref<135xf32, #tpu.memory_space<smem>>
    %946 = vector.broadcast %945 : f32 to vector<1x10x10xf32>
    %947 = arith.mulf %946, %928 : vector<1x10x10xf32>
    %948 = arith.addf %927, %947 : vector<1x10x10xf32>
    %949 = vector.extract_strided_slice %407 {offsets = [0, 2, 2], sizes = [1, 10, 10], strides = [1, 1, 1]} : vector<1x12x12xf32> to vector<1x10x10xf32>
    %c26_214 = arith.constant 26 : index
    %950 = memref.load %arg4[%c26_214] : memref<135xf32, #tpu.memory_space<smem>>
    %951 = vector.broadcast %950 : f32 to vector<1x10x10xf32>
    %952 = arith.mulf %951, %949 : vector<1x10x10xf32>
    %953 = arith.addf %932, %952 : vector<1x10x10xf32>
    %c53 = arith.constant 53 : index
    %954 = memref.load %arg4[%c53] : memref<135xf32, #tpu.memory_space<smem>>
    %955 = vector.broadcast %954 : f32 to vector<1x10x10xf32>
    %956 = arith.mulf %955, %949 : vector<1x10x10xf32>
    %957 = arith.addf %936, %956 : vector<1x10x10xf32>
    %c80 = arith.constant 80 : index
    %958 = memref.load %arg4[%c80] : memref<135xf32, #tpu.memory_space<smem>>
    %959 = vector.broadcast %958 : f32 to vector<1x10x10xf32>
    %960 = arith.mulf %959, %949 : vector<1x10x10xf32>
    %961 = arith.addf %940, %960 : vector<1x10x10xf32>
    %c107 = arith.constant 107 : index
    %962 = memref.load %arg4[%c107] : memref<135xf32, #tpu.memory_space<smem>>
    %963 = vector.broadcast %962 : f32 to vector<1x10x10xf32>
    %964 = arith.mulf %963, %949 : vector<1x10x10xf32>
    %965 = arith.addf %944, %964 : vector<1x10x10xf32>
    %c134 = arith.constant 134 : index
    %966 = memref.load %arg4[%c134] : memref<135xf32, #tpu.memory_space<smem>>
    %967 = vector.broadcast %966 : f32 to vector<1x10x10xf32>
    %968 = arith.mulf %967, %949 : vector<1x10x10xf32>
    %969 = arith.addf %948, %968 : vector<1x10x10xf32>
    %c0_215 = arith.constant 0 : index
    %970 = memref.load %arg5[%c0_215] : memref<5xf32, #tpu.memory_space<smem>>
    %971 = vector.broadcast %970 : f32 to vector<1x10x10xf32>
    %972 = arith.addf %953, %971 : vector<1x10x10xf32>
    %cst_216 = arith.constant 0.000000e+00 : f32
    %973 = vector.broadcast %cst_216 : f32 to vector<1x10x10xf32>
    %974 = arith.maximumf %972, %973 : vector<1x10x10xf32>
    %c1_217 = arith.constant 1 : index
    %975 = memref.load %arg5[%c1_217] : memref<5xf32, #tpu.memory_space<smem>>
    %976 = vector.broadcast %975 : f32 to vector<1x10x10xf32>
    %977 = arith.addf %957, %976 : vector<1x10x10xf32>
    %cst_218 = arith.constant 0.000000e+00 : f32
    %978 = vector.broadcast %cst_218 : f32 to vector<1x10x10xf32>
    %979 = arith.maximumf %977, %978 : vector<1x10x10xf32>
    %c2_219 = arith.constant 2 : index
    %980 = memref.load %arg5[%c2_219] : memref<5xf32, #tpu.memory_space<smem>>
    %981 = vector.broadcast %980 : f32 to vector<1x10x10xf32>
    %982 = arith.addf %961, %981 : vector<1x10x10xf32>
    %cst_220 = arith.constant 0.000000e+00 : f32
    %983 = vector.broadcast %cst_220 : f32 to vector<1x10x10xf32>
    %984 = arith.maximumf %982, %983 : vector<1x10x10xf32>
    %c3_221 = arith.constant 3 : index
    %985 = memref.load %arg5[%c3_221] : memref<5xf32, #tpu.memory_space<smem>>
    %986 = vector.broadcast %985 : f32 to vector<1x10x10xf32>
    %987 = arith.addf %965, %986 : vector<1x10x10xf32>
    %cst_222 = arith.constant 0.000000e+00 : f32
    %988 = vector.broadcast %cst_222 : f32 to vector<1x10x10xf32>
    %989 = arith.maximumf %987, %988 : vector<1x10x10xf32>
    %c4_223 = arith.constant 4 : index
    %990 = memref.load %arg5[%c4_223] : memref<5xf32, #tpu.memory_space<smem>>
    %991 = vector.broadcast %990 : f32 to vector<1x10x10xf32>
    %992 = arith.addf %969, %991 : vector<1x10x10xf32>
    %cst_224 = arith.constant 0.000000e+00 : f32
    %993 = vector.broadcast %cst_224 : f32 to vector<1x10x10xf32>
    %994 = arith.maximumf %992, %993 : vector<1x10x10xf32>
    %cst_225 = arith.constant 0.000000e+00 : f32
    %995 = vector.broadcast %cst_225 : f32 to vector<1x1x256xf32>
    %c0_226 = arith.constant 0 : index
    %c0_227 = arith.constant 0 : index
    %c0_228 = arith.constant 0 : index
    %996 = vector.load %arg14[%c0_226, %c0_227, %c0_228] : memref<1x1x256xf32, #tpu.memory_space<vmem>>, vector<1x1x256xf32>
    tpu.vector_store %arg14[%c0_226, %c0_227, %c0_228], %995 {strides = array<i32>} : memref<1x1x256xf32, #tpu.memory_space<vmem>>, vector<1x1x256xf32>,
    %997 = vector.extract_strided_slice %974 {offsets = [0, 0, 0], sizes = [1, 9, 9], strides = [1, 1, 1]} : vector<1x10x10xf32> to vector<1x9x9xf32>
    %998 = vector.extract_strided_slice %974 {offsets = [0, 0, 1], sizes = [1, 9, 9], strides = [1, 1, 1]} : vector<1x10x10xf32> to vector<1x9x9xf32>
    %999 = arith.maximumf %997, %998 : vector<1x9x9xf32>
    %1000 = vector.extract_strided_slice %974 {offsets = [0, 1, 0], sizes = [1, 9, 9], strides = [1, 1, 1]} : vector<1x10x10xf32> to vector<1x9x9xf32>
    %1001 = vector.extract_strided_slice %974 {offsets = [0, 1, 1], sizes = [1, 9, 9], strides = [1, 1, 1]} : vector<1x10x10xf32> to vector<1x9x9xf32>
    %1002 = arith.maximumf %1000, %1001 : vector<1x9x9xf32>
    %1003 = arith.maximumf %999, %1002 : vector<1x9x9xf32>
    %1004 = vector.extract_strided_slice %1003 {offsets = [0, 0, 0], sizes = [1, 1, 9], strides = [1, 1, 1]} : vector<1x9x9xf32> to vector<1x1x9xf32>
    %c0_229 = arith.constant 0 : index
    %c0_230 = arith.constant 0 : index
    %c0_231 = arith.constant 0 : index
    %1005 = vector.load %arg14[%c0_229, %c0_230, %c0_231] : memref<1x1x256xf32, #tpu.memory_space<vmem>>, vector<1x1x9xf32>
    tpu.vector_store %arg14[%c0_229, %c0_230, %c0_231], %1004 {strides = array<i32>} : memref<1x1x256xf32, #tpu.memory_space<vmem>>, vector<1x1x9xf32>,
    %1006 = vector.extract_strided_slice %1003 {offsets = [0, 2, 0], sizes = [1, 1, 9], strides = [1, 1, 1]} : vector<1x9x9xf32> to vector<1x1x9xf32>
    %c0_232 = arith.constant 0 : index
    %c0_233 = arith.constant 0 : index
    %c9_234 = arith.constant 9 : index
    %1007 = vector.load %arg14[%c0_232, %c0_233, %c9_234] : memref<1x1x256xf32, #tpu.memory_space<vmem>>, vector<1x1x9xf32>
    tpu.vector_store %arg14[%c0_232, %c0_233, %c9_234], %1006 {strides = array<i32>} : memref<1x1x256xf32, #tpu.memory_space<vmem>>, vector<1x1x9xf32>,
    %1008 = vector.extract_strided_slice %1003 {offsets = [0, 4, 0], sizes = [1, 1, 9], strides = [1, 1, 1]} : vector<1x9x9xf32> to vector<1x1x9xf32>
    %c0_235 = arith.constant 0 : index
    %c0_236 = arith.constant 0 : index
    %c18_237 = arith.constant 18 : index
    %1009 = vector.load %arg14[%c0_235, %c0_236, %c18_237] : memref<1x1x256xf32, #tpu.memory_space<vmem>>, vector<1x1x9xf32>
    tpu.vector_store %arg14[%c0_235, %c0_236, %c18_237], %1008 {strides = array<i32>} : memref<1x1x256xf32, #tpu.memory_space<vmem>>, vector<1x1x9xf32>,
    %1010 = vector.extract_strided_slice %1003 {offsets = [0, 6, 0], sizes = [1, 1, 9], strides = [1, 1, 1]} : vector<1x9x9xf32> to vector<1x1x9xf32>
    %c0_238 = arith.constant 0 : index
    %c0_239 = arith.constant 0 : index
    %c27_240 = arith.constant 27 : index
    %1011 = vector.load %arg14[%c0_238, %c0_239, %c27_240] : memref<1x1x256xf32, #tpu.memory_space<vmem>>, vector<1x1x9xf32>
    tpu.vector_store %arg14[%c0_238, %c0_239, %c27_240], %1010 {strides = array<i32>} : memref<1x1x256xf32, #tpu.memory_space<vmem>>, vector<1x1x9xf32>,
    %1012 = vector.extract_strided_slice %1003 {offsets = [0, 8, 0], sizes = [1, 1, 9], strides = [1, 1, 1]} : vector<1x9x9xf32> to vector<1x1x9xf32>
    %c0_241 = arith.constant 0 : index
    %c0_242 = arith.constant 0 : index
    %c36_243 = arith.constant 36 : index
    %1013 = vector.load %arg14[%c0_241, %c0_242, %c36_243] : memref<1x1x256xf32, #tpu.memory_space<vmem>>, vector<1x1x9xf32>
    tpu.vector_store %arg14[%c0_241, %c0_242, %c36_243], %1012 {strides = array<i32>} : memref<1x1x256xf32, #tpu.memory_space<vmem>>, vector<1x1x9xf32>,
    %1014 = vector.extract_strided_slice %979 {offsets = [0, 0, 0], sizes = [1, 9, 9], strides = [1, 1, 1]} : vector<1x10x10xf32> to vector<1x9x9xf32>
    %1015 = vector.extract_strided_slice %979 {offsets = [0, 0, 1], sizes = [1, 9, 9], strides = [1, 1, 1]} : vector<1x10x10xf32> to vector<1x9x9xf32>
    %1016 = arith.maximumf %1014, %1015 : vector<1x9x9xf32>
    %1017 = vector.extract_strided_slice %979 {offsets = [0, 1, 0], sizes = [1, 9, 9], strides = [1, 1, 1]} : vector<1x10x10xf32> to vector<1x9x9xf32>
    %1018 = vector.extract_strided_slice %979 {offsets = [0, 1, 1], sizes = [1, 9, 9], strides = [1, 1, 1]} : vector<1x10x10xf32> to vector<1x9x9xf32>
    %1019 = arith.maximumf %1017, %1018 : vector<1x9x9xf32>
    %1020 = arith.maximumf %1016, %1019 : vector<1x9x9xf32>
    %1021 = vector.extract_strided_slice %1020 {offsets = [0, 0, 0], sizes = [1, 1, 9], strides = [1, 1, 1]} : vector<1x9x9xf32> to vector<1x1x9xf32>
    %c0_244 = arith.constant 0 : index
    %c0_245 = arith.constant 0 : index
    %c45_246 = arith.constant 45 : index
    %1022 = vector.load %arg14[%c0_244, %c0_245, %c45_246] : memref<1x1x256xf32, #tpu.memory_space<vmem>>, vector<1x1x9xf32>
    tpu.vector_store %arg14[%c0_244, %c0_245, %c45_246], %1021 {strides = array<i32>} : memref<1x1x256xf32, #tpu.memory_space<vmem>>, vector<1x1x9xf32>,
    %1023 = vector.extract_strided_slice %1020 {offsets = [0, 2, 0], sizes = [1, 1, 9], strides = [1, 1, 1]} : vector<1x9x9xf32> to vector<1x1x9xf32>
    %c0_247 = arith.constant 0 : index
    %c0_248 = arith.constant 0 : index
    %c54_249 = arith.constant 54 : index
    %1024 = vector.load %arg14[%c0_247, %c0_248, %c54_249] : memref<1x1x256xf32, #tpu.memory_space<vmem>>, vector<1x1x9xf32>
    tpu.vector_store %arg14[%c0_247, %c0_248, %c54_249], %1023 {strides = array<i32>} : memref<1x1x256xf32, #tpu.memory_space<vmem>>, vector<1x1x9xf32>,
    %1025 = vector.extract_strided_slice %1020 {offsets = [0, 4, 0], sizes = [1, 1, 9], strides = [1, 1, 1]} : vector<1x9x9xf32> to vector<1x1x9xf32>
    %c0_250 = arith.constant 0 : index
    %c0_251 = arith.constant 0 : index
    %c63_252 = arith.constant 63 : index
    %1026 = vector.load %arg14[%c0_250, %c0_251, %c63_252] : memref<1x1x256xf32, #tpu.memory_space<vmem>>, vector<1x1x9xf32>
    tpu.vector_store %arg14[%c0_250, %c0_251, %c63_252], %1025 {strides = array<i32>} : memref<1x1x256xf32, #tpu.memory_space<vmem>>, vector<1x1x9xf32>,
    %1027 = vector.extract_strided_slice %1020 {offsets = [0, 6, 0], sizes = [1, 1, 9], strides = [1, 1, 1]} : vector<1x9x9xf32> to vector<1x1x9xf32>
    %c0_253 = arith.constant 0 : index
    %c0_254 = arith.constant 0 : index
    %c72_255 = arith.constant 72 : index
    %1028 = vector.load %arg14[%c0_253, %c0_254, %c72_255] : memref<1x1x256xf32, #tpu.memory_space<vmem>>, vector<1x1x9xf32>
    tpu.vector_store %arg14[%c0_253, %c0_254, %c72_255], %1027 {strides = array<i32>} : memref<1x1x256xf32, #tpu.memory_space<vmem>>, vector<1x1x9xf32>,
    %1029 = vector.extract_strided_slice %1020 {offsets = [0, 8, 0], sizes = [1, 1, 9], strides = [1, 1, 1]} : vector<1x9x9xf32> to vector<1x1x9xf32>
    %c0_256 = arith.constant 0 : index
    %c0_257 = arith.constant 0 : index
    %c81_258 = arith.constant 81 : index
    %1030 = vector.load %arg14[%c0_256, %c0_257, %c81_258] : memref<1x1x256xf32, #tpu.memory_space<vmem>>, vector<1x1x9xf32>
    tpu.vector_store %arg14[%c0_256, %c0_257, %c81_258], %1029 {strides = array<i32>} : memref<1x1x256xf32, #tpu.memory_space<vmem>>, vector<1x1x9xf32>,
    %1031 = vector.extract_strided_slice %984 {offsets = [0, 0, 0], sizes = [1, 9, 9], strides = [1, 1, 1]} : vector<1x10x10xf32> to vector<1x9x9xf32>
    %1032 = vector.extract_strided_slice %984 {offsets = [0, 0, 1], sizes = [1, 9, 9], strides = [1, 1, 1]} : vector<1x10x10xf32> to vector<1x9x9xf32>
    %1033 = arith.maximumf %1031, %1032 : vector<1x9x9xf32>
    %1034 = vector.extract_strided_slice %984 {offsets = [0, 1, 0], sizes = [1, 9, 9], strides = [1, 1, 1]} : vector<1x10x10xf32> to vector<1x9x9xf32>
    %1035 = vector.extract_strided_slice %984 {offsets = [0, 1, 1], sizes = [1, 9, 9], strides = [1, 1, 1]} : vector<1x10x10xf32> to vector<1x9x9xf32>
    %1036 = arith.maximumf %1034, %1035 : vector<1x9x9xf32>
    %1037 = arith.maximumf %1033, %1036 : vector<1x9x9xf32>
    %1038 = vector.extract_strided_slice %1037 {offsets = [0, 0, 0], sizes = [1, 1, 9], strides = [1, 1, 1]} : vector<1x9x9xf32> to vector<1x1x9xf32>
    %c0_259 = arith.constant 0 : index
    %c0_260 = arith.constant 0 : index
    %c90_261 = arith.constant 90 : index
    %1039 = vector.load %arg14[%c0_259, %c0_260, %c90_261] : memref<1x1x256xf32, #tpu.memory_space<vmem>>, vector<1x1x9xf32>
    tpu.vector_store %arg14[%c0_259, %c0_260, %c90_261], %1038 {strides = array<i32>} : memref<1x1x256xf32, #tpu.memory_space<vmem>>, vector<1x1x9xf32>,
    %1040 = vector.extract_strided_slice %1037 {offsets = [0, 2, 0], sizes = [1, 1, 9], strides = [1, 1, 1]} : vector<1x9x9xf32> to vector<1x1x9xf32>
    %c0_262 = arith.constant 0 : index
    %c0_263 = arith.constant 0 : index
    %c99_264 = arith.constant 99 : index
    %1041 = vector.load %arg14[%c0_262, %c0_263, %c99_264] : memref<1x1x256xf32, #tpu.memory_space<vmem>>, vector<1x1x9xf32>
    tpu.vector_store %arg14[%c0_262, %c0_263, %c99_264], %1040 {strides = array<i32>} : memref<1x1x256xf32, #tpu.memory_space<vmem>>, vector<1x1x9xf32>,
    %1042 = vector.extract_strided_slice %1037 {offsets = [0, 4, 0], sizes = [1, 1, 9], strides = [1, 1, 1]} : vector<1x9x9xf32> to vector<1x1x9xf32>
    %c0_265 = arith.constant 0 : index
    %c0_266 = arith.constant 0 : index
    %c108_267 = arith.constant 108 : index
    %1043 = vector.load %arg14[%c0_265, %c0_266, %c108_267] : memref<1x1x256xf32, #tpu.memory_space<vmem>>, vector<1x1x9xf32>
    tpu.vector_store %arg14[%c0_265, %c0_266, %c108_267], %1042 {strides = array<i32>} : memref<1x1x256xf32, #tpu.memory_space<vmem>>, vector<1x1x9xf32>,
    %1044 = vector.extract_strided_slice %1037 {offsets = [0, 6, 0], sizes = [1, 1, 9], strides = [1, 1, 1]} : vector<1x9x9xf32> to vector<1x1x9xf32>
    %c0_268 = arith.constant 0 : index
    %c0_269 = arith.constant 0 : index
    %c117_270 = arith.constant 117 : index
    %1045 = vector.load %arg14[%c0_268, %c0_269, %c117_270] : memref<1x1x256xf32, #tpu.memory_space<vmem>>, vector<1x1x9xf32>
    tpu.vector_store %arg14[%c0_268, %c0_269, %c117_270], %1044 {strides = array<i32>} : memref<1x1x256xf32, #tpu.memory_space<vmem>>, vector<1x1x9xf32>,
    %1046 = vector.extract_strided_slice %1037 {offsets = [0, 8, 0], sizes = [1, 1, 9], strides = [1, 1, 1]} : vector<1x9x9xf32> to vector<1x1x9xf32>
    %c0_271 = arith.constant 0 : index
    %c0_272 = arith.constant 0 : index
    %c126_273 = arith.constant 126 : index
    %1047 = vector.load %arg14[%c0_271, %c0_272, %c126_273] : memref<1x1x256xf32, #tpu.memory_space<vmem>>, vector<1x1x9xf32>
    tpu.vector_store %arg14[%c0_271, %c0_272, %c126_273], %1046 {strides = array<i32>} : memref<1x1x256xf32, #tpu.memory_space<vmem>>, vector<1x1x9xf32>,
    %1048 = vector.extract_strided_slice %989 {offsets = [0, 0, 0], sizes = [1, 9, 9], strides = [1, 1, 1]} : vector<1x10x10xf32> to vector<1x9x9xf32>
    %1049 = vector.extract_strided_slice %989 {offsets = [0, 0, 1], sizes = [1, 9, 9], strides = [1, 1, 1]} : vector<1x10x10xf32> to vector<1x9x9xf32>
    %1050 = arith.maximumf %1048, %1049 : vector<1x9x9xf32>
    %1051 = vector.extract_strided_slice %989 {offsets = [0, 1, 0], sizes = [1, 9, 9], strides = [1, 1, 1]} : vector<1x10x10xf32> to vector<1x9x9xf32>
    %1052 = vector.extract_strided_slice %989 {offsets = [0, 1, 1], sizes = [1, 9, 9], strides = [1, 1, 1]} : vector<1x10x10xf32> to vector<1x9x9xf32>
    %1053 = arith.maximumf %1051, %1052 : vector<1x9x9xf32>
    %1054 = arith.maximumf %1050, %1053 : vector<1x9x9xf32>
    %1055 = vector.extract_strided_slice %1054 {offsets = [0, 0, 0], sizes = [1, 1, 9], strides = [1, 1, 1]} : vector<1x9x9xf32> to vector<1x1x9xf32>
    %c0_274 = arith.constant 0 : index
    %c0_275 = arith.constant 0 : index
    %c135 = arith.constant 135 : index
    %1056 = vector.load %arg14[%c0_274, %c0_275, %c135] : memref<1x1x256xf32, #tpu.memory_space<vmem>>, vector<1x1x9xf32>
    tpu.vector_store %arg14[%c0_274, %c0_275, %c135], %1055 {strides = array<i32>} : memref<1x1x256xf32, #tpu.memory_space<vmem>>, vector<1x1x9xf32>,
    %1057 = vector.extract_strided_slice %1054 {offsets = [0, 2, 0], sizes = [1, 1, 9], strides = [1, 1, 1]} : vector<1x9x9xf32> to vector<1x1x9xf32>
    %c0_276 = arith.constant 0 : index
    %c0_277 = arith.constant 0 : index
    %c144 = arith.constant 144 : index
    %1058 = vector.load %arg14[%c0_276, %c0_277, %c144] : memref<1x1x256xf32, #tpu.memory_space<vmem>>, vector<1x1x9xf32>
    tpu.vector_store %arg14[%c0_276, %c0_277, %c144], %1057 {strides = array<i32>} : memref<1x1x256xf32, #tpu.memory_space<vmem>>, vector<1x1x9xf32>,
    %1059 = vector.extract_strided_slice %1054 {offsets = [0, 4, 0], sizes = [1, 1, 9], strides = [1, 1, 1]} : vector<1x9x9xf32> to vector<1x1x9xf32>
    %c0_278 = arith.constant 0 : index
    %c0_279 = arith.constant 0 : index
    %c153 = arith.constant 153 : index
    %1060 = vector.load %arg14[%c0_278, %c0_279, %c153] : memref<1x1x256xf32, #tpu.memory_space<vmem>>, vector<1x1x9xf32>
    tpu.vector_store %arg14[%c0_278, %c0_279, %c153], %1059 {strides = array<i32>} : memref<1x1x256xf32, #tpu.memory_space<vmem>>, vector<1x1x9xf32>,
    %1061 = vector.extract_strided_slice %1054 {offsets = [0, 6, 0], sizes = [1, 1, 9], strides = [1, 1, 1]} : vector<1x9x9xf32> to vector<1x1x9xf32>
    %c0_280 = arith.constant 0 : index
    %c0_281 = arith.constant 0 : index
    %c162 = arith.constant 162 : index
    %1062 = vector.load %arg14[%c0_280, %c0_281, %c162] : memref<1x1x256xf32, #tpu.memory_space<vmem>>, vector<1x1x9xf32>
    tpu.vector_store %arg14[%c0_280, %c0_281, %c162], %1061 {strides = array<i32>} : memref<1x1x256xf32, #tpu.memory_space<vmem>>, vector<1x1x9xf32>,
    %1063 = vector.extract_strided_slice %1054 {offsets = [0, 8, 0], sizes = [1, 1, 9], strides = [1, 1, 1]} : vector<1x9x9xf32> to vector<1x1x9xf32>
    %c0_282 = arith.constant 0 : index
    %c0_283 = arith.constant 0 : index
    %c171 = arith.constant 171 : index
    %1064 = vector.load %arg14[%c0_282, %c0_283, %c171] : memref<1x1x256xf32, #tpu.memory_space<vmem>>, vector<1x1x9xf32>
    tpu.vector_store %arg14[%c0_282, %c0_283, %c171], %1063 {strides = array<i32>} : memref<1x1x256xf32, #tpu.memory_space<vmem>>, vector<1x1x9xf32>,
    %1065 = vector.extract_strided_slice %994 {offsets = [0, 0, 0], sizes = [1, 9, 9], strides = [1, 1, 1]} : vector<1x10x10xf32> to vector<1x9x9xf32>
    %1066 = vector.extract_strided_slice %994 {offsets = [0, 0, 1], sizes = [1, 9, 9], strides = [1, 1, 1]} : vector<1x10x10xf32> to vector<1x9x9xf32>
    %1067 = arith.maximumf %1065, %1066 : vector<1x9x9xf32>
    %1068 = vector.extract_strided_slice %994 {offsets = [0, 1, 0], sizes = [1, 9, 9], strides = [1, 1, 1]} : vector<1x10x10xf32> to vector<1x9x9xf32>
    %1069 = vector.extract_strided_slice %994 {offsets = [0, 1, 1], sizes = [1, 9, 9], strides = [1, 1, 1]} : vector<1x10x10xf32> to vector<1x9x9xf32>
    %1070 = arith.maximumf %1068, %1069 : vector<1x9x9xf32>
    %1071 = arith.maximumf %1067, %1070 : vector<1x9x9xf32>
    %1072 = vector.extract_strided_slice %1071 {offsets = [0, 0, 0], sizes = [1, 1, 9], strides = [1, 1, 1]} : vector<1x9x9xf32> to vector<1x1x9xf32>
    %c0_284 = arith.constant 0 : index
    %c0_285 = arith.constant 0 : index
    %c180 = arith.constant 180 : index
    %1073 = vector.load %arg14[%c0_284, %c0_285, %c180] : memref<1x1x256xf32, #tpu.memory_space<vmem>>, vector<1x1x9xf32>
    tpu.vector_store %arg14[%c0_284, %c0_285, %c180], %1072 {strides = array<i32>} : memref<1x1x256xf32, #tpu.memory_space<vmem>>, vector<1x1x9xf32>,
    %1074 = vector.extract_strided_slice %1071 {offsets = [0, 2, 0], sizes = [1, 1, 9], strides = [1, 1, 1]} : vector<1x9x9xf32> to vector<1x1x9xf32>
    %c0_286 = arith.constant 0 : index
    %c0_287 = arith.constant 0 : index
    %c189 = arith.constant 189 : index
    %1075 = vector.load %arg14[%c0_286, %c0_287, %c189] : memref<1x1x256xf32, #tpu.memory_space<vmem>>, vector<1x1x9xf32>
    tpu.vector_store %arg14[%c0_286, %c0_287, %c189], %1074 {strides = array<i32>} : memref<1x1x256xf32, #tpu.memory_space<vmem>>, vector<1x1x9xf32>,
    %1076 = vector.extract_strided_slice %1071 {offsets = [0, 4, 0], sizes = [1, 1, 9], strides = [1, 1, 1]} : vector<1x9x9xf32> to vector<1x1x9xf32>
    %c0_288 = arith.constant 0 : index
    %c0_289 = arith.constant 0 : index
    %c198 = arith.constant 198 : index
    %1077 = vector.load %arg14[%c0_288, %c0_289, %c198] : memref<1x1x256xf32, #tpu.memory_space<vmem>>, vector<1x1x9xf32>
    tpu.vector_store %arg14[%c0_288, %c0_289, %c198], %1076 {strides = array<i32>} : memref<1x1x256xf32, #tpu.memory_space<vmem>>, vector<1x1x9xf32>,
    %1078 = vector.extract_strided_slice %1071 {offsets = [0, 6, 0], sizes = [1, 1, 9], strides = [1, 1, 1]} : vector<1x9x9xf32> to vector<1x1x9xf32>
    %c0_290 = arith.constant 0 : index
    %c0_291 = arith.constant 0 : index
    %c207 = arith.constant 207 : index
    %1079 = vector.load %arg14[%c0_290, %c0_291, %c207] : memref<1x1x256xf32, #tpu.memory_space<vmem>>, vector<1x1x9xf32>
    tpu.vector_store %arg14[%c0_290, %c0_291, %c207], %1078 {strides = array<i32>} : memref<1x1x256xf32, #tpu.memory_space<vmem>>, vector<1x1x9xf32>,
    %1080 = vector.extract_strided_slice %1071 {offsets = [0, 8, 0], sizes = [1, 1, 9], strides = [1, 1, 1]} : vector<1x9x9xf32> to vector<1x1x9xf32>
    %c0_292 = arith.constant 0 : index
    %c0_293 = arith.constant 0 : index
    %c216 = arith.constant 216 : index
    %1081 = vector.load %arg14[%c0_292, %c0_293, %c216] : memref<1x1x256xf32, #tpu.memory_space<vmem>>, vector<1x1x9xf32>
    tpu.vector_store %arg14[%c0_292, %c0_293, %c216], %1080 {strides = array<i32>} : memref<1x1x256xf32, #tpu.memory_space<vmem>>, vector<1x1x9xf32>,
    %c0_294 = arith.constant 0 : index
    %c0_295 = arith.constant 0 : index
    %c0_296 = arith.constant 0 : index
    %1082 = vector.load %arg14[%c0_294, %c0_295, %c0_296] : memref<1x1x256xf32, #tpu.memory_space<vmem>>, vector<1x1x256xf32>
    %1083 = vector.shape_cast %1082 : vector<1x1x256xf32> to vector<1x256xf32>
    %c0_297 = arith.constant 0 : index
    %c0_298 = arith.constant 0 : index
    %1084 = vector.load %arg6[%c0_297, %c0_298] : memref<256x256xf32, #tpu.memory_space<vmem>>, vector<256x256xf32>
    %cst_299 = arith.constant dense<0.000000e+00> : vector<1x256xf32>
    %1085 = tpu.matmul %1083, %1084, %cst_299 {dimension_numbers = #tpu.dot_dimension_numbers<[1], [0], [0], [1], [0, 0, 1, 1], [], []>} : vector<1x256xf32>, vector<256x256xf32>, vector<1x256xf32> -> vector<1x256xf32>
    %c0_300 = arith.constant 0 : index
    %c0_301 = arith.constant 0 : index
    %1086 = vector.load %arg7[%c0_300, %c0_301] : memref<1x256xf32, #tpu.memory_space<vmem>>, vector<1x256xf32>
    %1087 = arith.addf %1085, %1086 : vector<1x256xf32>
    %cst_302 = arith.constant 0.000000e+00 : f32
    %1088 = vector.broadcast %cst_302 : f32 to vector<1x256xf32>
    %1089 = arith.maximumf %1087, %1088 : vector<1x256xf32>
    %c0_303 = arith.constant 0 : index
    %c0_304 = arith.constant 0 : index
    %1090 = vector.load %arg8[%c0_303, %c0_304] : memref<256x128xf32, #tpu.memory_space<vmem>>, vector<256x128xf32>
    %cst_305 = arith.constant dense<0.000000e+00> : vector<1x128xf32>
    %1091 = tpu.matmul %1089, %1090, %cst_305 {dimension_numbers = #tpu.dot_dimension_numbers<[1], [0], [0], [1], [0, 0, 1, 1], [], []>} : vector<1x256xf32>, vector<256x128xf32>, vector<1x128xf32> -> vector<1x128xf32>
    %c0_306 = arith.constant 0 : index
    %c0_307 = arith.constant 0 : index
    %1092 = vector.load %arg9[%c0_306, %c0_307] : memref<1x128xf32, #tpu.memory_space<vmem>>, vector<1x128xf32>
    %1093 = arith.addf %1091, %1092 : vector<1x128xf32>
    %cst_308 = arith.constant 0.000000e+00 : f32
    %1094 = vector.broadcast %cst_308 : f32 to vector<1x128xf32>
    %1095 = arith.maximumf %1093, %1094 : vector<1x128xf32>
    %c0_309 = arith.constant 0 : index
    %c0_310 = arith.constant 0 : index
    %1096 = vector.load %arg10[%c0_309, %c0_310] : memref<128x128xf32, #tpu.memory_space<vmem>>, vector<128x128xf32>
    %cst_311 = arith.constant dense<0.000000e+00> : vector<1x128xf32>
    %1097 = tpu.matmul %1095, %1096, %cst_311 {dimension_numbers = #tpu.dot_dimension_numbers<[1], [0], [0], [1], [0, 0, 1, 1], [], []>} : vector<1x128xf32>, vector<128x128xf32>, vector<1x128xf32> -> vector<1x128xf32>
    %c0_312 = arith.constant 0 : index
    %c0_313 = arith.constant 0 : index
    %1098 = vector.load %arg11[%c0_312, %c0_313] : memref<1x128xf32, #tpu.memory_space<vmem>>, vector<1x128xf32>
    %1099 = arith.addf %1097, %1098 : vector<1x128xf32>
    %c0_314 = arith.constant 0 : index
    %c0_315 = arith.constant 0 : index
    %c0_316 = arith.constant 0 : index
    %1100 = vector.load %arg12[%c0_314, %c0_315, %c0_316] : memref<1x2x128xf32, #tpu.memory_space<vmem>>, vector<1x1x128xf32>
    %1101 = vector.shape_cast %1100 : vector<1x1x128xf32> to vector<1x128xf32>
    %1102 = vector.shape_cast %1095 : vector<1x128xf32> to vector<1x1x128xf32>
    tpu.vector_store %arg12[%c0_314, %c0_315, %c0_316], %1102 {strides = array<i32>} : memref<1x2x128xf32, #tpu.memory_space<vmem>>, vector<1x1x128xf32>,
    %c0_317 = arith.constant 0 : index
    %c1_318 = arith.constant 1 : index
    %c0_319 = arith.constant 0 : index
    %1103 = vector.load %arg12[%c0_317, %c1_318, %c0_319] : memref<1x2x128xf32, #tpu.memory_space<vmem>>, vector<1x1x128xf32>
    %1104 = vector.shape_cast %1103 : vector<1x1x128xf32> to vector<1x128xf32>
    %1105 = vector.shape_cast %1099 : vector<1x128xf32> to vector<1x1x128xf32>
    tpu.vector_store %arg12[%c0_317, %c1_318, %c0_319], %1105 {strides = array<i32>} : memref<1x2x128xf32, #tpu.memory_space<vmem>>, vector<1x1x128xf32>,
    return
  }
  func.func @transform_0(%arg0: i32) -> (i32, i32, i32) {
    %c0_i32 = arith.constant 0 : i32
    %c0_i32_0 = arith.constant 0 : i32
    %c0_i32_1 = arith.constant 0 : i32
    return %arg0, %c0_i32, %c0_i32_0 : i32, i32, i32
  }
  func.func @transform_1(%arg0: i32) -> i32 {
    %c0_i32 = arith.constant 0 : i32
    %c0_i32_0 = arith.constant 0 : i32
    return %c0_i32 : i32
  }
  func.func @transform_2(%arg0: i32) -> i32 {
    %c0_i32 = arith.constant 0 : i32
    %c0_i32_0 = arith.constant 0 : i32
    return %c0_i32 : i32
  }
  func.func @transform_3(%arg0: i32) -> i32 {
    %c0_i32 = arith.constant 0 : i32
    %c0_i32_0 = arith.constant 0 : i32
    return %c0_i32 : i32
  }
  func.func @transform_4(%arg0: i32) -> i32 {
    %c0_i32 = arith.constant 0 : i32
    %c0_i32_0 = arith.constant 0 : i32
    return %c0_i32 : i32
  }
  func.func @transform_5(%arg0: i32) -> (i32, i32) {
    %c0_i32 = arith.constant 0 : i32
    %c0_i32_0 = arith.constant 0 : i32
    %c0_i32_1 = arith.constant 0 : i32
    return %c0_i32, %c0_i32_0 : i32, i32
  }
  func.func @transform_6(%arg0: i32) -> (i32, i32) {
    %c0_i32 = arith.constant 0 : i32
    %c0_i32_0 = arith.constant 0 : i32
    %c0_i32_1 = arith.constant 0 : i32
    return %c0_i32, %c0_i32_0 : i32, i32
  }
  func.func @transform_7(%arg0: i32) -> (i32, i32) {
    %c0_i32 = arith.constant 0 : i32
    %c0_i32_0 = arith.constant 0 : i32
    %c0_i32_1 = arith.constant 0 : i32
    return %c0_i32, %c0_i32_0 : i32, i32
  }
  func.func @transform_8(%arg0: i32) -> (i32, i32) {
    %c0_i32 = arith.constant 0 : i32
    %c0_i32_0 = arith.constant 0 : i32
    %c0_i32_1 = arith.constant 0 : i32
    return %c0_i32, %c0_i32_0 : i32, i32
  }
  func.func @transform_9(%arg0: i32) -> (i32, i32) {
    %c0_i32 = arith.constant 0 : i32
    %c0_i32_0 = arith.constant 0 : i32
    %c0_i32_1 = arith.constant 0 : i32
    return %c0_i32, %c0_i32_0 : i32, i32
  }
  func.func @transform_10(%arg0: i32) -> (i32, i32) {
    %c0_i32 = arith.constant 0 : i32
    %c0_i32_0 = arith.constant 0 : i32
    %c0_i32_1 = arith.constant 0 : i32
    return %c0_i32, %c0_i32_0 : i32, i32
  }
  func.func @transform_11(%arg0: i32) -> (i32, i32, i32) {
    %c0_i32 = arith.constant 0 : i32
    %c0_i32_0 = arith.constant 0 : i32
    %c0_i32_1 = arith.constant 0 : i32
    return %arg0, %c0_i32, %c0_i32_0 : i32, i32, i32
  }
}

</mosaic_0001>

<llo_original>
// kernel: fmnist_cnn_forward.1
$region0: #{fmnist_cnn_forward.1}
  #allocation0 [shape = 'u32[]', space=smem, size = 0x4, offset = 0x4, fixed_abs, tag = 'smem constant byte address 0x4 - core index']
  #allocation1 [shape = 'u32[144,128]{1,0:T(1,128)}', space=vmem, size = 0x12000, scoped, tag = 'internal scratch']
  #allocation2 [shape = 'f32[3,1,12,12]{3,2,1,0:T(8,128)}', space=vmem, size = 0x6000, scoped, tag = 'scratch operand']
  #allocation3 [shape = 'f32[1,1,256]{2,1,0:T(1,128)}', space=vmem, size = 0x400, scoped, tag = 'scratch operand']
  %s0 = inlined_call_operand.vmem [shape: f32[2,28,28], index: 0, kind: input, shape index: {}]
  %s1 = inlined_call_operand.vmem [shape: f32[48], index: 1, kind: input, shape index: {}]
  %s2 = inlined_call_operand.vmem [shape: f32[3], index: 2, kind: input, shape index: {}]
  %s3 = inlined_call_operand.vmem [shape: f32[135], index: 3, kind: input, shape index: {}]
  %s4 = inlined_call_operand.vmem [shape: f32[5], index: 4, kind: input, shape index: {}]
  %s5 = inlined_call_operand.vmem [shape: f32[256,256], index: 5, kind: input, shape index: {}]
  %s6 = inlined_call_operand.vmem [shape: f32[1,256], index: 6, kind: input, shape index: {}]
  %s7 = inlined_call_operand.vmem [shape: f32[256,128], index: 7, kind: input, shape index: {}]
  %s8 = inlined_call_operand.vmem [shape: f32[1,128], index: 8, kind: input, shape index: {}]
  %s9 = inlined_call_operand.vmem [shape: f32[128,128], index: 9, kind: input, shape index: {}]
  %s10 = inlined_call_operand.vmem [shape: f32[1,128], index: 10, kind: input, shape index: {}]
  %s11 = inlined_call_operand.vmem [shape: f32[2,2,128], index: 11, kind: output, shape index: {}]
  %s12 = sld [smem:[#allocation0]]
  $region93: #{fmnist_cnn_forward.1} parent=0
    _
  %s14 = ssub.s32 1, %s12
  %s15 = scalar_select 0, %s14, %s12
  $region1: #{fmnist_cnn_forward.1} parent=0
    #allocation4 [shape = 'u8[512]{0}', space=smem, size = 0x200, scoped, tag = 'input window, operand 1, single buffered']
    #allocation5 [shape = 's32[2]{0}', space=sflag, size = 0x8, scoped, tag = 'scoped memory for fmnist_cnn_forward.1']
    #allocation6 [shape = 'u8[512]{0}', space=smem, size = 0x200, scoped, tag = 'input window, operand 2, single buffered']
    #allocation7 [shape = 's32[1]{0}', space=sflag, size = 0x4, scoped, tag = 'scoped memory for fmnist_cnn_forward.1']
    #allocation8 [shape = 'u8[1024]{0}', space=smem, size = 0x400, scoped, tag = 'input window, operand 3, single buffered']
    #allocation9 [shape = 'u8[512]{0}', space=smem, size = 0x200, scoped, tag = 'input window, operand 4, single buffered']
    #allocation10 [shape = 's32[1]{0}', space=sflag, size = 0x4, scoped, tag = 'scoped memory for fmnist_cnn_forward.1']
    %16 = vsyncpa [#allocation5], 0
    %17 = vsyncpa [#allocation7], 0
    %18 = vsyncpa [#allocation10], 0
    loop: start=0, step=1, limit=4
    $region2: #{fmnist_cnn_forward.1} parent=1 // loop_pre_header
      _
    $region3: #{fmnist_cnn_forward.1} parent=1 // loop_header
      %s20 = sphi 0, %s24
      %p21 = scmp.ge.s32.totalorder %s20, 4
      %s30 = sphi 0, %s32
      %s33 = sphi 0, %s30
      %s34 = sphi 0, %s33
      %s50 = sphi 0, %s34
      %s54 = sphi 0, %s54
      %s56 = sphi 0, %s54
      %s57 = sphi 0, %s56
      %s71 = sphi 0, %s57
      %s75 = sphi 0, %s75
      %s77 = sphi 0, %s75
      %s78 = sphi 0, %s77
      %s92 = sphi 0, %s78
      %s96 = sphi 0, %s96
      %s98 = sphi 0, %s96
      %s99 = sphi 0, %s98
      %s113 = sphi 0, %s99
      %s117 = sphi 0, %s117
      %s119 = sphi 0, %s117
      %s120 = sphi 0, %s119
      %s134 = sphi 0, %s120
      %s138 = sphi 0, %s138
      %s140 = sphi 0, %s138
      %s141 = sphi 0, %s140
      %s155 = sphi 0, %s141
      %s159 = sphi 0, %s159
      %s161 = sphi 0, %s159
      %s162 = sphi 0, %s161
      %s176 = sphi 0, %s162
      %s180 = sphi 0, %s180
      %s182 = sphi 0, %s180
      %s183 = sphi 0, %s182
      %s197 = sphi 0, %s183
      %s201 = sphi 0, %s201
      %s203 = sphi 0, %s201
      %s204 = sphi 0, %s203
      %s218 = sphi 0, %s204
      %s222 = sphi 0, %s222
      %s224 = sphi 0, %s222
      %s225 = sphi 0, %s224
      %s239 = sphi 0, %s225
      %s243 = sphi 0, %s243
      %s245 = sphi 0, %s243
      %s246 = sphi 0, %s245
      %s260 = sphi 0, %s246
      %s266 = sphi 0, %s268
      %s269 = sphi 0, %s266
      %s270 = sphi 0, %s269
      %s286 = sphi 0, %s270
    $region4: #{fmnist_cnn_forward.1} parent=1 // loop_header_branch
      %23 = sbr.rel (%p21) target = $region8
    $region5: #{fmnist_cnn_forward.1} parent=1 // loop_body
      %s25 = ssub.s32 %s20, 1
      %s26 = ssub.s32 %s20, 2
      %s27 = sadd.s32 %s20, 1
      %s28 = ssub.s32 %s20, %s27
      %p29 = scmp.eq.s32.totalorder %s28, 0
      %s31 = sadd.s32 %s30, 1
      %s32 = scalar_select %p29, %s30, %s31
      %p35 = pneg %p29
      %p36 = scmp.eq.s32.totalorder %s20, 1
      %p37 = por %p35, %p36
      %p38 = scmp.ne.s32.totalorder %s30, %s33
      %p39 = scmp.eq.s32.totalorder %s20, 0
      %p40 = por %p38, %p39
      %p41 = scmp.ne.s32.totalorder %s30, %s33
      %p42 = scmp.eq.s32.totalorder %s25, 1
      %p43 = por %p41, %p42
      %p44 = scmp.ne.s32.totalorder %s33, %s34
      %p45 = scmp.eq.s32.totalorder %s25, 0
      %p46 = por %p44, %p45
      %p47 = scmp.ne.s32.totalorder %s33, %s34
      %p48 = scmp.eq.s32.totalorder %s26, 1
      %p49 = por %p47, %p48
      %p51 = scmp.ne.s32.totalorder %s34, %s50
      %p52 = scmp.eq.s32.totalorder %s26, 0
      %p53 = por %p51, %p52
      %s55 = sadd.s32 %s54, 1
      %p58 = scmp.eq.s32.totalorder %s20, 1
      %p59 = scmp.ne.s32.totalorder %s54, %s56
      %p60 = scmp.eq.s32.totalorder %s20, 0
      %p61 = por %p59, %p60
      %p62 = scmp.ne.s32.totalorder %s54, %s56
      %p63 = scmp.eq.s32.totalorder %s25, 1
      %p64 = por %p62, %p63
      %p65 = scmp.ne.s32.totalorder %s56, %s57
      %p66 = scmp.eq.s32.totalorder %s25, 0
      %p67 = por %p65, %p66
      %p68 = scmp.ne.s32.totalorder %s56, %s57
      %p69 = scmp.eq.s32.totalorder %s26, 1
      %p70 = por %p68, %p69
      %p72 = scmp.ne.s32.totalorder %s57, %s71
      %p73 = scmp.eq.s32.totalorder %s26, 0
      %p74 = por %p72, %p73
      %s76 = sadd.s32 %s75, 1
      %p79 = scmp.eq.s32.totalorder %s20, 1
      %p80 = scmp.ne.s32.totalorder %s75, %s77
      %p81 = scmp.eq.s32.totalorder %s20, 0
      %p82 = por %p80, %p81
      %p83 = scmp.ne.s32.totalorder %s75, %s77
      %p84 = scmp.eq.s32.totalorder %s25, 1
      %p85 = por %p83, %p84
      %p86 = scmp.ne.s32.totalorder %s77, %s78
      %p87 = scmp.eq.s32.totalorder %s25, 0
      %p88 = por %p86, %p87
      %p89 = scmp.ne.s32.totalorder %s77, %s78
      %p90 = scmp.eq.s32.totalorder %s26, 1
      %p91 = por %p89, %p90
      %p93 = scmp.ne.s32.totalorder %s78, %s92
      %p94 = scmp.eq.s32.totalorder %s26, 0
      %p95 = por %p93, %p94
      %s97 = sadd.s32 %s96, 1
      %p100 = scmp.eq.s32.totalorder %s20, 1
      %p101 = scmp.ne.s32.totalorder %s96, %s98
      %p102 = scmp.eq.s32.totalorder %s20, 0
      %p103 = por %p101, %p102
      %p104 = scmp.ne.s32.totalorder %s96, %s98
      %p105 = scmp.eq.s32.totalorder %s25, 1
      %p106 = por %p104, %p105
      %p107 = scmp.ne.s32.totalorder %s98, %s99
      %p108 = scmp.eq.s32.totalorder %s25, 0
      %p109 = por %p107, %p108
      %p110 = scmp.ne.s32.totalorder %s98, %s99
      %p111 = scmp.eq.s32.totalorder %s26, 1
      %p112 = por %p110, %p111
      %p114 = scmp.ne.s32.totalorder %s99, %s113
      %p115 = scmp.eq.s32.totalorder %s26, 0
      %p116 = por %p114, %p115
      %s118 = sadd.s32 %s117, 1
      %p121 = scmp.eq.s32.totalorder %s20, 1
      %p122 = scmp.ne.s32.totalorder %s117, %s119
      %p123 = scmp.eq.s32.totalorder %s20, 0
      %p124 = por %p122, %p123
      %p125 = scmp.ne.s32.totalorder %s117, %s119
      %p126 = scmp.eq.s32.totalorder %s25, 1
      %p127 = por %p125, %p126
      %p128 = scmp.ne.s32.totalorder %s119, %s120
      %p129 = scmp.eq.s32.totalorder %s25, 0
      %p130 = por %p128, %p129
      %p131 = scmp.ne.s32.totalorder %s119, %s120
      %p132 = scmp.eq.s32.totalorder %s26, 1
      %p133 = por %p131, %p132
      %p135 = scmp.ne.s32.totalorder %s120, %s134
      %p136 = scmp.eq.s32.totalorder %s26, 0
      %p137 = por %p135, %p136
      %s139 = sadd.s32 %s138, 1
      %p142 = scmp.eq.s32.totalorder %s20, 1
      %p143 = scmp.ne.s32.totalorder %s138, %s140
      %p144 = scmp.eq.s32.totalorder %s20, 0
      %p145 = por %p143, %p144
      %p146 = scmp.ne.s32.totalorder %s138, %s140
      %p147 = scmp.eq.s32.totalorder %s25, 1
      %p148 = por %p146, %p147
      %p149 = scmp.ne.s32.totalorder %s140, %s141
      %p150 = scmp.eq.s32.totalorder %s25, 0
      %p151 = por %p149, %p150
      %p152 = scmp.ne.s32.totalorder %s140, %s141
      %p153 = scmp.eq.s32.totalorder %s26, 1
      %p154 = por %p152, %p153
      %p156 = scmp.ne.s32.totalorder %s141, %s155
      %p157 = scmp.eq.s32.totalorder %s26, 0
      %p158 = por %p156, %p157
      %s160 = sadd.s32 %s159, 1
      %p163 = scmp.eq.s32.totalorder %s20, 1
      %p164 = scmp.ne.s32.totalorder %s159, %s161
      %p165 = scmp.eq.s32.totalorder %s20, 0
      %p166 = por %p164, %p165
      %p167 = scmp.ne.s32.totalorder %s159, %s161
      %p168 = scmp.eq.s32.totalorder %s25, 1
      %p169 = por %p167, %p168
      %p170 = scmp.ne.s32.totalorder %s161, %s162
      %p171 = scmp.eq.s32.totalorder %s25, 0
      %p172 = por %p170, %p171
      %p173 = scmp.ne.s32.totalorder %s161, %s162
      %p174 = scmp.eq.s32.totalorder %s26, 1
      %p175 = por %p173, %p174
      %p177 = scmp.ne.s32.totalorder %s162, %s176
      %p178 = scmp.eq.s32.totalorder %s26, 0
      %p179 = por %p177, %p178
      %s181 = sadd.s32 %s180, 1
      %p184 = scmp.eq.s32.totalorder %s20, 1
      %p185 = scmp.ne.s32.totalorder %s180, %s182
      %p186 = scmp.eq.s32.totalorder %s20, 0
      %p187 = por %p185, %p186
      %p188 = scmp.ne.s32.totalorder %s180, %s182
      %p189 = scmp.eq.s32.totalorder %s25, 1
      %p190 = por %p188, %p189
      %p191 = scmp.ne.s32.totalorder %s182, %s183
      %p192 = scmp.eq.s32.totalorder %s25, 0
      %p193 = por %p191, %p192
      %p194 = scmp.ne.s32.totalorder %s182, %s183
      %p195 = scmp.eq.s32.totalorder %s26, 1
      %p196 = por %p194, %p195
      %p198 = scmp.ne.s32.totalorder %s183, %s197
      %p199 = scmp.eq.s32.totalorder %s26, 0
      %p200 = por %p198, %p199
      %s202 = sadd.s32 %s201, 1
      %p205 = scmp.eq.s32.totalorder %s20, 1
      %p206 = scmp.ne.s32.totalorder %s201, %s203
      %p207 = scmp.eq.s32.totalorder %s20, 0
      %p208 = por %p206, %p207
      %p209 = scmp.ne.s32.totalorder %s201, %s203
      %p210 = scmp.eq.s32.totalorder %s25, 1
      %p211 = por %p209, %p210
      %p212 = scmp.ne.s32.totalorder %s203, %s204
      %p213 = scmp.eq.s32.totalorder %s25, 0
      %p214 = por %p212, %p213
      %p215 = scmp.ne.s32.totalorder %s203, %s204
      %p216 = scmp.eq.s32.totalorder %s26, 1
      %p217 = por %p215, %p216
      %p219 = scmp.ne.s32.totalorder %s204, %s218
      %p220 = scmp.eq.s32.totalorder %s26, 0
      %p221 = por %p219, %p220
      %s223 = sadd.s32 %s222, 1
      %p226 = scmp.eq.s32.totalorder %s20, 1
      %p227 = scmp.ne.s32.totalorder %s222, %s224
      %p228 = scmp.eq.s32.totalorder %s20, 0
      %p229 = por %p227, %p228
      %p230 = scmp.ne.s32.totalorder %s222, %s224
      %p231 = scmp.eq.s32.totalorder %s25, 1
      %p232 = por %p230, %p231
      %p233 = scmp.ne.s32.totalorder %s224, %s225
      %p234 = scmp.eq.s32.totalorder %s25, 0
      %p235 = por %p233, %p234
      %p236 = scmp.ne.s32.totalorder %s224, %s225
      %p237 = scmp.eq.s32.totalorder %s26, 1
      %p238 = por %p236, %p237
      %p240 = scmp.ne.s32.totalorder %s225, %s239
      %p241 = scmp.eq.s32.totalorder %s26, 0
      %p242 = por %p240, %p241
      %s244 = sadd.s32 %s243, 1
      %p247 = scmp.eq.s32.totalorder %s20, 1
      %p248 = scmp.ne.s32.totalorder %s243, %s245
      %p249 = scmp.eq.s32.totalorder %s20, 0
      %p250 = por %p248, %p249
      %p251 = scmp.ne.s32.totalorder %s243, %s245
      %p252 = scmp.eq.s32.totalorder %s25, 1
      %p253 = por %p251, %p252
      %p254 = scmp.ne.s32.totalorder %s245, %s246
      %p255 = scmp.eq.s32.totalorder %s25, 0
      %p256 = por %p254, %p255
      %p257 = scmp.ne.s32.totalorder %s245, %s246
      %p258 = scmp.eq.s32.totalorder %s26, 1
      %p259 = por %p257, %p258
      %p261 = scmp.ne.s32.totalorder %s246, %s260
      %p262 = scmp.eq.s32.totalorder %s26, 0
      %p263 = por %p261, %p262
      %s264 = ssub.s32 %s20, %s27
      %p265 = scmp.eq.s32.totalorder %s264, 0
      %s267 = sadd.s32 %s266, 1
      %s268 = scalar_select %p265, %s266, %s267
      %p271 = pneg %p265
      %p272 = scmp.eq.s32.totalorder %s20, 1
      %p273 = por %p271, %p272
      %p274 = scmp.ne.s32.totalorder %s266, %s269
      %p275 = scmp.eq.s32.totalorder %s20, 0
      %p276 = por %p274, %p275
      %p277 = scmp.ne.s32.totalorder %s266, %s269
      %p278 = scmp.eq.s32.totalorder %s25, 1
      %p279 = por %p277, %p278
      %p280 = scmp.ne.s32.totalorder %s269, %s270
      %p281 = scmp.eq.s32.totalorder %s25, 0
      %p282 = por %p280, %p281
      %p283 = scmp.ne.s32.totalorder %s269, %s270
      %p284 = scmp.eq.s32.totalorder %s26, 1
      %p285 = por %p283, %p284
      %p287 = scmp.ne.s32.totalorder %s270, %s286
      %p288 = scmp.eq.s32.totalorder %s26, 0
      %p289 = por %p287, %p288
      %p290 = scmp.le.s32.totalorder 1, %s20
      %p291 = scmp.lt.s32.totalorder %s20, 3
      %p292 = pnand %p290, %p291
      %p293 = pneg %p292
      // Predicated region
      $region9: #{fmnist_cnn_forward.1} parent=5 // pred_check
        _
      $region10: #{fmnist_cnn_forward.1} parent=5 // pred_check_branch
        %295 = sbr.rel (%p292) target = $region12
      $region11: #{fmnist_cnn_forward.1} parent=5 // pred_region
        %s296 = ssub.s32 %s20, 1
        // Predicated region
        $region13: #{fmnist_cnn_forward.1} parent=11 // pred_check
          %p297 = pneg %p67
        $region14: #{fmnist_cnn_forward.1} parent=11 // pred_check_branch
          %299 = sbr.rel (%p297) target = $region16
        $region15: #{fmnist_cnn_forward.1} parent=11 // pred_region
          %s301 = ssub.s32 16, 16
          %302 = vsyncadd [#allocation5], %s301
          %s304 = sshll.u32 %s1, 4
          %s305 = int_to_ptr.vmem [resolvable:$true] %s304
          %307 = dma.vmem_to_smem %s305, 16, [#allocation4], [#allocation5]
        $region16: #{fmnist_cnn_forward.1} parent=11 // pred_fallthru
          _
        // Predicated region
        $region17: #{fmnist_cnn_forward.1} parent=11 // pred_check
          %p308 = pneg %p88
        $region18: #{fmnist_cnn_forward.1} parent=11 // pred_check_branch
          %310 = sbr.rel (%p308) target = $region20
        $region19: #{fmnist_cnn_forward.1} parent=11 // pred_region
          %s312 = ssub.s32 16, 16
          %313 = vsyncadd [#allocation7], %s312
          %s315 = sshll.u32 %s2, 4
          %s316 = int_to_ptr.vmem [resolvable:$true] %s315
          %318 = dma.vmem_to_smem %s316, 16, [#allocation6], [#allocation7]
        $region20: #{fmnist_cnn_forward.1} parent=11 // pred_fallthru
          _
        // Predicated region
        $region21: #{fmnist_cnn_forward.1} parent=11 // pred_check
          %p319 = pneg %p109
        $region22: #{fmnist_cnn_forward.1} parent=11 // pred_check_branch
          %321 = sbr.rel (%p319) target = $region24
        $region23: #{fmnist_cnn_forward.1} parent=11 // pred_region
          %s323 = ssub.s32 32, 32
          %324 = vsyncadd [#allocation7], %s323
          %s326 = sshll.u32 %s3, 4
          %s327 = int_to_ptr.vmem [resolvable:$true] %s326
          %329 = dma.vmem_to_smem %s327, 32, [#allocation8], [#allocation7]
        $region24: #{fmnist_cnn_forward.1} parent=11 // pred_fallthru
          _
        // Predicated region
        $region25: #{fmnist_cnn_forward.1} parent=11 // pred_check
          %p330 = pneg %p130
        $region26: #{fmnist_cnn_forward.1} parent=11 // pred_check_branch
          %332 = sbr.rel (%p330) target = $region28
        $region27: #{fmnist_cnn_forward.1} parent=11 // pred_region
          %s334 = ssub.s32 16, 16
          %335 = vsyncadd [#allocation10], %s334
          %s337 = sshll.u32 %s4, 4
          %s338 = int_to_ptr.vmem [resolvable:$true] %s337
          %340 = dma.vmem_to_smem %s338, 16, [#allocation9], [#allocation10]
        $region28: #{fmnist_cnn_forward.1} parent=11 // pred_fallthru
          _
        // Predicated region
        $region29: #{fmnist_cnn_forward.1} parent=11 // pred_check
          %p341 = pneg %p151
        $region30: #{fmnist_cnn_forward.1} parent=11 // pred_check_branch
          %343 = sbr.rel (%p341) target = $region32
        $region31: #{fmnist_cnn_forward.1} parent=11 // pred_region
          _
        $region32: #{fmnist_cnn_forward.1} parent=11 // pred_fallthru
          _
        // Predicated region
        $region33: #{fmnist_cnn_forward.1} parent=11 // pred_check
          %p344 = pneg %p172
        $region34: #{fmnist_cnn_forward.1} parent=11 // pred_check_branch
          %346 = sbr.rel (%p344) target = $region36
        $region35: #{fmnist_cnn_forward.1} parent=11 // pred_region
          _
        $region36: #{fmnist_cnn_forward.1} parent=11 // pred_fallthru
          _
        // Predicated region
        $region37: #{fmnist_cnn_forward.1} parent=11 // pred_check
          %p347 = pneg %p193
        $region38: #{fmnist_cnn_forward.1} parent=11 // pred_check_branch
          %349 = sbr.rel (%p347) target = $region40
        $region39: #{fmnist_cnn_forward.1} parent=11 // pred_region
          _
        $region40: #{fmnist_cnn_forward.1} parent=11 // pred_fallthru
          _
        // Predicated region
        $region41: #{fmnist_cnn_forward.1} parent=11 // pred_check
          %p350 = pneg %p214
        $region42: #{fmnist_cnn_forward.1} parent=11 // pred_check_branch
          %352 = sbr.rel (%p350) target = $region44
        $region43: #{fmnist_cnn_forward.1} parent=11 // pred_region
          _
        $region44: #{fmnist_cnn_forward.1} parent=11 // pred_fallthru
          _
        // Predicated region
        $region45: #{fmnist_cnn_forward.1} parent=11 // pred_check
          %p353 = pneg %p235
        $region46: #{fmnist_cnn_forward.1} parent=11 // pred_check_branch
          %355 = sbr.rel (%p353) target = $region48
        $region47: #{fmnist_cnn_forward.1} parent=11 // pred_region
          _
        $region48: #{fmnist_cnn_forward.1} parent=11 // pred_fallthru
          _
        // Predicated region
        $region49: #{fmnist_cnn_forward.1} parent=11 // pred_check
          %p356 = pneg %p256
        $region50: #{fmnist_cnn_forward.1} parent=11 // pred_check_branch
          %358 = sbr.rel (%p356) target = $region52
        $region51: #{fmnist_cnn_forward.1} parent=11 // pred_region
          _
        $region52: #{fmnist_cnn_forward.1} parent=11 // pred_fallthru
          _
      $region12: #{fmnist_cnn_forward.1} parent=5 // pred_fallthru
        _
      %p359 = scmp.lt.s32.totalorder %s20, 2
      // Predicated region
      $region53: #{fmnist_cnn_forward.1} parent=5 // pred_check
        %p360 = pneg %p359
      $region54: #{fmnist_cnn_forward.1} parent=5 // pred_check_branch
        %362 = sbr.rel (%p360) target = $region56
      $region55: #{fmnist_cnn_forward.1} parent=5 // pred_region
        // Predicated region
        $region57: #{fmnist_cnn_forward.1} parent=55 // pred_check
          %p363 = pneg %p40
        $region58: #{fmnist_cnn_forward.1} parent=55 // pred_check_branch
          %365 = sbr.rel (%p363) target = $region60
        $region59: #{fmnist_cnn_forward.1} parent=55 // pred_region
          %p366 = scmp.lt.s32.totalorder %s20, 1
          %s367 = scalar_select %p366, %s20, 1
          %s368 = smul.addr %s367, 4
          %s369 = smul.addr %s368, 8
          %s370 = scalar_lea.vmem %s0, %s369
        $region60: #{fmnist_cnn_forward.1} parent=55 // pred_fallthru
          _
      $region56: #{fmnist_cnn_forward.1} parent=5 // pred_fallthru
        _
      %p371 = scmp.le.s32.totalorder 1, %s20
      %p372 = scmp.lt.s32.totalorder %s20, 3
      %p373 = pnand %p371, %p372
      %p374 = pneg %p373
      // Predicated region
      $region61: #{fmnist_cnn_forward.1} parent=5 // pred_check
        _
      $region62: #{fmnist_cnn_forward.1} parent=5 // pred_check_branch
        %376 = sbr.rel (%p373) target = $region64
      $region63: #{fmnist_cnn_forward.1} parent=5 // pred_region
        %s377 = ssub.s32 %s20, 1
        // Predicated region
        $region65: #{fmnist_cnn_forward.1} parent=63 // pred_check
          %p378 = pneg %p67
        $region66: #{fmnist_cnn_forward.1} parent=63 // pred_check_branch
          %380 = sbr.rel (%p378) target = $region68
        $region67: #{fmnist_cnn_forward.1} parent=63 // pred_region
          %381 = dma.done [#allocation5], 16
        $region68: #{fmnist_cnn_forward.1} parent=63 // pred_fallthru
          _
        // Predicated region
        $region69: #{fmnist_cnn_forward.1} parent=63 // pred_check
          %p382 = pneg %p88
        $region70: #{fmnist_cnn_forward.1} parent=63 // pred_check_branch
          %384 = sbr.rel (%p382) target = $region72
        $region71: #{fmnist_cnn_forward.1} parent=63 // pred_region
          %385 = dma.done [#allocation7], 16
        $region72: #{fmnist_cnn_forward.1} parent=63 // pred_fallthru
          _
        // Predicated region
        $region73: #{fmnist_cnn_forward.1} parent=63 // pred_check
          %p386 = pneg %p109
        $region74: #{fmnist_cnn_forward.1} parent=63 // pred_check_branch
          %388 = sbr.rel (%p386) target = $region76
        $region75: #{fmnist_cnn_forward.1} parent=63 // pred_region
          %389 = dma.done [#allocation7], 32
        $region76: #{fmnist_cnn_forward.1} parent=63 // pred_fallthru
          _
        // Predicated region
        $region77: #{fmnist_cnn_forward.1} parent=63 // pred_check
          %p390 = pneg %p130
        $region78: #{fmnist_cnn_forward.1} parent=63 // pred_check_branch
          %392 = sbr.rel (%p390) target = $region80
        $region79: #{fmnist_cnn_forward.1} parent=63 // pred_region
          %393 = dma.done [#allocation10], 16
        $region80: #{fmnist_cnn_forward.1} parent=63 // pred_fallthru
          _
        %394 = sfence
        %p395 = scmp.lt.s32.totalorder %s25, 1
        %s396 = scalar_select %p395, %s25, 1
        %s397 = smul.addr %s396, 4
        %s398 = smul.addr %s397, 8
        %s399 = scalar_lea.vmem %s0, %s398
        %p400 = pneg %p46
        %p401 = pneg %p43
        %p402 = pneg %p67
        %p403 = pneg %p64
        %p404 = pneg %p88
        %p405 = pneg %p85
        %p406 = pneg %p109
        %p407 = pneg %p106
        %p408 = pneg %p130
        %p409 = pneg %p127
        %p410 = pneg %p151
        %p411 = pneg %p148
        %p412 = pneg %p172
        %p413 = pneg %p169
        %p414 = pneg %p193
        %p415 = pneg %p190
        %p416 = pneg %p214
        %p417 = pneg %p211
        %p418 = pneg %p235
        %p419 = pneg %p232
        %p420 = pneg %p256
        %p421 = pneg %p253
        %p422 = pneg %p282
        %p423 = pneg %p279
        %p424 = scmp.lt.s32.totalorder %s25, 1
        %s425 = scalar_select %p424, %s25, 1
        %s426 = smul.addr %s425, 2
        %s427 = scalar_lea.vmem %s11, %s426
        %p428 = scmp.lt.s32.totalorder %s25, 1
        %s429 = scalar_select %p428, %s25, 1
        %s430 = smul.addr %s429, 4
        %s431 = smul.addr %s430, 8
        %s432 = scalar_lea.vmem %s0, %s431
        %p433 = scmp.lt.s32.totalorder %s25, 1
        %s434 = scalar_select %p433, %s25, 1
        %s435 = smul.addr %s434, 2
        %s436 = scalar_lea.vmem %s11, %s435
        %v437 = vld [vmem:[%s432] sm:$0xff]
        %v438 = vld [vmem:[%s432 + $0x8] sm:$0xff]
        %v439 = vld [vmem:[%s432 + $0x10] sm:$0xff]
        %v440 = vld [vmem:[%s432 + $0x18] sm:$0xf]
        %s441 = sld [smem:[#allocation4]]
        %v442 = vstv %s441
        %v443 = vmul.f32 %v442, %v437
        %v444 = vmul.f32 %v442, %v438
        %v445 = vmul.f32 %v442, %v439
        %v446 = vmul.f32 %v442, %v440
        %s447 = sld [smem:[#allocation4 + $0x10]]
        %v448 = vstv %s447
        %v449 = vmul.f32 %v448, %v437
        %v450 = vmul.f32 %v448, %v438
        %v451 = vmul.f32 %v448, %v439
        %v452 = vmul.f32 %v448, %v440
        %s453 = sld [smem:[#allocation4 + $0x20]]
        %v454 = vstv %s453
        %v455 = vmul.f32 %v454, %v437
        %v456 = vmul.f32 %v454, %v438
        %v457 = vmul.f32 %v454, %v439
        %v458 = vmul.f32 %v454, %v440
        %s459 = sld [smem:[#allocation4 + $0x1]]
        %v460 = vstv %s459
        %v461 = vmul.f32 %v460, %v437
        %v462 = vmul.f32 %v460, %v438
        %v463 = vmul.f32 %v460, %v439
        %v464 = vmul.f32 %v460, %v440
        %469 = vrot.lane.b32.xlu0 %v461, 127
        %v470 = vpop.permute.xlu0 %469
        %471 = vrot.lane.b32.xlu0 %v462, 127
        %v472 = vpop.permute.xlu0 %471
        %473 = vrot.lane.b32.xlu0 %v463, 127
        %v474 = vpop.permute.xlu0 %473
        %475 = vrot.lane.b32.xlu0 %v464, 127
        %v476 = vpop.permute.xlu0 %475
        %v481 = vadd.f32 %v443, %v470
        %v482 = vadd.f32 %v444, %v472
        %v483 = vadd.f32 %v445, %v474
        %v484 = vadd.f32 %v446, %v476
        %s485 = sld [smem:[#allocation4 + $0x11]]
        %v486 = vstv %s485
        %v487 = vmul.f32 %v486, %v437
        %v488 = vmul.f32 %v486, %v438
        %v489 = vmul.f32 %v486, %v439
        %v490 = vmul.f32 %v486, %v440
        %495 = vrot.lane.b32.xlu0 %v487, 127
        %v496 = vpop.permute.xlu0 %495
        %497 = vrot.lane.b32.xlu0 %v488, 127
        %v498 = vpop.permute.xlu0 %497
        %499 = vrot.lane.b32.xlu0 %v489, 127
        %v500 = vpop.permute.xlu0 %499
        %501 = vrot.lane.b32.xlu0 %v490, 127
        %v502 = vpop.permute.xlu0 %501
        %v507 = vadd.f32 %v449, %v496
        %v508 = vadd.f32 %v450, %v498
        %v509 = vadd.f32 %v451, %v500
        %v510 = vadd.f32 %v452, %v502
        %s511 = sld [smem:[#allocation4 + $0x21]]
        %v512 = vstv %s511
        %v513 = vmul.f32 %v512, %v437
        %v514 = vmul.f32 %v512, %v438
        %v515 = vmul.f32 %v512, %v439
        %v516 = vmul.f32 %v512, %v440
        %521 = vrot.lane.b32.xlu0 %v513, 127
        %v522 = vpop.permute.xlu0 %521
        %523 = vrot.lane.b32.xlu0 %v514, 127
        %v524 = vpop.permute.xlu0 %523
        %525 = vrot.lane.b32.xlu0 %v515, 127
        %v526 = vpop.permute.xlu0 %525
        %527 = vrot.lane.b32.xlu0 %v516, 127
        %v528 = vpop.permute.xlu0 %527
        %v533 = vadd.f32 %v455, %v522
        %v534 = vadd.f32 %v456, %v524
        %v535 = vadd.f32 %v457, %v526
        %v536 = vadd.f32 %v458, %v528
        %s537 = sld [smem:[#allocation4 + $0x2]]
        %v538 = vstv %s537
        %v539 = vmul.f32 %v538, %v437
        %v540 = vmul.f32 %v538, %v438
        %v541 = vmul.f32 %v538, %v439
        %v542 = vmul.f32 %v538, %v440
        %547 = vrot.lane.b32.xlu0 %v539, 126
        %v548 = vpop.permute.xlu0 %547
        %549 = vrot.lane.b32.xlu0 %v540, 126
        %v550 = vpop.permute.xlu0 %549
        %551 = vrot.lane.b32.xlu0 %v541, 126
        %v552 = vpop.permute.xlu0 %551
        %553 = vrot.lane.b32.xlu0 %v542, 126
        %v554 = vpop.permute.xlu0 %553
        %v559 = vadd.f32 %v481, %v548
        %v560 = vadd.f32 %v482, %v550
        %v561 = vadd.f32 %v483, %v552
        %v562 = vadd.f32 %v484, %v554
        %s563 = sld [smem:[#allocation4 + $0x12]]
        %v564 = vstv %s563
        %v565 = vmul.f32 %v564, %v437
        %v566 = vmul.f32 %v564, %v438
        %v567 = vmul.f32 %v564, %v439
        %v568 = vmul.f32 %v564, %v440
        %573 = vrot.lane.b32.xlu0 %v565, 126
        %v574 = vpop.permute.xlu0 %573
        %575 = vrot.lane.b32.xlu0 %v566, 126
        %v576 = vpop.permute.xlu0 %575
        %577 = vrot.lane.b32.xlu0 %v567, 126
        %v578 = vpop.permute.xlu0 %577
        %579 = vrot.lane.b32.xlu0 %v568, 126
        %v580 = vpop.permute.xlu0 %579
        %v585 = vadd.f32 %v507, %v574
        %v586 = vadd.f32 %v508, %v576
        %v587 = vadd.f32 %v509, %v578
        %v588 = vadd.f32 %v510, %v580
        %s589 = sld [smem:[#allocation4 + $0x22]]
        %v590 = vstv %s589
        %v591 = vmul.f32 %v590, %v437
        %v592 = vmul.f32 %v590, %v438
        %v593 = vmul.f32 %v590, %v439
        %v594 = vmul.f32 %v590, %v440
        %599 = vrot.lane.b32.xlu0 %v591, 126
        %v600 = vpop.permute.xlu0 %599
        %601 = vrot.lane.b32.xlu0 %v592, 126
        %v602 = vpop.permute.xlu0 %601
        %603 = vrot.lane.b32.xlu0 %v593, 126
        %v604 = vpop.permute.xlu0 %603
        %605 = vrot.lane.b32.xlu0 %v594, 126
        %v606 = vpop.permute.xlu0 %605
        %v611 = vadd.f32 %v533, %v600
        %v612 = vadd.f32 %v534, %v602
        %v613 = vadd.f32 %v535, %v604
        %v614 = vadd.f32 %v536, %v606
        %s615 = sld [smem:[#allocation4 + $0x3]]
        %v616 = vstv %s615
        %v617 = vmul.f32 %v616, %v437
        %v618 = vmul.f32 %v616, %v438
        %v619 = vmul.f32 %v616, %v439
        %v620 = vmul.f32 %v616, %v440
        %625 = vrot.lane.b32.xlu0 %v617, 125
        %v626 = vpop.permute.xlu0 %625
        %627 = vrot.lane.b32.xlu0 %v618, 125
        %v628 = vpop.permute.xlu0 %627
        %629 = vrot.lane.b32.xlu0 %v619, 125
        %v630 = vpop.permute.xlu0 %629
        %631 = vrot.lane.b32.xlu0 %v620, 125
        %v632 = vpop.permute.xlu0 %631
        %v637 = vadd.f32 %v559, %v626
        %v638 = vadd.f32 %v560, %v628
        %v639 = vadd.f32 %v561, %v630
        %v640 = vadd.f32 %v562, %v632
        %s641 = sld [smem:[#allocation4 + $0x13]]
        %v642 = vstv %s641
        %v643 = vmul.f32 %v642, %v437
        %v644 = vmul.f32 %v642, %v438
        %v645 = vmul.f32 %v642, %v439
        %v646 = vmul.f32 %v642, %v440
        %651 = vrot.lane.b32.xlu0 %v643, 125
        %v652 = vpop.permute.xlu0 %651
        %653 = vrot.lane.b32.xlu0 %v644, 125
        %v654 = vpop.permute.xlu0 %653
        %655 = vrot.lane.b32.xlu0 %v645, 125
        %v656 = vpop.permute.xlu0 %655
        %657 = vrot.lane.b32.xlu0 %v646, 125
        %v658 = vpop.permute.xlu0 %657
        %v663 = vadd.f32 %v585, %v652
        %v664 = vadd.f32 %v586, %v654
        %v665 = vadd.f32 %v587, %v656
        %v666 = vadd.f32 %v588, %v658
        %s667 = sld [smem:[#allocation4 + $0x23]]
        %v668 = vstv %s667
        %v669 = vmul.f32 %v668, %v437
        %v670 = vmul.f32 %v668, %v438
        %v671 = vmul.f32 %v668, %v439
        %v672 = vmul.f32 %v668, %v440
        %677 = vrot.lane.b32.xlu0 %v669, 125
        %v678 = vpop.permute.xlu0 %677
        %679 = vrot.lane.b32.xlu0 %v670, 125
        %v680 = vpop.permute.xlu0 %679
        %681 = vrot.lane.b32.xlu0 %v671, 125
        %v682 = vpop.permute.xlu0 %681
        %683 = vrot.lane.b32.xlu0 %v672, 125
        %v684 = vpop.permute.xlu0 %683
        %v689 = vadd.f32 %v611, %v678
        %v690 = vadd.f32 %v612, %v680
        %v691 = vadd.f32 %v613, %v682
        %v692 = vadd.f32 %v614, %v684
        %s693 = sld [smem:[#allocation4 + $0x4]]
        %v694 = vstv %s693
        %v695 = vmul.f32 %v694, %v437
        %v696 = vmul.f32 %v694, %v438
        %v697 = vmul.f32 %v694, %v439
        %v698 = vmul.f32 %v694, %v440
        %vm703 = vcmask 1046528
        %v704 = vrot.slane %v695, 1
        %v705 = vrot.slane %v696, 1
        %v706 = vsel %vm703, %v704, %v705
        %v707 = vrot.slane %v697, 1
        %v708 = vsel %vm703, %v705, %v707
        %v709 = vrot.slane %v698, 1
        %v710 = vsel %vm703, %v707, %v709
        %v715 = vadd.f32 %v637, %v706
        %v716 = vadd.f32 %v638, %v708
        %v717 = vadd.f32 %v639, %v710
        %v718 = vadd.f32 %v640, %v709
        %s719 = sld [smem:[#allocation4 + $0x14]]
        %v720 = vstv %s719
        %v721 = vmul.f32 %v720, %v437
        %v722 = vmul.f32 %v720, %v438
        %v723 = vmul.f32 %v720, %v439
        %v724 = vmul.f32 %v720, %v440
        %v729 = vrot.slane %v721, 1
        %v730 = vrot.slane %v722, 1
        %v731 = vsel %vm703, %v729, %v730
        %v732 = vrot.slane %v723, 1
        %v733 = vsel %vm703, %v730, %v732
        %v734 = vrot.slane %v724, 1
        %v735 = vsel %vm703, %v732, %v734
        %v740 = vadd.f32 %v663, %v731
        %v741 = vadd.f32 %v664, %v733
        %v742 = vadd.f32 %v665, %v735
        %v743 = vadd.f32 %v666, %v734
        %s744 = sld [smem:[#allocation4 + $0x24]]
        %v745 = vstv %s744
        %v746 = vmul.f32 %v745, %v437
        %v747 = vmul.f32 %v745, %v438
        %v748 = vmul.f32 %v745, %v439
        %v749 = vmul.f32 %v745, %v440
        %v754 = vrot.slane %v746, 1
        %v755 = vrot.slane %v747, 1
        %v756 = vsel %vm703, %v754, %v755
        %v757 = vrot.slane %v748, 1
        %v758 = vsel %vm703, %v755, %v757
        %v759 = vrot.slane %v749, 1
        %v760 = vsel %vm703, %v757, %v759
        %v765 = vadd.f32 %v689, %v756
        %v766 = vadd.f32 %v690, %v758
        %v767 = vadd.f32 %v691, %v760
        %v768 = vadd.f32 %v692, %v759
        %s769 = sld [smem:[#allocation4 + $0x5]]
        %v770 = vstv %s769
        %v771 = vmul.f32 %v770, %v437
        %v772 = vmul.f32 %v770, %v438
        %v773 = vmul.f32 %v770, %v439
        %v774 = vmul.f32 %v770, %v440
        %v779 = vrot.slane %v771, 1
        %v780 = vrot.slane %v772, 1
        %v781 = vsel %vm703, %v779, %v780
        %v782 = vrot.slane %v773, 1
        %v783 = vsel %vm703, %v780, %v782
        %v784 = vrot.slane %v774, 1
        %v785 = vsel %vm703, %v782, %v784
        %786 = vrot.lane.b32.xlu0 %v781, 127
        %v787 = vpop.permute.xlu0 %786
        %788 = vrot.lane.b32.xlu0 %v783, 127
        %v789 = vpop.permute.xlu0 %788
        %790 = vrot.lane.b32.xlu0 %v785, 127
        %v791 = vpop.permute.xlu0 %790
        %792 = vrot.lane.b32.xlu0 %v784, 127
        %v793 = vpop.permute.xlu0 %792
        %v798 = vadd.f32 %v715, %v787
        %v799 = vadd.f32 %v716, %v789
        %v800 = vadd.f32 %v717, %v791
        %v801 = vadd.f32 %v718, %v793
        %s802 = sld [smem:[#allocation4 + $0x15]]
        %v803 = vstv %s802
        %v804 = vmul.f32 %v803, %v437
        %v805 = vmul.f32 %v803, %v438
        %v806 = vmul.f32 %v803, %v439
        %v807 = vmul.f32 %v803, %v440
        %v812 = vrot.slane %v804, 1
        %v813 = vrot.slane %v805, 1
        %v814 = vsel %vm703, %v812, %v813
        %v815 = vrot.slane %v806, 1
        %v816 = vsel %vm703, %v813, %v815
        %v817 = vrot.slane %v807, 1
        %v818 = vsel %vm703, %v815, %v817
        %819 = vrot.lane.b32.xlu0 %v814, 127
        %v820 = vpop.permute.xlu0 %819
        %821 = vrot.lane.b32.xlu0 %v816, 127
        %v822 = vpop.permute.xlu0 %821
        %823 = vrot.lane.b32.xlu0 %v818, 127
        %v824 = vpop.permute.xlu0 %823
        %825 = vrot.lane.b32.xlu0 %v817, 127
        %v826 = vpop.permute.xlu0 %825
        %v831 = vadd.f32 %v740, %v820
        %v832 = vadd.f32 %v741, %v822
        %v833 = vadd.f32 %v742, %v824
        %v834 = vadd.f32 %v743, %v826
        %s835 = sld [smem:[#allocation4 + $0x25]]
        %v836 = vstv %s835
        %v837 = vmul.f32 %v836, %v437
        %v838 = vmul.f32 %v836, %v438
        %v839 = vmul.f32 %v836, %v439
        %v840 = vmul.f32 %v836, %v440
        %v845 = vrot.slane %v837, 1
        %v846 = vrot.slane %v838, 1
        %v847 = vsel %vm703, %v845, %v846
        %v848 = vrot.slane %v839, 1
        %v849 = vsel %vm703, %v846, %v848
        %v850 = vrot.slane %v840, 1
        %v851 = vsel %vm703, %v848, %v850
        %852 = vrot.lane.b32.xlu0 %v847, 127
        %v853 = vpop.permute.xlu0 %852
        %854 = vrot.lane.b32.xlu0 %v849, 127
        %v855 = vpop.permute.xlu0 %854
        %856 = vrot.lane.b32.xlu0 %v851, 127
        %v857 = vpop.permute.xlu0 %856
        %858 = vrot.lane.b32.xlu0 %v850, 127
        %v859 = vpop.permute.xlu0 %858
        %v864 = vadd.f32 %v765, %v853
        %v865 = vadd.f32 %v766, %v855
        %v866 = vadd.f32 %v767, %v857
        %v867 = vadd.f32 %v768, %v859
        %s868 = sld [smem:[#allocation4 + $0x6]]
        %v869 = vstv %s868
        %v870 = vmul.f32 %v869, %v437
        %v871 = vmul.f32 %v869, %v438
        %v872 = vmul.f32 %v869, %v439
        %v873 = vmul.f32 %v869, %v440
        %v878 = vrot.slane %v870, 1
        %v879 = vrot.slane %v871, 1
        %v880 = vsel %vm703, %v878, %v879
        %v881 = vrot.slane %v872, 1
        %v882 = vsel %vm703, %v879, %v881
        %v883 = vrot.slane %v873, 1
        %v884 = vsel %vm703, %v881, %v883
        %885 = vrot.lane.b32.xlu0 %v880, 126
        %v886 = vpop.permute.xlu0 %885
        %887 = vrot.lane.b32.xlu0 %v882, 126
        %v888 = vpop.permute.xlu0 %887
        %889 = vrot.lane.b32.xlu0 %v884, 126
        %v890 = vpop.permute.xlu0 %889
        %891 = vrot.lane.b32.xlu0 %v883, 126
        %v892 = vpop.permute.xlu0 %891
        %v897 = vadd.f32 %v798, %v886
        %v898 = vadd.f32 %v799, %v888
        %v899 = vadd.f32 %v800, %v890
        %v900 = vadd.f32 %v801, %v892
        %s901 = sld [smem:[#allocation4 + $0x16]]
        %v902 = vstv %s901
        %v903 = vmul.f32 %v902, %v437
        %v904 = vmul.f32 %v902, %v438
        %v905 = vmul.f32 %v902, %v439
        %v906 = vmul.f32 %v902, %v440
        %v911 = vrot.slane %v903, 1
        %v912 = vrot.slane %v904, 1
        %v913 = vsel %vm703, %v911, %v912
        %v914 = vrot.slane %v905, 1
        %v915 = vsel %vm703, %v912, %v914
        %v916 = vrot.slane %v906, 1
        %v917 = vsel %vm703, %v914, %v916
        %918 = vrot.lane.b32.xlu0 %v913, 126
        %v919 = vpop.permute.xlu0 %918
        %920 = vrot.lane.b32.xlu0 %v915, 126
        %v921 = vpop.permute.xlu0 %920
        %922 = vrot.lane.b32.xlu0 %v917, 126
        %v923 = vpop.permute.xlu0 %922
        %924 = vrot.lane.b32.xlu0 %v916, 126
        %v925 = vpop.permute.xlu0 %924
        %v930 = vadd.f32 %v831, %v919
        %v931 = vadd.f32 %v832, %v921
        %v932 = vadd.f32 %v833, %v923
        %v933 = vadd.f32 %v834, %v925
        %s934 = sld [smem:[#allocation4 + $0x26]]
        %v935 = vstv %s934
        %v936 = vmul.f32 %v935, %v437
        %v937 = vmul.f32 %v935, %v438
        %v938 = vmul.f32 %v935, %v439
        %v939 = vmul.f32 %v935, %v440
        %v944 = vrot.slane %v936, 1
        %v945 = vrot.slane %v937, 1
        %v946 = vsel %vm703, %v944, %v945
        %v947 = vrot.slane %v938, 1
        %v948 = vsel %vm703, %v945, %v947
        %v949 = vrot.slane %v939, 1
        %v950 = vsel %vm703, %v947, %v949
        %951 = vrot.lane.b32.xlu0 %v946, 126
        %v952 = vpop.permute.xlu0 %951
        %953 = vrot.lane.b32.xlu0 %v948, 126
        %v954 = vpop.permute.xlu0 %953
        %955 = vrot.lane.b32.xlu0 %v950, 126
        %v956 = vpop.permute.xlu0 %955
        %957 = vrot.lane.b32.xlu0 %v949, 126
        %v958 = vpop.permute.xlu0 %957
        %v963 = vadd.f32 %v864, %v952
        %v964 = vadd.f32 %v865, %v954
        %v965 = vadd.f32 %v866, %v956
        %v966 = vadd.f32 %v867, %v958
        %s967 = sld [smem:[#allocation4 + $0x7]]
        %v968 = vstv %s967
        %v969 = vmul.f32 %v968, %v437
        %v970 = vmul.f32 %v968, %v438
        %v971 = vmul.f32 %v968, %v439
        %v972 = vmul.f32 %v968, %v440
        %v977 = vrot.slane %v969, 1
        %v978 = vrot.slane %v970, 1
        %v979 = vsel %vm703, %v977, %v978
        %v980 = vrot.slane %v971, 1
        %v981 = vsel %vm703, %v978, %v980
        %v982 = vrot.slane %v972, 1
        %v983 = vsel %vm703, %v980, %v982
        %984 = vrot.lane.b32.xlu0 %v979, 125
        %v985 = vpop.permute.xlu0 %984
        %986 = vrot.lane.b32.xlu0 %v981, 125
        %v987 = vpop.permute.xlu0 %986
        %988 = vrot.lane.b32.xlu0 %v983, 125
        %v989 = vpop.permute.xlu0 %988
        %990 = vrot.lane.b32.xlu0 %v982, 125
        %v991 = vpop.permute.xlu0 %990
        %v996 = vadd.f32 %v897, %v985
        %v997 = vadd.f32 %v898, %v987
        %v998 = vadd.f32 %v899, %v989
        %v999 = vadd.f32 %v900, %v991
        %s1000 = sld [smem:[#allocation4 + $0x17]]
        %v1001 = vstv %s1000
        %v1002 = vmul.f32 %v1001, %v437
        %v1003 = vmul.f32 %v1001, %v438
        %v1004 = vmul.f32 %v1001, %v439
        %v1005 = vmul.f32 %v1001, %v440
        %v1010 = vrot.slane %v1002, 1
        %v1011 = vrot.slane %v1003, 1
        %v1012 = vsel %vm703, %v1010, %v1011
        %v1013 = vrot.slane %v1004, 1
        %v1014 = vsel %vm703, %v1011, %v1013
        %v1015 = vrot.slane %v1005, 1
        %v1016 = vsel %vm703, %v1013, %v1015
        %1017 = vrot.lane.b32.xlu0 %v1012, 125
        %v1018 = vpop.permute.xlu0 %1017
        %1019 = vrot.lane.b32.xlu0 %v1014, 125
        %v1020 = vpop.permute.xlu0 %1019
        %1021 = vrot.lane.b32.xlu0 %v1016, 125
        %v1022 = vpop.permute.xlu0 %1021
        %1023 = vrot.lane.b32.xlu0 %v1015, 125
        %v1024 = vpop.permute.xlu0 %1023
        %v1029 = vadd.f32 %v930, %v1018
        %v1030 = vadd.f32 %v931, %v1020
        %v1031 = vadd.f32 %v932, %v1022
        %v1032 = vadd.f32 %v933, %v1024
        %s1033 = sld [smem:[#allocation4 + $0x27]]
        %v1034 = vstv %s1033
        %v1035 = vmul.f32 %v1034, %v437
        %v1036 = vmul.f32 %v1034, %v438
        %v1037 = vmul.f32 %v1034, %v439
        %v1038 = vmul.f32 %v1034, %v440
        %v1043 = vrot.slane %v1035, 1
        %v1044 = vrot.slane %v1036, 1
        %v1045 = vsel %vm703, %v1043, %v1044
        %v1046 = vrot.slane %v1037, 1
        %v1047 = vsel %vm703, %v1044, %v1046
        %v1048 = vrot.slane %v1038, 1
        %v1049 = vsel %vm703, %v1046, %v1048
        %1050 = vrot.lane.b32.xlu0 %v1045, 125
        %v1051 = vpop.permute.xlu0 %1050
        %1052 = vrot.lane.b32.xlu0 %v1047, 125
        %v1053 = vpop.permute.xlu0 %1052
        %1054 = vrot.lane.b32.xlu0 %v1049, 125
        %v1055 = vpop.permute.xlu0 %1054
        %1056 = vrot.lane.b32.xlu0 %v1048, 125
        %v1057 = vpop.permute.xlu0 %1056
        %v1062 = vadd.f32 %v963, %v1051
        %v1063 = vadd.f32 %v964, %v1053
        %v1064 = vadd.f32 %v965, %v1055
        %v1065 = vadd.f32 %v966, %v1057
        %s1066 = sld [smem:[#allocation4 + $0x8]]
        %v1067 = vstv %s1066
        %v1068 = vmul.f32 %v1067, %v437
        %v1069 = vmul.f32 %v1067, %v438
        %v1070 = vmul.f32 %v1067, %v439
        %v1071 = vmul.f32 %v1067, %v440
        %vm1076 = vcmask 1045504
        %v1077 = vrot.slane %v1068, 2
        %v1078 = vrot.slane %v1069, 2
        %v1079 = vsel %vm1076, %v1077, %v1078
        %v1080 = vrot.slane %v1070, 2
        %v1081 = vsel %vm1076, %v1078, %v1080
        %v1082 = vrot.slane %v1071, 2
        %v1083 = vsel %vm1076, %v1080, %v1082
        %v1088 = vadd.f32 %v996, %v1079
        %v1089 = vadd.f32 %v997, %v1081
        %v1090 = vadd.f32 %v998, %v1083
        %v1091 = vadd.f32 %v999, %v1082
        %s1092 = sld [smem:[#allocation4 + $0x18]]
        %v1093 = vstv %s1092
        %v1094 = vmul.f32 %v1093, %v437
        %v1095 = vmul.f32 %v1093, %v438
        %v1096 = vmul.f32 %v1093, %v439
        %v1097 = vmul.f32 %v1093, %v440
        %v1102 = vrot.slane %v1094, 2
        %v1103 = vrot.slane %v1095, 2
        %v1104 = vsel %vm1076, %v1102, %v1103
        %v1105 = vrot.slane %v1096, 2
        %v1106 = vsel %vm1076, %v1103, %v1105
        %v1107 = vrot.slane %v1097, 2
        %v1108 = vsel %vm1076, %v1105, %v1107
        %v1113 = vadd.f32 %v1029, %v1104
        %v1114 = vadd.f32 %v1030, %v1106
        %v1115 = vadd.f32 %v1031, %v1108
        %v1116 = vadd.f32 %v1032, %v1107
        %s1117 = sld [smem:[#allocation4 + $0x28]]
        %v1118 = vstv %s1117
        %v1119 = vmul.f32 %v1118, %v437
        %v1120 = vmul.f32 %v1118, %v438
        %v1121 = vmul.f32 %v1118, %v439
        %v1122 = vmul.f32 %v1118, %v440
        %v1127 = vrot.slane %v1119, 2
        %v1128 = vrot.slane %v1120, 2
        %v1129 = vsel %vm1076, %v1127, %v1128
        %v1130 = vrot.slane %v1121, 2
        %v1131 = vsel %vm1076, %v1128, %v1130
        %v1132 = vrot.slane %v1122, 2
        %v1133 = vsel %vm1076, %v1130, %v1132
        %v1138 = vadd.f32 %v1062, %v1129
        %v1139 = vadd.f32 %v1063, %v1131
        %v1140 = vadd.f32 %v1064, %v1133
        %v1141 = vadd.f32 %v1065, %v1132
        %s1142 = sld [smem:[#allocation4 + $0x9]]
        %v1143 = vstv %s1142
        %v1144 = vmul.f32 %v1143, %v437
        %v1145 = vmul.f32 %v1143, %v438
        %v1146 = vmul.f32 %v1143, %v439
        %v1147 = vmul.f32 %v1143, %v440
        %v1152 = vrot.slane %v1144, 2
        %v1153 = vrot.slane %v1145, 2
        %v1154 = vsel %vm1076, %v1152, %v1153
        %v1155 = vrot.slane %v1146, 2
        %v1156 = vsel %vm1076, %v1153, %v1155
        %v1157 = vrot.slane %v1147, 2
        %v1158 = vsel %vm1076, %v1155, %v1157
        %1159 = vrot.lane.b32.xlu0 %v1154, 127
        %v1160 = vpop.permute.xlu0 %1159
        %1161 = vrot.lane.b32.xlu0 %v1156, 127
        %v1162 = vpop.permute.xlu0 %1161
        %1163 = vrot.lane.b32.xlu0 %v1158, 127
        %v1164 = vpop.permute.xlu0 %1163
        %1165 = vrot.lane.b32.xlu0 %v1157, 127
        %v1166 = vpop.permute.xlu0 %1165
        %v1171 = vadd.f32 %v1088, %v1160
        %v1172 = vadd.f32 %v1089, %v1162
        %v1173 = vadd.f32 %v1090, %v1164
        %v1174 = vadd.f32 %v1091, %v1166
        %s1175 = sld [smem:[#allocation4 + $0x19]]
        %v1176 = vstv %s1175
        %v1177 = vmul.f32 %v1176, %v437
        %v1178 = vmul.f32 %v1176, %v438
        %v1179 = vmul.f32 %v1176, %v439
        %v1180 = vmul.f32 %v1176, %v440
        %v1185 = vrot.slane %v1177, 2
        %v1186 = vrot.slane %v1178, 2
        %v1187 = vsel %vm1076, %v1185, %v1186
        %v1188 = vrot.slane %v1179, 2
        %v1189 = vsel %vm1076, %v1186, %v1188
        %v1190 = vrot.slane %v1180, 2
        %v1191 = vsel %vm1076, %v1188, %v1190
        %1192 = vrot.lane.b32.xlu0 %v1187, 127
        %v1193 = vpop.permute.xlu0 %1192
        %1194 = vrot.lane.b32.xlu0 %v1189, 127
        %v1195 = vpop.permute.xlu0 %1194
        %1196 = vrot.lane.b32.xlu0 %v1191, 127
        %v1197 = vpop.permute.xlu0 %1196
        %1198 = vrot.lane.b32.xlu0 %v1190, 127
        %v1199 = vpop.permute.xlu0 %1198
        %v1204 = vadd.f32 %v1113, %v1193
        %v1205 = vadd.f32 %v1114, %v1195
        %v1206 = vadd.f32 %v1115, %v1197
        %v1207 = vadd.f32 %v1116, %v1199
        %s1208 = sld [smem:[#allocation4 + $0x29]]
        %v1209 = vstv %s1208
        %v1210 = vmul.f32 %v1209, %v437
        %v1211 = vmul.f32 %v1209, %v438
        %v1212 = vmul.f32 %v1209, %v439
        %v1213 = vmul.f32 %v1209, %v440
        %v1218 = vrot.slane %v1210, 2
        %v1219 = vrot.slane %v1211, 2
        %v1220 = vsel %vm1076, %v1218, %v1219
        %v1221 = vrot.slane %v1212, 2
        %v1222 = vsel %vm1076, %v1219, %v1221
        %v1223 = vrot.slane %v1213, 2
        %v1224 = vsel %vm1076, %v1221, %v1223
        %1225 = vrot.lane.b32.xlu0 %v1220, 127
        %v1226 = vpop.permute.xlu0 %1225
        %1227 = vrot.lane.b32.xlu0 %v1222, 127
        %v1228 = vpop.permute.xlu0 %1227
        %1229 = vrot.lane.b32.xlu0 %v1224, 127
        %v1230 = vpop.permute.xlu0 %1229
        %1231 = vrot.lane.b32.xlu0 %v1223, 127
        %v1232 = vpop.permute.xlu0 %1231
        %v1237 = vadd.f32 %v1138, %v1226
        %v1238 = vadd.f32 %v1139, %v1228
        %v1239 = vadd.f32 %v1140, %v1230
        %v1240 = vadd.f32 %v1141, %v1232
        %s1241 = sld [smem:[#allocation4 + $0xa]]
        %v1242 = vstv %s1241
        %v1243 = vmul.f32 %v1242, %v437
        %v1244 = vmul.f32 %v1242, %v438
        %v1245 = vmul.f32 %v1242, %v439
        %v1246 = vmul.f32 %v1242, %v440
        %v1251 = vrot.slane %v1243, 2
        %v1252 = vrot.slane %v1244, 2
        %v1253 = vsel %vm1076, %v1251, %v1252
        %v1254 = vrot.slane %v1245, 2
        %v1255 = vsel %vm1076, %v1252, %v1254
        %v1256 = vrot.slane %v1246, 2
        %v1257 = vsel %vm1076, %v1254, %v1256
        %1258 = vrot.lane.b32.xlu0 %v1253, 126
        %v1259 = vpop.permute.xlu0 %1258
        %1260 = vrot.lane.b32.xlu0 %v1255, 126
        %v1261 = vpop.permute.xlu0 %1260
        %1262 = vrot.lane.b32.xlu0 %v1257, 126
        %v1263 = vpop.permute.xlu0 %1262
        %1264 = vrot.lane.b32.xlu0 %v1256, 126
        %v1265 = vpop.permute.xlu0 %1264
        %v1270 = vadd.f32 %v1171, %v1259
        %v1271 = vadd.f32 %v1172, %v1261
        %v1272 = vadd.f32 %v1173, %v1263
        %v1273 = vadd.f32 %v1174, %v1265
        %s1274 = sld [smem:[#allocation4 + $0x1a]]
        %v1275 = vstv %s1274
        %v1276 = vmul.f32 %v1275, %v437
        %v1277 = vmul.f32 %v1275, %v438
        %v1278 = vmul.f32 %v1275, %v439
        %v1279 = vmul.f32 %v1275, %v440
        %v1284 = vrot.slane %v1276, 2
        %v1285 = vrot.slane %v1277, 2
        %v1286 = vsel %vm1076, %v1284, %v1285
        %v1287 = vrot.slane %v1278, 2
        %v1288 = vsel %vm1076, %v1285, %v1287
        %v1289 = vrot.slane %v1279, 2
        %v1290 = vsel %vm1076, %v1287, %v1289
        %1291 = vrot.lane.b32.xlu0 %v1286, 126
        %v1292 = vpop.permute.xlu0 %1291
        %1293 = vrot.lane.b32.xlu0 %v1288, 126
        %v1294 = vpop.permute.xlu0 %1293
        %1295 = vrot.lane.b32.xlu0 %v1290, 126
        %v1296 = vpop.permute.xlu0 %1295
        %1297 = vrot.lane.b32.xlu0 %v1289, 126
        %v1298 = vpop.permute.xlu0 %1297
        %v1303 = vadd.f32 %v1204, %v1292
        %v1304 = vadd.f32 %v1205, %v1294
        %v1305 = vadd.f32 %v1206, %v1296
        %v1306 = vadd.f32 %v1207, %v1298
        %s1307 = sld [smem:[#allocation4 + $0x2a]]
        %v1308 = vstv %s1307
        %v1309 = vmul.f32 %v1308, %v437
        %v1310 = vmul.f32 %v1308, %v438
        %v1311 = vmul.f32 %v1308, %v439
        %v1312 = vmul.f32 %v1308, %v440
        %v1317 = vrot.slane %v1309, 2
        %v1318 = vrot.slane %v1310, 2
        %v1319 = vsel %vm1076, %v1317, %v1318
        %v1320 = vrot.slane %v1311, 2
        %v1321 = vsel %vm1076, %v1318, %v1320
        %v1322 = vrot.slane %v1312, 2
        %v1323 = vsel %vm1076, %v1320, %v1322
        %1324 = vrot.lane.b32.xlu0 %v1319, 126
        %v1325 = vpop.permute.xlu0 %1324
        %1326 = vrot.lane.b32.xlu0 %v1321, 126
        %v1327 = vpop.permute.xlu0 %1326
        %1328 = vrot.lane.b32.xlu0 %v1323, 126
        %v1329 = vpop.permute.xlu0 %1328
        %1330 = vrot.lane.b32.xlu0 %v1322, 126
        %v1331 = vpop.permute.xlu0 %1330
        %v1336 = vadd.f32 %v1237, %v1325
        %v1337 = vadd.f32 %v1238, %v1327
        %v1338 = vadd.f32 %v1239, %v1329
        %v1339 = vadd.f32 %v1240, %v1331
        %s1340 = sld [smem:[#allocation4 + $0xb]]
        %v1341 = vstv %s1340
        %v1342 = vmul.f32 %v1341, %v437
        %v1343 = vmul.f32 %v1341, %v438
        %v1344 = vmul.f32 %v1341, %v439
        %v1345 = vmul.f32 %v1341, %v440
        %v1350 = vrot.slane %v1342, 2
        %v1351 = vrot.slane %v1343, 2
        %v1352 = vsel %vm1076, %v1350, %v1351
        %v1353 = vrot.slane %v1344, 2
        %v1354 = vsel %vm1076, %v1351, %v1353
        %v1355 = vrot.slane %v1345, 2
        %v1356 = vsel %vm1076, %v1353, %v1355
        %1357 = vrot.lane.b32.xlu0 %v1352, 125
        %v1358 = vpop.permute.xlu0 %1357
        %1359 = vrot.lane.b32.xlu0 %v1354, 125
        %v1360 = vpop.permute.xlu0 %1359
        %1361 = vrot.lane.b32.xlu0 %v1356, 125
        %v1362 = vpop.permute.xlu0 %1361
        %1363 = vrot.lane.b32.xlu0 %v1355, 125
        %v1364 = vpop.permute.xlu0 %1363
        %v1369 = vadd.f32 %v1270, %v1358
        %v1370 = vadd.f32 %v1271, %v1360
        %v1371 = vadd.f32 %v1272, %v1362
        %v1372 = vadd.f32 %v1273, %v1364
        %s1373 = sld [smem:[#allocation4 + $0x1b]]
        %v1374 = vstv %s1373
        %v1375 = vmul.f32 %v1374, %v437
        %v1376 = vmul.f32 %v1374, %v438
        %v1377 = vmul.f32 %v1374, %v439
        %v1378 = vmul.f32 %v1374, %v440
        %v1383 = vrot.slane %v1375, 2
        %v1384 = vrot.slane %v1376, 2
        %v1385 = vsel %vm1076, %v1383, %v1384
        %v1386 = vrot.slane %v1377, 2
        %v1387 = vsel %vm1076, %v1384, %v1386
        %v1388 = vrot.slane %v1378, 2
        %v1389 = vsel %vm1076, %v1386, %v1388
        %1390 = vrot.lane.b32.xlu0 %v1385, 125
        %v1391 = vpop.permute.xlu0 %1390
        %1392 = vrot.lane.b32.xlu0 %v1387, 125
        %v1393 = vpop.permute.xlu0 %1392
        %1394 = vrot.lane.b32.xlu0 %v1389, 125
        %v1395 = vpop.permute.xlu0 %1394
        %1396 = vrot.lane.b32.xlu0 %v1388, 125
        %v1397 = vpop.permute.xlu0 %1396
        %v1402 = vadd.f32 %v1303, %v1391
        %v1403 = vadd.f32 %v1304, %v1393
        %v1404 = vadd.f32 %v1305, %v1395
        %v1405 = vadd.f32 %v1306, %v1397
        %s1406 = sld [smem:[#allocation4 + $0x2b]]
        %v1407 = vstv %s1406
        %v1408 = vmul.f32 %v1407, %v437
        %v1409 = vmul.f32 %v1407, %v438
        %v1410 = vmul.f32 %v1407, %v439
        %v1411 = vmul.f32 %v1407, %v440
        %v1416 = vrot.slane %v1408, 2
        %v1417 = vrot.slane %v1409, 2
        %v1418 = vsel %vm1076, %v1416, %v1417
        %v1419 = vrot.slane %v1410, 2
        %v1420 = vsel %vm1076, %v1417, %v1419
        %v1421 = vrot.slane %v1411, 2
        %v1422 = vsel %vm1076, %v1419, %v1421
        %1423 = vrot.lane.b32.xlu0 %v1418, 125
        %v1424 = vpop.permute.xlu0 %1423
        %1425 = vrot.lane.b32.xlu0 %v1420, 125
        %v1426 = vpop.permute.xlu0 %1425
        %1427 = vrot.lane.b32.xlu0 %v1422, 125
        %v1428 = vpop.permute.xlu0 %1427
        %1429 = vrot.lane.b32.xlu0 %v1421, 125
        %v1430 = vpop.permute.xlu0 %1429
        %v1435 = vadd.f32 %v1336, %v1424
        %v1436 = vadd.f32 %v1337, %v1426
        %v1437 = vadd.f32 %v1338, %v1428
        %v1438 = vadd.f32 %v1339, %v1430
        %s1439 = sld [smem:[#allocation4 + $0xc]]
        %v1440 = vstv %s1439
        %v1441 = vmul.f32 %v1440, %v437
        %v1442 = vmul.f32 %v1440, %v438
        %v1443 = vmul.f32 %v1440, %v439
        %v1444 = vmul.f32 %v1440, %v440
        %vm1449 = vcmask 1044480
        %v1450 = vrot.slane %v1441, 3
        %v1451 = vrot.slane %v1442, 3
        %v1452 = vsel %vm1449, %v1450, %v1451
        %v1453 = vrot.slane %v1443, 3
        %v1454 = vsel %vm1449, %v1451, %v1453
        %v1455 = vrot.slane %v1444, 3
        %v1456 = vsel %vm1449, %v1453, %v1455
        %v1461 = vadd.f32 %v1369, %v1452
        %v1462 = vadd.f32 %v1370, %v1454
        %v1463 = vadd.f32 %v1371, %v1456
        %v1464 = vadd.f32 %v1372, %v1455
        %s1465 = sld [smem:[#allocation4 + $0x1c]]
        %v1466 = vstv %s1465
        %v1467 = vmul.f32 %v1466, %v437
        %v1468 = vmul.f32 %v1466, %v438
        %v1469 = vmul.f32 %v1466, %v439
        %v1470 = vmul.f32 %v1466, %v440
        %v1475 = vrot.slane %v1467, 3
        %v1476 = vrot.slane %v1468, 3
        %v1477 = vsel %vm1449, %v1475, %v1476
        %v1478 = vrot.slane %v1469, 3
        %v1479 = vsel %vm1449, %v1476, %v1478
        %v1480 = vrot.slane %v1470, 3
        %v1481 = vsel %vm1449, %v1478, %v1480
        %v1486 = vadd.f32 %v1402, %v1477
        %v1487 = vadd.f32 %v1403, %v1479
        %v1488 = vadd.f32 %v1404, %v1481
        %v1489 = vadd.f32 %v1405, %v1480
        %s1490 = sld [smem:[#allocation4 + $0x2c]]
        %v1491 = vstv %s1490
        %v1492 = vmul.f32 %v1491, %v437
        %v1493 = vmul.f32 %v1491, %v438
        %v1494 = vmul.f32 %v1491, %v439
        %v1495 = vmul.f32 %v1491, %v440
        %v1500 = vrot.slane %v1492, 3
        %v1501 = vrot.slane %v1493, 3
        %v1502 = vsel %vm1449, %v1500, %v1501
        %v1503 = vrot.slane %v1494, 3
        %v1504 = vsel %vm1449, %v1501, %v1503
        %v1505 = vrot.slane %v1495, 3
        %v1506 = vsel %vm1449, %v1503, %v1505
        %v1511 = vadd.f32 %v1435, %v1502
        %v1512 = vadd.f32 %v1436, %v1504
        %v1513 = vadd.f32 %v1437, %v1506
        %v1514 = vadd.f32 %v1438, %v1505
        %s1515 = sld [smem:[#allocation4 + $0xd]]
        %v1516 = vstv %s1515
        %v1517 = vmul.f32 %v1516, %v437
        %v1518 = vmul.f32 %v1516, %v438
        %v1519 = vmul.f32 %v1516, %v439
        %v1520 = vmul.f32 %v1516, %v440
        %v1525 = vrot.slane %v1517, 3
        %v1526 = vrot.slane %v1518, 3
        %v1527 = vsel %vm1449, %v1525, %v1526
        %v1528 = vrot.slane %v1519, 3
        %v1529 = vsel %vm1449, %v1526, %v1528
        %v1530 = vrot.slane %v1520, 3
        %v1531 = vsel %vm1449, %v1528, %v1530
        %1532 = vrot.lane.b32.xlu0 %v1527, 127
        %v1533 = vpop.permute.xlu0 %1532
        %1534 = vrot.lane.b32.xlu0 %v1529, 127
        %v1535 = vpop.permute.xlu0 %1534
        %1536 = vrot.lane.b32.xlu0 %v1531, 127
        %v1537 = vpop.permute.xlu0 %1536
        %1538 = vrot.lane.b32.xlu0 %v1530, 127
        %v1539 = vpop.permute.xlu0 %1538
        %v1544 = vadd.f32 %v1461, %v1533
        %v1545 = vadd.f32 %v1462, %v1535
        %v1546 = vadd.f32 %v1463, %v1537
        %v1547 = vadd.f32 %v1464, %v1539
        %s1548 = sld [smem:[#allocation4 + $0x1d]]
        %v1549 = vstv %s1548
        %v1550 = vmul.f32 %v1549, %v437
        %v1551 = vmul.f32 %v1549, %v438
        %v1552 = vmul.f32 %v1549, %v439
        %v1553 = vmul.f32 %v1549, %v440
        %v1558 = vrot.slane %v1550, 3
        %v1559 = vrot.slane %v1551, 3
        %v1560 = vsel %vm1449, %v1558, %v1559
        %v1561 = vrot.slane %v1552, 3
        %v1562 = vsel %vm1449, %v1559, %v1561
        %v1563 = vrot.slane %v1553, 3
        %v1564 = vsel %vm1449, %v1561, %v1563
        %1565 = vrot.lane.b32.xlu0 %v1560, 127
        %v1566 = vpop.permute.xlu0 %1565
        %1567 = vrot.lane.b32.xlu0 %v1562, 127
        %v1568 = vpop.permute.xlu0 %1567
        %1569 = vrot.lane.b32.xlu0 %v1564, 127
        %v1570 = vpop.permute.xlu0 %1569
        %1571 = vrot.lane.b32.xlu0 %v1563, 127
        %v1572 = vpop.permute.xlu0 %1571
        %v1577 = vadd.f32 %v1486, %v1566
        %v1578 = vadd.f32 %v1487, %v1568
        %v1579 = vadd.f32 %v1488, %v1570
        %v1580 = vadd.f32 %v1489, %v1572
        %s1581 = sld [smem:[#allocation4 + $0x2d]]
        %v1582 = vstv %s1581
        %v1583 = vmul.f32 %v1582, %v437
        %v1584 = vmul.f32 %v1582, %v438
        %v1585 = vmul.f32 %v1582, %v439
        %v1586 = vmul.f32 %v1582, %v440
        %v1591 = vrot.slane %v1583, 3
        %v1592 = vrot.slane %v1584, 3
        %v1593 = vsel %vm1449, %v1591, %v1592
        %v1594 = vrot.slane %v1585, 3
        %v1595 = vsel %vm1449, %v1592, %v1594
        %v1596 = vrot.slane %v1586, 3
        %v1597 = vsel %vm1449, %v1594, %v1596
        %1598 = vrot.lane.b32.xlu0 %v1593, 127
        %v1599 = vpop.permute.xlu0 %1598
        %1600 = vrot.lane.b32.xlu0 %v1595, 127
        %v1601 = vpop.permute.xlu0 %1600
        %1602 = vrot.lane.b32.xlu0 %v1597, 127
        %v1603 = vpop.permute.xlu0 %1602
        %1604 = vrot.lane.b32.xlu0 %v1596, 127
        %v1605 = vpop.permute.xlu0 %1604
        %v1610 = vadd.f32 %v1511, %v1599
        %v1611 = vadd.f32 %v1512, %v1601
        %v1612 = vadd.f32 %v1513, %v1603
        %v1613 = vadd.f32 %v1514, %v1605
        %s1614 = sld [smem:[#allocation4 + $0xe]]
        %v1615 = vstv %s1614
        %v1616 = vmul.f32 %v1615, %v437
        %v1617 = vmul.f32 %v1615, %v438
        %v1618 = vmul.f32 %v1615, %v439
        %v1619 = vmul.f32 %v1615, %v440
        %v1624 = vrot.slane %v1616, 3
        %v1625 = vrot.slane %v1617, 3
        %v1626 = vsel %vm1449, %v1624, %v1625
        %v1627 = vrot.slane %v1618, 3
        %v1628 = vsel %vm1449, %v1625, %v1627
        %v1629 = vrot.slane %v1619, 3
        %v1630 = vsel %vm1449, %v1627, %v1629
        %1631 = vrot.lane.b32.xlu0 %v1626, 126
        %v1632 = vpop.permute.xlu0 %1631
        %1633 = vrot.lane.b32.xlu0 %v1628, 126
        %v1634 = vpop.permute.xlu0 %1633
        %1635 = vrot.lane.b32.xlu0 %v1630, 126
        %v1636 = vpop.permute.xlu0 %1635
        %1637 = vrot.lane.b32.xlu0 %v1629, 126
        %v1638 = vpop.permute.xlu0 %1637
        %v1643 = vadd.f32 %v1544, %v1632
        %v1644 = vadd.f32 %v1545, %v1634
        %v1645 = vadd.f32 %v1546, %v1636
        %v1646 = vadd.f32 %v1547, %v1638
        %s1647 = sld [smem:[#allocation4 + $0x1e]]
        %v1648 = vstv %s1647
        %v1649 = vmul.f32 %v1648, %v437
        %v1650 = vmul.f32 %v1648, %v438
        %v1651 = vmul.f32 %v1648, %v439
        %v1652 = vmul.f32 %v1648, %v440
        %v1657 = vrot.slane %v1649, 3
        %v1658 = vrot.slane %v1650, 3
        %v1659 = vsel %vm1449, %v1657, %v1658
        %v1660 = vrot.slane %v1651, 3
        %v1661 = vsel %vm1449, %v1658, %v1660
        %v1662 = vrot.slane %v1652, 3
        %v1663 = vsel %vm1449, %v1660, %v1662
        %1664 = vrot.lane.b32.xlu0 %v1659, 126
        %v1665 = vpop.permute.xlu0 %1664
        %1666 = vrot.lane.b32.xlu0 %v1661, 126
        %v1667 = vpop.permute.xlu0 %1666
        %1668 = vrot.lane.b32.xlu0 %v1663, 126
        %v1669 = vpop.permute.xlu0 %1668
        %1670 = vrot.lane.b32.xlu0 %v1662, 126
        %v1671 = vpop.permute.xlu0 %1670
        %v1676 = vadd.f32 %v1577, %v1665
        %v1677 = vadd.f32 %v1578, %v1667
        %v1678 = vadd.f32 %v1579, %v1669
        %v1679 = vadd.f32 %v1580, %v1671
        %s1680 = sld [smem:[#allocation4 + $0x2e]]
        %v1681 = vstv %s1680
        %v1682 = vmul.f32 %v1681, %v437
        %v1683 = vmul.f32 %v1681, %v438
        %v1684 = vmul.f32 %v1681, %v439
        %v1685 = vmul.f32 %v1681, %v440
        %v1690 = vrot.slane %v1682, 3
        %v1691 = vrot.slane %v1683, 3
        %v1692 = vsel %vm1449, %v1690, %v1691
        %v1693 = vrot.slane %v1684, 3
        %v1694 = vsel %vm1449, %v1691, %v1693
        %v1695 = vrot.slane %v1685, 3
        %v1696 = vsel %vm1449, %v1693, %v1695
        %1697 = vrot.lane.b32.xlu0 %v1692, 126
        %v1698 = vpop.permute.xlu0 %1697
        %1699 = vrot.lane.b32.xlu0 %v1694, 126
        %v1700 = vpop.permute.xlu0 %1699
        %1701 = vrot.lane.b32.xlu0 %v1696, 126
        %v1702 = vpop.permute.xlu0 %1701
        %1703 = vrot.lane.b32.xlu0 %v1695, 126
        %v1704 = vpop.permute.xlu0 %1703
        %v1709 = vadd.f32 %v1610, %v1698
        %v1710 = vadd.f32 %v1611, %v1700
        %v1711 = vadd.f32 %v1612, %v1702
        %v1712 = vadd.f32 %v1613, %v1704
        %s1713 = sld [smem:[#allocation4 + $0xf]]
        %v1714 = vstv %s1713
        %v1715 = vmul.f32 %v1714, %v437
        %v1716 = vmul.f32 %v1714, %v438
        %v1717 = vmul.f32 %v1714, %v439
        %v1718 = vmul.f32 %v1714, %v440
        %v1723 = vrot.slane %v1715, 3
        %v1724 = vrot.slane %v1716, 3
        %v1725 = vsel %vm1449, %v1723, %v1724
        %v1726 = vrot.slane %v1717, 3
        %v1727 = vsel %vm1449, %v1724, %v1726
        %v1728 = vrot.slane %v1718, 3
        %v1729 = vsel %vm1449, %v1726, %v1728
        %1730 = vrot.lane.b32.xlu0 %v1725, 125
        %v1731 = vpop.permute.xlu0 %1730
        %1732 = vrot.lane.b32.xlu0 %v1727, 125
        %v1733 = vpop.permute.xlu0 %1732
        %1734 = vrot.lane.b32.xlu0 %v1729, 125
        %v1735 = vpop.permute.xlu0 %1734
        %1736 = vrot.lane.b32.xlu0 %v1728, 125
        %v1737 = vpop.permute.xlu0 %1736
        %v1742 = vadd.f32 %v1643, %v1731
        %v1743 = vadd.f32 %v1644, %v1733
        %v1744 = vadd.f32 %v1645, %v1735
        %v1745 = vadd.f32 %v1646, %v1737
        %s1746 = sld [smem:[#allocation4 + $0x1f]]
        %v1747 = vstv %s1746
        %v1748 = vmul.f32 %v1747, %v437
        %v1749 = vmul.f32 %v1747, %v438
        %v1750 = vmul.f32 %v1747, %v439
        %v1751 = vmul.f32 %v1747, %v440
        %v1756 = vrot.slane %v1748, 3
        %v1757 = vrot.slane %v1749, 3
        %v1758 = vsel %vm1449, %v1756, %v1757
        %v1759 = vrot.slane %v1750, 3
        %v1760 = vsel %vm1449, %v1757, %v1759
        %v1761 = vrot.slane %v1751, 3
        %v1762 = vsel %vm1449, %v1759, %v1761
        %1763 = vrot.lane.b32.xlu0 %v1758, 125
        %v1764 = vpop.permute.xlu0 %1763
        %1765 = vrot.lane.b32.xlu0 %v1760, 125
        %v1766 = vpop.permute.xlu0 %1765
        %1767 = vrot.lane.b32.xlu0 %v1762, 125
        %v1768 = vpop.permute.xlu0 %1767
        %1769 = vrot.lane.b32.xlu0 %v1761, 125
        %v1770 = vpop.permute.xlu0 %1769
        %v1775 = vadd.f32 %v1676, %v1764
        %v1776 = vadd.f32 %v1677, %v1766
        %v1777 = vadd.f32 %v1678, %v1768
        %v1778 = vadd.f32 %v1679, %v1770
        %s1779 = sld [smem:[#allocation4 + $0x2f]]
        %v1780 = vstv %s1779
        %v1781 = vmul.f32 %v1780, %v437
        %v1782 = vmul.f32 %v1780, %v438
        %v1783 = vmul.f32 %v1780, %v439
        %v1784 = vmul.f32 %v1780, %v440
        %v1789 = vrot.slane %v1781, 3
        %v1790 = vrot.slane %v1782, 3
        %v1791 = vsel %vm1449, %v1789, %v1790
        %v1792 = vrot.slane %v1783, 3
        %v1793 = vsel %vm1449, %v1790, %v1792
        %v1794 = vrot.slane %v1784, 3
        %v1795 = vsel %vm1449, %v1792, %v1794
        %1796 = vrot.lane.b32.xlu0 %v1791, 125
        %v1797 = vpop.permute.xlu0 %1796
        %1798 = vrot.lane.b32.xlu0 %v1793, 125
        %v1799 = vpop.permute.xlu0 %1798
        %1800 = vrot.lane.b32.xlu0 %v1795, 125
        %v1801 = vpop.permute.xlu0 %1800
        %1802 = vrot.lane.b32.xlu0 %v1794, 125
        %v1803 = vpop.permute.xlu0 %1802
        %v1808 = vadd.f32 %v1709, %v1797
        %v1809 = vadd.f32 %v1710, %v1799
        %v1810 = vadd.f32 %v1711, %v1801
        %v1811 = vadd.f32 %v1712, %v1803
        %s1812 = sld [smem:[#allocation6]]
        %v1813 = vstv %s1812
        %v1814 = vadd.f32 %v1742, %v1813
        %v1815 = vadd.f32 %v1743, %v1813
        %v1816 = vadd.f32 %v1744, %v1813
        %v1817 = vadd.f32 %v1745, %v1813
        %v1818 = vmax.f32 %v1814, 0.0
        %v1819 = vmax.f32 %v1815, 0.0
        %v1820 = vmax.f32 %v1816, 0.0
        %v1821 = vmax.f32 %v1817, 0.0
        %s1822 = sld [smem:[#allocation6 + $0x1]]
        %v1823 = vstv %s1822
        %v1824 = vadd.f32 %v1775, %v1823
        %v1825 = vadd.f32 %v1776, %v1823
        %v1826 = vadd.f32 %v1777, %v1823
        %v1827 = vadd.f32 %v1778, %v1823
        %v1828 = vmax.f32 %v1824, 0.0
        %v1829 = vmax.f32 %v1825, 0.0
        %v1830 = vmax.f32 %v1826, 0.0
        %v1831 = vmax.f32 %v1827, 0.0
        %s1832 = sld [smem:[#allocation6 + $0x2]]
        %v1833 = vstv %s1832
        %v1834 = vadd.f32 %v1808, %v1833
        %v1835 = vadd.f32 %v1809, %v1833
        %v1836 = vadd.f32 %v1810, %v1833
        %v1837 = vadd.f32 %v1811, %v1833
        %v1838 = vmax.f32 %v1834, 0.0
        %v1839 = vmax.f32 %v1835, 0.0
        %v1840 = vmax.f32 %v1836, 0.0
        %v1841 = vmax.f32 %v1837, 0.0
        %v1842 = vlaneseq
        %v1843 = vshrl.u32 %v1842, 7
        %v1844 = vadd.s32 %v1843, 8
        %v1845 = vadd.s32 %v1843, 16
        %v1846 = vlaneseq
        %v1847 = vand.u32 %v1846, 127
        %v1848 = vmul.u32 %v1847, 2
        %vm1849 = vcmp.eq.s32.totalorder %v1843, %v1848
        %vm1850 = vcmp.eq.s32.totalorder %v1844, %v1848
        %vm1851 = vcmp.eq.s32.totalorder %v1845, %v1848
        %v1852 = vsel %vm1849, 1, 0
        %v1853 = vsel %vm1850, 1, 0
        %v1854 = vsel %vm1851, 1, 0
        %v1855 = vcvt.s32.f32 %v1852
        %v1856 = vcvt.s32.f32 %v1853
        %v1857 = vcvt.s32.f32 %v1854
        %1861 = vrot.lane.b32.xlu0 %v1818, 127
        %v1862 = vpop.permute.xlu0 %1861
        %1863 = vrot.lane.b32.xlu0 %v1819, 127
        %v1864 = vpop.permute.xlu0 %1863
        %1865 = vrot.lane.b32.xlu0 %v1820, 127
        %v1866 = vpop.permute.xlu0 %1865
        %v1870 = vmax.f32 %v1818, %v1862
        %v1871 = vmax.f32 %v1819, %v1864
        %v1872 = vmax.f32 %v1820, %v1866
        %1874 = vrot.lane.b32.xlu0 %v1821, 127
        %v1875 = vpop.permute.xlu0 %1874
        %v1877 = vmax.f32 %v1821, %v1875
        %v1882 = vrot.slane %v1870, 1
        %v1883 = vrot.slane %v1871, 1
        %v1884 = vsel %vm703, %v1882, %v1883
        %v1885 = vrot.slane %v1872, 1
        %v1886 = vsel %vm703, %v1883, %v1885
        %v1887 = vrot.slane %v1877, 1
        %v1888 = vsel %vm703, %v1885, %v1887
        %v1892 = vmax.f32 %v1870, %v1884
        %v1893 = vmax.f32 %v1871, %v1886
        %v1894 = vmax.f32 %v1872, %v1888
        %vm1895 = vcmask 195584
        %v1897 = vsel %vm1895, %v1892, 0
        %v1900 = vsel %vm1895, %v1893, 0
        %v1903 = vsel %vm1895, %v1894, 0
        %1905 = vmatprep.subr.mxu0 0.0
        %1906 = vmatpush1.msra.mxu0 %v1855
        %1907 = vmatprep.subr.mxu0 0.0
        %1908 = vmatpush1.msra.mxu0 %v1856
        %1909 = vmatprep.subr.mxu0 0.0
        %1910 = vmatpush1.msra.mxu0 %v1857
        %1911 = vmatprep.subr.mxu0 0.0
        %1912 = vmatpush1.msra.mxu0 0.0
        %1913 = vmatprep.subr.mxu0 0.0
        %1914 = vmatpush1.msra.mxu0 0.0
        %1915 = vmatprep.subr.mxu0 0.0
        %1916 = vmatpush1.msra.mxu0 0.0
        %1917 = vmatprep.subr.mxu0 0.0
        %1918 = vmatpush1.msra.mxu0 0.0
        %1919 = vmatprep.subr.mxu0 0.0
        %1920 = vmatpush1.msra.mxu0 0.0
        %1921 = vmatprep.subr.mxu0 0.0
        %1922 = vmatpush1.msra.mxu0 0.0
        %1923 = vmatprep.subr.mxu0 0.0
        %1924 = vmatpush1.msra.mxu0 0.0
        %1925 = vmatprep.subr.mxu0 0.0
        %1926 = vmatpush1.msra.mxu0 0.0
        %1927 = vmatprep.subr.mxu0 0.0
        %1928 = vmatpush1.msra.mxu0 0.0
        %1929 = vmatprep.subr.mxu0 0.0
        %1930 = vmatpush1.msra.mxu0 0.0
        %1931 = vmatprep.subr.mxu0 0.0
        %1932 = vmatpush1.msra.mxu0 0.0
        %1933 = vmatprep.subr.mxu0 0.0
        %1934 = vmatpush1.msra.mxu0 0.0
        %1935 = vmatprep.subr.mxu0 0.0
        %1936 = vmatpush1.msra.mxu0 0.0
        %1937 = vmatprep.subr.mxu0 0.0
        %1938 = vmatpush1.msra.mxu0 0.0
        %1939 = vmatprep.subr.mxu0 0.0
        %1940 = vmatpush1.msra.mxu0 0.0
        %1941 = vmatprep.subr.mxu0 0.0
        %1942 = vmatpush1.msra.mxu0 0.0
        %1943 = vmatprep.subr.mxu0 0.0
        %1944 = vmatpush1.msra.mxu0 0.0
        %1945 = vmatprep.subr.mxu0 0.0
        %1946 = vmatpush1.msra.mxu0 0.0
        %1947 = vmatprep.subr.mxu0 0.0
        %1948 = vmatpush1.msra.mxu0 0.0
        %1949 = vmatprep.subr.mxu0 0.0
        %1950 = vmatpush1.msra.mxu0 0.0
        %1951 = vmatprep.subr.mxu0 0.0
        %1952 = vmatpush1.msra.mxu0 0.0
        %1953 = vmatprep.subr.mxu0 0.0
        %1954 = vmatpush1.msra.mxu0 0.0
        %1955 = vmatprep.subr.mxu0 0.0
        %1956 = vmatpush1.msra.mxu0 0.0
        %1957 = vmatprep.subr.mxu0 0.0
        %1958 = vmatpush1.msra.mxu0 0.0
        %1959 = vmatprep.subr.mxu0 0.0
        %1960 = vmatpush1.msra.mxu0 0.0
        %1961 = vmatprep.subr.mxu0 0.0
        %1962 = vmatpush1.msra.mxu0 0.0
        %1963 = vmatprep.subr.mxu0 0.0
        %1964 = vmatpush1.msra.mxu0 0.0
        %1965 = vmatprep.subr.mxu0 0.0
        %1966 = vmatpush1.msra.mxu0 0.0
        %1967 = vmatprep.subr.mxu0 0.0
        %1968 = vmatpush1.msra.mxu0 0.0
        %1969 = vmatprep.mubr.f32.mxu0 0.0
        %1970 = vmatmul.mubr.f32.gmra.mrb[0].mxu0 %v1897
        %v1971 = vpop.f32.mrb[0].mxu0
        %v1972 = vadd.f32 0.0, %v1971
        %v1973 = vpop.f32.mrb[0].mxu0
        %1974 = vmatprep.mubr.f32.mxu0 0.0
        %1975 = vmatmul.mubr.f32.gmra.mrb[0].mxu0 %v1900
        %v1976 = vpop.f32.mrb[0].mxu0
        %v1977 = vadd.f32 0.0, %v1976
        %v1978 = vpop.f32.mrb[0].mxu0
        %1979 = vmatprep.mubr.f32.mxu0 0.0
        %1980 = vmatmul.mubr.f32.gmra.mrb[0].mxu0 %v1903
        %v1981 = vpop.f32.mrb[0].mxu0
        %v1982 = vadd.f32 0.0, %v1981
        %v1983 = vpop.f32.mrb[0].mxu0
        %1984 = vdwg.mxu0
        %vm1985 = vcmask 90112
        %1986 = vst.msk [vmem:[#allocation2] sm:$0x1] %vm1985, %v1972
        %vm1987 = vcmask 92162
        %1988 = vst.msk [vmem:[#allocation2 - $0x1] sm:$0x4] %vm1987, %v1972
        %vm1989 = vcmask 94212
        %1990 = vst.msk [vmem:[#allocation2 - $0x2] sm:$0x10] %vm1989, %v1972
        %vm1991 = vcmask 96262
        %1992 = vst.msk [vmem:[#allocation2 - $0x3] sm:$0x40] %vm1991, %v1972
        %1993 = vst.msk [vmem:[#allocation2 + $0x4] sm:$0x1] %vm1985, %v1977
        %1994 = vst.msk [vmem:[#allocation2 + $0x3] sm:$0x4] %vm1987, %v1977
        %1995 = vst.msk [vmem:[#allocation2 + $0x2] sm:$0x10] %vm1989, %v1977
        %1996 = vst.msk [vmem:[#allocation2 + $0x1] sm:$0x40] %vm1991, %v1977
        %1997 = vst.msk [vmem:[#allocation2 + $0x8] sm:$0x1] %vm1985, %v1982
        %1998 = vst.msk [vmem:[#allocation2 + $0x7] sm:$0x4] %vm1987, %v1982
        %1999 = vst.msk [vmem:[#allocation2 + $0x6] sm:$0x10] %vm1989, %v1982
        %2000 = vst.msk [vmem:[#allocation2 + $0x5] sm:$0x40] %vm1991, %v1982
        %2004 = vrot.lane.b32.xlu0 %v1828, 127
        %v2005 = vpop.permute.xlu0 %2004
        %2006 = vrot.lane.b32.xlu0 %v1829, 127
        %v2007 = vpop.permute.xlu0 %2006
        %2008 = vrot.lane.b32.xlu0 %v1830, 127
        %v2009 = vpop.permute.xlu0 %2008
        %v2013 = vmax.f32 %v1828, %v2005
        %v2014 = vmax.f32 %v1829, %v2007
        %v2015 = vmax.f32 %v1830, %v2009
        %2017 = vrot.lane.b32.xlu0 %v1831, 127
        %v2018 = vpop.permute.xlu0 %2017
        %v2020 = vmax.f32 %v1831, %v2018
        %v2025 = vrot.slane %v2013, 1
        %v2026 = vrot.slane %v2014, 1
        %v2027 = vsel %vm703, %v2025, %v2026
        %v2028 = vrot.slane %v2015, 1
        %v2029 = vsel %vm703, %v2026, %v2028
        %v2030 = vrot.slane %v2020, 1
        %v2031 = vsel %vm703, %v2028, %v2030
        %v2035 = vmax.f32 %v2013, %v2027
        %v2036 = vmax.f32 %v2014, %v2029
        %v2037 = vmax.f32 %v2015, %v2031
        %v2039 = vsel %vm1895, %v2035, 0
        %v2042 = vsel %vm1895, %v2036, 0
        %v2045 = vsel %vm1895, %v2037, 0
        %2047 = vmatprep.subr.mxu0 0.0
        %2048 = vmatpush1.msra.mxu0 %v1855
        %2049 = vmatprep.subr.mxu0 0.0
        %2050 = vmatpush1.msra.mxu0 %v1856
        %2051 = vmatprep.subr.mxu0 0.0
        %2052 = vmatpush1.msra.mxu0 %v1857
        %2053 = vmatprep.subr.mxu0 0.0
        %2054 = vmatpush1.msra.mxu0 0.0
        %2055 = vmatprep.subr.mxu0 0.0
        %2056 = vmatpush1.msra.mxu0 0.0
        %2057 = vmatprep.subr.mxu0 0.0
        %2058 = vmatpush1.msra.mxu0 0.0
        %2059 = vmatprep.subr.mxu0 0.0
        %2060 = vmatpush1.msra.mxu0 0.0
        %2061 = vmatprep.subr.mxu0 0.0
        %2062 = vmatpush1.msra.mxu0 0.0
        %2063 = vmatprep.subr.mxu0 0.0
        %2064 = vmatpush1.msra.mxu0 0.0
        %2065 = vmatprep.subr.mxu0 0.0
        %2066 = vmatpush1.msra.mxu0 0.0
        %2067 = vmatprep.subr.mxu0 0.0
        %2068 = vmatpush1.msra.mxu0 0.0
        %2069 = vmatprep.subr.mxu0 0.0
        %2070 = vmatpush1.msra.mxu0 0.0
        %2071 = vmatprep.subr.mxu0 0.0
        %2072 = vmatpush1.msra.mxu0 0.0
        %2073 = vmatprep.subr.mxu0 0.0
        %2074 = vmatpush1.msra.mxu0 0.0
        %2075 = vmatprep.subr.mxu0 0.0
        %2076 = vmatpush1.msra.mxu0 0.0
        %2077 = vmatprep.subr.mxu0 0.0
        %2078 = vmatpush1.msra.mxu0 0.0
        %2079 = vmatprep.subr.mxu0 0.0
        %2080 = vmatpush1.msra.mxu0 0.0
        %2081 = vmatprep.subr.mxu0 0.0
        %2082 = vmatpush1.msra.mxu0 0.0
        %2083 = vmatprep.subr.mxu0 0.0
        %2084 = vmatpush1.msra.mxu0 0.0
        %2085 = vmatprep.subr.mxu0 0.0
        %2086 = vmatpush1.msra.mxu0 0.0
        %2087 = vmatprep.subr.mxu0 0.0
        %2088 = vmatpush1.msra.mxu0 0.0
        %2089 = vmatprep.subr.mxu0 0.0
        %2090 = vmatpush1.msra.mxu0 0.0
        %2091 = vmatprep.subr.mxu0 0.0
        %2092 = vmatpush1.msra.mxu0 0.0
        %2093 = vmatprep.subr.mxu0 0.0
        %2094 = vmatpush1.msra.mxu0 0.0
        %2095 = vmatprep.subr.mxu0 0.0
        %2096 = vmatpush1.msra.mxu0 0.0
        %2097 = vmatprep.subr.mxu0 0.0
        %2098 = vmatpush1.msra.mxu0 0.0
        %2099 = vmatprep.subr.mxu0 0.0
        %2100 = vmatpush1.msra.mxu0 0.0
        %2101 = vmatprep.subr.mxu0 0.0
        %2102 = vmatpush1.msra.mxu0 0.0
        %2103 = vmatprep.subr.mxu0 0.0
        %2104 = vmatpush1.msra.mxu0 0.0
        %2105 = vmatprep.subr.mxu0 0.0
        %2106 = vmatpush1.msra.mxu0 0.0
        %2107 = vmatprep.subr.mxu0 0.0
        %2108 = vmatpush1.msra.mxu0 0.0
        %2109 = vmatprep.subr.mxu0 0.0
        %2110 = vmatpush1.msra.mxu0 0.0
        %2111 = vmatprep.mubr.f32.mxu0 0.0
        %2112 = vmatmul.mubr.f32.gmra.mrb[0].mxu0 %v2039
        %v2113 = vpop.f32.mrb[0].mxu0
        %v2114 = vadd.f32 0.0, %v2113
        %v2115 = vpop.f32.mrb[0].mxu0
        %2116 = vmatprep.mubr.f32.mxu0 0.0
        %2117 = vmatmul.mubr.f32.gmra.mrb[0].mxu0 %v2042
        %v2118 = vpop.f32.mrb[0].mxu0
        %v2119 = vadd.f32 0.0, %v2118
        %v2120 = vpop.f32.mrb[0].mxu0
        %2121 = vmatprep.mubr.f32.mxu0 0.0
        %2122 = vmatmul.mubr.f32.gmra.mrb[0].mxu0 %v2045
        %v2123 = vpop.f32.mrb[0].mxu0
        %v2124 = vadd.f32 0.0, %v2123
        %v2125 = vpop.f32.mrb[0].mxu0
        %2126 = vdwg.mxu0
        %s2127 = scalar_lea.vmem [#allocation2], 16
        %2128 = vst.msk [vmem:[%s2127] sm:$0x1] %vm1985, %v2114
        %2129 = vst.msk [vmem:[%s2127 - $0x1] sm:$0x4] %vm1987, %v2114
        %2130 = vst.msk [vmem:[%s2127 - $0x2] sm:$0x10] %vm1989, %v2114
        %2131 = vst.msk [vmem:[%s2127 - $0x3] sm:$0x40] %vm1991, %v2114
        %2132 = vst.msk [vmem:[%s2127 + $0x4] sm:$0x1] %vm1985, %v2119
        %2133 = vst.msk [vmem:[%s2127 + $0x3] sm:$0x4] %vm1987, %v2119
        %2134 = vst.msk [vmem:[%s2127 + $0x2] sm:$0x10] %vm1989, %v2119
        %2135 = vst.msk [vmem:[%s2127 + $0x1] sm:$0x40] %vm1991, %v2119
        %2136 = vst.msk [vmem:[%s2127 + $0x8] sm:$0x1] %vm1985, %v2124
        %2137 = vst.msk [vmem:[%s2127 + $0x7] sm:$0x4] %vm1987, %v2124
        %2138 = vst.msk [vmem:[%s2127 + $0x6] sm:$0x10] %vm1989, %v2124
        %2139 = vst.msk [vmem:[%s2127 + $0x5] sm:$0x40] %vm1991, %v2124
        %2143 = vrot.lane.b32.xlu0 %v1838, 127
        %v2144 = vpop.permute.xlu0 %2143
        %2145 = vrot.lane.b32.xlu0 %v1839, 127
        %v2146 = vpop.permute.xlu0 %2145
        %2147 = vrot.lane.b32.xlu0 %v1840, 127
        %v2148 = vpop.permute.xlu0 %2147
        %v2152 = vmax.f32 %v1838, %v2144
        %v2153 = vmax.f32 %v1839, %v2146
        %v2154 = vmax.f32 %v1840, %v2148
        %2156 = vrot.lane.b32.xlu0 %v1841, 127
        %v2157 = vpop.permute.xlu0 %2156
        %v2159 = vmax.f32 %v1841, %v2157
        %v2164 = vrot.slane %v2152, 1
        %v2165 = vrot.slane %v2153, 1
        %v2166 = vsel %vm703, %v2164, %v2165
        %v2167 = vrot.slane %v2154, 1
        %v2168 = vsel %vm703, %v2165, %v2167
        %v2169 = vrot.slane %v2159, 1
        %v2170 = vsel %vm703, %v2167, %v2169
        %v2174 = vmax.f32 %v2152, %v2166
        %v2175 = vmax.f32 %v2153, %v2168
        %v2176 = vmax.f32 %v2154, %v2170
        %v2178 = vsel %vm1895, %v2174, 0
        %v2181 = vsel %vm1895, %v2175, 0
        %v2184 = vsel %vm1895, %v2176, 0
        %2186 = vmatprep.subr.mxu0 0.0
        %2187 = vmatpush1.msra.mxu0 %v1855
        %2188 = vmatprep.subr.mxu0 0.0
        %2189 = vmatpush1.msra.mxu0 %v1856
        %2190 = vmatprep.subr.mxu0 0.0
        %2191 = vmatpush1.msra.mxu0 %v1857
        %2192 = vmatprep.subr.mxu0 0.0
        %2193 = vmatpush1.msra.mxu0 0.0
        %2194 = vmatprep.subr.mxu0 0.0
        %2195 = vmatpush1.msra.mxu0 0.0
        %2196 = vmatprep.subr.mxu0 0.0
        %2197 = vmatpush1.msra.mxu0 0.0
        %2198 = vmatprep.subr.mxu0 0.0
        %2199 = vmatpush1.msra.mxu0 0.0
        %2200 = vmatprep.subr.mxu0 0.0
        %2201 = vmatpush1.msra.mxu0 0.0
        %2202 = vmatprep.subr.mxu0 0.0
        %2203 = vmatpush1.msra.mxu0 0.0
        %2204 = vmatprep.subr.mxu0 0.0
        %2205 = vmatpush1.msra.mxu0 0.0
        %2206 = vmatprep.subr.mxu0 0.0
        %2207 = vmatpush1.msra.mxu0 0.0
        %2208 = vmatprep.subr.mxu0 0.0
        %2209 = vmatpush1.msra.mxu0 0.0
        %2210 = vmatprep.subr.mxu0 0.0
        %2211 = vmatpush1.msra.mxu0 0.0
        %2212 = vmatprep.subr.mxu0 0.0
        %2213 = vmatpush1.msra.mxu0 0.0
        %2214 = vmatprep.subr.mxu0 0.0
        %2215 = vmatpush1.msra.mxu0 0.0
        %2216 = vmatprep.subr.mxu0 0.0
        %2217 = vmatpush1.msra.mxu0 0.0
        %2218 = vmatprep.subr.mxu0 0.0
        %2219 = vmatpush1.msra.mxu0 0.0
        %2220 = vmatprep.subr.mxu0 0.0
        %2221 = vmatpush1.msra.mxu0 0.0
        %2222 = vmatprep.subr.mxu0 0.0
        %2223 = vmatpush1.msra.mxu0 0.0
        %2224 = vmatprep.subr.mxu0 0.0
        %2225 = vmatpush1.msra.mxu0 0.0
        %2226 = vmatprep.subr.mxu0 0.0
        %2227 = vmatpush1.msra.mxu0 0.0
        %2228 = vmatprep.subr.mxu0 0.0
        %2229 = vmatpush1.msra.mxu0 0.0
        %2230 = vmatprep.subr.mxu0 0.0
        %2231 = vmatpush1.msra.mxu0 0.0
        %2232 = vmatprep.subr.mxu0 0.0
        %2233 = vmatpush1.msra.mxu0 0.0
        %2234 = vmatprep.subr.mxu0 0.0
        %2235 = vmatpush1.msra.mxu0 0.0
        %2236 = vmatprep.subr.mxu0 0.0
        %2237 = vmatpush1.msra.mxu0 0.0
        %2238 = vmatprep.subr.mxu0 0.0
        %2239 = vmatpush1.msra.mxu0 0.0
        %2240 = vmatprep.subr.mxu0 0.0
        %2241 = vmatpush1.msra.mxu0 0.0
        %2242 = vmatprep.subr.mxu0 0.0
        %2243 = vmatpush1.msra.mxu0 0.0
        %2244 = vmatprep.subr.mxu0 0.0
        %2245 = vmatpush1.msra.mxu0 0.0
        %2246 = vmatprep.subr.mxu0 0.0
        %2247 = vmatpush1.msra.mxu0 0.0
        %2248 = vmatprep.subr.mxu0 0.0
        %2249 = vmatpush1.msra.mxu0 0.0
        %2250 = vmatprep.mubr.f32.mxu0 0.0
        %2251 = vmatmul.mubr.f32.gmra.mrb[0].mxu0 %v2178
        %v2252 = vpop.f32.mrb[0].mxu0
        %v2253 = vadd.f32 0.0, %v2252
        %v2254 = vpop.f32.mrb[0].mxu0
        %2255 = vmatprep.mubr.f32.mxu0 0.0
        %2256 = vmatmul.mubr.f32.gmra.mrb[0].mxu0 %v2181
        %v2257 = vpop.f32.mrb[0].mxu0
        %v2258 = vadd.f32 0.0, %v2257
        %v2259 = vpop.f32.mrb[0].mxu0
        %2260 = vmatprep.mubr.f32.mxu0 0.0
        %2261 = vmatmul.mubr.f32.gmra.mrb[0].mxu0 %v2184
        %v2262 = vpop.f32.mrb[0].mxu0
        %v2263 = vadd.f32 0.0, %v2262
        %v2264 = vpop.f32.mrb[0].mxu0
        %2265 = vdwg.mxu0
        %s2266 = scalar_lea.vmem [#allocation2], 32
        %2267 = vst.msk [vmem:[%s2266] sm:$0x1] %vm1985, %v2253
        %2268 = vst.msk [vmem:[%s2266 - $0x1] sm:$0x4] %vm1987, %v2253
        %2269 = vst.msk [vmem:[%s2266 - $0x2] sm:$0x10] %vm1989, %v2253
        %2270 = vst.msk [vmem:[%s2266 - $0x3] sm:$0x40] %vm1991, %v2253
        %2271 = vst.msk [vmem:[%s2266 + $0x4] sm:$0x1] %vm1985, %v2258
        %2272 = vst.msk [vmem:[%s2266 + $0x3] sm:$0x4] %vm1987, %v2258
        %2273 = vst.msk [vmem:[%s2266 + $0x2] sm:$0x10] %vm1989, %v2258
        %2274 = vst.msk [vmem:[%s2266 + $0x1] sm:$0x40] %vm1991, %v2258
        %2275 = vst.msk [vmem:[%s2266 + $0x8] sm:$0x1] %vm1985, %v2263
        %2276 = vst.msk [vmem:[%s2266 + $0x7] sm:$0x4] %vm1987, %v2263
        %2277 = vst.msk [vmem:[%s2266 + $0x6] sm:$0x10] %vm1989, %v2263
        %2278 = vst.msk [vmem:[%s2266 + $0x5] sm:$0x40] %vm1991, %v2263
        %v2279 = vld [vmem:[#allocation2] sm:$0xff]
        %v2280 = vld [vmem:[#allocation2 + $0x8] sm:$0xf]
        %v2281 = vld [vmem:[%s2127] sm:$0xff]
        %v2282 = vld [vmem:[%s2127 + $0x8] sm:$0xf]
        %v2283 = vld [vmem:[%s2266] sm:$0xff]
        %v2284 = vld [vmem:[%s2266 + $0x8] sm:$0xf]
        %s2285 = sld [smem:[#allocation8]]
        %v2286 = vstv %s2285
        %v2287 = vmul.f32 %v2286, %v2279
        %v2288 = vmul.f32 %v2286, %v2280
        %s2289 = sld [smem:[#allocation8 + $0x1b]]
        %v2290 = vstv %s2289
        %v2291 = vmul.f32 %v2290, %v2279
        %v2292 = vmul.f32 %v2290, %v2280
        %s2293 = sld [smem:[#allocation8 + $0x36]]
        %v2294 = vstv %s2293
        %v2295 = vmul.f32 %v2294, %v2279
        %v2296 = vmul.f32 %v2294, %v2280
        %s2297 = sld [smem:[#allocation8 + $0x51]]
        %v2298 = vstv %s2297
        %v2299 = vmul.f32 %v2298, %v2279
        %v2300 = vmul.f32 %v2298, %v2280
        %s2301 = sld [smem:[#allocation8 + $0x6c]]
        %v2302 = vstv %s2301
        %v2303 = vmul.f32 %v2302, %v2279
        %v2304 = vmul.f32 %v2302, %v2280
        %s2305 = sld [smem:[#allocation8 + $0x1]]
        %v2306 = vstv %s2305
        %v2307 = vmul.f32 %v2306, %v2279
        %v2308 = vmul.f32 %v2306, %v2280
        %2311 = vrot.lane.b32.xlu0 %v2307, 127
        %v2312 = vpop.permute.xlu0 %2311
        %2313 = vrot.lane.b32.xlu0 %v2308, 127
        %v2314 = vpop.permute.xlu0 %2313
        %v2317 = vadd.f32 %v2287, %v2312
        %v2318 = vadd.f32 %v2288, %v2314
        %s2319 = sld [smem:[#allocation8 + $0x1c]]
        %v2320 = vstv %s2319
        %v2321 = vmul.f32 %v2320, %v2279
        %v2322 = vmul.f32 %v2320, %v2280
        %2325 = vrot.lane.b32.xlu0 %v2321, 127
        %v2326 = vpop.permute.xlu0 %2325
        %2327 = vrot.lane.b32.xlu0 %v2322, 127
        %v2328 = vpop.permute.xlu0 %2327
        %v2331 = vadd.f32 %v2291, %v2326
        %v2332 = vadd.f32 %v2292, %v2328
        %s2333 = sld [smem:[#allocation8 + $0x37]]
        %v2334 = vstv %s2333
        %v2335 = vmul.f32 %v2334, %v2279
        %v2336 = vmul.f32 %v2334, %v2280
        %2339 = vrot.lane.b32.xlu0 %v2335, 127
        %v2340 = vpop.permute.xlu0 %2339
        %2341 = vrot.lane.b32.xlu0 %v2336, 127
        %v2342 = vpop.permute.xlu0 %2341
        %v2345 = vadd.f32 %v2295, %v2340
        %v2346 = vadd.f32 %v2296, %v2342
        %s2347 = sld [smem:[#allocation8 + $0x52]]
        %v2348 = vstv %s2347
        %v2349 = vmul.f32 %v2348, %v2279
        %v2350 = vmul.f32 %v2348, %v2280
        %2353 = vrot.lane.b32.xlu0 %v2349, 127
        %v2354 = vpop.permute.xlu0 %2353
        %2355 = vrot.lane.b32.xlu0 %v2350, 127
        %v2356 = vpop.permute.xlu0 %2355
        %v2359 = vadd.f32 %v2299, %v2354
        %v2360 = vadd.f32 %v2300, %v2356
        %s2361 = sld [smem:[#allocation8 + $0x6d]]
        %v2362 = vstv %s2361
        %v2363 = vmul.f32 %v2362, %v2279
        %v2364 = vmul.f32 %v2362, %v2280
        %2367 = vrot.lane.b32.xlu0 %v2363, 127
        %v2368 = vpop.permute.xlu0 %2367
        %2369 = vrot.lane.b32.xlu0 %v2364, 127
        %v2370 = vpop.permute.xlu0 %2369
        %v2373 = vadd.f32 %v2303, %v2368
        %v2374 = vadd.f32 %v2304, %v2370
        %s2375 = sld [smem:[#allocation8 + $0x2]]
        %v2376 = vstv %s2375
        %v2377 = vmul.f32 %v2376, %v2279
        %v2378 = vmul.f32 %v2376, %v2280
        %2381 = vrot.lane.b32.xlu0 %v2377, 126
        %v2382 = vpop.permute.xlu0 %2381
        %2383 = vrot.lane.b32.xlu0 %v2378, 126
        %v2384 = vpop.permute.xlu0 %2383
        %v2387 = vadd.f32 %v2317, %v2382
        %v2388 = vadd.f32 %v2318, %v2384
        %s2389 = sld [smem:[#allocation8 + $0x1d]]
        %v2390 = vstv %s2389
        %v2391 = vmul.f32 %v2390, %v2279
        %v2392 = vmul.f32 %v2390, %v2280
        %2395 = vrot.lane.b32.xlu0 %v2391, 126
        %v2396 = vpop.permute.xlu0 %2395
        %2397 = vrot.lane.b32.xlu0 %v2392, 126
        %v2398 = vpop.permute.xlu0 %2397
        %v2401 = vadd.f32 %v2331, %v2396
        %v2402 = vadd.f32 %v2332, %v2398
        %s2403 = sld [smem:[#allocation8 + $0x38]]
        %v2404 = vstv %s2403
        %v2405 = vmul.f32 %v2404, %v2279
        %v2406 = vmul.f32 %v2404, %v2280
        %2409 = vrot.lane.b32.xlu0 %v2405, 126
        %v2410 = vpop.permute.xlu0 %2409
        %2411 = vrot.lane.b32.xlu0 %v2406, 126
        %v2412 = vpop.permute.xlu0 %2411
        %v2415 = vadd.f32 %v2345, %v2410
        %v2416 = vadd.f32 %v2346, %v2412
        %s2417 = sld [smem:[#allocation8 + $0x53]]
        %v2418 = vstv %s2417
        %v2419 = vmul.f32 %v2418, %v2279
        %v2420 = vmul.f32 %v2418, %v2280
        %2423 = vrot.lane.b32.xlu0 %v2419, 126
        %v2424 = vpop.permute.xlu0 %2423
        %2425 = vrot.lane.b32.xlu0 %v2420, 126
        %v2426 = vpop.permute.xlu0 %2425
        %v2429 = vadd.f32 %v2359, %v2424
        %v2430 = vadd.f32 %v2360, %v2426
        %s2431 = sld [smem:[#allocation8 + $0x6e]]
        %v2432 = vstv %s2431
        %v2433 = vmul.f32 %v2432, %v2279
        %v2434 = vmul.f32 %v2432, %v2280
        %2437 = vrot.lane.b32.xlu0 %v2433, 126
        %v2438 = vpop.permute.xlu0 %2437
        %2439 = vrot.lane.b32.xlu0 %v2434, 126
        %v2440 = vpop.permute.xlu0 %2439
        %v2443 = vadd.f32 %v2373, %v2438
        %v2444 = vadd.f32 %v2374, %v2440
        %s2445 = sld [smem:[#allocation8 + $0x3]]
        %v2446 = vstv %s2445
        %v2447 = vmul.f32 %v2446, %v2279
        %v2448 = vmul.f32 %v2446, %v2280
        %v2451 = vrot.slane %v2447, 1
        %v2452 = vrot.slane %v2448, 1
        %v2453 = vsel %vm703, %v2451, %v2452
        %v2456 = vadd.f32 %v2387, %v2453
        %v2457 = vadd.f32 %v2388, %v2452
        %s2458 = sld [smem:[#allocation8 + $0x1e]]
        %v2459 = vstv %s2458
        %v2460 = vmul.f32 %v2459, %v2279
        %v2461 = vmul.f32 %v2459, %v2280
        %v2464 = vrot.slane %v2460, 1
        %v2465 = vrot.slane %v2461, 1
        %v2466 = vsel %vm703, %v2464, %v2465
        %v2469 = vadd.f32 %v2401, %v2466
        %v2470 = vadd.f32 %v2402, %v2465
        %s2471 = sld [smem:[#allocation8 + $0x39]]
        %v2472 = vstv %s2471
        %v2473 = vmul.f32 %v2472, %v2279
        %v2474 = vmul.f32 %v2472, %v2280
        %v2477 = vrot.slane %v2473, 1
        %v2478 = vrot.slane %v2474, 1
        %v2479 = vsel %vm703, %v2477, %v2478
        %v2482 = vadd.f32 %v2415, %v2479
        %v2483 = vadd.f32 %v2416, %v2478
        %s2484 = sld [smem:[#allocation8 + $0x54]]
        %v2485 = vstv %s2484
        %v2486 = vmul.f32 %v2485, %v2279
        %v2487 = vmul.f32 %v2485, %v2280
        %v2490 = vrot.slane %v2486, 1
        %v2491 = vrot.slane %v2487, 1
        %v2492 = vsel %vm703, %v2490, %v2491
        %v2495 = vadd.f32 %v2429, %v2492
        %v2496 = vadd.f32 %v2430, %v2491
        %s2497 = sld [smem:[#allocation8 + $0x6f]]
        %v2498 = vstv %s2497
        %v2499 = vmul.f32 %v2498, %v2279
        %v2500 = vmul.f32 %v2498, %v2280
        %v2503 = vrot.slane %v2499, 1
        %v2504 = vrot.slane %v2500, 1
        %v2505 = vsel %vm703, %v2503, %v2504
        %v2508 = vadd.f32 %v2443, %v2505
        %v2509 = vadd.f32 %v2444, %v2504
        %s2510 = sld [smem:[#allocation8 + $0x4]]
        %v2511 = vstv %s2510
        %v2512 = vmul.f32 %v2511, %v2279
        %v2513 = vmul.f32 %v2511, %v2280
        %v2516 = vrot.slane %v2512, 1
        %v2517 = vrot.slane %v2513, 1
        %v2518 = vsel %vm703, %v2516, %v2517
        %2519 = vrot.lane.b32.xlu0 %v2518, 127
        %v2520 = vpop.permute.xlu0 %2519
        %2521 = vrot.lane.b32.xlu0 %v2517, 127
        %v2522 = vpop.permute.xlu0 %2521
        %v2525 = vadd.f32 %v2456, %v2520
        %v2526 = vadd.f32 %v2457, %v2522
        %s2527 = sld [smem:[#allocation8 + $0x1f]]
        %v2528 = vstv %s2527
        %v2529 = vmul.f32 %v2528, %v2279
        %v2530 = vmul.f32 %v2528, %v2280
        %v2533 = vrot.slane %v2529, 1
        %v2534 = vrot.slane %v2530, 1
        %v2535 = vsel %vm703, %v2533, %v2534
        %2536 = vrot.lane.b32.xlu0 %v2535, 127
        %v2537 = vpop.permute.xlu0 %2536
        %2538 = vrot.lane.b32.xlu0 %v2534, 127
        %v2539 = vpop.permute.xlu0 %2538
        %v2542 = vadd.f32 %v2469, %v2537
        %v2543 = vadd.f32 %v2470, %v2539
        %s2544 = sld [smem:[#allocation8 + $0x3a]]
        %v2545 = vstv %s2544
        %v2546 = vmul.f32 %v2545, %v2279
        %v2547 = vmul.f32 %v2545, %v2280
        %v2550 = vrot.slane %v2546, 1
        %v2551 = vrot.slane %v2547, 1
        %v2552 = vsel %vm703, %v2550, %v2551
        %2553 = vrot.lane.b32.xlu0 %v2552, 127
        %v2554 = vpop.permute.xlu0 %2553
        %2555 = vrot.lane.b32.xlu0 %v2551, 127
        %v2556 = vpop.permute.xlu0 %2555
        %v2559 = vadd.f32 %v2482, %v2554
        %v2560 = vadd.f32 %v2483, %v2556
        %s2561 = sld [smem:[#allocation8 + $0x55]]
        %v2562 = vstv %s2561
        %v2563 = vmul.f32 %v2562, %v2279
        %v2564 = vmul.f32 %v2562, %v2280
        %v2567 = vrot.slane %v2563, 1
        %v2568 = vrot.slane %v2564, 1
        %v2569 = vsel %vm703, %v2567, %v2568
        %2570 = vrot.lane.b32.xlu0 %v2569, 127
        %v2571 = vpop.permute.xlu0 %2570
        %2572 = vrot.lane.b32.xlu0 %v2568, 127
        %v2573 = vpop.permute.xlu0 %2572
        %v2576 = vadd.f32 %v2495, %v2571
        %v2577 = vadd.f32 %v2496, %v2573
        %s2578 = sld [smem:[#allocation8 + $0x70]]
        %v2579 = vstv %s2578
        %v2580 = vmul.f32 %v2579, %v2279
        %v2581 = vmul.f32 %v2579, %v2280
        %v2584 = vrot.slane %v2580, 1
        %v2585 = vrot.slane %v2581, 1
        %v2586 = vsel %vm703, %v2584, %v2585
        %2587 = vrot.lane.b32.xlu0 %v2586, 127
        %v2588 = vpop.permute.xlu0 %2587
        %2589 = vrot.lane.b32.xlu0 %v2585, 127
        %v2590 = vpop.permute.xlu0 %2589
        %v2593 = vadd.f32 %v2508, %v2588
        %v2594 = vadd.f32 %v2509, %v2590
        %s2595 = sld [smem:[#allocation8 + $0x5]]
        %v2596 = vstv %s2595
        %v2597 = vmul.f32 %v2596, %v2279
        %v2598 = vmul.f32 %v2596, %v2280
        %v2601 = vrot.slane %v2597, 1
        %v2602 = vrot.slane %v2598, 1
        %v2603 = vsel %vm703, %v2601, %v2602
        %2604 = vrot.lane.b32.xlu0 %v2603, 126
        %v2605 = vpop.permute.xlu0 %2604
        %2606 = vrot.lane.b32.xlu0 %v2602, 126
        %v2607 = vpop.permute.xlu0 %2606
        %v2610 = vadd.f32 %v2525, %v2605
        %v2611 = vadd.f32 %v2526, %v2607
        %s2612 = sld [smem:[#allocation8 + $0x20]]
        %v2613 = vstv %s2612
        %v2614 = vmul.f32 %v2613, %v2279
        %v2615 = vmul.f32 %v2613, %v2280
        %v2618 = vrot.slane %v2614, 1
        %v2619 = vrot.slane %v2615, 1
        %v2620 = vsel %vm703, %v2618, %v2619
        %2621 = vrot.lane.b32.xlu0 %v2620, 126
        %v2622 = vpop.permute.xlu0 %2621
        %2623 = vrot.lane.b32.xlu0 %v2619, 126
        %v2624 = vpop.permute.xlu0 %2623
        %v2627 = vadd.f32 %v2542, %v2622
        %v2628 = vadd.f32 %v2543, %v2624
        %s2629 = sld [smem:[#allocation8 + $0x3b]]
        %v2630 = vstv %s2629
        %v2631 = vmul.f32 %v2630, %v2279
        %v2632 = vmul.f32 %v2630, %v2280
        %v2635 = vrot.slane %v2631, 1
        %v2636 = vrot.slane %v2632, 1
        %v2637 = vsel %vm703, %v2635, %v2636
        %2638 = vrot.lane.b32.xlu0 %v2637, 126
        %v2639 = vpop.permute.xlu0 %2638
        %2640 = vrot.lane.b32.xlu0 %v2636, 126
        %v2641 = vpop.permute.xlu0 %2640
        %v2644 = vadd.f32 %v2559, %v2639
        %v2645 = vadd.f32 %v2560, %v2641
        %s2646 = sld [smem:[#allocation8 + $0x56]]
        %v2647 = vstv %s2646
        %v2648 = vmul.f32 %v2647, %v2279
        %v2649 = vmul.f32 %v2647, %v2280
        %v2652 = vrot.slane %v2648, 1
        %v2653 = vrot.slane %v2649, 1
        %v2654 = vsel %vm703, %v2652, %v2653
        %2655 = vrot.lane.b32.xlu0 %v2654, 126
        %v2656 = vpop.permute.xlu0 %2655
        %2657 = vrot.lane.b32.xlu0 %v2653, 126
        %v2658 = vpop.permute.xlu0 %2657
        %v2661 = vadd.f32 %v2576, %v2656
        %v2662 = vadd.f32 %v2577, %v2658
        %s2663 = sld [smem:[#allocation8 + $0x71]]
        %v2664 = vstv %s2663
        %v2665 = vmul.f32 %v2664, %v2279
        %v2666 = vmul.f32 %v2664, %v2280
        %v2669 = vrot.slane %v2665, 1
        %v2670 = vrot.slane %v2666, 1
        %v2671 = vsel %vm703, %v2669, %v2670
        %2672 = vrot.lane.b32.xlu0 %v2671, 126
        %v2673 = vpop.permute.xlu0 %2672
        %2674 = vrot.lane.b32.xlu0 %v2670, 126
        %v2675 = vpop.permute.xlu0 %2674
        %v2678 = vadd.f32 %v2593, %v2673
        %v2679 = vadd.f32 %v2594, %v2675
        %s2680 = sld [smem:[#allocation8 + $0x6]]
        %v2681 = vstv %s2680
        %v2682 = vmul.f32 %v2681, %v2279
        %v2683 = vmul.f32 %v2681, %v2280
        %v2686 = vrot.slane %v2682, 2
        %v2687 = vrot.slane %v2683, 2
        %v2688 = vsel %vm1076, %v2686, %v2687
        %v2691 = vadd.f32 %v2610, %v2688
        %v2692 = vadd.f32 %v2611, %v2687
        %s2693 = sld [smem:[#allocation8 + $0x21]]
        %v2694 = vstv %s2693
        %v2695 = vmul.f32 %v2694, %v2279
        %v2696 = vmul.f32 %v2694, %v2280
        %v2699 = vrot.slane %v2695, 2
        %v2700 = vrot.slane %v2696, 2
        %v2701 = vsel %vm1076, %v2699, %v2700
        %v2704 = vadd.f32 %v2627, %v2701
        %v2705 = vadd.f32 %v2628, %v2700
        %s2706 = sld [smem:[#allocation8 + $0x3c]]
        %v2707 = vstv %s2706
        %v2708 = vmul.f32 %v2707, %v2279
        %v2709 = vmul.f32 %v2707, %v2280
        %v2712 = vrot.slane %v2708, 2
        %v2713 = vrot.slane %v2709, 2
        %v2714 = vsel %vm1076, %v2712, %v2713
        %v2717 = vadd.f32 %v2644, %v2714
        %v2718 = vadd.f32 %v2645, %v2713
        %s2719 = sld [smem:[#allocation8 + $0x57]]
        %v2720 = vstv %s2719
        %v2721 = vmul.f32 %v2720, %v2279
        %v2722 = vmul.f32 %v2720, %v2280
        %v2725 = vrot.slane %v2721, 2
        %v2726 = vrot.slane %v2722, 2
        %v2727 = vsel %vm1076, %v2725, %v2726
        %v2730 = vadd.f32 %v2661, %v2727
        %v2731 = vadd.f32 %v2662, %v2726
        %s2732 = sld [smem:[#allocation8 + $0x72]]
        %v2733 = vstv %s2732
        %v2734 = vmul.f32 %v2733, %v2279
        %v2735 = vmul.f32 %v2733, %v2280
        %v2738 = vrot.slane %v2734, 2
        %v2739 = vrot.slane %v2735, 2
        %v2740 = vsel %vm1076, %v2738, %v2739
        %v2743 = vadd.f32 %v2678, %v2740
        %v2744 = vadd.f32 %v2679, %v2739
        %s2745 = sld [smem:[#allocation8 + $0x7]]
        %v2746 = vstv %s2745
        %v2747 = vmul.f32 %v2746, %v2279
        %v2748 = vmul.f32 %v2746, %v2280
        %v2751 = vrot.slane %v2747, 2
        %v2752 = vrot.slane %v2748, 2
        %v2753 = vsel %vm1076, %v2751, %v2752
        %2754 = vrot.lane.b32.xlu0 %v2753, 127
        %v2755 = vpop.permute.xlu0 %2754
        %2756 = vrot.lane.b32.xlu0 %v2752, 127
        %v2757 = vpop.permute.xlu0 %2756
        %v2760 = vadd.f32 %v2691, %v2755
        %v2761 = vadd.f32 %v2692, %v2757
        %s2762 = sld [smem:[#allocation8 + $0x22]]
        %v2763 = vstv %s2762
        %v2764 = vmul.f32 %v2763, %v2279
        %v2765 = vmul.f32 %v2763, %v2280
        %v2768 = vrot.slane %v2764, 2
        %v2769 = vrot.slane %v2765, 2
        %v2770 = vsel %vm1076, %v2768, %v2769
        %2771 = vrot.lane.b32.xlu0 %v2770, 127
        %v2772 = vpop.permute.xlu0 %2771
        %2773 = vrot.lane.b32.xlu0 %v2769, 127
        %v2774 = vpop.permute.xlu0 %2773
        %v2777 = vadd.f32 %v2704, %v2772
        %v2778 = vadd.f32 %v2705, %v2774
        %s2779 = sld [smem:[#allocation8 + $0x3d]]
        %v2780 = vstv %s2779
        %v2781 = vmul.f32 %v2780, %v2279
        %v2782 = vmul.f32 %v2780, %v2280
        %v2785 = vrot.slane %v2781, 2
        %v2786 = vrot.slane %v2782, 2
        %v2787 = vsel %vm1076, %v2785, %v2786
        %2788 = vrot.lane.b32.xlu0 %v2787, 127
        %v2789 = vpop.permute.xlu0 %2788
        %2790 = vrot.lane.b32.xlu0 %v2786, 127
        %v2791 = vpop.permute.xlu0 %2790
        %v2794 = vadd.f32 %v2717, %v2789
        %v2795 = vadd.f32 %v2718, %v2791
        %s2796 = sld [smem:[#allocation8 + $0x58]]
        %v2797 = vstv %s2796
        %v2798 = vmul.f32 %v2797, %v2279
        %v2799 = vmul.f32 %v2797, %v2280
        %v2802 = vrot.slane %v2798, 2
        %v2803 = vrot.slane %v2799, 2
        %v2804 = vsel %vm1076, %v2802, %v2803
        %2805 = vrot.lane.b32.xlu0 %v2804, 127
        %v2806 = vpop.permute.xlu0 %2805
        %2807 = vrot.lane.b32.xlu0 %v2803, 127
        %v2808 = vpop.permute.xlu0 %2807
        %v2811 = vadd.f32 %v2730, %v2806
        %v2812 = vadd.f32 %v2731, %v2808
        %s2813 = sld [smem:[#allocation8 + $0x73]]
        %v2814 = vstv %s2813
        %v2815 = vmul.f32 %v2814, %v2279
        %v2816 = vmul.f32 %v2814, %v2280
        %v2819 = vrot.slane %v2815, 2
        %v2820 = vrot.slane %v2816, 2
        %v2821 = vsel %vm1076, %v2819, %v2820
        %2822 = vrot.lane.b32.xlu0 %v2821, 127
        %v2823 = vpop.permute.xlu0 %2822
        %2824 = vrot.lane.b32.xlu0 %v2820, 127
        %v2825 = vpop.permute.xlu0 %2824
        %v2828 = vadd.f32 %v2743, %v2823
        %v2829 = vadd.f32 %v2744, %v2825
        %s2830 = sld [smem:[#allocation8 + $0x8]]
        %v2831 = vstv %s2830
        %v2832 = vmul.f32 %v2831, %v2279
        %v2833 = vmul.f32 %v2831, %v2280
        %v2836 = vrot.slane %v2832, 2
        %v2837 = vrot.slane %v2833, 2
        %v2838 = vsel %vm1076, %v2836, %v2837
        %2839 = vrot.lane.b32.xlu0 %v2838, 126
        %v2840 = vpop.permute.xlu0 %2839
        %2841 = vrot.lane.b32.xlu0 %v2837, 126
        %v2842 = vpop.permute.xlu0 %2841
        %v2845 = vadd.f32 %v2760, %v2840
        %v2846 = vadd.f32 %v2761, %v2842
        %s2847 = sld [smem:[#allocation8 + $0x23]]
        %v2848 = vstv %s2847
        %v2849 = vmul.f32 %v2848, %v2279
        %v2850 = vmul.f32 %v2848, %v2280
        %v2853 = vrot.slane %v2849, 2
        %v2854 = vrot.slane %v2850, 2
        %v2855 = vsel %vm1076, %v2853, %v2854
        %2856 = vrot.lane.b32.xlu0 %v2855, 126
        %v2857 = vpop.permute.xlu0 %2856
        %2858 = vrot.lane.b32.xlu0 %v2854, 126
        %v2859 = vpop.permute.xlu0 %2858
        %v2862 = vadd.f32 %v2777, %v2857
        %v2863 = vadd.f32 %v2778, %v2859
        %s2864 = sld [smem:[#allocation8 + $0x3e]]
        %v2865 = vstv %s2864
        %v2866 = vmul.f32 %v2865, %v2279
        %v2867 = vmul.f32 %v2865, %v2280
        %v2870 = vrot.slane %v2866, 2
        %v2871 = vrot.slane %v2867, 2
        %v2872 = vsel %vm1076, %v2870, %v2871
        %2873 = vrot.lane.b32.xlu0 %v2872, 126
        %v2874 = vpop.permute.xlu0 %2873
        %2875 = vrot.lane.b32.xlu0 %v2871, 126
        %v2876 = vpop.permute.xlu0 %2875
        %v2879 = vadd.f32 %v2794, %v2874
        %v2880 = vadd.f32 %v2795, %v2876
        %s2881 = sld [smem:[#allocation8 + $0x59]]
        %v2882 = vstv %s2881
        %v2883 = vmul.f32 %v2882, %v2279
        %v2884 = vmul.f32 %v2882, %v2280
        %v2887 = vrot.slane %v2883, 2
        %v2888 = vrot.slane %v2884, 2
        %v2889 = vsel %vm1076, %v2887, %v2888
        %2890 = vrot.lane.b32.xlu0 %v2889, 126
        %v2891 = vpop.permute.xlu0 %2890
        %2892 = vrot.lane.b32.xlu0 %v2888, 126
        %v2893 = vpop.permute.xlu0 %2892
        %v2896 = vadd.f32 %v2811, %v2891
        %v2897 = vadd.f32 %v2812, %v2893
        %s2898 = sld [smem:[#allocation8 + $0x74]]
        %v2899 = vstv %s2898
        %v2900 = vmul.f32 %v2899, %v2279
        %v2901 = vmul.f32 %v2899, %v2280
        %v2904 = vrot.slane %v2900, 2
        %v2905 = vrot.slane %v2901, 2
        %v2906 = vsel %vm1076, %v2904, %v2905
        %2907 = vrot.lane.b32.xlu0 %v2906, 126
        %v2908 = vpop.permute.xlu0 %2907
        %2909 = vrot.lane.b32.xlu0 %v2905, 126
        %v2910 = vpop.permute.xlu0 %2909
        %v2913 = vadd.f32 %v2828, %v2908
        %v2914 = vadd.f32 %v2829, %v2910
        %s2915 = sld [smem:[#allocation8 + $0x9]]
        %v2916 = vstv %s2915
        %v2917 = vmul.f32 %v2916, %v2281
        %v2918 = vmul.f32 %v2916, %v2282
        %v2919 = vadd.f32 %v2845, %v2917
        %v2920 = vadd.f32 %v2846, %v2918
        %s2921 = sld [smem:[#allocation8 + $0x24]]
        %v2922 = vstv %s2921
        %v2923 = vmul.f32 %v2922, %v2281
        %v2924 = vmul.f32 %v2922, %v2282
        %v2925 = vadd.f32 %v2862, %v2923
        %v2926 = vadd.f32 %v2863, %v2924
        %s2927 = sld [smem:[#allocation8 + $0x3f]]
        %v2928 = vstv %s2927
        %v2929 = vmul.f32 %v2928, %v2281
        %v2930 = vmul.f32 %v2928, %v2282
        %v2931 = vadd.f32 %v2879, %v2929
        %v2932 = vadd.f32 %v2880, %v2930
        %s2933 = sld [smem:[#allocation8 + $0x5a]]
        %v2934 = vstv %s2933
        %v2935 = vmul.f32 %v2934, %v2281
        %v2936 = vmul.f32 %v2934, %v2282
        %v2937 = vadd.f32 %v2896, %v2935
        %v2938 = vadd.f32 %v2897, %v2936
        %s2939 = sld [smem:[#allocation8 + $0x75]]
        %v2940 = vstv %s2939
        %v2941 = vmul.f32 %v2940, %v2281
        %v2942 = vmul.f32 %v2940, %v2282
        %v2943 = vadd.f32 %v2913, %v2941
        %v2944 = vadd.f32 %v2914, %v2942
        %s2945 = sld [smem:[#allocation8 + $0xa]]
        %v2946 = vstv %s2945
        %v2947 = vmul.f32 %v2946, %v2281
        %v2948 = vmul.f32 %v2946, %v2282
        %2951 = vrot.lane.b32.xlu0 %v2947, 127
        %v2952 = vpop.permute.xlu0 %2951
        %2953 = vrot.lane.b32.xlu0 %v2948, 127
        %v2954 = vpop.permute.xlu0 %2953
        %v2957 = vadd.f32 %v2919, %v2952
        %v2958 = vadd.f32 %v2920, %v2954
        %s2959 = sld [smem:[#allocation8 + $0x25]]
        %v2960 = vstv %s2959
        %v2961 = vmul.f32 %v2960, %v2281
        %v2962 = vmul.f32 %v2960, %v2282
        %2965 = vrot.lane.b32.xlu0 %v2961, 127
        %v2966 = vpop.permute.xlu0 %2965
        %2967 = vrot.lane.b32.xlu0 %v2962, 127
        %v2968 = vpop.permute.xlu0 %2967
        %v2971 = vadd.f32 %v2925, %v2966
        %v2972 = vadd.f32 %v2926, %v2968
        %s2973 = sld [smem:[#allocation8 + $0x40]]
        %v2974 = vstv %s2973
        %v2975 = vmul.f32 %v2974, %v2281
        %v2976 = vmul.f32 %v2974, %v2282
        %2979 = vrot.lane.b32.xlu0 %v2975, 127
        %v2980 = vpop.permute.xlu0 %2979
        %2981 = vrot.lane.b32.xlu0 %v2976, 127
        %v2982 = vpop.permute.xlu0 %2981
        %v2985 = vadd.f32 %v2931, %v2980
        %v2986 = vadd.f32 %v2932, %v2982
        %s2987 = sld [smem:[#allocation8 + $0x5b]]
        %v2988 = vstv %s2987
        %v2989 = vmul.f32 %v2988, %v2281
        %v2990 = vmul.f32 %v2988, %v2282
        %2993 = vrot.lane.b32.xlu0 %v2989, 127
        %v2994 = vpop.permute.xlu0 %2993
        %2995 = vrot.lane.b32.xlu0 %v2990, 127
        %v2996 = vpop.permute.xlu0 %2995
        %v2999 = vadd.f32 %v2937, %v2994
        %v3000 = vadd.f32 %v2938, %v2996
        %s3001 = sld [smem:[#allocation8 + $0x76]]
        %v3002 = vstv %s3001
        %v3003 = vmul.f32 %v3002, %v2281
        %v3004 = vmul.f32 %v3002, %v2282
        %3007 = vrot.lane.b32.xlu0 %v3003, 127
        %v3008 = vpop.permute.xlu0 %3007
        %3009 = vrot.lane.b32.xlu0 %v3004, 127
        %v3010 = vpop.permute.xlu0 %3009
        %v3013 = vadd.f32 %v2943, %v3008
        %v3014 = vadd.f32 %v2944, %v3010
        %s3015 = sld [smem:[#allocation8 + $0xb]]
        %v3016 = vstv %s3015
        %v3017 = vmul.f32 %v3016, %v2281
        %v3018 = vmul.f32 %v3016, %v2282
        %3021 = vrot.lane.b32.xlu0 %v3017, 126
        %v3022 = vpop.permute.xlu0 %3021
        %3023 = vrot.lane.b32.xlu0 %v3018, 126
        %v3024 = vpop.permute.xlu0 %3023
        %v3027 = vadd.f32 %v2957, %v3022
        %v3028 = vadd.f32 %v2958, %v3024
        %s3029 = sld [smem:[#allocation8 + $0x26]]
        %v3030 = vstv %s3029
        %v3031 = vmul.f32 %v3030, %v2281
        %v3032 = vmul.f32 %v3030, %v2282
        %3035 = vrot.lane.b32.xlu0 %v3031, 126
        %v3036 = vpop.permute.xlu0 %3035
        %3037 = vrot.lane.b32.xlu0 %v3032, 126
        %v3038 = vpop.permute.xlu0 %3037
        %v3041 = vadd.f32 %v2971, %v3036
        %v3042 = vadd.f32 %v2972, %v3038
        %s3043 = sld [smem:[#allocation8 + $0x41]]
        %v3044 = vstv %s3043
        %v3045 = vmul.f32 %v3044, %v2281
        %v3046 = vmul.f32 %v3044, %v2282
        %3049 = vrot.lane.b32.xlu0 %v3045, 126
        %v3050 = vpop.permute.xlu0 %3049
        %3051 = vrot.lane.b32.xlu0 %v3046, 126
        %v3052 = vpop.permute.xlu0 %3051
        %v3055 = vadd.f32 %v2985, %v3050
        %v3056 = vadd.f32 %v2986, %v3052
        %s3057 = sld [smem:[#allocation8 + $0x5c]]
        %v3058 = vstv %s3057
        %v3059 = vmul.f32 %v3058, %v2281
        %v3060 = vmul.f32 %v3058, %v2282
        %3063 = vrot.lane.b32.xlu0 %v3059, 126
        %v3064 = vpop.permute.xlu0 %3063
        %3065 = vrot.lane.b32.xlu0 %v3060, 126
        %v3066 = vpop.permute.xlu0 %3065
        %v3069 = vadd.f32 %v2999, %v3064
        %v3070 = vadd.f32 %v3000, %v3066
        %s3071 = sld [smem:[#allocation8 + $0x77]]
        %v3072 = vstv %s3071
        %v3073 = vmul.f32 %v3072, %v2281
        %v3074 = vmul.f32 %v3072, %v2282
        %3077 = vrot.lane.b32.xlu0 %v3073, 126
        %v3078 = vpop.permute.xlu0 %3077
        %3079 = vrot.lane.b32.xlu0 %v3074, 126
        %v3080 = vpop.permute.xlu0 %3079
        %v3083 = vadd.f32 %v3013, %v3078
        %v3084 = vadd.f32 %v3014, %v3080
        %s3085 = sld [smem:[#allocation8 + $0xc]]
        %v3086 = vstv %s3085
        %v3087 = vmul.f32 %v3086, %v2281
        %v3088 = vmul.f32 %v3086, %v2282
        %v3091 = vrot.slane %v3087, 1
        %v3092 = vrot.slane %v3088, 1
        %v3093 = vsel %vm703, %v3091, %v3092
        %v3096 = vadd.f32 %v3027, %v3093
        %v3097 = vadd.f32 %v3028, %v3092
        %s3098 = sld [smem:[#allocation8 + $0x27]]
        %v3099 = vstv %s3098
        %v3100 = vmul.f32 %v3099, %v2281
        %v3101 = vmul.f32 %v3099, %v2282
        %v3104 = vrot.slane %v3100, 1
        %v3105 = vrot.slane %v3101, 1
        %v3106 = vsel %vm703, %v3104, %v3105
        %v3109 = vadd.f32 %v3041, %v3106
        %v3110 = vadd.f32 %v3042, %v3105
        %s3111 = sld [smem:[#allocation8 + $0x42]]
        %v3112 = vstv %s3111
        %v3113 = vmul.f32 %v3112, %v2281
        %v3114 = vmul.f32 %v3112, %v2282
        %v3117 = vrot.slane %v3113, 1
        %v3118 = vrot.slane %v3114, 1
        %v3119 = vsel %vm703, %v3117, %v3118
        %v3122 = vadd.f32 %v3055, %v3119
        %v3123 = vadd.f32 %v3056, %v3118
        %s3124 = sld [smem:[#allocation8 + $0x5d]]
        %v3125 = vstv %s3124
        %v3126 = vmul.f32 %v3125, %v2281
        %v3127 = vmul.f32 %v3125, %v2282
        %v3130 = vrot.slane %v3126, 1
        %v3131 = vrot.slane %v3127, 1
        %v3132 = vsel %vm703, %v3130, %v3131
        %v3135 = vadd.f32 %v3069, %v3132
        %v3136 = vadd.f32 %v3070, %v3131
        %s3137 = sld [smem:[#allocation8 + $0x78]]
        %v3138 = vstv %s3137
        %v3139 = vmul.f32 %v3138, %v2281
        %v3140 = vmul.f32 %v3138, %v2282
        %v3143 = vrot.slane %v3139, 1
        %v3144 = vrot.slane %v3140, 1
        %v3145 = vsel %vm703, %v3143, %v3144
        %v3148 = vadd.f32 %v3083, %v3145
        %v3149 = vadd.f32 %v3084, %v3144
        %s3150 = sld [smem:[#allocation8 + $0xd]]
        %v3151 = vstv %s3150
        %v3152 = vmul.f32 %v3151, %v2281
        %v3153 = vmul.f32 %v3151, %v2282
        %v3156 = vrot.slane %v3152, 1
        %v3157 = vrot.slane %v3153, 1
        %v3158 = vsel %vm703, %v3156, %v3157
        %3159 = vrot.lane.b32.xlu0 %v3158, 127
        %v3160 = vpop.permute.xlu0 %3159
        %3161 = vrot.lane.b32.xlu0 %v3157, 127
        %v3162 = vpop.permute.xlu0 %3161
        %v3165 = vadd.f32 %v3096, %v3160
        %v3166 = vadd.f32 %v3097, %v3162
        %s3167 = sld [smem:[#allocation8 + $0x28]]
        %v3168 = vstv %s3167
        %v3169 = vmul.f32 %v3168, %v2281
        %v3170 = vmul.f32 %v3168, %v2282
        %v3173 = vrot.slane %v3169, 1
        %v3174 = vrot.slane %v3170, 1
        %v3175 = vsel %vm703, %v3173, %v3174
        %3176 = vrot.lane.b32.xlu0 %v3175, 127
        %v3177 = vpop.permute.xlu0 %3176
        %3178 = vrot.lane.b32.xlu0 %v3174, 127
        %v3179 = vpop.permute.xlu0 %3178
        %v3182 = vadd.f32 %v3109, %v3177
        %v3183 = vadd.f32 %v3110, %v3179
        %s3184 = sld [smem:[#allocation8 + $0x43]]
        %v3185 = vstv %s3184
        %v3186 = vmul.f32 %v3185, %v2281
        %v3187 = vmul.f32 %v3185, %v2282
        %v3190 = vrot.slane %v3186, 1
        %v3191 = vrot.slane %v3187, 1
        %v3192 = vsel %vm703, %v3190, %v3191
        %3193 = vrot.lane.b32.xlu0 %v3192, 127
        %v3194 = vpop.permute.xlu0 %3193
        %3195 = vrot.lane.b32.xlu0 %v3191, 127
        %v3196 = vpop.permute.xlu0 %3195
        %v3199 = vadd.f32 %v3122, %v3194
        %v3200 = vadd.f32 %v3123, %v3196
        %s3201 = sld [smem:[#allocation8 + $0x5e]]
        %v3202 = vstv %s3201
        %v3203 = vmul.f32 %v3202, %v2281
        %v3204 = vmul.f32 %v3202, %v2282
        %v3207 = vrot.slane %v3203, 1
        %v3208 = vrot.slane %v3204, 1
        %v3209 = vsel %vm703, %v3207, %v3208
        %3210 = vrot.lane.b32.xlu0 %v3209, 127
        %v3211 = vpop.permute.xlu0 %3210
        %3212 = vrot.lane.b32.xlu0 %v3208, 127
        %v3213 = vpop.permute.xlu0 %3212
        %v3216 = vadd.f32 %v3135, %v3211
        %v3217 = vadd.f32 %v3136, %v3213
        %s3218 = sld [smem:[#allocation8 + $0x79]]
        %v3219 = vstv %s3218
        %v3220 = vmul.f32 %v3219, %v2281
        %v3221 = vmul.f32 %v3219, %v2282
        %v3224 = vrot.slane %v3220, 1
        %v3225 = vrot.slane %v3221, 1
        %v3226 = vsel %vm703, %v3224, %v3225
        %3227 = vrot.lane.b32.xlu0 %v3226, 127
        %v3228 = vpop.permute.xlu0 %3227
        %3229 = vrot.lane.b32.xlu0 %v3225, 127
        %v3230 = vpop.permute.xlu0 %3229
        %v3233 = vadd.f32 %v3148, %v3228
        %v3234 = vadd.f32 %v3149, %v3230
        %s3235 = sld [smem:[#allocation8 + $0xe]]
        %v3236 = vstv %s3235
        %v3237 = vmul.f32 %v3236, %v2281
        %v3238 = vmul.f32 %v3236, %v2282
        %v3241 = vrot.slane %v3237, 1
        %v3242 = vrot.slane %v3238, 1
        %v3243 = vsel %vm703, %v3241, %v3242
        %3244 = vrot.lane.b32.xlu0 %v3243, 126
        %v3245 = vpop.permute.xlu0 %3244
        %3246 = vrot.lane.b32.xlu0 %v3242, 126
        %v3247 = vpop.permute.xlu0 %3246
        %v3250 = vadd.f32 %v3165, %v3245
        %v3251 = vadd.f32 %v3166, %v3247
        %s3252 = sld [smem:[#allocation8 + $0x29]]
        %v3253 = vstv %s3252
        %v3254 = vmul.f32 %v3253, %v2281
        %v3255 = vmul.f32 %v3253, %v2282
        %v3258 = vrot.slane %v3254, 1
        %v3259 = vrot.slane %v3255, 1
        %v3260 = vsel %vm703, %v3258, %v3259
        %3261 = vrot.lane.b32.xlu0 %v3260, 126
        %v3262 = vpop.permute.xlu0 %3261
        %3263 = vrot.lane.b32.xlu0 %v3259, 126
        %v3264 = vpop.permute.xlu0 %3263
        %v3267 = vadd.f32 %v3182, %v3262
        %v3268 = vadd.f32 %v3183, %v3264
        %s3269 = sld [smem:[#allocation8 + $0x44]]
        %v3270 = vstv %s3269
        %v3271 = vmul.f32 %v3270, %v2281
        %v3272 = vmul.f32 %v3270, %v2282
        %v3275 = vrot.slane %v3271, 1
        %v3276 = vrot.slane %v3272, 1
        %v3277 = vsel %vm703, %v3275, %v3276
        %3278 = vrot.lane.b32.xlu0 %v3277, 126
        %v3279 = vpop.permute.xlu0 %3278
        %3280 = vrot.lane.b32.xlu0 %v3276, 126
        %v3281 = vpop.permute.xlu0 %3280
        %v3284 = vadd.f32 %v3199, %v3279
        %v3285 = vadd.f32 %v3200, %v3281
        %s3286 = sld [smem:[#allocation8 + $0x5f]]
        %v3287 = vstv %s3286
        %v3288 = vmul.f32 %v3287, %v2281
        %v3289 = vmul.f32 %v3287, %v2282
        %v3292 = vrot.slane %v3288, 1
        %v3293 = vrot.slane %v3289, 1
        %v3294 = vsel %vm703, %v3292, %v3293
        %3295 = vrot.lane.b32.xlu0 %v3294, 126
        %v3296 = vpop.permute.xlu0 %3295
        %3297 = vrot.lane.b32.xlu0 %v3293, 126
        %v3298 = vpop.permute.xlu0 %3297
        %v3301 = vadd.f32 %v3216, %v3296
        %v3302 = vadd.f32 %v3217, %v3298
        %s3303 = sld [smem:[#allocation8 + $0x7a]]
        %v3304 = vstv %s3303
        %v3305 = vmul.f32 %v3304, %v2281
        %v3306 = vmul.f32 %v3304, %v2282
        %v3309 = vrot.slane %v3305, 1
        %v3310 = vrot.slane %v3306, 1
        %v3311 = vsel %vm703, %v3309, %v3310
        %3312 = vrot.lane.b32.xlu0 %v3311, 126
        %v3313 = vpop.permute.xlu0 %3312
        %3314 = vrot.lane.b32.xlu0 %v3310, 126
        %v3315 = vpop.permute.xlu0 %3314
        %v3318 = vadd.f32 %v3233, %v3313
        %v3319 = vadd.f32 %v3234, %v3315
        %s3320 = sld [smem:[#allocation8 + $0xf]]
        %v3321 = vstv %s3320
        %v3322 = vmul.f32 %v3321, %v2281
        %v3323 = vmul.f32 %v3321, %v2282
        %v3326 = vrot.slane %v3322, 2
        %v3327 = vrot.slane %v3323, 2
        %v3328 = vsel %vm1076, %v3326, %v3327
        %v3331 = vadd.f32 %v3250, %v3328
        %v3332 = vadd.f32 %v3251, %v3327
        %s3333 = sld [smem:[#allocation8 + $0x2a]]
        %v3334 = vstv %s3333
        %v3335 = vmul.f32 %v3334, %v2281
        %v3336 = vmul.f32 %v3334, %v2282
        %v3339 = vrot.slane %v3335, 2
        %v3340 = vrot.slane %v3336, 2
        %v3341 = vsel %vm1076, %v3339, %v3340
        %v3344 = vadd.f32 %v3267, %v3341
        %v3345 = vadd.f32 %v3268, %v3340
        %s3346 = sld [smem:[#allocation8 + $0x45]]
        %v3347 = vstv %s3346
        %v3348 = vmul.f32 %v3347, %v2281
        %v3349 = vmul.f32 %v3347, %v2282
        %v3352 = vrot.slane %v3348, 2
        %v3353 = vrot.slane %v3349, 2
        %v3354 = vsel %vm1076, %v3352, %v3353
        %v3357 = vadd.f32 %v3284, %v3354
        %v3358 = vadd.f32 %v3285, %v3353
        %s3359 = sld [smem:[#allocation8 + $0x60]]
        %v3360 = vstv %s3359
        %v3361 = vmul.f32 %v3360, %v2281
        %v3362 = vmul.f32 %v3360, %v2282
        %v3365 = vrot.slane %v3361, 2
        %v3366 = vrot.slane %v3362, 2
        %v3367 = vsel %vm1076, %v3365, %v3366
        %v3370 = vadd.f32 %v3301, %v3367
        %v3371 = vadd.f32 %v3302, %v3366
        %s3372 = sld [smem:[#allocation8 + $0x7b]]
        %v3373 = vstv %s3372
        %v3374 = vmul.f32 %v3373, %v2281
        %v3375 = vmul.f32 %v3373, %v2282
        %v3378 = vrot.slane %v3374, 2
        %v3379 = vrot.slane %v3375, 2
        %v3380 = vsel %vm1076, %v3378, %v3379
        %v3383 = vadd.f32 %v3318, %v3380
        %v3384 = vadd.f32 %v3319, %v3379
        %s3385 = sld [smem:[#allocation8 + $0x10]]
        %v3386 = vstv %s3385
        %v3387 = vmul.f32 %v3386, %v2281
        %v3388 = vmul.f32 %v3386, %v2282
        %v3391 = vrot.slane %v3387, 2
        %v3392 = vrot.slane %v3388, 2
        %v3393 = vsel %vm1076, %v3391, %v3392
        %3394 = vrot.lane.b32.xlu0 %v3393, 127
        %v3395 = vpop.permute.xlu0 %3394
        %3396 = vrot.lane.b32.xlu0 %v3392, 127
        %v3397 = vpop.permute.xlu0 %3396
        %v3400 = vadd.f32 %v3331, %v3395
        %v3401 = vadd.f32 %v3332, %v3397
        %s3402 = sld [smem:[#allocation8 + $0x2b]]
        %v3403 = vstv %s3402
        %v3404 = vmul.f32 %v3403, %v2281
        %v3405 = vmul.f32 %v3403, %v2282
        %v3408 = vrot.slane %v3404, 2
        %v3409 = vrot.slane %v3405, 2
        %v3410 = vsel %vm1076, %v3408, %v3409
        %3411 = vrot.lane.b32.xlu0 %v3410, 127
        %v3412 = vpop.permute.xlu0 %3411
        %3413 = vrot.lane.b32.xlu0 %v3409, 127
        %v3414 = vpop.permute.xlu0 %3413
        %v3417 = vadd.f32 %v3344, %v3412
        %v3418 = vadd.f32 %v3345, %v3414
        %s3419 = sld [smem:[#allocation8 + $0x46]]
        %v3420 = vstv %s3419
        %v3421 = vmul.f32 %v3420, %v2281
        %v3422 = vmul.f32 %v3420, %v2282
        %v3425 = vrot.slane %v3421, 2
        %v3426 = vrot.slane %v3422, 2
        %v3427 = vsel %vm1076, %v3425, %v3426
        %3428 = vrot.lane.b32.xlu0 %v3427, 127
        %v3429 = vpop.permute.xlu0 %3428
        %3430 = vrot.lane.b32.xlu0 %v3426, 127
        %v3431 = vpop.permute.xlu0 %3430
        %v3434 = vadd.f32 %v3357, %v3429
        %v3435 = vadd.f32 %v3358, %v3431
        %s3436 = sld [smem:[#allocation8 + $0x61]]
        %v3437 = vstv %s3436
        %v3438 = vmul.f32 %v3437, %v2281
        %v3439 = vmul.f32 %v3437, %v2282
        %v3442 = vrot.slane %v3438, 2
        %v3443 = vrot.slane %v3439, 2
        %v3444 = vsel %vm1076, %v3442, %v3443
        %3445 = vrot.lane.b32.xlu0 %v3444, 127
        %v3446 = vpop.permute.xlu0 %3445
        %3447 = vrot.lane.b32.xlu0 %v3443, 127
        %v3448 = vpop.permute.xlu0 %3447
        %v3451 = vadd.f32 %v3370, %v3446
        %v3452 = vadd.f32 %v3371, %v3448
        %s3453 = sld [smem:[#allocation8 + $0x7c]]
        %v3454 = vstv %s3453
        %v3455 = vmul.f32 %v3454, %v2281
        %v3456 = vmul.f32 %v3454, %v2282
        %v3459 = vrot.slane %v3455, 2
        %v3460 = vrot.slane %v3456, 2
        %v3461 = vsel %vm1076, %v3459, %v3460
        %3462 = vrot.lane.b32.xlu0 %v3461, 127
        %v3463 = vpop.permute.xlu0 %3462
        %3464 = vrot.lane.b32.xlu0 %v3460, 127
        %v3465 = vpop.permute.xlu0 %3464
        %v3468 = vadd.f32 %v3383, %v3463
        %v3469 = vadd.f32 %v3384, %v3465
        %s3470 = sld [smem:[#allocation8 + $0x11]]
        %v3471 = vstv %s3470
        %v3472 = vmul.f32 %v3471, %v2281
        %v3473 = vmul.f32 %v3471, %v2282
        %v3476 = vrot.slane %v3472, 2
        %v3477 = vrot.slane %v3473, 2
        %v3478 = vsel %vm1076, %v3476, %v3477
        %3479 = vrot.lane.b32.xlu0 %v3478, 126
        %v3480 = vpop.permute.xlu0 %3479
        %3481 = vrot.lane.b32.xlu0 %v3477, 126
        %v3482 = vpop.permute.xlu0 %3481
        %v3485 = vadd.f32 %v3400, %v3480
        %v3486 = vadd.f32 %v3401, %v3482
        %s3487 = sld [smem:[#allocation8 + $0x2c]]
        %v3488 = vstv %s3487
        %v3489 = vmul.f32 %v3488, %v2281
        %v3490 = vmul.f32 %v3488, %v2282
        %v3493 = vrot.slane %v3489, 2
        %v3494 = vrot.slane %v3490, 2
        %v3495 = vsel %vm1076, %v3493, %v3494
        %3496 = vrot.lane.b32.xlu0 %v3495, 126
        %v3497 = vpop.permute.xlu0 %3496
        %3498 = vrot.lane.b32.xlu0 %v3494, 126
        %v3499 = vpop.permute.xlu0 %3498
        %v3502 = vadd.f32 %v3417, %v3497
        %v3503 = vadd.f32 %v3418, %v3499
        %s3504 = sld [smem:[#allocation8 + $0x47]]
        %v3505 = vstv %s3504
        %v3506 = vmul.f32 %v3505, %v2281
        %v3507 = vmul.f32 %v3505, %v2282
        %v3510 = vrot.slane %v3506, 2
        %v3511 = vrot.slane %v3507, 2
        %v3512 = vsel %vm1076, %v3510, %v3511
        %3513 = vrot.lane.b32.xlu0 %v3512, 126
        %v3514 = vpop.permute.xlu0 %3513
        %3515 = vrot.lane.b32.xlu0 %v3511, 126
        %v3516 = vpop.permute.xlu0 %3515
        %v3519 = vadd.f32 %v3434, %v3514
        %v3520 = vadd.f32 %v3435, %v3516
        %s3521 = sld [smem:[#allocation8 + $0x62]]
        %v3522 = vstv %s3521
        %v3523 = vmul.f32 %v3522, %v2281
        %v3524 = vmul.f32 %v3522, %v2282
        %v3527 = vrot.slane %v3523, 2
        %v3528 = vrot.slane %v3524, 2
        %v3529 = vsel %vm1076, %v3527, %v3528
        %3530 = vrot.lane.b32.xlu0 %v3529, 126
        %v3531 = vpop.permute.xlu0 %3530
        %3532 = vrot.lane.b32.xlu0 %v3528, 126
        %v3533 = vpop.permute.xlu0 %3532
        %v3536 = vadd.f32 %v3451, %v3531
        %v3537 = vadd.f32 %v3452, %v3533
        %s3538 = sld [smem:[#allocation8 + $0x7d]]
        %v3539 = vstv %s3538
        %v3540 = vmul.f32 %v3539, %v2281
        %v3541 = vmul.f32 %v3539, %v2282
        %v3544 = vrot.slane %v3540, 2
        %v3545 = vrot.slane %v3541, 2
        %v3546 = vsel %vm1076, %v3544, %v3545
        %3547 = vrot.lane.b32.xlu0 %v3546, 126
        %v3548 = vpop.permute.xlu0 %3547
        %3549 = vrot.lane.b32.xlu0 %v3545, 126
        %v3550 = vpop.permute.xlu0 %3549
        %v3553 = vadd.f32 %v3468, %v3548
        %v3554 = vadd.f32 %v3469, %v3550
        %s3555 = sld [smem:[#allocation8 + $0x12]]
        %v3556 = vstv %s3555
        %v3557 = vmul.f32 %v3556, %v2283
        %v3558 = vmul.f32 %v3556, %v2284
        %v3559 = vadd.f32 %v3485, %v3557
        %v3560 = vadd.f32 %v3486, %v3558
        %s3561 = sld [smem:[#allocation8 + $0x2d]]
        %v3562 = vstv %s3561
        %v3563 = vmul.f32 %v3562, %v2283
        %v3564 = vmul.f32 %v3562, %v2284
        %v3565 = vadd.f32 %v3502, %v3563
        %v3566 = vadd.f32 %v3503, %v3564
        %s3567 = sld [smem:[#allocation8 + $0x48]]
        %v3568 = vstv %s3567
        %v3569 = vmul.f32 %v3568, %v2283
        %v3570 = vmul.f32 %v3568, %v2284
        %v3571 = vadd.f32 %v3519, %v3569
        %v3572 = vadd.f32 %v3520, %v3570
        %s3573 = sld [smem:[#allocation8 + $0x63]]
        %v3574 = vstv %s3573
        %v3575 = vmul.f32 %v3574, %v2283
        %v3576 = vmul.f32 %v3574, %v2284
        %v3577 = vadd.f32 %v3536, %v3575
        %v3578 = vadd.f32 %v3537, %v3576
        %s3579 = sld [smem:[#allocation8 + $0x7e]]
        %v3580 = vstv %s3579
        %v3581 = vmul.f32 %v3580, %v2283
        %v3582 = vmul.f32 %v3580, %v2284
        %v3583 = vadd.f32 %v3553, %v3581
        %v3584 = vadd.f32 %v3554, %v3582
        %s3585 = sld [smem:[#allocation8 + $0x13]]
        %v3586 = vstv %s3585
        %v3587 = vmul.f32 %v3586, %v2283
        %v3588 = vmul.f32 %v3586, %v2284
        %3591 = vrot.lane.b32.xlu0 %v3587, 127
        %v3592 = vpop.permute.xlu0 %3591
        %3593 = vrot.lane.b32.xlu0 %v3588, 127
        %v3594 = vpop.permute.xlu0 %3593
        %v3597 = vadd.f32 %v3559, %v3592
        %v3598 = vadd.f32 %v3560, %v3594
        %s3599 = sld [smem:[#allocation8 + $0x2e]]
        %v3600 = vstv %s3599
        %v3601 = vmul.f32 %v3600, %v2283
        %v3602 = vmul.f32 %v3600, %v2284
        %3605 = vrot.lane.b32.xlu0 %v3601, 127
        %v3606 = vpop.permute.xlu0 %3605
        %3607 = vrot.lane.b32.xlu0 %v3602, 127
        %v3608 = vpop.permute.xlu0 %3607
        %v3611 = vadd.f32 %v3565, %v3606
        %v3612 = vadd.f32 %v3566, %v3608
        %s3613 = sld [smem:[#allocation8 + $0x49]]
        %v3614 = vstv %s3613
        %v3615 = vmul.f32 %v3614, %v2283
        %v3616 = vmul.f32 %v3614, %v2284
        %3619 = vrot.lane.b32.xlu0 %v3615, 127
        %v3620 = vpop.permute.xlu0 %3619
        %3621 = vrot.lane.b32.xlu0 %v3616, 127
        %v3622 = vpop.permute.xlu0 %3621
        %v3625 = vadd.f32 %v3571, %v3620
        %v3626 = vadd.f32 %v3572, %v3622
        %s3627 = sld [smem:[#allocation8 + $0x64]]
        %v3628 = vstv %s3627
        %v3629 = vmul.f32 %v3628, %v2283
        %v3630 = vmul.f32 %v3628, %v2284
        %3633 = vrot.lane.b32.xlu0 %v3629, 127
        %v3634 = vpop.permute.xlu0 %3633
        %3635 = vrot.lane.b32.xlu0 %v3630, 127
        %v3636 = vpop.permute.xlu0 %3635
        %v3639 = vadd.f32 %v3577, %v3634
        %v3640 = vadd.f32 %v3578, %v3636
        %s3641 = sld [smem:[#allocation8 + $0x7f]]
        %v3642 = vstv %s3641
        %v3643 = vmul.f32 %v3642, %v2283
        %v3644 = vmul.f32 %v3642, %v2284
        %3647 = vrot.lane.b32.xlu0 %v3643, 127
        %v3648 = vpop.permute.xlu0 %3647
        %3649 = vrot.lane.b32.xlu0 %v3644, 127
        %v3650 = vpop.permute.xlu0 %3649
        %v3653 = vadd.f32 %v3583, %v3648
        %v3654 = vadd.f32 %v3584, %v3650
        %s3655 = sld [smem:[#allocation8 + $0x14]]
        %v3656 = vstv %s3655
        %v3657 = vmul.f32 %v3656, %v2283
        %v3658 = vmul.f32 %v3656, %v2284
        %3661 = vrot.lane.b32.xlu0 %v3657, 126
        %v3662 = vpop.permute.xlu0 %3661
        %3663 = vrot.lane.b32.xlu0 %v3658, 126
        %v3664 = vpop.permute.xlu0 %3663
        %v3667 = vadd.f32 %v3597, %v3662
        %v3668 = vadd.f32 %v3598, %v3664
        %s3669 = sld [smem:[#allocation8 + $0x2f]]
        %v3670 = vstv %s3669
        %v3671 = vmul.f32 %v3670, %v2283
        %v3672 = vmul.f32 %v3670, %v2284
        %3675 = vrot.lane.b32.xlu0 %v3671, 126
        %v3676 = vpop.permute.xlu0 %3675
        %3677 = vrot.lane.b32.xlu0 %v3672, 126
        %v3678 = vpop.permute.xlu0 %3677
        %v3681 = vadd.f32 %v3611, %v3676
        %v3682 = vadd.f32 %v3612, %v3678
        %s3683 = sld [smem:[#allocation8 + $0x4a]]
        %v3684 = vstv %s3683
        %v3685 = vmul.f32 %v3684, %v2283
        %v3686 = vmul.f32 %v3684, %v2284
        %3689 = vrot.lane.b32.xlu0 %v3685, 126
        %v3690 = vpop.permute.xlu0 %3689
        %3691 = vrot.lane.b32.xlu0 %v3686, 126
        %v3692 = vpop.permute.xlu0 %3691
        %v3695 = vadd.f32 %v3625, %v3690
        %v3696 = vadd.f32 %v3626, %v3692
        %s3697 = sld [smem:[#allocation8 + $0x65]]
        %v3698 = vstv %s3697
        %v3699 = vmul.f32 %v3698, %v2283
        %v3700 = vmul.f32 %v3698, %v2284
        %3703 = vrot.lane.b32.xlu0 %v3699, 126
        %v3704 = vpop.permute.xlu0 %3703
        %3705 = vrot.lane.b32.xlu0 %v3700, 126
        %v3706 = vpop.permute.xlu0 %3705
        %v3709 = vadd.f32 %v3639, %v3704
        %v3710 = vadd.f32 %v3640, %v3706
        %s3711 = sld [smem:[#allocation8 + $0x80]]
        %v3712 = vstv %s3711
        %v3713 = vmul.f32 %v3712, %v2283
        %v3714 = vmul.f32 %v3712, %v2284
        %3717 = vrot.lane.b32.xlu0 %v3713, 126
        %v3718 = vpop.permute.xlu0 %3717
        %3719 = vrot.lane.b32.xlu0 %v3714, 126
        %v3720 = vpop.permute.xlu0 %3719
        %v3723 = vadd.f32 %v3653, %v3718
        %v3724 = vadd.f32 %v3654, %v3720
        %s3725 = sld [smem:[#allocation8 + $0x15]]
        %v3726 = vstv %s3725
        %v3727 = vmul.f32 %v3726, %v2283
        %v3728 = vmul.f32 %v3726, %v2284
        %v3731 = vrot.slane %v3727, 1
        %v3732 = vrot.slane %v3728, 1
        %v3733 = vsel %vm703, %v3731, %v3732
        %v3736 = vadd.f32 %v3667, %v3733
        %v3737 = vadd.f32 %v3668, %v3732
        %s3738 = sld [smem:[#allocation8 + $0x30]]
        %v3739 = vstv %s3738
        %v3740 = vmul.f32 %v3739, %v2283
        %v3741 = vmul.f32 %v3739, %v2284
        %v3744 = vrot.slane %v3740, 1
        %v3745 = vrot.slane %v3741, 1
        %v3746 = vsel %vm703, %v3744, %v3745
        %v3749 = vadd.f32 %v3681, %v3746
        %v3750 = vadd.f32 %v3682, %v3745
        %s3751 = sld [smem:[#allocation8 + $0x4b]]
        %v3752 = vstv %s3751
        %v3753 = vmul.f32 %v3752, %v2283
        %v3754 = vmul.f32 %v3752, %v2284
        %v3757 = vrot.slane %v3753, 1
        %v3758 = vrot.slane %v3754, 1
        %v3759 = vsel %vm703, %v3757, %v3758
        %v3762 = vadd.f32 %v3695, %v3759
        %v3763 = vadd.f32 %v3696, %v3758
        %s3764 = sld [smem:[#allocation8 + $0x66]]
        %v3765 = vstv %s3764
        %v3766 = vmul.f32 %v3765, %v2283
        %v3767 = vmul.f32 %v3765, %v2284
        %v3770 = vrot.slane %v3766, 1
        %v3771 = vrot.slane %v3767, 1
        %v3772 = vsel %vm703, %v3770, %v3771
        %v3775 = vadd.f32 %v3709, %v3772
        %v3776 = vadd.f32 %v3710, %v3771
        %s3777 = sld [smem:[#allocation8 + $0x81]]
        %v3778 = vstv %s3777
        %v3779 = vmul.f32 %v3778, %v2283
        %v3780 = vmul.f32 %v3778, %v2284
        %v3783 = vrot.slane %v3779, 1
        %v3784 = vrot.slane %v3780, 1
        %v3785 = vsel %vm703, %v3783, %v3784
        %v3788 = vadd.f32 %v3723, %v3785
        %v3789 = vadd.f32 %v3724, %v3784
        %s3790 = sld [smem:[#allocation8 + $0x16]]
        %v3791 = vstv %s3790
        %v3792 = vmul.f32 %v3791, %v2283
        %v3793 = vmul.f32 %v3791, %v2284
        %v3796 = vrot.slane %v3792, 1
        %v3797 = vrot.slane %v3793, 1
        %v3798 = vsel %vm703, %v3796, %v3797
        %3799 = vrot.lane.b32.xlu0 %v3798, 127
        %v3800 = vpop.permute.xlu0 %3799
        %3801 = vrot.lane.b32.xlu0 %v3797, 127
        %v3802 = vpop.permute.xlu0 %3801
        %v3805 = vadd.f32 %v3736, %v3800
        %v3806 = vadd.f32 %v3737, %v3802
        %s3807 = sld [smem:[#allocation8 + $0x31]]
        %v3808 = vstv %s3807
        %v3809 = vmul.f32 %v3808, %v2283
        %v3810 = vmul.f32 %v3808, %v2284
        %v3813 = vrot.slane %v3809, 1
        %v3814 = vrot.slane %v3810, 1
        %v3815 = vsel %vm703, %v3813, %v3814
        %3816 = vrot.lane.b32.xlu0 %v3815, 127
        %v3817 = vpop.permute.xlu0 %3816
        %3818 = vrot.lane.b32.xlu0 %v3814, 127
        %v3819 = vpop.permute.xlu0 %3818
        %v3822 = vadd.f32 %v3749, %v3817
        %v3823 = vadd.f32 %v3750, %v3819
        %s3824 = sld [smem:[#allocation8 + $0x4c]]
        %v3825 = vstv %s3824
        %v3826 = vmul.f32 %v3825, %v2283
        %v3827 = vmul.f32 %v3825, %v2284
        %v3830 = vrot.slane %v3826, 1
        %v3831 = vrot.slane %v3827, 1
        %v3832 = vsel %vm703, %v3830, %v3831
        %3833 = vrot.lane.b32.xlu0 %v3832, 127
        %v3834 = vpop.permute.xlu0 %3833
        %3835 = vrot.lane.b32.xlu0 %v3831, 127
        %v3836 = vpop.permute.xlu0 %3835
        %v3839 = vadd.f32 %v3762, %v3834
        %v3840 = vadd.f32 %v3763, %v3836
        %s3841 = sld [smem:[#allocation8 + $0x67]]
        %v3842 = vstv %s3841
        %v3843 = vmul.f32 %v3842, %v2283
        %v3844 = vmul.f32 %v3842, %v2284
        %v3847 = vrot.slane %v3843, 1
        %v3848 = vrot.slane %v3844, 1
        %v3849 = vsel %vm703, %v3847, %v3848
        %3850 = vrot.lane.b32.xlu0 %v3849, 127
        %v3851 = vpop.permute.xlu0 %3850
        %3852 = vrot.lane.b32.xlu0 %v3848, 127
        %v3853 = vpop.permute.xlu0 %3852
        %v3856 = vadd.f32 %v3775, %v3851
        %v3857 = vadd.f32 %v3776, %v3853
        %s3858 = sld [smem:[#allocation8 + $0x82]]
        %v3859 = vstv %s3858
        %v3860 = vmul.f32 %v3859, %v2283
        %v3861 = vmul.f32 %v3859, %v2284
        %v3864 = vrot.slane %v3860, 1
        %v3865 = vrot.slane %v3861, 1
        %v3866 = vsel %vm703, %v3864, %v3865
        %3867 = vrot.lane.b32.xlu0 %v3866, 127
        %v3868 = vpop.permute.xlu0 %3867
        %3869 = vrot.lane.b32.xlu0 %v3865, 127
        %v3870 = vpop.permute.xlu0 %3869
        %v3873 = vadd.f32 %v3788, %v3868
        %v3874 = vadd.f32 %v3789, %v3870
        %s3875 = sld [smem:[#allocation8 + $0x17]]
        %v3876 = vstv %s3875
        %v3877 = vmul.f32 %v3876, %v2283
        %v3878 = vmul.f32 %v3876, %v2284
        %v3881 = vrot.slane %v3877, 1
        %v3882 = vrot.slane %v3878, 1
        %v3883 = vsel %vm703, %v3881, %v3882
        %3884 = vrot.lane.b32.xlu0 %v3883, 126
        %v3885 = vpop.permute.xlu0 %3884
        %3886 = vrot.lane.b32.xlu0 %v3882, 126
        %v3887 = vpop.permute.xlu0 %3886
        %v3890 = vadd.f32 %v3805, %v3885
        %v3891 = vadd.f32 %v3806, %v3887
        %s3892 = sld [smem:[#allocation8 + $0x32]]
        %v3893 = vstv %s3892
        %v3894 = vmul.f32 %v3893, %v2283
        %v3895 = vmul.f32 %v3893, %v2284
        %v3898 = vrot.slane %v3894, 1
        %v3899 = vrot.slane %v3895, 1
        %v3900 = vsel %vm703, %v3898, %v3899
        %3901 = vrot.lane.b32.xlu0 %v3900, 126
        %v3902 = vpop.permute.xlu0 %3901
        %3903 = vrot.lane.b32.xlu0 %v3899, 126
        %v3904 = vpop.permute.xlu0 %3903
        %v3907 = vadd.f32 %v3822, %v3902
        %v3908 = vadd.f32 %v3823, %v3904
        %s3909 = sld [smem:[#allocation8 + $0x4d]]
        %v3910 = vstv %s3909
        %v3911 = vmul.f32 %v3910, %v2283
        %v3912 = vmul.f32 %v3910, %v2284
        %v3915 = vrot.slane %v3911, 1
        %v3916 = vrot.slane %v3912, 1
        %v3917 = vsel %vm703, %v3915, %v3916
        %3918 = vrot.lane.b32.xlu0 %v3917, 126
        %v3919 = vpop.permute.xlu0 %3918
        %3920 = vrot.lane.b32.xlu0 %v3916, 126
        %v3921 = vpop.permute.xlu0 %3920
        %v3924 = vadd.f32 %v3839, %v3919
        %v3925 = vadd.f32 %v3840, %v3921
        %s3926 = sld [smem:[#allocation8 + $0x68]]
        %v3927 = vstv %s3926
        %v3928 = vmul.f32 %v3927, %v2283
        %v3929 = vmul.f32 %v3927, %v2284
        %v3932 = vrot.slane %v3928, 1
        %v3933 = vrot.slane %v3929, 1
        %v3934 = vsel %vm703, %v3932, %v3933
        %3935 = vrot.lane.b32.xlu0 %v3934, 126
        %v3936 = vpop.permute.xlu0 %3935
        %3937 = vrot.lane.b32.xlu0 %v3933, 126
        %v3938 = vpop.permute.xlu0 %3937
        %v3941 = vadd.f32 %v3856, %v3936
        %v3942 = vadd.f32 %v3857, %v3938
        %s3943 = sld [smem:[#allocation8 + $0x83]]
        %v3944 = vstv %s3943
        %v3945 = vmul.f32 %v3944, %v2283
        %v3946 = vmul.f32 %v3944, %v2284
        %v3949 = vrot.slane %v3945, 1
        %v3950 = vrot.slane %v3946, 1
        %v3951 = vsel %vm703, %v3949, %v3950
        %3952 = vrot.lane.b32.xlu0 %v3951, 126
        %v3953 = vpop.permute.xlu0 %3952
        %3954 = vrot.lane.b32.xlu0 %v3950, 126
        %v3955 = vpop.permute.xlu0 %3954
        %v3958 = vadd.f32 %v3873, %v3953
        %v3959 = vadd.f32 %v3874, %v3955
        %s3960 = sld [smem:[#allocation8 + $0x18]]
        %v3961 = vstv %s3960
        %v3962 = vmul.f32 %v3961, %v2283
        %v3963 = vmul.f32 %v3961, %v2284
        %v3966 = vrot.slane %v3962, 2
        %v3967 = vrot.slane %v3963, 2
        %v3968 = vsel %vm1076, %v3966, %v3967
        %v3971 = vadd.f32 %v3890, %v3968
        %v3972 = vadd.f32 %v3891, %v3967
        %s3973 = sld [smem:[#allocation8 + $0x33]]
        %v3974 = vstv %s3973
        %v3975 = vmul.f32 %v3974, %v2283
        %v3976 = vmul.f32 %v3974, %v2284
        %v3979 = vrot.slane %v3975, 2
        %v3980 = vrot.slane %v3976, 2
        %v3981 = vsel %vm1076, %v3979, %v3980
        %v3984 = vadd.f32 %v3907, %v3981
        %v3985 = vadd.f32 %v3908, %v3980
        %s3986 = sld [smem:[#allocation8 + $0x4e]]
        %v3987 = vstv %s3986
        %v3988 = vmul.f32 %v3987, %v2283
        %v3989 = vmul.f32 %v3987, %v2284
        %v3992 = vrot.slane %v3988, 2
        %v3993 = vrot.slane %v3989, 2
        %v3994 = vsel %vm1076, %v3992, %v3993
        %v3997 = vadd.f32 %v3924, %v3994
        %v3998 = vadd.f32 %v3925, %v3993
        %s3999 = sld [smem:[#allocation8 + $0x69]]
        %v4000 = vstv %s3999
        %v4001 = vmul.f32 %v4000, %v2283
        %v4002 = vmul.f32 %v4000, %v2284
        %v4005 = vrot.slane %v4001, 2
        %v4006 = vrot.slane %v4002, 2
        %v4007 = vsel %vm1076, %v4005, %v4006
        %v4010 = vadd.f32 %v3941, %v4007
        %v4011 = vadd.f32 %v3942, %v4006
        %s4012 = sld [smem:[#allocation8 + $0x84]]
        %v4013 = vstv %s4012
        %v4014 = vmul.f32 %v4013, %v2283
        %v4015 = vmul.f32 %v4013, %v2284
        %v4018 = vrot.slane %v4014, 2
        %v4019 = vrot.slane %v4015, 2
        %v4020 = vsel %vm1076, %v4018, %v4019
        %v4023 = vadd.f32 %v3958, %v4020
        %v4024 = vadd.f32 %v3959, %v4019
        %s4025 = sld [smem:[#allocation8 + $0x19]]
        %v4026 = vstv %s4025
        %v4027 = vmul.f32 %v4026, %v2283
        %v4028 = vmul.f32 %v4026, %v2284
        %v4031 = vrot.slane %v4027, 2
        %v4032 = vrot.slane %v4028, 2
        %v4033 = vsel %vm1076, %v4031, %v4032
        %4034 = vrot.lane.b32.xlu0 %v4033, 127
        %v4035 = vpop.permute.xlu0 %4034
        %4036 = vrot.lane.b32.xlu0 %v4032, 127
        %v4037 = vpop.permute.xlu0 %4036
        %v4040 = vadd.f32 %v3971, %v4035
        %v4041 = vadd.f32 %v3972, %v4037
        %s4042 = sld [smem:[#allocation8 + $0x34]]
        %v4043 = vstv %s4042
        %v4044 = vmul.f32 %v4043, %v2283
        %v4045 = vmul.f32 %v4043, %v2284
        %v4048 = vrot.slane %v4044, 2
        %v4049 = vrot.slane %v4045, 2
        %v4050 = vsel %vm1076, %v4048, %v4049
        %4051 = vrot.lane.b32.xlu0 %v4050, 127
        %v4052 = vpop.permute.xlu0 %4051
        %4053 = vrot.lane.b32.xlu0 %v4049, 127
        %v4054 = vpop.permute.xlu0 %4053
        %v4057 = vadd.f32 %v3984, %v4052
        %v4058 = vadd.f32 %v3985, %v4054
        %s4059 = sld [smem:[#allocation8 + $0x4f]]
        %v4060 = vstv %s4059
        %v4061 = vmul.f32 %v4060, %v2283
        %v4062 = vmul.f32 %v4060, %v2284
        %v4065 = vrot.slane %v4061, 2
        %v4066 = vrot.slane %v4062, 2
        %v4067 = vsel %vm1076, %v4065, %v4066
        %4068 = vrot.lane.b32.xlu0 %v4067, 127
        %v4069 = vpop.permute.xlu0 %4068
        %4070 = vrot.lane.b32.xlu0 %v4066, 127
        %v4071 = vpop.permute.xlu0 %4070
        %v4074 = vadd.f32 %v3997, %v4069
        %v4075 = vadd.f32 %v3998, %v4071
        %s4076 = sld [smem:[#allocation8 + $0x6a]]
        %v4077 = vstv %s4076
        %v4078 = vmul.f32 %v4077, %v2283
        %v4079 = vmul.f32 %v4077, %v2284
        %v4082 = vrot.slane %v4078, 2
        %v4083 = vrot.slane %v4079, 2
        %v4084 = vsel %vm1076, %v4082, %v4083
        %4085 = vrot.lane.b32.xlu0 %v4084, 127
        %v4086 = vpop.permute.xlu0 %4085
        %4087 = vrot.lane.b32.xlu0 %v4083, 127
        %v4088 = vpop.permute.xlu0 %4087
        %v4091 = vadd.f32 %v4010, %v4086
        %v4092 = vadd.f32 %v4011, %v4088
        %s4093 = sld [smem:[#allocation8 + $0x85]]
        %v4094 = vstv %s4093
        %v4095 = vmul.f32 %v4094, %v2283
        %v4096 = vmul.f32 %v4094, %v2284
        %v4099 = vrot.slane %v4095, 2
        %v4100 = vrot.slane %v4096, 2
        %v4101 = vsel %vm1076, %v4099, %v4100
        %4102 = vrot.lane.b32.xlu0 %v4101, 127
        %v4103 = vpop.permute.xlu0 %4102
        %4104 = vrot.lane.b32.xlu0 %v4100, 127
        %v4105 = vpop.permute.xlu0 %4104
        %v4108 = vadd.f32 %v4023, %v4103
        %v4109 = vadd.f32 %v4024, %v4105
        %s4110 = sld [smem:[#allocation8 + $0x1a]]
        %v4111 = vstv %s4110
        %v4112 = vmul.f32 %v4111, %v2283
        %v4113 = vmul.f32 %v4111, %v2284
        %v4116 = vrot.slane %v4112, 2
        %v4117 = vrot.slane %v4113, 2
        %v4118 = vsel %vm1076, %v4116, %v4117
        %4119 = vrot.lane.b32.xlu0 %v4118, 126
        %v4120 = vpop.permute.xlu0 %4119
        %4121 = vrot.lane.b32.xlu0 %v4117, 126
        %v4122 = vpop.permute.xlu0 %4121
        %v4125 = vadd.f32 %v4040, %v4120
        %v4126 = vadd.f32 %v4041, %v4122
        %s4127 = sld [smem:[#allocation8 + $0x35]]
        %v4128 = vstv %s4127
        %v4129 = vmul.f32 %v4128, %v2283
        %v4130 = vmul.f32 %v4128, %v2284
        %v4133 = vrot.slane %v4129, 2
        %v4134 = vrot.slane %v4130, 2
        %v4135 = vsel %vm1076, %v4133, %v4134
        %4136 = vrot.lane.b32.xlu0 %v4135, 126
        %v4137 = vpop.permute.xlu0 %4136
        %4138 = vrot.lane.b32.xlu0 %v4134, 126
        %v4139 = vpop.permute.xlu0 %4138
        %v4142 = vadd.f32 %v4057, %v4137
        %v4143 = vadd.f32 %v4058, %v4139
        %s4144 = sld [smem:[#allocation8 + $0x50]]
        %v4145 = vstv %s4144
        %v4146 = vmul.f32 %v4145, %v2283
        %v4147 = vmul.f32 %v4145, %v2284
        %v4150 = vrot.slane %v4146, 2
        %v4151 = vrot.slane %v4147, 2
        %v4152 = vsel %vm1076, %v4150, %v4151
        %4153 = vrot.lane.b32.xlu0 %v4152, 126
        %v4154 = vpop.permute.xlu0 %4153
        %4155 = vrot.lane.b32.xlu0 %v4151, 126
        %v4156 = vpop.permute.xlu0 %4155
        %v4159 = vadd.f32 %v4074, %v4154
        %v4160 = vadd.f32 %v4075, %v4156
        %s4161 = sld [smem:[#allocation8 + $0x6b]]
        %v4162 = vstv %s4161
        %v4163 = vmul.f32 %v4162, %v2283
        %v4164 = vmul.f32 %v4162, %v2284
        %v4167 = vrot.slane %v4163, 2
        %v4168 = vrot.slane %v4164, 2
        %v4169 = vsel %vm1076, %v4167, %v4168
        %4170 = vrot.lane.b32.xlu0 %v4169, 126
        %v4171 = vpop.permute.xlu0 %4170
        %4172 = vrot.lane.b32.xlu0 %v4168, 126
        %v4173 = vpop.permute.xlu0 %4172
        %v4176 = vadd.f32 %v4091, %v4171
        %v4177 = vadd.f32 %v4092, %v4173
        %s4178 = sld [smem:[#allocation8 + $0x86]]
        %v4179 = vstv %s4178
        %v4180 = vmul.f32 %v4179, %v2283
        %v4181 = vmul.f32 %v4179, %v2284
        %v4184 = vrot.slane %v4180, 2
        %v4185 = vrot.slane %v4181, 2
        %v4186 = vsel %vm1076, %v4184, %v4185
        %4187 = vrot.lane.b32.xlu0 %v4186, 126
        %v4188 = vpop.permute.xlu0 %4187
        %4189 = vrot.lane.b32.xlu0 %v4185, 126
        %v4190 = vpop.permute.xlu0 %4189
        %v4193 = vadd.f32 %v4108, %v4188
        %v4194 = vadd.f32 %v4109, %v4190
        %s4195 = sld [smem:[#allocation9]]
        %v4196 = vstv %s4195
        %v4197 = vadd.f32 %v4125, %v4196
        %v4198 = vadd.f32 %v4126, %v4196
        %v4199 = vmax.f32 %v4197, 0.0
        %v4200 = vmax.f32 %v4198, 0.0
        %s4201 = sld [smem:[#allocation9 + $0x1]]
        %v4202 = vstv %s4201
        %v4203 = vadd.f32 %v4142, %v4202
        %v4204 = vadd.f32 %v4143, %v4202
        %v4205 = vmax.f32 %v4203, 0.0
        %v4206 = vmax.f32 %v4204, 0.0
        %s4207 = sld [smem:[#allocation9 + $0x2]]
        %v4208 = vstv %s4207
        %v4209 = vadd.f32 %v4159, %v4208
        %v4210 = vadd.f32 %v4160, %v4208
        %v4211 = vmax.f32 %v4209, 0.0
        %v4212 = vmax.f32 %v4210, 0.0
        %s4213 = sld [smem:[#allocation9 + $0x3]]
        %v4214 = vstv %s4213
        %v4215 = vadd.f32 %v4176, %v4214
        %v4216 = vadd.f32 %v4177, %v4214
        %v4217 = vmax.f32 %v4215, 0.0
        %v4218 = vmax.f32 %v4216, 0.0
        %s4219 = sld [smem:[#allocation9 + $0x4]]
        %v4220 = vstv %s4219
        %v4221 = vadd.f32 %v4193, %v4220
        %v4222 = vadd.f32 %v4194, %v4220
        %v4223 = vmax.f32 %v4221, 0.0
        %v4224 = vmax.f32 %v4222, 0.0
        %v4225 = vlaneseq
        %vm4226 = vcmp.ge.s32.totalorder %v4225, 0
        %vm4227 = vcmp.lt.s32.totalorder %v4225, 256
        %vm4228 = vmand %vm4226, %vm4227
        %4229 = vst.msk [vmem:[#allocation3] sm:$0x3] %vm4228, 0.0
        %4232 = vrot.lane.b32.xlu0 %v4199, 127
        %v4233 = vpop.permute.xlu0 %4232
        %4234 = vrot.lane.b32.xlu0 %v4200, 127
        %v4235 = vpop.permute.xlu0 %4234
        %v4238 = vmax.f32 %v4199, %v4233
        %v4239 = vmax.f32 %v4200, %v4235
        %v4242 = vrot.slane %v4238, 1
        %v4243 = vrot.slane %v4239, 1
        %v4244 = vsel %vm703, %v4242, %v4243
        %v4247 = vmax.f32 %v4238, %v4244
        %v4248 = vmax.f32 %v4239, %v4243
        %vm4249 = vcmp.lt.s32.totalorder %v4225, 9
        %vm4250 = vmand %vm4226, %vm4249
        %4251 = vst.msk [vmem:[#allocation3] sm:$0x1] %vm4250, %v4247
        %v4254 = vunpack.c.l.s4 1966171168
        %v4255 = vunpack.c.0.s8 %v4254
        %v4256 = vlaneseq
        %v4257 = vshrl.u32 %v4256, 7
        %v4258 = vsub.s32 %v4255, %v4257
        %v4259 = vrot.slane %v4247, %v4258
        %v4261 = vunpack.c.l.s4 1966171168
        %v4262 = vunpack.c.0.s8 %v4261
        %v4263 = vlaneseq
        %v4264 = vshrl.u32 %v4263, 7
        %v4265 = vsub.s32 %v4262, %v4264
        %v4266 = vrot.slane %v4259, %v4265
        %v4267 = vcombine.high %v4266, %v4266
        %4268 = vrot.lane.b32.xlu0 %v4267, 9
        %v4269 = vpop.permute.xlu0 %4268
        %vm4271 = vcmp.ge.s32.totalorder %v4225, 9
        %vm4272 = vcmp.lt.s32.totalorder %v4225, 18
        %vm4273 = vmand %vm4271, %vm4272
        %4274 = vst.msk [vmem:[#allocation3] sm:$0x1] %vm4273, %v4269
        %v4275 = vcombine.high %v4247, %v4247
        %v4277 = vunpack.c.l.s4 1966171168
        %v4278 = vunpack.c.0.s8 %v4277
        %v4279 = vlaneseq
        %v4280 = vshrl.u32 %v4279, 7
        %v4281 = vsub.s32 %v4278, %v4280
        %v4282 = vrot.slane %v4275, %v4281
        %v4284 = vunpack.c.l.s4 1966171168
        %v4285 = vunpack.c.0.s8 %v4284
        %v4286 = vlaneseq
        %v4287 = vshrl.u32 %v4286, 7
        %v4288 = vsub.s32 %v4285, %v4287
        %v4289 = vrot.slane %v4282, %v4288
        %4290 = vrot.lane.b32.xlu0 %v4289, 18
        %v4291 = vpop.permute.xlu0 %4290
        %vm4293 = vcmp.ge.s32.totalorder %v4225, 18
        %vm4294 = vcmp.lt.s32.totalorder %v4225, 27
        %vm4295 = vmand %vm4293, %vm4294
        %4296 = vst.msk [vmem:[#allocation3] sm:$0x1] %vm4295, %v4291
        %v4297 = vcombine.high %v4289, %v4289
        %4298 = vrot.lane.b32.xlu0 %v4297, 27
        %v4299 = vpop.permute.xlu0 %4298
        %vm4301 = vcmp.ge.s32.totalorder %v4225, 27
        %vm4302 = vcmp.lt.s32.totalorder %v4225, 36
        %vm4303 = vmand %vm4301, %vm4302
        %4304 = vst.msk [vmem:[#allocation3] sm:$0x1] %vm4303, %v4299
        %v4307 = vunpack.c.l.s4 1966171168
        %v4308 = vunpack.c.0.s8 %v4307
        %v4309 = vlaneseq
        %v4310 = vshrl.u32 %v4309, 7
        %v4311 = vsub.s32 %v4308, %v4310
        %v4312 = vrot.slane %v4248, %v4311
        %v4314 = vunpack.c.l.s4 1966171168
        %v4315 = vunpack.c.0.s8 %v4314
        %v4316 = vlaneseq
        %v4317 = vshrl.u32 %v4316, 7
        %v4318 = vsub.s32 %v4315, %v4317
        %v4319 = vrot.slane %v4312, %v4318
        %4320 = vrot.lane.b32.xlu0 %v4319, 36
        %v4321 = vpop.permute.xlu0 %4320
        %vm4323 = vcmp.ge.s32.totalorder %v4225, 36
        %vm4324 = vcmp.lt.s32.totalorder %v4225, 45
        %vm4325 = vmand %vm4323, %vm4324
        %4326 = vst.msk [vmem:[#allocation3] sm:$0x1] %vm4325, %v4321
        %4329 = vrot.lane.b32.xlu0 %v4205, 127
        %v4330 = vpop.permute.xlu0 %4329
        %4331 = vrot.lane.b32.xlu0 %v4206, 127
        %v4332 = vpop.permute.xlu0 %4331
        %v4335 = vmax.f32 %v4205, %v4330
        %v4336 = vmax.f32 %v4206, %v4332
        %v4339 = vrot.slane %v4335, 1
        %v4340 = vrot.slane %v4336, 1
        %v4341 = vsel %vm703, %v4339, %v4340
        %v4344 = vmax.f32 %v4335, %v4341
        %v4345 = vmax.f32 %v4336, %v4340
        %v4348 = vunpack.c.l.s4 1966171168
        %v4349 = vunpack.c.0.s8 %v4348
        %v4350 = vlaneseq
        %v4351 = vshrl.u32 %v4350, 7
        %v4352 = vsub.s32 %v4349, %v4351
        %v4353 = vrot.slane %v4344, %v4352
        %v4355 = vunpack.c.l.s4 1966171168
        %v4356 = vunpack.c.0.s8 %v4355
        %v4357 = vlaneseq
        %v4358 = vshrl.u32 %v4357, 7
        %v4359 = vsub.s32 %v4356, %v4358
        %v4360 = vrot.slane %v4353, %v4359
        %4361 = vrot.lane.b32.xlu0 %v4360, 45
        %v4362 = vpop.permute.xlu0 %4361
        %vm4364 = vcmp.ge.s32.totalorder %v4225, 45
        %vm4365 = vcmp.lt.s32.totalorder %v4225, 54
        %vm4366 = vmand %vm4364, %vm4365
        %4367 = vst.msk [vmem:[#allocation3] sm:$0x1] %vm4366, %v4362
        %v4368 = vcombine.high %v4360, %v4360
        %4369 = vrot.lane.b32.xlu0 %v4368, 54
        %v4370 = vpop.permute.xlu0 %4369
        %vm4372 = vcmp.ge.s32.totalorder %v4225, 54
        %vm4373 = vcmp.lt.s32.totalorder %v4225, 63
        %vm4374 = vmand %vm4372, %vm4373
        %4375 = vst.msk [vmem:[#allocation3] sm:$0x1] %vm4374, %v4370
        %v4376 = vcombine.high %v4344, %v4344
        %v4378 = vunpack.c.l.s4 1966171168
        %v4379 = vunpack.c.0.s8 %v4378
        %v4380 = vlaneseq
        %v4381 = vshrl.u32 %v4380, 7
        %v4382 = vsub.s32 %v4379, %v4381
        %v4383 = vrot.slane %v4376, %v4382
        %v4385 = vunpack.c.l.s4 1966171168
        %v4386 = vunpack.c.0.s8 %v4385
        %v4387 = vlaneseq
        %v4388 = vshrl.u32 %v4387, 7
        %v4389 = vsub.s32 %v4386, %v4388
        %v4390 = vrot.slane %v4383, %v4389
        %4391 = vrot.lane.b32.xlu0 %v4390, 63
        %v4392 = vpop.permute.xlu0 %4391
        %vm4394 = vcmp.ge.s32.totalorder %v4225, 63
        %vm4395 = vcmp.lt.s32.totalorder %v4225, 72
        %vm4396 = vmand %vm4394, %vm4395
        %4397 = vst.msk [vmem:[#allocation3] sm:$0x1] %vm4396, %v4392
        %v4398 = vcombine.high %v4390, %v4390
        %4399 = vrot.lane.b32.xlu0 %v4398, 72
        %v4400 = vpop.permute.xlu0 %4399
        %vm4402 = vcmp.ge.s32.totalorder %v4225, 72
        %vm4403 = vcmp.lt.s32.totalorder %v4225, 81
        %vm4404 = vmand %vm4402, %vm4403
        %4405 = vst.msk [vmem:[#allocation3] sm:$0x1] %vm4404, %v4400
        %v4408 = vunpack.c.l.s4 1966171168
        %v4409 = vunpack.c.0.s8 %v4408
        %v4410 = vlaneseq
        %v4411 = vshrl.u32 %v4410, 7
        %v4412 = vsub.s32 %v4409, %v4411
        %v4413 = vrot.slane %v4345, %v4412
        %v4415 = vunpack.c.l.s4 1966171168
        %v4416 = vunpack.c.0.s8 %v4415
        %v4417 = vlaneseq
        %v4418 = vshrl.u32 %v4417, 7
        %v4419 = vsub.s32 %v4416, %v4418
        %v4420 = vrot.slane %v4413, %v4419
        %4421 = vrot.lane.b32.xlu0 %v4420, 81
        %v4422 = vpop.permute.xlu0 %4421
        %vm4424 = vcmp.ge.s32.totalorder %v4225, 81
        %vm4425 = vcmp.lt.s32.totalorder %v4225, 90
        %vm4426 = vmand %vm4424, %vm4425
        %4427 = vst.msk [vmem:[#allocation3] sm:$0x1] %vm4426, %v4422
        %4430 = vrot.lane.b32.xlu0 %v4211, 127
        %v4431 = vpop.permute.xlu0 %4430
        %4432 = vrot.lane.b32.xlu0 %v4212, 127
        %v4433 = vpop.permute.xlu0 %4432
        %v4436 = vmax.f32 %v4211, %v4431
        %v4437 = vmax.f32 %v4212, %v4433
        %v4440 = vrot.slane %v4436, 1
        %v4441 = vrot.slane %v4437, 1
        %v4442 = vsel %vm703, %v4440, %v4441
        %v4445 = vmax.f32 %v4436, %v4442
        %v4446 = vmax.f32 %v4437, %v4441
        %v4449 = vunpack.c.l.s4 1966171168
        %v4450 = vunpack.c.0.s8 %v4449
        %v4451 = vlaneseq
        %v4452 = vshrl.u32 %v4451, 7
        %v4453 = vsub.s32 %v4450, %v4452
        %v4454 = vrot.slane %v4445, %v4453
        %v4456 = vunpack.c.l.s4 1966171168
        %v4457 = vunpack.c.0.s8 %v4456
        %v4458 = vlaneseq
        %v4459 = vshrl.u32 %v4458, 7
        %v4460 = vsub.s32 %v4457, %v4459
        %v4461 = vrot.slane %v4454, %v4460
        %4462 = vrot.lane.b32.xlu0 %v4461, 90
        %v4463 = vpop.permute.xlu0 %4462
        %vm4465 = vcmp.ge.s32.totalorder %v4225, 90
        %vm4466 = vcmp.lt.s32.totalorder %v4225, 99
        %vm4467 = vmand %vm4465, %vm4466
        %4468 = vst.msk [vmem:[#allocation3] sm:$0x1] %vm4467, %v4463
        %v4469 = vcombine.high %v4461, %v4461
        %4470 = vrot.lane.b32.xlu0 %v4469, 99
        %v4471 = vpop.permute.xlu0 %4470
        %vm4473 = vcmp.ge.s32.totalorder %v4225, 99
        %vm4474 = vcmp.lt.s32.totalorder %v4225, 108
        %vm4475 = vmand %vm4473, %vm4474
        %4476 = vst.msk [vmem:[#allocation3] sm:$0x1] %vm4475, %v4471
        %v4477 = vcombine.high %v4445, %v4445
        %v4479 = vunpack.c.l.s4 1966171168
        %v4480 = vunpack.c.0.s8 %v4479
        %v4481 = vlaneseq
        %v4482 = vshrl.u32 %v4481, 7
        %v4483 = vsub.s32 %v4480, %v4482
        %v4484 = vrot.slane %v4477, %v4483
        %v4486 = vunpack.c.l.s4 1966171168
        %v4487 = vunpack.c.0.s8 %v4486
        %v4488 = vlaneseq
        %v4489 = vshrl.u32 %v4488, 7
        %v4490 = vsub.s32 %v4487, %v4489
        %v4491 = vrot.slane %v4484, %v4490
        %4492 = vrot.lane.b32.xlu0 %v4491, 108
        %v4493 = vpop.permute.xlu0 %4492
        %vm4495 = vcmp.ge.s32.totalorder %v4225, 108
        %vm4496 = vcmp.lt.s32.totalorder %v4225, 117
        %vm4497 = vmand %vm4495, %vm4496
        %4498 = vst.msk [vmem:[#allocation3] sm:$0x1] %vm4497, %v4493
        %v4499 = vcombine.high %v4491, %v4491
        %4500 = vrot.lane.b32.xlu0 %v4499, 117
        %v4501 = vpop.permute.xlu0 %4500
        %vm4503 = vcmp.ge.s32.totalorder %v4225, 117
        %vm4504 = vcmp.lt.s32.totalorder %v4225, 126
        %vm4505 = vmand %vm4503, %vm4504
        %4506 = vst.msk [vmem:[#allocation3] sm:$0x1] %vm4505, %v4501
        %v4509 = vunpack.c.l.s4 1966171168
        %v4510 = vunpack.c.0.s8 %v4509
        %v4511 = vlaneseq
        %v4512 = vshrl.u32 %v4511, 7
        %v4513 = vsub.s32 %v4510, %v4512
        %v4514 = vrot.slane %v4446, %v4513
        %v4516 = vunpack.c.l.s4 1966171168
        %v4517 = vunpack.c.0.s8 %v4516
        %v4518 = vlaneseq
        %v4519 = vshrl.u32 %v4518, 7
        %v4520 = vsub.s32 %v4517, %v4519
        %v4521 = vrot.slane %v4514, %v4520
        %4522 = vrot.lane.b32.xlu0 %v4521, 126
        %v4523 = vpop.permute.xlu0 %4522
        %v4524 = vrot.slane %v4523, 7
        %vm4525 = vcmask 1031168
        %v4526 = vsel %vm4525, %v4524, %v4523
        %vm4528 = vcmp.ge.s32.totalorder %v4225, 126
        %vm4529 = vcmp.lt.s32.totalorder %v4225, 135
        %vm4530 = vmand %vm4528, %vm4529
        %4531 = vst.msk [vmem:[#allocation3] sm:$0x3] %vm4530, %v4526
        %4534 = vrot.lane.b32.xlu0 %v4217, 127
        %v4535 = vpop.permute.xlu0 %4534
        %4536 = vrot.lane.b32.xlu0 %v4218, 127
        %v4537 = vpop.permute.xlu0 %4536
        %v4540 = vmax.f32 %v4217, %v4535
        %v4541 = vmax.f32 %v4218, %v4537
        %v4544 = vrot.slane %v4540, 1
        %v4545 = vrot.slane %v4541, 1
        %v4546 = vsel %vm703, %v4544, %v4545
        %v4549 = vmax.f32 %v4540, %v4546
        %v4550 = vmax.f32 %v4541, %v4545
        %v4553 = vunpack.c.l.s4 1966171168
        %v4554 = vunpack.c.0.s8 %v4553
        %v4555 = vlaneseq
        %v4556 = vshrl.u32 %v4555, 7
        %v4557 = vsub.s32 %v4554, %v4556
        %v4558 = vrot.slane %v4549, %v4557
        %v4560 = vunpack.c.l.s4 1966171168
        %v4561 = vunpack.c.0.s8 %v4560
        %v4562 = vlaneseq
        %v4563 = vshrl.u32 %v4562, 7
        %v4564 = vsub.s32 %v4561, %v4563
        %v4565 = vrot.slane %v4558, %v4564
        %4566 = vrot.lane.b32.xlu0 %v4565, 7
        %v4567 = vpop.permute.xlu0 %4566
        %vm4569 = vcmp.ge.s32.totalorder %v4225, 7
        %vm4570 = vcmp.lt.s32.totalorder %v4225, 16
        %vm4571 = vmand %vm4569, %vm4570
        %4572 = vst.msk [vmem:[#allocation3 + $0x1] sm:$0x1] %vm4571, %v4567
        %v4573 = vcombine.high %v4565, %v4565
        %4574 = vrot.lane.b32.xlu0 %v4573, 16
        %v4575 = vpop.permute.xlu0 %4574
        %vm4577 = vcmp.ge.s32.totalorder %v4225, 16
        %vm4578 = vcmp.lt.s32.totalorder %v4225, 25
        %vm4579 = vmand %vm4577, %vm4578
        %4580 = vst.msk [vmem:[#allocation3 + $0x1] sm:$0x1] %vm4579, %v4575
        %v4581 = vcombine.high %v4549, %v4549
        %v4583 = vunpack.c.l.s4 1966171168
        %v4584 = vunpack.c.0.s8 %v4583
        %v4585 = vlaneseq
        %v4586 = vshrl.u32 %v4585, 7
        %v4587 = vsub.s32 %v4584, %v4586
        %v4588 = vrot.slane %v4581, %v4587
        %v4590 = vunpack.c.l.s4 1966171168
        %v4591 = vunpack.c.0.s8 %v4590
        %v4592 = vlaneseq
        %v4593 = vshrl.u32 %v4592, 7
        %v4594 = vsub.s32 %v4591, %v4593
        %v4595 = vrot.slane %v4588, %v4594
        %4596 = vrot.lane.b32.xlu0 %v4595, 25
        %v4597 = vpop.permute.xlu0 %4596
        %vm4599 = vcmp.ge.s32.totalorder %v4225, 25
        %vm4600 = vcmp.lt.s32.totalorder %v4225, 34
        %vm4601 = vmand %vm4599, %vm4600
        %4602 = vst.msk [vmem:[#allocation3 + $0x1] sm:$0x1] %vm4601, %v4597
        %v4603 = vcombine.high %v4595, %v4595
        %4604 = vrot.lane.b32.xlu0 %v4603, 34
        %v4605 = vpop.permute.xlu0 %4604
        %vm4607 = vcmp.ge.s32.totalorder %v4225, 34
        %vm4608 = vcmp.lt.s32.totalorder %v4225, 43
        %vm4609 = vmand %vm4607, %vm4608
        %4610 = vst.msk [vmem:[#allocation3 + $0x1] sm:$0x1] %vm4609, %v4605
        %v4613 = vunpack.c.l.s4 1966171168
        %v4614 = vunpack.c.0.s8 %v4613
        %v4615 = vlaneseq
        %v4616 = vshrl.u32 %v4615, 7
        %v4617 = vsub.s32 %v4614, %v4616
        %v4618 = vrot.slane %v4550, %v4617
        %v4620 = vunpack.c.l.s4 1966171168
        %v4621 = vunpack.c.0.s8 %v4620
        %v4622 = vlaneseq
        %v4623 = vshrl.u32 %v4622, 7
        %v4624 = vsub.s32 %v4621, %v4623
        %v4625 = vrot.slane %v4618, %v4624
        %4626 = vrot.lane.b32.xlu0 %v4625, 43
        %v4627 = vpop.permute.xlu0 %4626
        %vm4629 = vcmp.ge.s32.totalorder %v4225, 43
        %vm4630 = vcmp.lt.s32.totalorder %v4225, 52
        %vm4631 = vmand %vm4629, %vm4630
        %4632 = vst.msk [vmem:[#allocation3 + $0x1] sm:$0x1] %vm4631, %v4627
        %4635 = vrot.lane.b32.xlu0 %v4223, 127
        %v4636 = vpop.permute.xlu0 %4635
        %4637 = vrot.lane.b32.xlu0 %v4224, 127
        %v4638 = vpop.permute.xlu0 %4637
        %v4641 = vmax.f32 %v4223, %v4636
        %v4642 = vmax.f32 %v4224, %v4638
        %v4645 = vrot.slane %v4641, 1
        %v4646 = vrot.slane %v4642, 1
        %v4647 = vsel %vm703, %v4645, %v4646
        %v4650 = vmax.f32 %v4641, %v4647
        %v4651 = vmax.f32 %v4642, %v4646
        %v4654 = vunpack.c.l.s4 1966171168
        %v4655 = vunpack.c.0.s8 %v4654
        %v4656 = vlaneseq
        %v4657 = vshrl.u32 %v4656, 7
        %v4658 = vsub.s32 %v4655, %v4657
        %v4659 = vrot.slane %v4650, %v4658
        %v4661 = vunpack.c.l.s4 1966171168
        %v4662 = vunpack.c.0.s8 %v4661
        %v4663 = vlaneseq
        %v4664 = vshrl.u32 %v4663, 7
        %v4665 = vsub.s32 %v4662, %v4664
        %v4666 = vrot.slane %v4659, %v4665
        %4667 = vrot.lane.b32.xlu0 %v4666, 52
        %v4668 = vpop.permute.xlu0 %4667
        %vm4670 = vcmp.ge.s32.totalorder %v4225, 52
        %vm4671 = vcmp.lt.s32.totalorder %v4225, 61
        %vm4672 = vmand %vm4670, %vm4671
        %4673 = vst.msk [vmem:[#allocation3 + $0x1] sm:$0x1] %vm4672, %v4668
        %v4674 = vcombine.high %v4666, %v4666
        %4675 = vrot.lane.b32.xlu0 %v4674, 61
        %v4676 = vpop.permute.xlu0 %4675
        %vm4678 = vcmp.ge.s32.totalorder %v4225, 61
        %vm4679 = vcmp.lt.s32.totalorder %v4225, 70
        %vm4680 = vmand %vm4678, %vm4679
        %4681 = vst.msk [vmem:[#allocation3 + $0x1] sm:$0x1] %vm4680, %v4676
        %v4682 = vcombine.high %v4650, %v4650
        %v4684 = vunpack.c.l.s4 1966171168
        %v4685 = vunpack.c.0.s8 %v4684
        %v4686 = vlaneseq
        %v4687 = vshrl.u32 %v4686, 7
        %v4688 = vsub.s32 %v4685, %v4687
        %v4689 = vrot.slane %v4682, %v4688
        %v4691 = vunpack.c.l.s4 1966171168
        %v4692 = vunpack.c.0.s8 %v4691
        %v4693 = vlaneseq
        %v4694 = vshrl.u32 %v4693, 7
        %v4695 = vsub.s32 %v4692, %v4694
        %v4696 = vrot.slane %v4689, %v4695
        %4697 = vrot.lane.b32.xlu0 %v4696, 70
        %v4698 = vpop.permute.xlu0 %4697
        %vm4700 = vcmp.ge.s32.totalorder %v4225, 70
        %vm4701 = vcmp.lt.s32.totalorder %v4225, 79
        %vm4702 = vmand %vm4700, %vm4701
        %4703 = vst.msk [vmem:[#allocation3 + $0x1] sm:$0x1] %vm4702, %v4698
        %v4704 = vcombine.high %v4696, %v4696
        %4705 = vrot.lane.b32.xlu0 %v4704, 79
        %v4706 = vpop.permute.xlu0 %4705
        %vm4708 = vcmp.ge.s32.totalorder %v4225, 79
        %vm4709 = vcmp.lt.s32.totalorder %v4225, 88
        %vm4710 = vmand %vm4708, %vm4709
        %4711 = vst.msk [vmem:[#allocation3 + $0x1] sm:$0x1] %vm4710, %v4706
        %v4714 = vunpack.c.l.s4 1966171168
        %v4715 = vunpack.c.0.s8 %v4714
        %v4716 = vlaneseq
        %v4717 = vshrl.u32 %v4716, 7
        %v4718 = vsub.s32 %v4715, %v4717
        %v4719 = vrot.slane %v4651, %v4718
        %v4721 = vunpack.c.l.s4 1966171168
        %v4722 = vunpack.c.0.s8 %v4721
        %v4723 = vlaneseq
        %v4724 = vshrl.u32 %v4723, 7
        %v4725 = vsub.s32 %v4722, %v4724
        %v4726 = vrot.slane %v4719, %v4725
        %4727 = vrot.lane.b32.xlu0 %v4726, 88
        %v4728 = vpop.permute.xlu0 %4727
        %vm4730 = vcmp.ge.s32.totalorder %v4225, 88
        %vm4731 = vcmp.lt.s32.totalorder %v4225, 97
        %vm4732 = vmand %vm4730, %vm4731
        %4733 = vst.msk [vmem:[#allocation3 + $0x1] sm:$0x1] %vm4732, %v4728
        %v4734 = vld [vmem:[#allocation3] sm:$0x3]
        %v4735 = vld [vmem:[%s5] sm:$0xff]
        %v4736 = vld [vmem:[%s5 + $0x8] sm:$0xff]
        %v4737 = vld [vmem:[%s5 + $0x10] sm:$0xff]
        %v4738 = vld [vmem:[%s5 + $0x18] sm:$0xff]
        %v4739 = vld [vmem:[%s5 + $0x20] sm:$0xff]
        %v4740 = vld [vmem:[%s5 + $0x28] sm:$0xff]
        %v4741 = vld [vmem:[%s5 + $0x30] sm:$0xff]
        %v4742 = vld [vmem:[%s5 + $0x38] sm:$0xff]
        %v4743 = vld [vmem:[%s5 + $0x40] sm:$0xff]
        %v4744 = vld [vmem:[%s5 + $0x48] sm:$0xff]
        %v4745 = vld [vmem:[%s5 + $0x50] sm:$0xff]
        %v4746 = vld [vmem:[%s5 + $0x58] sm:$0xff]
        %v4747 = vld [vmem:[%s5 + $0x60] sm:$0xff]
        %v4748 = vld [vmem:[%s5 + $0x68] sm:$0xff]
        %v4749 = vld [vmem:[%s5 + $0x70] sm:$0xff]
        %v4750 = vld [vmem:[%s5 + $0x78] sm:$0xff]
        %v4751 = vld [vmem:[%s5 + $0x80] sm:$0xff]
        %v4752 = vld [vmem:[%s5 + $0x88] sm:$0xff]
        %v4753 = vld [vmem:[%s5 + $0x90] sm:$0xff]
        %v4754 = vld [vmem:[%s5 + $0x98] sm:$0xff]
        %v4755 = vld [vmem:[%s5 + $0xa0] sm:$0xff]
        %v4756 = vld [vmem:[%s5 + $0xa8] sm:$0xff]
        %v4757 = vld [vmem:[%s5 + $0xb0] sm:$0xff]
        %v4758 = vld [vmem:[%s5 + $0xb8] sm:$0xff]
        %v4759 = vld [vmem:[%s5 + $0xc0] sm:$0xff]
        %v4760 = vld [vmem:[%s5 + $0xc8] sm:$0xff]
        %v4761 = vld [vmem:[%s5 + $0xd0] sm:$0xff]
        %v4762 = vld [vmem:[%s5 + $0xd8] sm:$0xff]
        %v4763 = vld [vmem:[%s5 + $0xe0] sm:$0xff]
        %v4764 = vld [vmem:[%s5 + $0xe8] sm:$0xff]
        %v4765 = vld [vmem:[%s5 + $0xf0] sm:$0xff]
        %v4766 = vld [vmem:[%s5 + $0xf8] sm:$0xff]
        %v4767 = vld [vmem:[%s5 + $0x100] sm:$0xff]
        %v4768 = vld [vmem:[%s5 + $0x108] sm:$0xff]
        %v4769 = vld [vmem:[%s5 + $0x110] sm:$0xff]
        %v4770 = vld [vmem:[%s5 + $0x118] sm:$0xff]
        %v4771 = vld [vmem:[%s5 + $0x120] sm:$0xff]
        %v4772 = vld [vmem:[%s5 + $0x128] sm:$0xff]
        %v4773 = vld [vmem:[%s5 + $0x130] sm:$0xff]
        %v4774 = vld [vmem:[%s5 + $0x138] sm:$0xff]
        %v4775 = vld [vmem:[%s5 + $0x140] sm:$0xff]
        %v4776 = vld [vmem:[%s5 + $0x148] sm:$0xff]
        %v4777 = vld [vmem:[%s5 + $0x150] sm:$0xff]
        %v4778 = vld [vmem:[%s5 + $0x158] sm:$0xff]
        %v4779 = vld [vmem:[%s5 + $0x160] sm:$0xff]
        %v4780 = vld [vmem:[%s5 + $0x168] sm:$0xff]
        %v4781 = vld [vmem:[%s5 + $0x170] sm:$0xff]
        %v4782 = vld [vmem:[%s5 + $0x178] sm:$0xff]
        %v4783 = vld [vmem:[%s5 + $0x180] sm:$0xff]
        %v4784 = vld [vmem:[%s5 + $0x188] sm:$0xff]
        %v4785 = vld [vmem:[%s5 + $0x190] sm:$0xff]
        %v4786 = vld [vmem:[%s5 + $0x198] sm:$0xff]
        %v4787 = vld [vmem:[%s5 + $0x1a0] sm:$0xff]
        %v4788 = vld [vmem:[%s5 + $0x1a8] sm:$0xff]
        %v4789 = vld [vmem:[%s5 + $0x1b0] sm:$0xff]
        %v4790 = vld [vmem:[%s5 + $0x1b8] sm:$0xff]
        %v4791 = vld [vmem:[%s5 + $0x1c0] sm:$0xff]
        %v4792 = vld [vmem:[%s5 + $0x1c8] sm:$0xff]
        %v4793 = vld [vmem:[%s5 + $0x1d0] sm:$0xff]
        %v4794 = vld [vmem:[%s5 + $0x1d8] sm:$0xff]
        %v4795 = vld [vmem:[%s5 + $0x1e0] sm:$0xff]
        %v4796 = vld [vmem:[%s5 + $0x1e8] sm:$0xff]
        %v4797 = vld [vmem:[%s5 + $0x1f0] sm:$0xff]
        %v4798 = vld [vmem:[%s5 + $0x1f8] sm:$0xff]
        %v4799 = vld [vmem:[%s6] sm:$0x3]
        %v4801 = vlaneseq
        %v4802 = vshrl.u32 %v4801, 7
        %v4803 = vsub.s32 0, %v4802
        %v4804 = vrot.slane %v4734, %v4803
        %v4805 = vlaneseq
        %v4806 = vshrl.u32 %v4805, 7
        %v4807 = vsub.s32 1, %v4806
        %v4808 = vrot.slane %v4734, %v4807
        %v4812 = vlaneseq
        %v4813 = vshrl.u32 %v4812, 7
        %v4814 = vsub.s32 0, %v4813
        %v4815 = vrot.slane %v4799, %v4814
        %v4816 = vlaneseq
        %v4817 = vshrl.u32 %v4816, 7
        %v4818 = vsub.s32 1, %v4817
        %v4819 = vrot.slane %v4799, %v4818
        %4822 = vmatprep.subr.mxu0 %v4736
        %4823 = vmatpush1.msra.mxu0 %v4735
        %4824 = vmatprep.subr.mxu0 %v4738
        %4825 = vmatpush1.msra.mxu0 %v4737
        %4826 = vmatprep.subr.mxu0 %v4740
        %4827 = vmatpush1.msra.mxu0 %v4739
        %4828 = vmatprep.subr.mxu0 %v4742
        %4829 = vmatpush1.msra.mxu0 %v4741
        %4830 = vmatprep.subr.mxu0 %v4744
        %4831 = vmatpush1.msra.mxu0 %v4743
        %4832 = vmatprep.subr.mxu0 %v4746
        %4833 = vmatpush1.msra.mxu0 %v4745
        %4834 = vmatprep.subr.mxu0 %v4748
        %4835 = vmatpush1.msra.mxu0 %v4747
        %4836 = vmatprep.subr.mxu0 %v4750
        %4837 = vmatpush1.msra.mxu0 %v4749
        %4838 = vmatprep.subr.mxu0 %v4752
        %4839 = vmatpush1.msra.mxu0 %v4751
        %4840 = vmatprep.subr.mxu0 %v4754
        %4841 = vmatpush1.msra.mxu0 %v4753
        %4842 = vmatprep.subr.mxu0 %v4756
        %4843 = vmatpush1.msra.mxu0 %v4755
        %4844 = vmatprep.subr.mxu0 %v4758
        %4845 = vmatpush1.msra.mxu0 %v4757
        %4846 = vmatprep.subr.mxu0 %v4760
        %4847 = vmatpush1.msra.mxu0 %v4759
        %4848 = vmatprep.subr.mxu0 %v4762
        %4849 = vmatpush1.msra.mxu0 %v4761
        %4850 = vmatprep.subr.mxu0 %v4764
        %4851 = vmatpush1.msra.mxu0 %v4763
        %4852 = vmatprep.subr.mxu0 %v4766
        %4853 = vmatpush1.msra.mxu0 %v4765
        %4854 = vmatprep.subr.mxu0 %v4768
        %4855 = vmatpush1.msra.mxu0 %v4767
        %4856 = vmatprep.subr.mxu0 %v4770
        %4857 = vmatpush1.msra.mxu0 %v4769
        %4858 = vmatprep.subr.mxu0 %v4772
        %4859 = vmatpush1.msra.mxu0 %v4771
        %4860 = vmatprep.subr.mxu0 %v4774
        %4861 = vmatpush1.msra.mxu0 %v4773
        %4862 = vmatprep.subr.mxu0 %v4776
        %4863 = vmatpush1.msra.mxu0 %v4775
        %4864 = vmatprep.subr.mxu0 %v4778
        %4865 = vmatpush1.msra.mxu0 %v4777
        %4866 = vmatprep.subr.mxu0 %v4780
        %4867 = vmatpush1.msra.mxu0 %v4779
        %4868 = vmatprep.subr.mxu0 %v4782
        %4869 = vmatpush1.msra.mxu0 %v4781
        %4870 = vmatprep.subr.mxu0 %v4784
        %4871 = vmatpush1.msra.mxu0 %v4783
        %4872 = vmatprep.subr.mxu0 %v4786
        %4873 = vmatpush1.msra.mxu0 %v4785
        %4874 = vmatprep.subr.mxu0 %v4788
        %4875 = vmatpush1.msra.mxu0 %v4787
        %4876 = vmatprep.subr.mxu0 %v4790
        %4877 = vmatpush1.msra.mxu0 %v4789
        %4878 = vmatprep.subr.mxu0 %v4792
        %4879 = vmatpush1.msra.mxu0 %v4791
        %4880 = vmatprep.subr.mxu0 %v4794
        %4881 = vmatpush1.msra.mxu0 %v4793
        %4882 = vmatprep.subr.mxu0 %v4796
        %4883 = vmatpush1.msra.mxu0 %v4795
        %4884 = vmatprep.subr.mxu0 %v4798
        %4885 = vmatpush1.msra.mxu0 %v4797
        %4886 = vmatprep.mubr.f32.mxu0 %v4808
        %4887 = vmatmul.mubr.f32.gmra.mrb[0].mxu0 %v4804
        %v4888 = vpop.f32.mrb[0].mxu0
        %v4889 = vadd.f32 %v4815, %v4888
        %v4890 = vpop.f32.mrb[0].mxu0
        %v4891 = vadd.f32 %v4819, %v4890
        %4892 = vdwg.mxu0
        %v4893 = vmax.f32 %v4889, 0.0
        %v4894 = vmax.f32 %v4891, 0.0
        %v4895 = vld [vmem:[%s7] sm:$0xff]
        %v4896 = vld [vmem:[%s7 + $0x8] sm:$0xff]
        %v4897 = vld [vmem:[%s7 + $0x10] sm:$0xff]
        %v4898 = vld [vmem:[%s7 + $0x18] sm:$0xff]
        %v4899 = vld [vmem:[%s7 + $0x20] sm:$0xff]
        %v4900 = vld [vmem:[%s7 + $0x28] sm:$0xff]
        %v4901 = vld [vmem:[%s7 + $0x30] sm:$0xff]
        %v4902 = vld [vmem:[%s7 + $0x38] sm:$0xff]
        %v4903 = vld [vmem:[%s7 + $0x40] sm:$0xff]
        %v4904 = vld [vmem:[%s7 + $0x48] sm:$0xff]
        %v4905 = vld [vmem:[%s7 + $0x50] sm:$0xff]
        %v4906 = vld [vmem:[%s7 + $0x58] sm:$0xff]
        %v4907 = vld [vmem:[%s7 + $0x60] sm:$0xff]
        %v4908 = vld [vmem:[%s7 + $0x68] sm:$0xff]
        %v4909 = vld [vmem:[%s7 + $0x70] sm:$0xff]
        %v4910 = vld [vmem:[%s7 + $0x78] sm:$0xff]
        %v4911 = vld [vmem:[%s7 + $0x80] sm:$0xff]
        %v4912 = vld [vmem:[%s7 + $0x88] sm:$0xff]
        %v4913 = vld [vmem:[%s7 + $0x90] sm:$0xff]
        %v4914 = vld [vmem:[%s7 + $0x98] sm:$0xff]
        %v4915 = vld [vmem:[%s7 + $0xa0] sm:$0xff]
        %v4916 = vld [vmem:[%s7 + $0xa8] sm:$0xff]
        %v4917 = vld [vmem:[%s7 + $0xb0] sm:$0xff]
        %v4918 = vld [vmem:[%s7 + $0xb8] sm:$0xff]
        %v4919 = vld [vmem:[%s7 + $0xc0] sm:$0xff]
        %v4920 = vld [vmem:[%s7 + $0xc8] sm:$0xff]
        %v4921 = vld [vmem:[%s7 + $0xd0] sm:$0xff]
        %v4922 = vld [vmem:[%s7 + $0xd8] sm:$0xff]
        %v4923 = vld [vmem:[%s7 + $0xe0] sm:$0xff]
        %v4924 = vld [vmem:[%s7 + $0xe8] sm:$0xff]
        %v4925 = vld [vmem:[%s7 + $0xf0] sm:$0xff]
        %v4926 = vld [vmem:[%s7 + $0xf8] sm:$0xff]
        %v4927 = vld [vmem:[%s8] sm:$0x1]
        %4928 = vmatprep.subr.mxu0 0.0
        %4929 = vmatpush1.msra.mxu0 %v4895
        %4930 = vmatprep.subr.mxu0 0.0
        %4931 = vmatpush1.msra.mxu0 %v4896
        %4932 = vmatprep.subr.mxu0 0.0
        %4933 = vmatpush1.msra.mxu0 %v4897
        %4934 = vmatprep.subr.mxu0 0.0
        %4935 = vmatpush1.msra.mxu0 %v4898
        %4936 = vmatprep.subr.mxu0 0.0
        %4937 = vmatpush1.msra.mxu0 %v4899
        %4938 = vmatprep.subr.mxu0 0.0
        %4939 = vmatpush1.msra.mxu0 %v4900
        %4940 = vmatprep.subr.mxu0 0.0
        %4941 = vmatpush1.msra.mxu0 %v4901
        %4942 = vmatprep.subr.mxu0 0.0
        %4943 = vmatpush1.msra.mxu0 %v4902
        %4944 = vmatprep.subr.mxu0 0.0
        %4945 = vmatpush1.msra.mxu0 %v4903
        %4946 = vmatprep.subr.mxu0 0.0
        %4947 = vmatpush1.msra.mxu0 %v4904
        %4948 = vmatprep.subr.mxu0 0.0
        %4949 = vmatpush1.msra.mxu0 %v4905
        %4950 = vmatprep.subr.mxu0 0.0
        %4951 = vmatpush1.msra.mxu0 %v4906
        %4952 = vmatprep.subr.mxu0 0.0
        %4953 = vmatpush1.msra.mxu0 %v4907
        %4954 = vmatprep.subr.mxu0 0.0
        %4955 = vmatpush1.msra.mxu0 %v4908
        %4956 = vmatprep.subr.mxu0 0.0
        %4957 = vmatpush1.msra.mxu0 %v4909
        %4958 = vmatprep.subr.mxu0 0.0
        %4959 = vmatpush1.msra.mxu0 %v4910
        %4960 = vmatprep.subr.mxu0 0.0
        %4961 = vmatpush1.msra.mxu0 %v4911
        %4962 = vmatprep.subr.mxu0 0.0
        %4963 = vmatpush1.msra.mxu0 %v4912
        %4964 = vmatprep.subr.mxu0 0.0
        %4965 = vmatpush1.msra.mxu0 %v4913
        %4966 = vmatprep.subr.mxu0 0.0
        %4967 = vmatpush1.msra.mxu0 %v4914
        %4968 = vmatprep.subr.mxu0 0.0
        %4969 = vmatpush1.msra.mxu0 %v4915
        %4970 = vmatprep.subr.mxu0 0.0
        %4971 = vmatpush1.msra.mxu0 %v4916
        %4972 = vmatprep.subr.mxu0 0.0
        %4973 = vmatpush1.msra.mxu0 %v4917
        %4974 = vmatprep.subr.mxu0 0.0
        %4975 = vmatpush1.msra.mxu0 %v4918
        %4976 = vmatprep.subr.mxu0 0.0
        %4977 = vmatpush1.msra.mxu0 %v4919
        %4978 = vmatprep.subr.mxu0 0.0
        %4979 = vmatpush1.msra.mxu0 %v4920
        %4980 = vmatprep.subr.mxu0 0.0
        %4981 = vmatpush1.msra.mxu0 %v4921
        %4982 = vmatprep.subr.mxu0 0.0
        %4983 = vmatpush1.msra.mxu0 %v4922
        %4984 = vmatprep.subr.mxu0 0.0
        %4985 = vmatpush1.msra.mxu0 %v4923
        %4986 = vmatprep.subr.mxu0 0.0
        %4987 = vmatpush1.msra.mxu0 %v4924
        %4988 = vmatprep.subr.mxu0 0.0
        %4989 = vmatpush1.msra.mxu0 %v4925
        %4990 = vmatprep.subr.mxu0 0.0
        %4991 = vmatpush1.msra.mxu0 %v4926
        %4992 = vmatprep.mubr.f32.mxu0 %v4894
        %4993 = vmatmul.mubr.f32.gmra.mrb[0].mxu0 %v4893
        %v4994 = vpop.f32.mrb[0].mxu0
        %v4995 = vadd.f32 %v4927, %v4994
        %v4996 = vpop.f32.mrb[0].mxu0
        %4997 = vdwg.mxu0
        %v4998 = vmax.f32 %v4995, 0.0
        %v4999 = vld [vmem:[%s9] sm:$0xff]
        %v5000 = vld [vmem:[%s9 + $0x8] sm:$0xff]
        %v5001 = vld [vmem:[%s9 + $0x10] sm:$0xff]
        %v5002 = vld [vmem:[%s9 + $0x18] sm:$0xff]
        %v5003 = vld [vmem:[%s9 + $0x20] sm:$0xff]
        %v5004 = vld [vmem:[%s9 + $0x28] sm:$0xff]
        %v5005 = vld [vmem:[%s9 + $0x30] sm:$0xff]
        %v5006 = vld [vmem:[%s9 + $0x38] sm:$0xff]
        %v5007 = vld [vmem:[%s9 + $0x40] sm:$0xff]
        %v5008 = vld [vmem:[%s9 + $0x48] sm:$0xff]
        %v5009 = vld [vmem:[%s9 + $0x50] sm:$0xff]
        %v5010 = vld [vmem:[%s9 + $0x58] sm:$0xff]
        %v5011 = vld [vmem:[%s9 + $0x60] sm:$0xff]
        %v5012 = vld [vmem:[%s9 + $0x68] sm:$0xff]
        %v5013 = vld [vmem:[%s9 + $0x70] sm:$0xff]
        %v5014 = vld [vmem:[%s9 + $0x78] sm:$0xff]
        %v5015 = vld [vmem:[%s10] sm:$0x1]
        %5016 = vmatprep.subr.mxu0 0.0
        %5017 = vmatpush1.msra.mxu0 %v4999
        %5018 = vmatprep.subr.mxu0 0.0
        %5019 = vmatpush1.msra.mxu0 %v5000
        %5020 = vmatprep.subr.mxu0 0.0
        %5021 = vmatpush1.msra.mxu0 %v5001
        %5022 = vmatprep.subr.mxu0 0.0
        %5023 = vmatpush1.msra.mxu0 %v5002
        %5024 = vmatprep.subr.mxu0 0.0
        %5025 = vmatpush1.msra.mxu0 %v5003
        %5026 = vmatprep.subr.mxu0 0.0
        %5027 = vmatpush1.msra.mxu0 %v5004
        %5028 = vmatprep.subr.mxu0 0.0
        %5029 = vmatpush1.msra.mxu0 %v5005
        %5030 = vmatprep.subr.mxu0 0.0
        %5031 = vmatpush1.msra.mxu0 %v5006
        %5032 = vmatprep.subr.mxu0 0.0
        %5033 = vmatpush1.msra.mxu0 %v5007
        %5034 = vmatprep.subr.mxu0 0.0
        %5035 = vmatpush1.msra.mxu0 %v5008
        %5036 = vmatprep.subr.mxu0 0.0
        %5037 = vmatpush1.msra.mxu0 %v5009
        %5038 = vmatprep.subr.mxu0 0.0
        %5039 = vmatpush1.msra.mxu0 %v5010
        %5040 = vmatprep.subr.mxu0 0.0
        %5041 = vmatpush1.msra.mxu0 %v5011
        %5042 = vmatprep.subr.mxu0 0.0
        %5043 = vmatpush1.msra.mxu0 %v5012
        %5044 = vmatprep.subr.mxu0 0.0
        %5045 = vmatpush1.msra.mxu0 %v5013
        %5046 = vmatprep.subr.mxu0 0.0
        %5047 = vmatpush1.msra.mxu0 %v5014
        %5048 = vmatprep.subr.mxu0 0.0
        %5049 = vmatpush1.msra.mxu0 0.0
        %5050 = vmatprep.subr.mxu0 0.0
        %5051 = vmatpush1.msra.mxu0 0.0
        %5052 = vmatprep.subr.mxu0 0.0
        %5053 = vmatpush1.msra.mxu0 0.0
        %5054 = vmatprep.subr.mxu0 0.0
        %5055 = vmatpush1.msra.mxu0 0.0
        %5056 = vmatprep.subr.mxu0 0.0
        %5057 = vmatpush1.msra.mxu0 0.0
        %5058 = vmatprep.subr.mxu0 0.0
        %5059 = vmatpush1.msra.mxu0 0.0
        %5060 = vmatprep.subr.mxu0 0.0
        %5061 = vmatpush1.msra.mxu0 0.0
        %5062 = vmatprep.subr.mxu0 0.0
        %5063 = vmatpush1.msra.mxu0 0.0
        %5064 = vmatprep.subr.mxu0 0.0
        %5065 = vmatpush1.msra.mxu0 0.0
        %5066 = vmatprep.subr.mxu0 0.0
        %5067 = vmatpush1.msra.mxu0 0.0
        %5068 = vmatprep.subr.mxu0 0.0
        %5069 = vmatpush1.msra.mxu0 0.0
        %5070 = vmatprep.subr.mxu0 0.0
        %5071 = vmatpush1.msra.mxu0 0.0
        %5072 = vmatprep.subr.mxu0 0.0
        %5073 = vmatpush1.msra.mxu0 0.0
        %5074 = vmatprep.subr.mxu0 0.0
        %5075 = vmatpush1.msra.mxu0 0.0
        %5076 = vmatprep.subr.mxu0 0.0
        %5077 = vmatpush1.msra.mxu0 0.0
        %5078 = vmatprep.subr.mxu0 0.0
        %5079 = vmatpush1.msra.mxu0 0.0
        %5080 = vmatprep.mubr.f32.mxu0 0.0
        %5081 = vmatmul.mubr.f32.gmra.mrb[0].mxu0 %v4998
        %v5082 = vpop.f32.mrb[0].mxu0
        %v5083 = vadd.f32 %v5015, %v5082
        %v5084 = vpop.f32.mrb[0].mxu0
        %5085 = vdwg.mxu0
        %5086 = vst [vmem:[%s436] sm:$0x1] %v4998
        %5087 = vst [vmem:[%s436 + $0x1] sm:$0x1] %v5083
        %p5088 = scmp.lt.s32.totalorder %s25, 1
        %s5089 = scalar_select %p5088, %s25, 1
        %s5090 = smul.addr %s5089, 2
        %s5091 = scalar_lea.vmem %s11, %s5090
        // Predicated region
        $region81: #{fmnist_cnn_forward.1} parent=63 // pred_check
          %p5092 = pneg %p279
        $region82: #{fmnist_cnn_forward.1} parent=63 // pred_check_branch
          %5094 = sbr.rel (%p5092) target = $region84
        $region83: #{fmnist_cnn_forward.1} parent=63 // pred_region
          _
        $region84: #{fmnist_cnn_forward.1} parent=63 // pred_fallthru
          _
      $region64: #{fmnist_cnn_forward.1} parent=5 // pred_fallthru
        _
      %p5095 = scmp.le.s32.totalorder 2, %s20
      // Predicated region
      $region85: #{fmnist_cnn_forward.1} parent=5 // pred_check
        %p5096 = pneg %p5095
      $region86: #{fmnist_cnn_forward.1} parent=5 // pred_check_branch
        %5098 = sbr.rel (%p5096) target = $region88
      $region87: #{fmnist_cnn_forward.1} parent=5 // pred_region
        %s5099 = ssub.s32 %s20, 2
        // Predicated region
        $region89: #{fmnist_cnn_forward.1} parent=87 // pred_check
          %p5100 = pneg %p285
        $region90: #{fmnist_cnn_forward.1} parent=87 // pred_check_branch
          %5102 = sbr.rel (%p5100) target = $region92
        $region91: #{fmnist_cnn_forward.1} parent=87 // pred_region
          %p5103 = scmp.lt.s32.totalorder %s26, 1
          %s5104 = scalar_select %p5103, %s26, 1
          %s5105 = smul.addr %s5104, 2
          %s5106 = scalar_lea.vmem %s11, %s5105
        $region92: #{fmnist_cnn_forward.1} parent=87 // pred_fallthru
          _
      $region88: #{fmnist_cnn_forward.1} parent=5 // pred_fallthru
        _
    $region6: #{fmnist_cnn_forward.1} parent=1 // loop_footer
      %s24 = sadd.s32 1, %s20
    $region7: #{fmnist_cnn_forward.1} parent=1 // loop_footer_branch
      %19 = sbr.rel target = $region3
    $region8: #{fmnist_cnn_forward.1} parent=1 // loop_exit
      _
    %5107 = vsyncpa [#allocation5], 1
    %s5108 = scalar_lea.sflag [#allocation5], 1
    %5109 = vsyncpa %s5108, 1
    %5110 = vsyncpa [#allocation7], 1
    %5111 = vsyncpa [#allocation10], 1

</llo_original>
